<compile_context>
chip_gen: v7x
topology: tpu7x:2x2x1
jax: 0.10.0
libtpu: 0.0.40
codegen_flags: <defaults>
</compile_context>

<pallas_src>
import functools

import jax
import jax.numpy as jnp
from jax.experimental import pallas as pl
from jax.experimental.pallas import tpu as pltpu


LANE = 128
COMPUTE_DTYPE = jnp.bfloat16      # MXU-native inputs; accumulation stays f32
ACT_DTYPE = jnp.bfloat16          # activations between layers


def _round_up(x, m):
    return (x + m - 1) // m * m


def _pick_div_tile(dim, candidates):
    for c in candidates:
        if dim % c == 0:
            return c
    return dim


def _vmem_budgets():
    """Generation-dependent VMEM limits (v7x has 64 MiB/TC, v5e/v6e 128 MiB)."""
    try:
        kind = jax.devices()[0].device_kind.lower()
    except Exception:  # pragma: no cover - defensive
        kind = ""
    if "v7" in kind:
        return 48 * 1024 * 1024, 12 * 1024 * 1024
    return 96 * 1024 * 1024, 24 * 1024 * 1024


VMEM_LIMIT_BYTES, VMEM_TILE_BUDGET = _vmem_budgets()


# ----------------------------------------------------------------------------
# Kernel A: tiled fused matmul + BatchNorm (+ residual) (+ ReLU)
#           (1x1 convs, shortcut conv, 7x7 stem via tap-folded contraction)
# ----------------------------------------------------------------------------
def _matmul_bn_kernel(x_ref, w_ref, s_ref, b_ref, o_ref, acc_ref, *, relu):
    k = pl.program_id(2)

    @pl.when(k == 0)
    def _init():
        acc_ref[...] = jnp.zeros_like(acc_ref)

    acc_ref[...] += jnp.dot(x_ref[...], w_ref[...],
                            preferred_element_type=jnp.float32)

    @pl.when(k == pl.num_programs(2) - 1)
    def _finalize():
        y = acc_ref[...] * s_ref[...] + b_ref[...]
        if relu:
            y = jnp.maximum(y, 0.0)
        o_ref[...] = y.astype(o_ref.dtype)


def _matmul_bn_res_kernel(x_ref, w_ref, s_ref, b_ref, r_ref, o_ref, acc_ref, *, relu):
    k = pl.program_id(2)

    @pl.when(k == 0)
    def _init():
        acc_ref[...] = jnp.zeros_like(acc_ref)

    acc_ref[...] += jnp.dot(x_ref[...], w_ref[...],
                            preferred_element_type=jnp.float32)

    @pl.when(k == pl.num_programs(2) - 1)
    def _finalize():
        y = acc_ref[...] * s_ref[...] + b_ref[...] + r_ref[...].astype(jnp.float32)
        if relu:
            y = jnp.maximum(y, 0.0)
        o_ref[...] = y.astype(o_ref.dtype)


def fused_matmul_bn(x, w, scale, shift, *, relu, residual=None):
    """act((x @ w) * scale + shift [+ residual]) -> (M, n_p) bf16.

    x: (M, K_phys) activation (K may be lane-padded; extra channels must be 0).
    w: (K_logical, N) with K_logical <= K_phys (padded rows are zeroed here).
    residual: optional (M, >=N) bf16/f32, already lane-padded or not.
    Output keeps the lane-padded channel dim; padded channels are exact zeros.
    """
    m, k = x.shape
    k_log, n = w.shape
    assert k_log <= k

    n_p = _round_up(n, LANE)
    tn = _pick_div_tile(n_p, (512, 256, 128))            # 256-wide-MXU friendly

    k_p = _round_up(k, LANE)
    tk = k_p if k_p <= 1024 else _pick_div_tile(k_p, (512, 256, 128))

    if m <= 1024:
        m_p = _round_up(m, 8)
        tm = m_p
    else:
        m_p = _round_up(m, LANE)
        tm = _pick_div_tile(m_p, (1024, 512, 256, 128))

    # VMEM budget: double-buffered bf16 input/output tiles + epilogue + f32 acc.
    def _tile_bytes(tm_):
        b = 2 * (tm_ * tk * 2 + tk * tn * 2 + 2 * tn * 4 + tm_ * tn * 2)
        if residual is not None:
            b += 2 * tm_ * tn * 2
        return b + tm_ * tn * 4

    while (tm > LANE and (tm // 2) % 8 == 0 and m_p % (tm // 2) == 0
           and _tile_bytes(tm) > VMEM_TILE_BUDGET):
        tm //= 2

    xp = x
    if (m_p, k_p) != (m, k):
        xp = jnp.pad(x, ((0, m_p - m), (0, k_p - k)))
    xp = xp.astype(COMPUTE_DTYPE)
    wp = jnp.pad(w, ((0, k_p - k_log), (0, n_p - n))).astype(COMPUTE_DTYPE)
    sp = jnp.pad(scale.reshape(1, -1), ((0, 0), (0, n_p - n))).astype(jnp.float32)
    bp = jnp.pad(shift.reshape(1, -1), ((0, 0), (0, n_p - n))).astype(jnp.float32)

    args = [xp, wp, sp, bp]
    in_specs = [
        pl.BlockSpec((tm, tk), lambda i, j, kk: (i, kk)),
        pl.BlockSpec((tk, tn), lambda i, j, kk: (kk, j)),
        pl.BlockSpec((1, tn), lambda i, j, kk: (0, j)),
        pl.BlockSpec((1, tn), lambda i, j, kk: (0, j)),
    ]
    bytes_accessed = xp.size * 2 + wp.size * 2 + m_p * n_p * 2 + 2 * n_p * 4
    if residual is None:
        kernel = functools.partial(_matmul_bn_kernel, relu=relu)
    else:
        r = residual
        rn = r.shape[1]
        if rn < n_p or m_p != m:
            r = jnp.pad(r, ((0, m_p - m), (0, max(0, n_p - rn))))
        r = r[:, :n_p].astype(COMPUTE_DTYPE)
        args.append(r)
        in_specs.append(pl.BlockSpec((tm, tn), lambda i, j, kk: (i, j)))
        bytes_accessed += r.size * 2
        kernel = functools.partial(_matmul_bn_res_kernel, relu=relu)

    out = pl.pallas_call(
        kernel,
        out_shape=jax.ShapeDtypeStruct((m_p, n_p), ACT_DTYPE),
        grid=(m_p // tm, n_p // tn, k_p // tk),
        in_specs=in_specs,
        out_specs=pl.BlockSpec((tm, tn), lambda i, j, kk: (i, j)),
        scratch_shapes=[pltpu.VMEM((tm, tn), jnp.float32)],
        compiler_params=pltpu.CompilerParams(
            dimension_semantics=("parallel", "parallel", "arbitrary"),
            vmem_limit_bytes=VMEM_LIMIT_BYTES),
        cost_estimate=pl.CostEstimate(
            flops=2 * m_p * k_p * n_p,
            transcendentals=0,
            bytes_accessed=int(bytes_accessed)),
    )(*args)
    if m_p != m:
        out = out[:m]
    return out


# ----------------------------------------------------------------------------
# Kernel B: direct grouped 3x3 conv + BN (+ ReLU), block-diagonal group folding,
#           phase-decomposed planes (no im2col in HBM)
# ----------------------------------------------------------------------------
def _direct_conv_bn_kernel(x_ref, w_ref, s_ref, b_ref, o_ref, *, taps, m_rows, relu):
    # x_ref: (s*s, Hd*Wd, C) phase-decomposed plane (bf16), resident per step.
    # Per tap: a statically-offset contiguous slice of the flattened plane is
    # matmul'ed against that tap's block-diagonal (C, Np) weight and
    # accumulated in f32.
    acc = jnp.zeros(o_ref.shape, jnp.float32)
    for t, (phase, start) in enumerate(taps):
        patch = x_ref[phase, start:start + m_rows, :]          # (m_rows, C)
        acc = acc + jnp.dot(patch, w_ref[t], preferred_element_type=jnp.float32)
    y = acc * s_ref[...] + b_ref[...]
    if relu:
        y = jnp.maximum(y, 0.0)
    o_ref[...] = y.astype(o_ref.dtype)


def _block_diag_tap_weights(w, groups):
    """(C_out, C_g, kh, kw) grouped weight -> (kh*kw, C_in, C_out) block-diag."""
    c_out, c_g, kh, kw = w.shape
    g = groups
    c_out_g = c_out // g
    wt = w.reshape(g, c_out_g, c_g, kh * kw).transpose(3, 0, 2, 1)  # (T,g,cg,cog)
    eye = jnp.eye(g, dtype=w.dtype)
    bd = jnp.einsum("tgco,gh->tgcho", wt, eye)                       # (T,g,cg,g,cog)
    return bd.reshape(kh * kw, g * c_g, g * c_out_g)


def grouped_conv3x3_bn(x, w, scale, shift, *, stride, padding, groups, relu):
    """Grouped KxK conv + BN (+ReLU), NHWC in / NHWC out (lane-padded channels)."""
    b, h, w_in, c_phys = x.shape
    c_out, c_g, kh, kw = w.shape
    g, s = groups, stride
    c_in = c_g * g
    assert c_in <= c_phys and c_out % g == 0

    ho = (h + 2 * padding - kh) // s + 1
    wo = (w_in + 2 * padding - kw) // s + 1
    qi_max = (kh - 1) // s
    qj_max = (kw - 1) // s
    # Decimated (phase) plane sizes; slack so flattened tap windows never overrun.
    hd = max(ho + qi_max + (1 if qj_max > 0 else 0), -(-(h + 2 * padding) // s))
    wd = max(wo + qj_max, -(-(w_in + 2 * padding) // s))
    hp, wp = s * hd, s * wd

    xp = jnp.pad(x, ((0, 0), (padding, hp - h - padding),
                     (padding, wp - w_in - padding), (0, 0)))
    # Phase decomposition by stride (cheap ~1x-bytes transpose, not a kh*kw blowup).
    xd = xp.reshape(b, hd, s, wd, s, c_phys)
    xd = xd.transpose(0, 2, 4, 1, 3, 5).reshape(b, s * s, hd * wd, c_phys)
    xd = xd.astype(COMPUTE_DTYPE)

    # Block-diagonal weights (T, C_phys, Np): all groups folded into one matmul,
    # output exactly lane-dense.
    n_p = _round_up(c_out, LANE)
    taps_n = kh * kw
    wt = _block_diag_tap_weights(w, g)
    wt = jnp.pad(wt, ((0, 0), (0, c_phys - c_in), (0, n_p - c_out)))
    wt = wt.astype(COMPUTE_DTYPE)
    sp = jnp.pad(scale.reshape(1, -1), ((0, 0), (0, n_p - c_out))).astype(jnp.float32)
    bp = jnp.pad(shift.reshape(1, -1), ((0, 0), (0, n_p - c_out))).astype(jnp.float32)

    m_rows = ho * wd
    # Static (phase, flat-offset) per tap (di, dj).
    taps = tuple(((di % s) * s + (dj % s), (di // s) * wd + (dj // s))
                 for di in range(kh) for dj in range(kw))

    kernel = functools.partial(_direct_conv_bn_kernel, taps=taps,
                               m_rows=m_rows, relu=relu)
    out = pl.pallas_call(
        kernel,
        out_shape=jax.ShapeDtypeStruct((b, m_rows, n_p), ACT_DTYPE),
        grid=(b,),
        in_specs=[
            pl.BlockSpec((None, s * s, hd * wd, c_phys), lambda bi: (bi, 0, 0, 0)),
            pl.BlockSpec((taps_n, c_phys, n_p), lambda bi: (0, 0, 0)),
            pl.BlockSpec((1, n_p), lambda bi: (0, 0)),
            pl.BlockSpec((1, n_p), lambda bi: (0, 0)),
        ],
        out_specs=pl.BlockSpec((None, m_rows, n_p), lambda bi: (bi, 0, 0)),
        compiler_params=pltpu.CompilerParams(
            dimension_semantics=("parallel",),
            vmem_limit_bytes=VMEM_LIMIT_BYTES),
        cost_estimate=pl.CostEstimate(
            flops=2 * b * taps_n * m_rows * c_phys * n_p,
            transcendentals=0,
            bytes_accessed=int(xd.size * 2 + wt.size * 2 + b * m_rows * n_p * 2)),
    )(xd, wt, sp, bp)

    # (B, Ho, Wd, Np) -> (B, Ho, Wo, Np); channel padding is kept (zeros).
    out = out.reshape(b, ho, wd, n_p)[:, :, :wo, :]
    return out


# ----------------------------------------------------------------------------
# Stem 7x7 conv: taps folded into the contraction dim, single fused matmul.
# ----------------------------------------------------------------------------
def stem_conv7x7_bn(x, w, scale, shift, *, stride, padding):
    b, h, w_in, c = x.shape
    c_out, c_in, kh, kw = w.shape
    assert c_in == c
    s, p = stride, padding
    ho = (h + 2 * p - kh) // s + 1
    wo = (w_in + 2 * p - kw) // s + 1
    xp = jnp.pad(x, ((0, 0), (p, p), (p, p), (0, 0))).astype(COMPUTE_DTYPE)
    cols = []
    for di in range(kh):
        for dj in range(kw):
            cols.append(xp[:, di:di + s * (ho - 1) + 1:s,
                           dj:dj + s * (wo - 1) + 1:s, :])
    patches = jnp.concatenate(cols, axis=-1)                     # (B,Ho,Wo,T*C)
    wmat = w.transpose(2, 3, 1, 0).reshape(kh * kw * c_in, c_out)
    y = fused_matmul_bn(patches.reshape(b * ho * wo, kh * kw * c_in),
                        wmat, scale, shift, relu=True)
    return y.reshape(b, ho, wo, y.shape[-1])


# ----------------------------------------------------------------------------
# Kernel C: classifier (global average pool + linear) with spatial accumulation
# ----------------------------------------------------------------------------
def _classifier_kernel(x_ref, w_ref, b_ref, o_ref, acc_ref, *, inv_hw):
    i = pl.program_id(0)

    @pl.when(i == 0)
    def _init():
        acc_ref[...] = jnp.zeros_like(acc_ref)

    acc_ref[...] += jnp.sum(x_ref[...].astype(jnp.float32), axis=1)   # (B, C)

    @pl.when(i == pl.num_programs(0) - 1)
    def _finalize():
        pooled = (acc_ref[...] * inv_hw).astype(w_ref.dtype)
        y = jnp.dot(pooled, w_ref[...], preferred_element_type=jnp.float32)
        o_ref[...] = (y + b_ref[...]).astype(o_ref.dtype)


def classifier(feats, fc_w, fc_b):
    """AdaptiveAvgPool2d((1,1)) + Flatten + Dropout(eval=identity) + Linear."""
    b, h, w, c = feats.shape
    hw = h * w
    n_cls, c_log = fc_w.shape
    n_p = _round_up(n_cls, LANE)                 # lane-dense logits, sliced after

    thw = hw if hw <= 512 else 512
    hw_p = _round_up(hw, thw)
    x = feats.reshape(b, hw, c)
    if hw_p != hw:
        x = jnp.pad(x, ((0, 0), (0, hw_p - hw), (0, 0)))
    wmat = fc_w.T
    if c_log < c:
        wmat = jnp.pad(wmat, ((0, c - c_log), (0, 0)))
    wp = jnp.pad(wmat, ((0, 0), (0, n_p - n_cls))).astype(COMPUTE_DTYPE)
    bp = jnp.pad(fc_b.reshape(1, -1), ((0, 0), (0, n_p - n_cls))).astype(jnp.float32)

    kernel = functools.partial(_classifier_kernel, inv_hw=1.0 / hw)
    out = pl.pallas_call(
        kernel,
        out_shape=jax.ShapeDtypeStruct((b, n_p), jnp.float32),
        grid=(hw_p // thw,),
        in_specs=[
            pl.BlockSpec((b, thw, c), lambda i: (0, i, 0)),
            pl.BlockSpec((c, n_p), lambda i: (0, 0)),     # fc weights resident
            pl.BlockSpec((1, n_p), lambda i: (0, 0)),
        ],
        out_specs=pl.BlockSpec((b, n_p), lambda i: (0, 0)),
        scratch_shapes=[pltpu.VMEM((b, c), jnp.float32)],
        compiler_params=pltpu.CompilerParams(
            dimension_semantics=("arbitrary",),
            vmem_limit_bytes=VMEM_LIMIT_BYTES),
    )(x, wp, bp)
    return out[:, :n_cls]


# ----------------------------------------------------------------------------
# Plain-JAX wiring (layer composition only)
# ----------------------------------------------------------------------------
def conv1x1_bn(x, p, *, stride, relu, residual=None):
    """_Conv2d equivalent for 1x1 convs: conv(no bias)+BN(inference)[+ReLU]."""
    w = p["w"]
    if stride > 1:
        x = x[:, ::stride, ::stride, :]
    b, ho, wo, cp = x.shape
    m = b * ho * wo
    res = residual.reshape(m, -1) if residual is not None else None
    y = fused_matmul_bn(x.reshape(m, cp), w[:, :, 0, 0].T,
                        p["scale"], p["shift"], relu=relu, residual=res)
    return y.reshape(b, ho, wo, y.shape[-1])


def block_forward(x, blk, cardinality):
    """AggregatedResidualBlock forward (NHWC, lane-padded channels)."""
    stride = 2 if "shortcut" in blk else 1
    if stride == 2:
        shortcut = conv1x1_bn(x, blk["shortcut"], stride=2, relu=False)
    else:
        shortcut = x
    h = conv1x1_bn(x, blk["conv1"], stride=1, relu=True)
    h = grouped_conv3x3_bn(h, blk["conv2"]["w"], blk["conv2"]["scale"],
                           blk["conv2"]["shift"], stride=stride, padding=1,
                           groups=cardinality, relu=True)
    # relu(shortcut + residual) of the block is fused into conv3's epilogue.
    return conv1x1_bn(h, blk["conv3"], stride=1, relu=True, residual=shortcut)


def resnext_forward(x_nchw, params, cardinality):
    x = jnp.transpose(x_nchw, (0, 2, 3, 1))            # NCHW -> NHWC once
    st = params["stem"]
    x = stem_conv7x7_bn(x, st["w"], st["scale"], st["shift"], stride=2, padding=3)
    for blocks in params["stages"]:
        for blk in blocks:
            x = block_forward(x, blk, cardinality)
    return classifier(x, params["fc_w"], params["fc_b"])


# ----------------------------------------------------------------------------
# Deterministic parameter initialization (mirrors the PyTorch module's shapes)
# ----------------------------------------------------------------------------
def conv_bn_params(key, cin, cout, kh, kw, groups=1):
    k0, k1, k2, k3, k4 = jax.random.split(key, 5)
    fan_in = (cin // groups) * kh * kw
    w = jax.random.normal(k0, (cout, cin // groups, kh, kw), jnp.float32) / jnp.sqrt(float(fan_in))
    gamma = 1.0 + 0.1 * jax.random.normal(k1, (cout,), jnp.float32)
    beta = 0.1 * jax.random.normal(k2, (cout,), jnp.float32)
    running_mean = 0.1 * jax.random.normal(k3, (cout,), jnp.float32)
    running_var = 1.0 + 0.1 * jnp.abs(jax.random.normal(k4, (cout,), jnp.float32))
    eps = 1e-5
    scale = gamma / jnp.sqrt(running_var + eps)
    shift = beta - running_mean * scale
    return {"w": w, "scale": scale, "shift": shift}


def init_net(key, num_classes, cardinality, bottleneck_width, base_width,
             layer_per_stage, channel_per_stage):
    assert len(layer_per_stage) == len(channel_per_stage)
    kit = iter(jax.random.split(key, 128))
    params = {"stem": conv_bn_params(next(kit), 3, base_width, 7, 7)}
    stage_channels = [base_width] + list(channel_per_stage)
    stages = []
    for i, nlayers in enumerate(layer_per_stage):
        bw = bottleneck_width * (2 ** i)
        in_c, out_c = stage_channels[i], stage_channels[i + 1]
        blocks = []
        for j in range(nlayers):
            stride = 2 if j == 0 else 1
            cin = in_c if j == 0 else out_c
            gc = cardinality * bw
            assert gc * 2 == out_c
            blk = {
                "conv1": conv_bn_params(next(kit), cin, gc, 1, 1),
                "conv2": conv_bn_params(next(kit), gc, gc, 3, 3, groups=cardinality),
                "conv3": conv_bn_params(next(kit), gc, out_c, 1, 1),
            }
            if stride == 2:
                blk["shortcut"] = conv_bn_params(next(kit), cin, out_c, 1, 1)
            blocks.append(blk)
        stages.append(blocks)
    params["stages"] = stages
    kf1, kf2 = jax.random.split(next(kit))
    c_last = stage_channels[-1]
    params["fc_w"] = jax.random.normal(kf1, (num_classes, c_last), jnp.float32) / jnp.sqrt(float(c_last))
    params["fc_b"] = 0.1 * jax.random.normal(kf2, (num_classes,), jnp.float32)
    return params


# ----------------------------------------------------------------------------
if __name__ == "__main__":
    key = jax.random.PRNGKey(0)
    pkey, xkey = jax.random.split(key)

    num_classes = 10
    cardinality = 2
    bottleneck_width = 2
    base_width = 4
    layer_per_stage = [2, 1]
    channel_per_stage = [8, 16]   # out_channel[i] == 2*cardinality*bottleneck_width*2**i

    params = init_net(pkey, num_classes, cardinality, bottleneck_width,
                      base_width, layer_per_stage, channel_per_stage)

    # PyTorch-style NCHW input: batch=2, 3 channels, 16x16 spatial.
    x = jax.random.normal(xkey, (2, 3, 16, 16), jnp.float32)

    fwd = jax.jit(functools.partial(resnext_forward, cardinality=cardinality))
    logits = jax.block_until_ready(fwd(x, params))
    assert logits.shape == (2, num_classes), logits.shape
    assert bool(jnp.all(jnp.isfinite(logits)))
    print("KERNEL_OK")
</pallas_src>

<mosaic_0001>
module attributes {stable_mosaic.version = 11 : i64} {
  func.func @_matmul_bn_kernel(%arg0: i32, %arg1: i32, %arg2: i32, %arg3: memref<128x256xbf16, #tpu.memory_space<vmem>>, %arg4: memref<256x128xbf16, #tpu.memory_space<vmem>>, %arg5: memref<1x128xf32, #tpu.memory_space<vmem>>, %arg6: memref<1x128xf32, #tpu.memory_space<vmem>>, %arg7: memref<128x128xbf16, #tpu.memory_space<vmem>>, %arg8: memref<128x128xf32, #tpu.memory_space<vmem>>) attributes {dimension_semantics = [#tpu.dimension_semantics<parallel>, #tpu.dimension_semantics<parallel>, #tpu.dimension_semantics<arbitrary>], iteration_bounds = array<i64: 1, 1, 1>, scalar_prefetch = 0 : i64, scratch_operands = 1 : i64, tpu.core_type = #tpu.core_type<tc>, window_params = [{transform_indices = @transform_0, window_bounds = array<i64: 128, 256>}, {transform_indices = @transform_1, window_bounds = array<i64: 256, 128>}, {transform_indices = @transform_2, window_bounds = array<i64: 1, 128>}, {transform_indices = @transform_3, window_bounds = array<i64: 1, 128>}, {transform_indices = @transform_4, window_bounds = array<i64: 128, 128>}]} {
    %c0_i32 = arith.constant 0 : i32
    %0 = arith.cmpi eq, %arg2, %c0_i32 : i32
    %1 = arith.extui %0 : i1 to i32
    %c0_i32_0 = arith.constant 0 : i32
    %2 = arith.cmpi ne, %1, %c0_i32_0 : i32
    scf.if %2 {
      %cst_10 = arith.constant 0.000000e+00 : f32
      %12 = vector.broadcast %cst_10 : f32 to vector<128x128xf32>
      %c0_11 = arith.constant 0 : index
      %c0_12 = arith.constant 0 : index
      %13 = vector.load %arg8[%c0_11, %c0_12] : memref<128x128xf32, #tpu.memory_space<vmem>>, vector<128x128xf32>
      tpu.vector_store %arg8[%c0_11, %c0_12], %12 {strides = array<i32>} : memref<128x128xf32, #tpu.memory_space<vmem>>, vector<128x128xf32>,
    } else {
    }
    %c0 = arith.constant 0 : index
    %c0_1 = arith.constant 0 : index
    %3 = vector.load %arg8[%c0, %c0_1] : memref<128x128xf32, #tpu.memory_space<vmem>>, vector<128x128xf32>
    %c0_2 = arith.constant 0 : index
    %c0_3 = arith.constant 0 : index
    %4 = vector.load %arg3[%c0_2, %c0_3] : memref<128x256xbf16, #tpu.memory_space<vmem>>, vector<128x256xbf16>
    %c0_4 = arith.constant 0 : index
    %c0_5 = arith.constant 0 : index
    %5 = vector.load %arg4[%c0_4, %c0_5] : memref<256x128xbf16, #tpu.memory_space<vmem>>, vector<256x128xbf16>
    %cst = arith.constant dense<0.000000e+00> : vector<128x128xf32>
    %6 = tpu.matmul %4, %5, %cst {dimension_numbers = #tpu.dot_dimension_numbers<[1], [0], [0], [1], [0, 0, 1, 1], [], []>} : vector<128x256xbf16>, vector<256x128xbf16>, vector<128x128xf32> -> vector<128x128xf32>
    %7 = arith.addf %3, %6 : vector<128x128xf32>
    %c0_6 = arith.constant 0 : index
    %c0_7 = arith.constant 0 : index
    %8 = vector.load %arg8[%c0_6, %c0_7] : memref<128x128xf32, #tpu.memory_space<vmem>>, vector<128x128xf32>
    tpu.vector_store %arg8[%c0_6, %c0_7], %7 {strides = array<i32>} : memref<128x128xf32, #tpu.memory_space<vmem>>, vector<128x128xf32>,
    %c0_i32_8 = arith.constant 0 : i32
    %9 = arith.cmpi eq, %arg2, %c0_i32_8 : i32
    %10 = arith.extui %9 : i1 to i32
    %c0_i32_9 = arith.constant 0 : i32
    %11 = arith.cmpi ne, %10, %c0_i32_9 : i32
    scf.if %11 {
      %c0_10 = arith.constant 0 : index
      %c0_11 = arith.constant 0 : index
      %12 = vector.load %arg8[%c0_10, %c0_11] : memref<128x128xf32, #tpu.memory_space<vmem>>, vector<128x128xf32>
      %c0_12 = arith.constant 0 : index
      %c0_13 = arith.constant 0 : index
      %13 = vector.load %arg5[%c0_12, %c0_13] : memref<1x128xf32, #tpu.memory_space<vmem>>, vector<1x128xf32>
      %14 = vector.broadcast %13 : vector<1x128xf32> to vector<128x128xf32>
      %15 = arith.mulf %12, %14 : vector<128x128xf32>
      %c0_14 = arith.constant 0 : index
      %c0_15 = arith.constant 0 : index
      %16 = vector.load %arg6[%c0_14, %c0_15] : memref<1x128xf32, #tpu.memory_space<vmem>>, vector<1x128xf32>
      %17 = vector.broadcast %16 : vector<1x128xf32> to vector<128x128xf32>
      %18 = arith.addf %15, %17 : vector<128x128xf32>
      %cst_16 = arith.constant 0.000000e+00 : f32
      %19 = vector.broadcast %cst_16 : f32 to vector<128x128xf32>
      %20 = arith.maximumf %18, %19 : vector<128x128xf32>
      %21 = arith.truncf %20 : vector<128x128xf32> to vector<128x128xbf16>
      %c0_17 = arith.constant 0 : index
      %c0_18 = arith.constant 0 : index
      %22 = vector.load %arg7[%c0_17, %c0_18] : memref<128x128xbf16, #tpu.memory_space<vmem>>, vector<128x128xbf16>
      tpu.vector_store %arg7[%c0_17, %c0_18], %21 {strides = array<i32>} : memref<128x128xbf16, #tpu.memory_space<vmem>>, vector<128x128xbf16>,
    } else {
    }
    return
  }
  func.func @transform_0(%arg0: i32, %arg1: i32, %arg2: i32) -> (i32, i32) {
    %c0_i32 = arith.constant 0 : i32
    return %arg0, %arg2 : i32, i32
  }
  func.func @transform_1(%arg0: i32, %arg1: i32, %arg2: i32) -> (i32, i32) {
    %c0_i32 = arith.constant 0 : i32
    return %arg2, %arg1 : i32, i32
  }
  func.func @transform_2(%arg0: i32, %arg1: i32, %arg2: i32) -> (i32, i32) {
    %c0_i32 = arith.constant 0 : i32
    %c0_i32_0 = arith.constant 0 : i32
    return %c0_i32, %arg1 : i32, i32
  }
  func.func @transform_3(%arg0: i32, %arg1: i32, %arg2: i32) -> (i32, i32) {
    %c0_i32 = arith.constant 0 : i32
    %c0_i32_0 = arith.constant 0 : i32
    return %c0_i32, %arg1 : i32, i32
  }
  func.func @transform_4(%arg0: i32, %arg1: i32, %arg2: i32) -> (i32, i32) {
    %c0_i32 = arith.constant 0 : i32
    return %arg0, %arg1 : i32, i32
  }
}

module attributes {stable_mosaic.version = 11 : i64} {
  func.func @_matmul_bn_kernel(%arg0: i32, %arg1: i32, %arg2: i32, %arg3: memref<128x128xbf16, #tpu.memory_space<vmem>>, %arg4: memref<128x128xbf16, #tpu.memory_space<vmem>>, %arg5: memref<1x128xf32, #tpu.memory_space<vmem>>, %arg6: memref<1x128xf32, #tpu.memory_space<vmem>>, %arg7: memref<128x128xbf16, #tpu.memory_space<vmem>>, %arg8: memref<128x128xf32, #tpu.memory_space<vmem>>) attributes {dimension_semantics = [#tpu.dimension_semantics<parallel>, #tpu.dimension_semantics<parallel>, #tpu.dimension_semantics<arbitrary>], iteration_bounds = array<i64: 1, 1, 1>, scalar_prefetch = 0 : i64, scratch_operands = 1 : i64, tpu.core_type = #tpu.core_type<tc>, window_params = [{transform_indices = @transform_0, window_bounds = array<i64: 128, 128>}, {transform_indices = @transform_1, window_bounds = array<i64: 128, 128>}, {transform_indices = @transform_2, window_bounds = array<i64: 1, 128>}, {transform_indices = @transform_3, window_bounds = array<i64: 1, 128>}, {transform_indices = @transform_4, window_bounds = array<i64: 128, 128>}]} {
    %c0_i32 = arith.constant 0 : i32
    %0 = arith.cmpi eq, %arg2, %c0_i32 : i32
    %1 = arith.extui %0 : i1 to i32
    %c0_i32_0 = arith.constant 0 : i32
    %2 = arith.cmpi ne, %1, %c0_i32_0 : i32
    scf.if %2 {
      %cst_10 = arith.constant 0.000000e+00 : f32
      %12 = vector.broadcast %cst_10 : f32 to vector<128x128xf32>
      %c0_11 = arith.constant 0 : index
      %c0_12 = arith.constant 0 : index
      %13 = vector.load %arg8[%c0_11, %c0_12] : memref<128x128xf32, #tpu.memory_space<vmem>>, vector<128x128xf32>
      tpu.vector_store %arg8[%c0_11, %c0_12], %12 {strides = array<i32>} : memref<128x128xf32, #tpu.memory_space<vmem>>, vector<128x128xf32>,
    } else {
    }
    %c0 = arith.constant 0 : index
    %c0_1 = arith.constant 0 : index
    %3 = vector.load %arg8[%c0, %c0_1] : memref<128x128xf32, #tpu.memory_space<vmem>>, vector<128x128xf32>
    %c0_2 = arith.constant 0 : index
    %c0_3 = arith.constant 0 : index
    %4 = vector.load %arg3[%c0_2, %c0_3] : memref<128x128xbf16, #tpu.memory_space<vmem>>, vector<128x128xbf16>
    %c0_4 = arith.constant 0 : index
    %c0_5 = arith.constant 0 : index
    %5 = vector.load %arg4[%c0_4, %c0_5] : memref<128x128xbf16, #tpu.memory_space<vmem>>, vector<128x128xbf16>
    %cst = arith.constant dense<0.000000e+00> : vector<128x128xf32>
    %6 = tpu.matmul %4, %5, %cst {dimension_numbers = #tpu.dot_dimension_numbers<[1], [0], [0], [1], [0, 0, 1, 1], [], []>} : vector<128x128xbf16>, vector<128x128xbf16>, vector<128x128xf32> -> vector<128x128xf32>
    %7 = arith.addf %3, %6 : vector<128x128xf32>
    %c0_6 = arith.constant 0 : index
    %c0_7 = arith.constant 0 : index
    %8 = vector.load %arg8[%c0_6, %c0_7] : memref<128x128xf32, #tpu.memory_space<vmem>>, vector<128x128xf32>
    tpu.vector_store %arg8[%c0_6, %c0_7], %7 {strides = array<i32>} : memref<128x128xf32, #tpu.memory_space<vmem>>, vector<128x128xf32>,
    %c0_i32_8 = arith.constant 0 : i32
    %9 = arith.cmpi eq, %arg2, %c0_i32_8 : i32
    %10 = arith.extui %9 : i1 to i32
    %c0_i32_9 = arith.constant 0 : i32
    %11 = arith.cmpi ne, %10, %c0_i32_9 : i32
    scf.if %11 {
      %c0_10 = arith.constant 0 : index
      %c0_11 = arith.constant 0 : index
      %12 = vector.load %arg8[%c0_10, %c0_11] : memref<128x128xf32, #tpu.memory_space<vmem>>, vector<128x128xf32>
      %c0_12 = arith.constant 0 : index
      %c0_13 = arith.constant 0 : index
      %13 = vector.load %arg5[%c0_12, %c0_13] : memref<1x128xf32, #tpu.memory_space<vmem>>, vector<1x128xf32>
      %14 = vector.broadcast %13 : vector<1x128xf32> to vector<128x128xf32>
      %15 = arith.mulf %12, %14 : vector<128x128xf32>
      %c0_14 = arith.constant 0 : index
      %c0_15 = arith.constant 0 : index
      %16 = vector.load %arg6[%c0_14, %c0_15] : memref<1x128xf32, #tpu.memory_space<vmem>>, vector<1x128xf32>
      %17 = vector.broadcast %16 : vector<1x128xf32> to vector<128x128xf32>
      %18 = arith.addf %15, %17 : vector<128x128xf32>
      %cst_16 = arith.constant 0.000000e+00 : f32
      %19 = vector.broadcast %cst_16 : f32 to vector<128x128xf32>
      %20 = arith.maximumf %18, %19 : vector<128x128xf32>
      %21 = arith.truncf %20 : vector<128x128xf32> to vector<128x128xbf16>
      %c0_17 = arith.constant 0 : index
      %c0_18 = arith.constant 0 : index
      %22 = vector.load %arg7[%c0_17, %c0_18] : memref<128x128xbf16, #tpu.memory_space<vmem>>, vector<128x128xbf16>
      tpu.vector_store %arg7[%c0_17, %c0_18], %21 {strides = array<i32>} : memref<128x128xbf16, #tpu.memory_space<vmem>>, vector<128x128xbf16>,
    } else {
    }
    return
  }
  func.func @transform_0(%arg0: i32, %arg1: i32, %arg2: i32) -> (i32, i32) {
    %c0_i32 = arith.constant 0 : i32
    return %arg0, %arg2 : i32, i32
  }
  func.func @transform_1(%arg0: i32, %arg1: i32, %arg2: i32) -> (i32, i32) {
    %c0_i32 = arith.constant 0 : i32
    return %arg2, %arg1 : i32, i32
  }
  func.func @transform_2(%arg0: i32, %arg1: i32, %arg2: i32) -> (i32, i32) {
    %c0_i32 = arith.constant 0 : i32
    %c0_i32_0 = arith.constant 0 : i32
    return %c0_i32, %arg1 : i32, i32
  }
  func.func @transform_3(%arg0: i32, %arg1: i32, %arg2: i32) -> (i32, i32) {
    %c0_i32 = arith.constant 0 : i32
    %c0_i32_0 = arith.constant 0 : i32
    return %c0_i32, %arg1 : i32, i32
  }
  func.func @transform_4(%arg0: i32, %arg1: i32, %arg2: i32) -> (i32, i32) {
    %c0_i32 = arith.constant 0 : i32
    return %arg0, %arg1 : i32, i32
  }
}

module attributes {stable_mosaic.version = 11 : i64} {
  func.func @_direct_conv_bn_kernel(%arg0: i32, %arg1: memref<1x4x30x128xbf16, #tpu.memory_space<vmem>>, %arg2: memref<9x128x128xbf16, #tpu.memory_space<vmem>>, %arg3: memref<1x128xf32, #tpu.memory_space<vmem>>, %arg4: memref<1x128xf32, #tpu.memory_space<vmem>>, %arg5: memref<1x20x128xbf16, #tpu.memory_space<vmem>>) attributes {dimension_semantics = [#tpu.dimension_semantics<parallel>], iteration_bounds = array<i64: 2>, scalar_prefetch = 0 : i64, scratch_operands = 0 : i64, tpu.core_type = #tpu.core_type<tc>, window_params = [{transform_indices = @transform_0, window_bounds = array<i64: 1, 4, 30, 128>}, {pipeline_mode = #tpu.pipeline_mode<synchronous>, transform_indices = @transform_1, window_bounds = array<i64: 9, 128, 128>}, {pipeline_mode = #tpu.pipeline_mode<synchronous>, transform_indices = @transform_2, window_bounds = array<i64: 1, 128>}, {pipeline_mode = #tpu.pipeline_mode<synchronous>, transform_indices = @transform_3, window_bounds = array<i64: 1, 128>}, {transform_indices = @transform_4, window_bounds = array<i64: 1, 20, 128>}]} {
    %cst = arith.constant 0.000000e+00 : f32
    %0 = vector.broadcast %cst : f32 to vector<20x128xf32>
    %c0 = arith.constant 0 : index
    %c0_0 = arith.constant 0 : index
    %c0_1 = arith.constant 0 : index
    %c0_2 = arith.constant 0 : index
    %1 = vector.load %arg1[%c0, %c0_0, %c0_1, %c0_2] : memref<1x4x30x128xbf16, #tpu.memory_space<vmem>>, vector<1x1x20x128xbf16>
    %2 = vector.shape_cast %1 : vector<1x1x20x128xbf16> to vector<20x128xbf16>
    %c0_3 = arith.constant 0 : index
    %c0_4 = arith.constant 0 : index
    %c0_5 = arith.constant 0 : index
    %3 = vector.load %arg2[%c0_3, %c0_4, %c0_5] : memref<9x128x128xbf16, #tpu.memory_space<vmem>>, vector<1x128x128xbf16>
    %4 = vector.shape_cast %3 : vector<1x128x128xbf16> to vector<128x128xbf16>
    %cst_6 = arith.constant dense<0.000000e+00> : vector<20x128xf32>
    %5 = tpu.matmul %2, %4, %cst_6 {dimension_numbers = #tpu.dot_dimension_numbers<[1], [0], [0], [1], [0, 0, 1, 1], [], []>} : vector<20x128xbf16>, vector<128x128xbf16>, vector<20x128xf32> -> vector<20x128xf32>
    %6 = arith.addf %0, %5 : vector<20x128xf32>
    %c0_7 = arith.constant 0 : index
    %c1 = arith.constant 1 : index
    %c0_8 = arith.constant 0 : index
    %c0_9 = arith.constant 0 : index
    %7 = vector.load %arg1[%c0_7, %c1, %c0_8, %c0_9] : memref<1x4x30x128xbf16, #tpu.memory_space<vmem>>, vector<1x1x20x128xbf16>
    %8 = vector.shape_cast %7 : vector<1x1x20x128xbf16> to vector<20x128xbf16>
    %c1_10 = arith.constant 1 : index
    %c0_11 = arith.constant 0 : index
    %c0_12 = arith.constant 0 : index
    %9 = vector.load %arg2[%c1_10, %c0_11, %c0_12] : memref<9x128x128xbf16, #tpu.memory_space<vmem>>, vector<1x128x128xbf16>
    %10 = vector.shape_cast %9 : vector<1x128x128xbf16> to vector<128x128xbf16>
    %cst_13 = arith.constant dense<0.000000e+00> : vector<20x128xf32>
    %11 = tpu.matmul %8, %10, %cst_13 {dimension_numbers = #tpu.dot_dimension_numbers<[1], [0], [0], [1], [0, 0, 1, 1], [], []>} : vector<20x128xbf16>, vector<128x128xbf16>, vector<20x128xf32> -> vector<20x128xf32>
    %12 = arith.addf %6, %11 : vector<20x128xf32>
    %c0_14 = arith.constant 0 : index
    %c0_15 = arith.constant 0 : index
    %c1_16 = arith.constant 1 : index
    %c0_17 = arith.constant 0 : index
    %13 = vector.load %arg1[%c0_14, %c0_15, %c1_16, %c0_17] : memref<1x4x30x128xbf16, #tpu.memory_space<vmem>>, vector<1x1x20x128xbf16>
    %14 = vector.shape_cast %13 : vector<1x1x20x128xbf16> to vector<20x128xbf16>
    %c2 = arith.constant 2 : index
    %c0_18 = arith.constant 0 : index
    %c0_19 = arith.constant 0 : index
    %15 = vector.load %arg2[%c2, %c0_18, %c0_19] : memref<9x128x128xbf16, #tpu.memory_space<vmem>>, vector<1x128x128xbf16>
    %16 = vector.shape_cast %15 : vector<1x128x128xbf16> to vector<128x128xbf16>
    %cst_20 = arith.constant dense<0.000000e+00> : vector<20x128xf32>
    %17 = tpu.matmul %14, %16, %cst_20 {dimension_numbers = #tpu.dot_dimension_numbers<[1], [0], [0], [1], [0, 0, 1, 1], [], []>} : vector<20x128xbf16>, vector<128x128xbf16>, vector<20x128xf32> -> vector<20x128xf32>
    %18 = arith.addf %12, %17 : vector<20x128xf32>
    %c0_21 = arith.constant 0 : index
    %c2_22 = arith.constant 2 : index
    %c0_23 = arith.constant 0 : index
    %c0_24 = arith.constant 0 : index
    %19 = vector.load %arg1[%c0_21, %c2_22, %c0_23, %c0_24] : memref<1x4x30x128xbf16, #tpu.memory_space<vmem>>, vector<1x1x20x128xbf16>
    %20 = vector.shape_cast %19 : vector<1x1x20x128xbf16> to vector<20x128xbf16>
    %c3 = arith.constant 3 : index
    %c0_25 = arith.constant 0 : index
    %c0_26 = arith.constant 0 : index
    %21 = vector.load %arg2[%c3, %c0_25, %c0_26] : memref<9x128x128xbf16, #tpu.memory_space<vmem>>, vector<1x128x128xbf16>
    %22 = vector.shape_cast %21 : vector<1x128x128xbf16> to vector<128x128xbf16>
    %cst_27 = arith.constant dense<0.000000e+00> : vector<20x128xf32>
    %23 = tpu.matmul %20, %22, %cst_27 {dimension_numbers = #tpu.dot_dimension_numbers<[1], [0], [0], [1], [0, 0, 1, 1], [], []>} : vector<20x128xbf16>, vector<128x128xbf16>, vector<20x128xf32> -> vector<20x128xf32>
    %24 = arith.addf %18, %23 : vector<20x128xf32>
    %c0_28 = arith.constant 0 : index
    %c3_29 = arith.constant 3 : index
    %c0_30 = arith.constant 0 : index
    %c0_31 = arith.constant 0 : index
    %25 = vector.load %arg1[%c0_28, %c3_29, %c0_30, %c0_31] : memref<1x4x30x128xbf16, #tpu.memory_space<vmem>>, vector<1x1x20x128xbf16>
    %26 = vector.shape_cast %25 : vector<1x1x20x128xbf16> to vector<20x128xbf16>
    %c4 = arith.constant 4 : index
    %c0_32 = arith.constant 0 : index
    %c0_33 = arith.constant 0 : index
    %27 = vector.load %arg2[%c4, %c0_32, %c0_33] : memref<9x128x128xbf16, #tpu.memory_space<vmem>>, vector<1x128x128xbf16>
    %28 = vector.shape_cast %27 : vector<1x128x128xbf16> to vector<128x128xbf16>
    %cst_34 = arith.constant dense<0.000000e+00> : vector<20x128xf32>
    %29 = tpu.matmul %26, %28, %cst_34 {dimension_numbers = #tpu.dot_dimension_numbers<[1], [0], [0], [1], [0, 0, 1, 1], [], []>} : vector<20x128xbf16>, vector<128x128xbf16>, vector<20x128xf32> -> vector<20x128xf32>
    %30 = arith.addf %24, %29 : vector<20x128xf32>
    %c0_35 = arith.constant 0 : index
    %c2_36 = arith.constant 2 : index
    %c1_37 = arith.constant 1 : index
    %c0_38 = arith.constant 0 : index
    %31 = vector.load %arg1[%c0_35, %c2_36, %c1_37, %c0_38] : memref<1x4x30x128xbf16, #tpu.memory_space<vmem>>, vector<1x1x20x128xbf16>
    %32 = vector.shape_cast %31 : vector<1x1x20x128xbf16> to vector<20x128xbf16>
    %c5 = arith.constant 5 : index
    %c0_39 = arith.constant 0 : index
    %c0_40 = arith.constant 0 : index
    %33 = vector.load %arg2[%c5, %c0_39, %c0_40] : memref<9x128x128xbf16, #tpu.memory_space<vmem>>, vector<1x128x128xbf16>
    %34 = vector.shape_cast %33 : vector<1x128x128xbf16> to vector<128x128xbf16>
    %cst_41 = arith.constant dense<0.000000e+00> : vector<20x128xf32>
    %35 = tpu.matmul %32, %34, %cst_41 {dimension_numbers = #tpu.dot_dimension_numbers<[1], [0], [0], [1], [0, 0, 1, 1], [], []>} : vector<20x128xbf16>, vector<128x128xbf16>, vector<20x128xf32> -> vector<20x128xf32>
    %36 = arith.addf %30, %35 : vector<20x128xf32>
    %c0_42 = arith.constant 0 : index
    %c0_43 = arith.constant 0 : index
    %c5_44 = arith.constant 5 : index
    %c0_45 = arith.constant 0 : index
    %37 = vector.load %arg1[%c0_42, %c0_43, %c5_44, %c0_45] : memref<1x4x30x128xbf16, #tpu.memory_space<vmem>>, vector<1x1x20x128xbf16>
    %38 = vector.shape_cast %37 : vector<1x1x20x128xbf16> to vector<20x128xbf16>
    %c6 = arith.constant 6 : index
    %c0_46 = arith.constant 0 : index
    %c0_47 = arith.constant 0 : index
    %39 = vector.load %arg2[%c6, %c0_46, %c0_47] : memref<9x128x128xbf16, #tpu.memory_space<vmem>>, vector<1x128x128xbf16>
    %40 = vector.shape_cast %39 : vector<1x128x128xbf16> to vector<128x128xbf16>
    %cst_48 = arith.constant dense<0.000000e+00> : vector<20x128xf32>
    %41 = tpu.matmul %38, %40, %cst_48 {dimension_numbers = #tpu.dot_dimension_numbers<[1], [0], [0], [1], [0, 0, 1, 1], [], []>} : vector<20x128xbf16>, vector<128x128xbf16>, vector<20x128xf32> -> vector<20x128xf32>
    %42 = arith.addf %36, %41 : vector<20x128xf32>
    %c0_49 = arith.constant 0 : index
    %c1_50 = arith.constant 1 : index
    %c5_51 = arith.constant 5 : index
    %c0_52 = arith.constant 0 : index
    %43 = vector.load %arg1[%c0_49, %c1_50, %c5_51, %c0_52] : memref<1x4x30x128xbf16, #tpu.memory_space<vmem>>, vector<1x1x20x128xbf16>
    %44 = vector.shape_cast %43 : vector<1x1x20x128xbf16> to vector<20x128xbf16>
    %c7 = arith.constant 7 : index
    %c0_53 = arith.constant 0 : index
    %c0_54 = arith.constant 0 : index
    %45 = vector.load %arg2[%c7, %c0_53, %c0_54] : memref<9x128x128xbf16, #tpu.memory_space<vmem>>, vector<1x128x128xbf16>
    %46 = vector.shape_cast %45 : vector<1x128x128xbf16> to vector<128x128xbf16>
    %cst_55 = arith.constant dense<0.000000e+00> : vector<20x128xf32>
    %47 = tpu.matmul %44, %46, %cst_55 {dimension_numbers = #tpu.dot_dimension_numbers<[1], [0], [0], [1], [0, 0, 1, 1], [], []>} : vector<20x128xbf16>, vector<128x128xbf16>, vector<20x128xf32> -> vector<20x128xf32>
    %48 = arith.addf %42, %47 : vector<20x128xf32>
    %c0_56 = arith.constant 0 : index
    %c0_57 = arith.constant 0 : index
    %c6_58 = arith.constant 6 : index
    %c0_59 = arith.constant 0 : index
    %49 = vector.load %arg1[%c0_56, %c0_57, %c6_58, %c0_59] : memref<1x4x30x128xbf16, #tpu.memory_space<vmem>>, vector<1x1x20x128xbf16>
    %50 = vector.shape_cast %49 : vector<1x1x20x128xbf16> to vector<20x128xbf16>
    %c8 = arith.constant 8 : index
    %c0_60 = arith.constant 0 : index
    %c0_61 = arith.constant 0 : index
    %51 = vector.load %arg2[%c8, %c0_60, %c0_61] : memref<9x128x128xbf16, #tpu.memory_space<vmem>>, vector<1x128x128xbf16>
    %52 = vector.shape_cast %51 : vector<1x128x128xbf16> to vector<128x128xbf16>
    %cst_62 = arith.constant dense<0.000000e+00> : vector<20x128xf32>
    %53 = tpu.matmul %50, %52, %cst_62 {dimension_numbers = #tpu.dot_dimension_numbers<[1], [0], [0], [1], [0, 0, 1, 1], [], []>} : vector<20x128xbf16>, vector<128x128xbf16>, vector<20x128xf32> -> vector<20x128xf32>
    %54 = arith.addf %48, %53 : vector<20x128xf32>
    %c0_63 = arith.constant 0 : index
    %c0_64 = arith.constant 0 : index
    %55 = vector.load %arg3[%c0_63, %c0_64] : memref<1x128xf32, #tpu.memory_space<vmem>>, vector<1x128xf32>
    %56 = vector.broadcast %55 : vector<1x128xf32> to vector<20x128xf32>
    %57 = arith.mulf %54, %56 : vector<20x128xf32>
    %c0_65 = arith.constant 0 : index
    %c0_66 = arith.constant 0 : index
    %58 = vector.load %arg4[%c0_65, %c0_66] : memref<1x128xf32, #tpu.memory_space<vmem>>, vector<1x128xf32>
    %59 = vector.broadcast %58 : vector<1x128xf32> to vector<20x128xf32>
    %60 = arith.addf %57, %59 : vector<20x128xf32>
    %cst_67 = arith.constant 0.000000e+00 : f32
    %61 = vector.broadcast %cst_67 : f32 to vector<20x128xf32>
    %62 = arith.maximumf %60, %61 : vector<20x128xf32>
    %63 = arith.truncf %62 : vector<20x128xf32> to vector<20x128xbf16>
    %c0_68 = arith.constant 0 : index
    %c0_69 = arith.constant 0 : index
    %c0_70 = arith.constant 0 : index
    %64 = vector.load %arg5[%c0_68, %c0_69, %c0_70] : memref<1x20x128xbf16, #tpu.memory_space<vmem>>, vector<1x20x128xbf16>
    %65 = vector.shape_cast %64 : vector<1x20x128xbf16> to vector<20x128xbf16>
    %66 = vector.shape_cast %63 : vector<20x128xbf16> to vector<1x20x128xbf16>
    tpu.vector_store %arg5[%c0_68, %c0_69, %c0_70], %66 {strides = array<i32>} : memref<1x20x128xbf16, #tpu.memory_space<vmem>>, vector<1x20x128xbf16>,
    return
  }
  func.func @transform_0(%arg0: i32) -> (i32, i32, i32, i32) {
    %c0_i32 = arith.constant 0 : i32
    %c0_i32_0 = arith.constant 0 : i32
    %c0_i32_1 = arith.constant 0 : i32
    %c0_i32_2 = arith.constant 0 : i32
    return %arg0, %c0_i32, %c0_i32_0, %c0_i32_1 : i32, i32, i32, i32
  }
  func.func @transform_1(%arg0: i32) -> (i32, i32, i32) {
    %c0_i32 = arith.constant 0 : i32
    %c0_i32_0 = arith.constant 0 : i32
    %c0_i32_1 = arith.constant 0 : i32
    %c0_i32_2 = arith.constant 0 : i32
    return %c0_i32, %c0_i32_0, %c0_i32_1 : i32, i32, i32
  }
  func.func @transform_2(%arg0: i32) -> (i32, i32) {
    %c0_i32 = arith.constant 0 : i32
    %c0_i32_0 = arith.constant 0 : i32
    %c0_i32_1 = arith.constant 0 : i32
    return %c0_i32, %c0_i32_0 : i32, i32
  }
  func.func @transform_3(%arg0: i32) -> (i32, i32) {
    %c0_i32 = arith.constant 0 : i32
    %c0_i32_0 = arith.constant 0 : i32
    %c0_i32_1 = arith.constant 0 : i32
    return %c0_i32, %c0_i32_0 : i32, i32
  }
  func.func @transform_4(%arg0: i32) -> (i32, i32, i32) {
    %c0_i32 = arith.constant 0 : i32
    %c0_i32_0 = arith.constant 0 : i32
    %c0_i32_1 = arith.constant 0 : i32
    return %arg0, %c0_i32, %c0_i32_0 : i32, i32, i32
  }
}

module attributes {stable_mosaic.version = 11 : i64} {
  func.func @_matmul_bn_kernel(%arg0: i32, %arg1: i32, %arg2: i32, %arg3: memref<32x128xbf16, #tpu.memory_space<vmem>>, %arg4: memref<128x128xbf16, #tpu.memory_space<vmem>>, %arg5: memref<1x128xf32, #tpu.memory_space<vmem>>, %arg6: memref<1x128xf32, #tpu.memory_space<vmem>>, %arg7: memref<32x128xbf16, #tpu.memory_space<vmem>>, %arg8: memref<32x128xf32, #tpu.memory_space<vmem>>) attributes {dimension_semantics = [#tpu.dimension_semantics<parallel>, #tpu.dimension_semantics<parallel>, #tpu.dimension_semantics<arbitrary>], iteration_bounds = array<i64: 1, 1, 1>, scalar_prefetch = 0 : i64, scratch_operands = 1 : i64, tpu.core_type = #tpu.core_type<tc>, window_params = [{transform_indices = @transform_0, window_bounds = array<i64: 32, 128>}, {transform_indices = @transform_1, window_bounds = array<i64: 128, 128>}, {transform_indices = @transform_2, window_bounds = array<i64: 1, 128>}, {transform_indices = @transform_3, window_bounds = array<i64: 1, 128>}, {transform_indices = @transform_4, window_bounds = array<i64: 32, 128>}]} {
    %c0_i32 = arith.constant 0 : i32
    %0 = arith.cmpi eq, %arg2, %c0_i32 : i32
    %1 = arith.extui %0 : i1 to i32
    %c0_i32_0 = arith.constant 0 : i32
    %2 = arith.cmpi ne, %1, %c0_i32_0 : i32
    scf.if %2 {
      %cst_10 = arith.constant 0.000000e+00 : f32
      %12 = vector.broadcast %cst_10 : f32 to vector<32x128xf32>
      %c0_11 = arith.constant 0 : index
      %c0_12 = arith.constant 0 : index
      %13 = vector.load %arg8[%c0_11, %c0_12] : memref<32x128xf32, #tpu.memory_space<vmem>>, vector<32x128xf32>
      tpu.vector_store %arg8[%c0_11, %c0_12], %12 {strides = array<i32>} : memref<32x128xf32, #tpu.memory_space<vmem>>, vector<32x128xf32>,
    } else {
    }
    %c0 = arith.constant 0 : index
    %c0_1 = arith.constant 0 : index
    %3 = vector.load %arg8[%c0, %c0_1] : memref<32x128xf32, #tpu.memory_space<vmem>>, vector<32x128xf32>
    %c0_2 = arith.constant 0 : index
    %c0_3 = arith.constant 0 : index
    %4 = vector.load %arg3[%c0_2, %c0_3] : memref<32x128xbf16, #tpu.memory_space<vmem>>, vector<32x128xbf16>
    %c0_4 = arith.constant 0 : index
    %c0_5 = arith.constant 0 : index
    %5 = vector.load %arg4[%c0_4, %c0_5] : memref<128x128xbf16, #tpu.memory_space<vmem>>, vector<128x128xbf16>
    %cst = arith.constant dense<0.000000e+00> : vector<32x128xf32>
    %6 = tpu.matmul %4, %5, %cst {dimension_numbers = #tpu.dot_dimension_numbers<[1], [0], [0], [1], [0, 0, 1, 1], [], []>} : vector<32x128xbf16>, vector<128x128xbf16>, vector<32x128xf32> -> vector<32x128xf32>
    %7 = arith.addf %3, %6 : vector<32x128xf32>
    %c0_6 = arith.constant 0 : index
    %c0_7 = arith.constant 0 : index
    %8 = vector.load %arg8[%c0_6, %c0_7] : memref<32x128xf32, #tpu.memory_space<vmem>>, vector<32x128xf32>
    tpu.vector_store %arg8[%c0_6, %c0_7], %7 {strides = array<i32>} : memref<32x128xf32, #tpu.memory_space<vmem>>, vector<32x128xf32>,
    %c0_i32_8 = arith.constant 0 : i32
    %9 = arith.cmpi eq, %arg2, %c0_i32_8 : i32
    %10 = arith.extui %9 : i1 to i32
    %c0_i32_9 = arith.constant 0 : i32
    %11 = arith.cmpi ne, %10, %c0_i32_9 : i32
    scf.if %11 {
      %c0_10 = arith.constant 0 : index
      %c0_11 = arith.constant 0 : index
      %12 = vector.load %arg8[%c0_10, %c0_11] : memref<32x128xf32, #tpu.memory_space<vmem>>, vector<32x128xf32>
      %c0_12 = arith.constant 0 : index
      %c0_13 = arith.constant 0 : index
      %13 = vector.load %arg5[%c0_12, %c0_13] : memref<1x128xf32, #tpu.memory_space<vmem>>, vector<1x128xf32>
      %14 = vector.broadcast %13 : vector<1x128xf32> to vector<32x128xf32>
      %15 = arith.mulf %12, %14 : vector<32x128xf32>
      %c0_14 = arith.constant 0 : index
      %c0_15 = arith.constant 0 : index
      %16 = vector.load %arg6[%c0_14, %c0_15] : memref<1x128xf32, #tpu.memory_space<vmem>>, vector<1x128xf32>
      %17 = vector.broadcast %16 : vector<1x128xf32> to vector<32x128xf32>
      %18 = arith.addf %15, %17 : vector<32x128xf32>
      %19 = arith.truncf %18 : vector<32x128xf32> to vector<32x128xbf16>
      %c0_16 = arith.constant 0 : index
      %c0_17 = arith.constant 0 : index
      %20 = vector.load %arg7[%c0_16, %c0_17] : memref<32x128xbf16, #tpu.memory_space<vmem>>, vector<32x128xbf16>
      tpu.vector_store %arg7[%c0_16, %c0_17], %19 {strides = array<i32>} : memref<32x128xbf16, #tpu.memory_space<vmem>>, vector<32x128xbf16>,
    } else {
    }
    return
  }
  func.func @transform_0(%arg0: i32, %arg1: i32, %arg2: i32) -> (i32, i32) {
    %c0_i32 = arith.constant 0 : i32
    return %arg0, %arg2 : i32, i32
  }
  func.func @transform_1(%arg0: i32, %arg1: i32, %arg2: i32) -> (i32, i32) {
    %c0_i32 = arith.constant 0 : i32
    return %arg2, %arg1 : i32, i32
  }
  func.func @transform_2(%arg0: i32, %arg1: i32, %arg2: i32) -> (i32, i32) {
    %c0_i32 = arith.constant 0 : i32
    %c0_i32_0 = arith.constant 0 : i32
    return %c0_i32, %arg1 : i32, i32
  }
  func.func @transform_3(%arg0: i32, %arg1: i32, %arg2: i32) -> (i32, i32) {
    %c0_i32 = arith.constant 0 : i32
    %c0_i32_0 = arith.constant 0 : i32
    return %c0_i32, %arg1 : i32, i32
  }
  func.func @transform_4(%arg0: i32, %arg1: i32, %arg2: i32) -> (i32, i32) {
    %c0_i32 = arith.constant 0 : i32
    return %arg0, %arg1 : i32, i32
  }
}

module attributes {stable_mosaic.version = 11 : i64} {
  func.func @_matmul_bn_kernel(%arg0: i32, %arg1: i32, %arg2: i32, %arg3: memref<32x128xbf16, #tpu.memory_space<vmem>>, %arg4: memref<128x128xbf16, #tpu.memory_space<vmem>>, %arg5: memref<1x128xf32, #tpu.memory_space<vmem>>, %arg6: memref<1x128xf32, #tpu.memory_space<vmem>>, %arg7: memref<32x128xbf16, #tpu.memory_space<vmem>>, %arg8: memref<32x128xf32, #tpu.memory_space<vmem>>) attributes {dimension_semantics = [#tpu.dimension_semantics<parallel>, #tpu.dimension_semantics<parallel>, #tpu.dimension_semantics<arbitrary>], iteration_bounds = array<i64: 1, 1, 1>, scalar_prefetch = 0 : i64, scratch_operands = 1 : i64, tpu.core_type = #tpu.core_type<tc>, window_params = [{transform_indices = @transform_0, window_bounds = array<i64: 32, 128>}, {transform_indices = @transform_1, window_bounds = array<i64: 128, 128>}, {transform_indices = @transform_2, window_bounds = array<i64: 1, 128>}, {transform_indices = @transform_3, window_bounds = array<i64: 1, 128>}, {transform_indices = @transform_4, window_bounds = array<i64: 32, 128>}]} {
    %c0_i32 = arith.constant 0 : i32
    %0 = arith.cmpi eq, %arg2, %c0_i32 : i32
    %1 = arith.extui %0 : i1 to i32
    %c0_i32_0 = arith.constant 0 : i32
    %2 = arith.cmpi ne, %1, %c0_i32_0 : i32
    scf.if %2 {
      %cst_10 = arith.constant 0.000000e+00 : f32
      %12 = vector.broadcast %cst_10 : f32 to vector<32x128xf32>
      %c0_11 = arith.constant 0 : index
      %c0_12 = arith.constant 0 : index
      %13 = vector.load %arg8[%c0_11, %c0_12] : memref<32x128xf32, #tpu.memory_space<vmem>>, vector<32x128xf32>
      tpu.vector_store %arg8[%c0_11, %c0_12], %12 {strides = array<i32>} : memref<32x128xf32, #tpu.memory_space<vmem>>, vector<32x128xf32>,
    } else {
    }
    %c0 = arith.constant 0 : index
    %c0_1 = arith.constant 0 : index
    %3 = vector.load %arg8[%c0, %c0_1] : memref<32x128xf32, #tpu.memory_space<vmem>>, vector<32x128xf32>
    %c0_2 = arith.constant 0 : index
    %c0_3 = arith.constant 0 : index
    %4 = vector.load %arg3[%c0_2, %c0_3] : memref<32x128xbf16, #tpu.memory_space<vmem>>, vector<32x128xbf16>
    %c0_4 = arith.constant 0 : index
    %c0_5 = arith.constant 0 : index
    %5 = vector.load %arg4[%c0_4, %c0_5] : memref<128x128xbf16, #tpu.memory_space<vmem>>, vector<128x128xbf16>
    %cst = arith.constant dense<0.000000e+00> : vector<32x128xf32>
    %6 = tpu.matmul %4, %5, %cst {dimension_numbers = #tpu.dot_dimension_numbers<[1], [0], [0], [1], [0, 0, 1, 1], [], []>} : vector<32x128xbf16>, vector<128x128xbf16>, vector<32x128xf32> -> vector<32x128xf32>
    %7 = arith.addf %3, %6 : vector<32x128xf32>
    %c0_6 = arith.constant 0 : index
    %c0_7 = arith.constant 0 : index
    %8 = vector.load %arg8[%c0_6, %c0_7] : memref<32x128xf32, #tpu.memory_space<vmem>>, vector<32x128xf32>
    tpu.vector_store %arg8[%c0_6, %c0_7], %7 {strides = array<i32>} : memref<32x128xf32, #tpu.memory_space<vmem>>, vector<32x128xf32>,
    %c0_i32_8 = arith.constant 0 : i32
    %9 = arith.cmpi eq, %arg2, %c0_i32_8 : i32
    %10 = arith.extui %9 : i1 to i32
    %c0_i32_9 = arith.constant 0 : i32
    %11 = arith.cmpi ne, %10, %c0_i32_9 : i32
    scf.if %11 {
      %c0_10 = arith.constant 0 : index
      %c0_11 = arith.constant 0 : index
      %12 = vector.load %arg8[%c0_10, %c0_11] : memref<32x128xf32, #tpu.memory_space<vmem>>, vector<32x128xf32>
      %c0_12 = arith.constant 0 : index
      %c0_13 = arith.constant 0 : index
      %13 = vector.load %arg5[%c0_12, %c0_13] : memref<1x128xf32, #tpu.memory_space<vmem>>, vector<1x128xf32>
      %14 = vector.broadcast %13 : vector<1x128xf32> to vector<32x128xf32>
      %15 = arith.mulf %12, %14 : vector<32x128xf32>
      %c0_14 = arith.constant 0 : index
      %c0_15 = arith.constant 0 : index
      %16 = vector.load %arg6[%c0_14, %c0_15] : memref<1x128xf32, #tpu.memory_space<vmem>>, vector<1x128xf32>
      %17 = vector.broadcast %16 : vector<1x128xf32> to vector<32x128xf32>
      %18 = arith.addf %15, %17 : vector<32x128xf32>
      %cst_16 = arith.constant 0.000000e+00 : f32
      %19 = vector.broadcast %cst_16 : f32 to vector<32x128xf32>
      %20 = arith.maximumf %18, %19 : vector<32x128xf32>
      %21 = arith.truncf %20 : vector<32x128xf32> to vector<32x128xbf16>
      %c0_17 = arith.constant 0 : index
      %c0_18 = arith.constant 0 : index
      %22 = vector.load %arg7[%c0_17, %c0_18] : memref<32x128xbf16, #tpu.memory_space<vmem>>, vector<32x128xbf16>
      tpu.vector_store %arg7[%c0_17, %c0_18], %21 {strides = array<i32>} : memref<32x128xbf16, #tpu.memory_space<vmem>>, vector<32x128xbf16>,
    } else {
    }
    return
  }
  func.func @transform_0(%arg0: i32, %arg1: i32, %arg2: i32) -> (i32, i32) {
    %c0_i32 = arith.constant 0 : i32
    return %arg0, %arg2 : i32, i32
  }
  func.func @transform_1(%arg0: i32, %arg1: i32, %arg2: i32) -> (i32, i32) {
    %c0_i32 = arith.constant 0 : i32
    return %arg2, %arg1 : i32, i32
  }
  func.func @transform_2(%arg0: i32, %arg1: i32, %arg2: i32) -> (i32, i32) {
    %c0_i32 = arith.constant 0 : i32
    %c0_i32_0 = arith.constant 0 : i32
    return %c0_i32, %arg1 : i32, i32
  }
  func.func @transform_3(%arg0: i32, %arg1: i32, %arg2: i32) -> (i32, i32) {
    %c0_i32 = arith.constant 0 : i32
    %c0_i32_0 = arith.constant 0 : i32
    return %c0_i32, %arg1 : i32, i32
  }
  func.func @transform_4(%arg0: i32, %arg1: i32, %arg2: i32) -> (i32, i32) {
    %c0_i32 = arith.constant 0 : i32
    return %arg0, %arg1 : i32, i32
  }
}

module attributes {stable_mosaic.version = 11 : i64} {
  func.func @_matmul_bn_res_kernel(%arg0: i32, %arg1: i32, %arg2: i32, %arg3: memref<32x128xbf16, #tpu.memory_space<vmem>>, %arg4: memref<128x128xbf16, #tpu.memory_space<vmem>>, %arg5: memref<1x128xf32, #tpu.memory_space<vmem>>, %arg6: memref<1x128xf32, #tpu.memory_space<vmem>>, %arg7: memref<32x128xbf16, #tpu.memory_space<vmem>>, %arg8: memref<32x128xbf16, #tpu.memory_space<vmem>>, %arg9: memref<32x128xf32, #tpu.memory_space<vmem>>) attributes {dimension_semantics = [#tpu.dimension_semantics<parallel>, #tpu.dimension_semantics<parallel>, #tpu.dimension_semantics<arbitrary>], iteration_bounds = array<i64: 1, 1, 1>, scalar_prefetch = 0 : i64, scratch_operands = 1 : i64, tpu.core_type = #tpu.core_type<tc>, window_params = [{transform_indices = @transform_0, window_bounds = array<i64: 32, 128>}, {transform_indices = @transform_1, window_bounds = array<i64: 128, 128>}, {transform_indices = @transform_2, window_bounds = array<i64: 1, 128>}, {transform_indices = @transform_3, window_bounds = array<i64: 1, 128>}, {transform_indices = @transform_4, window_bounds = array<i64: 32, 128>}, {transform_indices = @transform_5, window_bounds = array<i64: 32, 128>}]} {
    %c0_i32 = arith.constant 0 : i32
    %0 = arith.cmpi eq, %arg2, %c0_i32 : i32
    %1 = arith.extui %0 : i1 to i32
    %c0_i32_0 = arith.constant 0 : i32
    %2 = arith.cmpi ne, %1, %c0_i32_0 : i32
    scf.if %2 {
      %cst_10 = arith.constant 0.000000e+00 : f32
      %12 = vector.broadcast %cst_10 : f32 to vector<32x128xf32>
      %c0_11 = arith.constant 0 : index
      %c0_12 = arith.constant 0 : index
      %13 = vector.load %arg9[%c0_11, %c0_12] : memref<32x128xf32, #tpu.memory_space<vmem>>, vector<32x128xf32>
      tpu.vector_store %arg9[%c0_11, %c0_12], %12 {strides = array<i32>} : memref<32x128xf32, #tpu.memory_space<vmem>>, vector<32x128xf32>,
    } else {
    }
    %c0 = arith.constant 0 : index
    %c0_1 = arith.constant 0 : index
    %3 = vector.load %arg9[%c0, %c0_1] : memref<32x128xf32, #tpu.memory_space<vmem>>, vector<32x128xf32>
    %c0_2 = arith.constant 0 : index
    %c0_3 = arith.constant 0 : index
    %4 = vector.load %arg3[%c0_2, %c0_3] : memref<32x128xbf16, #tpu.memory_space<vmem>>, vector<32x128xbf16>
    %c0_4 = arith.constant 0 : index
    %c0_5 = arith.constant 0 : index
    %5 = vector.load %arg4[%c0_4, %c0_5] : memref<128x128xbf16, #tpu.memory_space<vmem>>, vector<128x128xbf16>
    %cst = arith.constant dense<0.000000e+00> : vector<32x128xf32>
    %6 = tpu.matmul %4, %5, %cst {dimension_numbers = #tpu.dot_dimension_numbers<[1], [0], [0], [1], [0, 0, 1, 1], [], []>} : vector<32x128xbf16>, vector<128x128xbf16>, vector<32x128xf32> -> vector<32x128xf32>
    %7 = arith.addf %3, %6 : vector<32x128xf32>
    %c0_6 = arith.constant 0 : index
    %c0_7 = arith.constant 0 : index
    %8 = vector.load %arg9[%c0_6, %c0_7] : memref<32x128xf32, #tpu.memory_space<vmem>>, vector<32x128xf32>
    tpu.vector_store %arg9[%c0_6, %c0_7], %7 {strides = array<i32>} : memref<32x128xf32, #tpu.memory_space<vmem>>, vector<32x128xf32>,
    %c0_i32_8 = arith.constant 0 : i32
    %9 = arith.cmpi eq, %arg2, %c0_i32_8 : i32
    %10 = arith.extui %9 : i1 to i32
    %c0_i32_9 = arith.constant 0 : i32
    %11 = arith.cmpi ne, %10, %c0_i32_9 : i32
    scf.if %11 {
      %c0_10 = arith.constant 0 : index
      %c0_11 = arith.constant 0 : index
      %12 = vector.load %arg9[%c0_10, %c0_11] : memref<32x128xf32, #tpu.memory_space<vmem>>, vector<32x128xf32>
      %c0_12 = arith.constant 0 : index
      %c0_13 = arith.constant 0 : index
      %13 = vector.load %arg5[%c0_12, %c0_13] : memref<1x128xf32, #tpu.memory_space<vmem>>, vector<1x128xf32>
      %14 = vector.broadcast %13 : vector<1x128xf32> to vector<32x128xf32>
      %15 = arith.mulf %12, %14 : vector<32x128xf32>
      %c0_14 = arith.constant 0 : index
      %c0_15 = arith.constant 0 : index
      %16 = vector.load %arg6[%c0_14, %c0_15] : memref<1x128xf32, #tpu.memory_space<vmem>>, vector<1x128xf32>
      %17 = vector.broadcast %16 : vector<1x128xf32> to vector<32x128xf32>
      %18 = arith.addf %15, %17 : vector<32x128xf32>
      %c0_16 = arith.constant 0 : index
      %c0_17 = arith.constant 0 : index
      %19 = vector.load %arg7[%c0_16, %c0_17] : memref<32x128xbf16, #tpu.memory_space<vmem>>, vector<32x128xbf16>
      %20 = arith.extf %19 : vector<32x128xbf16> to vector<32x128xf32>
      %21 = arith.addf %18, %20 : vector<32x128xf32>
      %cst_18 = arith.constant 0.000000e+00 : f32
      %22 = vector.broadcast %cst_18 : f32 to vector<32x128xf32>
      %23 = arith.maximumf %21, %22 : vector<32x128xf32>
      %24 = arith.truncf %23 : vector<32x128xf32> to vector<32x128xbf16>
      %c0_19 = arith.constant 0 : index
      %c0_20 = arith.constant 0 : index
      %25 = vector.load %arg8[%c0_19, %c0_20] : memref<32x128xbf16, #tpu.memory_space<vmem>>, vector<32x128xbf16>
      tpu.vector_store %arg8[%c0_19, %c0_20], %24 {strides = array<i32>} : memref<32x128xbf16, #tpu.memory_space<vmem>>, vector<32x128xbf16>,
    } else {
    }
    return
  }
  func.func @transform_0(%arg0: i32, %arg1: i32, %arg2: i32) -> (i32, i32) {
    %c0_i32 = arith.constant 0 : i32
    return %arg0, %arg2 : i32, i32
  }
  func.func @transform_1(%arg0: i32, %arg1: i32, %arg2: i32) -> (i32, i32) {
    %c0_i32 = arith.constant 0 : i32
    return %arg2, %arg1 : i32, i32
  }
  func.func @transform_2(%arg0: i32, %arg1: i32, %arg2: i32) -> (i32, i32) {
    %c0_i32 = arith.constant 0 : i32
    %c0_i32_0 = arith.constant 0 : i32
    return %c0_i32, %arg1 : i32, i32
  }
  func.func @transform_3(%arg0: i32, %arg1: i32, %arg2: i32) -> (i32, i32) {
    %c0_i32 = arith.constant 0 : i32
    %c0_i32_0 = arith.constant 0 : i32
    return %c0_i32, %arg1 : i32, i32
  }
  func.func @transform_4(%arg0: i32, %arg1: i32, %arg2: i32) -> (i32, i32) {
    %c0_i32 = arith.constant 0 : i32
    return %arg0, %arg1 : i32, i32
  }
  func.func @transform_5(%arg0: i32, %arg1: i32, %arg2: i32) -> (i32, i32) {
    %c0_i32 = arith.constant 0 : i32
    return %arg0, %arg1 : i32, i32
  }
}

module attributes {stable_mosaic.version = 11 : i64} {
  func.func @_direct_conv_bn_kernel(%arg0: i32, %arg1: memref<1x1x42x128xbf16, #tpu.memory_space<vmem>>, %arg2: memref<9x128x128xbf16, #tpu.memory_space<vmem>>, %arg3: memref<1x128xf32, #tpu.memory_space<vmem>>, %arg4: memref<1x128xf32, #tpu.memory_space<vmem>>, %arg5: memref<1x24x128xbf16, #tpu.memory_space<vmem>>) attributes {dimension_semantics = [#tpu.dimension_semantics<parallel>], iteration_bounds = array<i64: 2>, scalar_prefetch = 0 : i64, scratch_operands = 0 : i64, tpu.core_type = #tpu.core_type<tc>, window_params = [{transform_indices = @transform_0, window_bounds = array<i64: 1, 1, 42, 128>}, {pipeline_mode = #tpu.pipeline_mode<synchronous>, transform_indices = @transform_1, window_bounds = array<i64: 9, 128, 128>}, {pipeline_mode = #tpu.pipeline_mode<synchronous>, transform_indices = @transform_2, window_bounds = array<i64: 1, 128>}, {pipeline_mode = #tpu.pipeline_mode<synchronous>, transform_indices = @transform_3, window_bounds = array<i64: 1, 128>}, {transform_indices = @transform_4, window_bounds = array<i64: 1, 24, 128>}]} {
    %cst = arith.constant 0.000000e+00 : f32
    %0 = vector.broadcast %cst : f32 to vector<24x128xf32>
    %c0 = arith.constant 0 : index
    %c0_0 = arith.constant 0 : index
    %c0_1 = arith.constant 0 : index
    %c0_2 = arith.constant 0 : index
    %1 = vector.load %arg1[%c0, %c0_0, %c0_1, %c0_2] : memref<1x1x42x128xbf16, #tpu.memory_space<vmem>>, vector<1x1x24x128xbf16>
    %2 = vector.shape_cast %1 : vector<1x1x24x128xbf16> to vector<24x128xbf16>
    %c0_3 = arith.constant 0 : index
    %c0_4 = arith.constant 0 : index
    %c0_5 = arith.constant 0 : index
    %3 = vector.load %arg2[%c0_3, %c0_4, %c0_5] : memref<9x128x128xbf16, #tpu.memory_space<vmem>>, vector<1x128x128xbf16>
    %4 = vector.shape_cast %3 : vector<1x128x128xbf16> to vector<128x128xbf16>
    %cst_6 = arith.constant dense<0.000000e+00> : vector<24x128xf32>
    %5 = tpu.matmul %2, %4, %cst_6 {dimension_numbers = #tpu.dot_dimension_numbers<[1], [0], [0], [1], [0, 0, 1, 1], [], []>} : vector<24x128xbf16>, vector<128x128xbf16>, vector<24x128xf32> -> vector<24x128xf32>
    %6 = arith.addf %0, %5 : vector<24x128xf32>
    %c0_7 = arith.constant 0 : index
    %c0_8 = arith.constant 0 : index
    %c1 = arith.constant 1 : index
    %c0_9 = arith.constant 0 : index
    %7 = vector.load %arg1[%c0_7, %c0_8, %c1, %c0_9] : memref<1x1x42x128xbf16, #tpu.memory_space<vmem>>, vector<1x1x24x128xbf16>
    %8 = vector.shape_cast %7 : vector<1x1x24x128xbf16> to vector<24x128xbf16>
    %c1_10 = arith.constant 1 : index
    %c0_11 = arith.constant 0 : index
    %c0_12 = arith.constant 0 : index
    %9 = vector.load %arg2[%c1_10, %c0_11, %c0_12] : memref<9x128x128xbf16, #tpu.memory_space<vmem>>, vector<1x128x128xbf16>
    %10 = vector.shape_cast %9 : vector<1x128x128xbf16> to vector<128x128xbf16>
    %cst_13 = arith.constant dense<0.000000e+00> : vector<24x128xf32>
    %11 = tpu.matmul %8, %10, %cst_13 {dimension_numbers = #tpu.dot_dimension_numbers<[1], [0], [0], [1], [0, 0, 1, 1], [], []>} : vector<24x128xbf16>, vector<128x128xbf16>, vector<24x128xf32> -> vector<24x128xf32>
    %12 = arith.addf %6, %11 : vector<24x128xf32>
    %c0_14 = arith.constant 0 : index
    %c0_15 = arith.constant 0 : index
    %c2 = arith.constant 2 : index
    %c0_16 = arith.constant 0 : index
    %13 = vector.load %arg1[%c0_14, %c0_15, %c2, %c0_16] : memref<1x1x42x128xbf16, #tpu.memory_space<vmem>>, vector<1x1x24x128xbf16>
    %14 = vector.shape_cast %13 : vector<1x1x24x128xbf16> to vector<24x128xbf16>
    %c2_17 = arith.constant 2 : index
    %c0_18 = arith.constant 0 : index
    %c0_19 = arith.constant 0 : index
    %15 = vector.load %arg2[%c2_17, %c0_18, %c0_19] : memref<9x128x128xbf16, #tpu.memory_space<vmem>>, vector<1x128x128xbf16>
    %16 = vector.shape_cast %15 : vector<1x128x128xbf16> to vector<128x128xbf16>
    %cst_20 = arith.constant dense<0.000000e+00> : vector<24x128xf32>
    %17 = tpu.matmul %14, %16, %cst_20 {dimension_numbers = #tpu.dot_dimension_numbers<[1], [0], [0], [1], [0, 0, 1, 1], [], []>} : vector<24x128xbf16>, vector<128x128xbf16>, vector<24x128xf32> -> vector<24x128xf32>
    %18 = arith.addf %12, %17 : vector<24x128xf32>
    %c0_21 = arith.constant 0 : index
    %c0_22 = arith.constant 0 : index
    %c6 = arith.constant 6 : index
    %c0_23 = arith.constant 0 : index
    %19 = vector.load %arg1[%c0_21, %c0_22, %c6, %c0_23] : memref<1x1x42x128xbf16, #tpu.memory_space<vmem>>, vector<1x1x24x128xbf16>
    %20 = vector.shape_cast %19 : vector<1x1x24x128xbf16> to vector<24x128xbf16>
    %c3 = arith.constant 3 : index
    %c0_24 = arith.constant 0 : index
    %c0_25 = arith.constant 0 : index
    %21 = vector.load %arg2[%c3, %c0_24, %c0_25] : memref<9x128x128xbf16, #tpu.memory_space<vmem>>, vector<1x128x128xbf16>
    %22 = vector.shape_cast %21 : vector<1x128x128xbf16> to vector<128x128xbf16>
    %cst_26 = arith.constant dense<0.000000e+00> : vector<24x128xf32>
    %23 = tpu.matmul %20, %22, %cst_26 {dimension_numbers = #tpu.dot_dimension_numbers<[1], [0], [0], [1], [0, 0, 1, 1], [], []>} : vector<24x128xbf16>, vector<128x128xbf16>, vector<24x128xf32> -> vector<24x128xf32>
    %24 = arith.addf %18, %23 : vector<24x128xf32>
    %c0_27 = arith.constant 0 : index
    %c0_28 = arith.constant 0 : index
    %c7 = arith.constant 7 : index
    %c0_29 = arith.constant 0 : index
    %25 = vector.load %arg1[%c0_27, %c0_28, %c7, %c0_29] : memref<1x1x42x128xbf16, #tpu.memory_space<vmem>>, vector<1x1x24x128xbf16>
    %26 = vector.shape_cast %25 : vector<1x1x24x128xbf16> to vector<24x128xbf16>
    %c4 = arith.constant 4 : index
    %c0_30 = arith.constant 0 : index
    %c0_31 = arith.constant 0 : index
    %27 = vector.load %arg2[%c4, %c0_30, %c0_31] : memref<9x128x128xbf16, #tpu.memory_space<vmem>>, vector<1x128x128xbf16>
    %28 = vector.shape_cast %27 : vector<1x128x128xbf16> to vector<128x128xbf16>
    %cst_32 = arith.constant dense<0.000000e+00> : vector<24x128xf32>
    %29 = tpu.matmul %26, %28, %cst_32 {dimension_numbers = #tpu.dot_dimension_numbers<[1], [0], [0], [1], [0, 0, 1, 1], [], []>} : vector<24x128xbf16>, vector<128x128xbf16>, vector<24x128xf32> -> vector<24x128xf32>
    %30 = arith.addf %24, %29 : vector<24x128xf32>
    %c0_33 = arith.constant 0 : index
    %c0_34 = arith.constant 0 : index
    %c8 = arith.constant 8 : index
    %c0_35 = arith.constant 0 : index
    %31 = vector.load %arg1[%c0_33, %c0_34, %c8, %c0_35] : memref<1x1x42x128xbf16, #tpu.memory_space<vmem>>, vector<1x1x24x128xbf16>
    %32 = vector.shape_cast %31 : vector<1x1x24x128xbf16> to vector<24x128xbf16>
    %c5 = arith.constant 5 : index
    %c0_36 = arith.constant 0 : index
    %c0_37 = arith.constant 0 : index
    %33 = vector.load %arg2[%c5, %c0_36, %c0_37] : memref<9x128x128xbf16, #tpu.memory_space<vmem>>, vector<1x128x128xbf16>
    %34 = vector.shape_cast %33 : vector<1x128x128xbf16> to vector<128x128xbf16>
    %cst_38 = arith.constant dense<0.000000e+00> : vector<24x128xf32>
    %35 = tpu.matmul %32, %34, %cst_38 {dimension_numbers = #tpu.dot_dimension_numbers<[1], [0], [0], [1], [0, 0, 1, 1], [], []>} : vector<24x128xbf16>, vector<128x128xbf16>, vector<24x128xf32> -> vector<24x128xf32>
    %36 = arith.addf %30, %35 : vector<24x128xf32>
    %c0_39 = arith.constant 0 : index
    %c0_40 = arith.constant 0 : index
    %c12 = arith.constant 12 : index
    %c0_41 = arith.constant 0 : index
    %37 = vector.load %arg1[%c0_39, %c0_40, %c12, %c0_41] : memref<1x1x42x128xbf16, #tpu.memory_space<vmem>>, vector<1x1x24x128xbf16>
    %38 = vector.shape_cast %37 : vector<1x1x24x128xbf16> to vector<24x128xbf16>
    %c6_42 = arith.constant 6 : index
    %c0_43 = arith.constant 0 : index
    %c0_44 = arith.constant 0 : index
    %39 = vector.load %arg2[%c6_42, %c0_43, %c0_44] : memref<9x128x128xbf16, #tpu.memory_space<vmem>>, vector<1x128x128xbf16>
    %40 = vector.shape_cast %39 : vector<1x128x128xbf16> to vector<128x128xbf16>
    %cst_45 = arith.constant dense<0.000000e+00> : vector<24x128xf32>
    %41 = tpu.matmul %38, %40, %cst_45 {dimension_numbers = #tpu.dot_dimension_numbers<[1], [0], [0], [1], [0, 0, 1, 1], [], []>} : vector<24x128xbf16>, vector<128x128xbf16>, vector<24x128xf32> -> vector<24x128xf32>
    %42 = arith.addf %36, %41 : vector<24x128xf32>
    %c0_46 = arith.constant 0 : index
    %c0_47 = arith.constant 0 : index
    %c13 = arith.constant 13 : index
    %c0_48 = arith.constant 0 : index
    %43 = vector.load %arg1[%c0_46, %c0_47, %c13, %c0_48] : memref<1x1x42x128xbf16, #tpu.memory_space<vmem>>, vector<1x1x24x128xbf16>
    %44 = vector.shape_cast %43 : vector<1x1x24x128xbf16> to vector<24x128xbf16>
    %c7_49 = arith.constant 7 : index
    %c0_50 = arith.constant 0 : index
    %c0_51 = arith.constant 0 : index
    %45 = vector.load %arg2[%c7_49, %c0_50, %c0_51] : memref<9x128x128xbf16, #tpu.memory_space<vmem>>, vector<1x128x128xbf16>
    %46 = vector.shape_cast %45 : vector<1x128x128xbf16> to vector<128x128xbf16>
    %cst_52 = arith.constant dense<0.000000e+00> : vector<24x128xf32>
    %47 = tpu.matmul %44, %46, %cst_52 {dimension_numbers = #tpu.dot_dimension_numbers<[1], [0], [0], [1], [0, 0, 1, 1], [], []>} : vector<24x128xbf16>, vector<128x128xbf16>, vector<24x128xf32> -> vector<24x128xf32>
    %48 = arith.addf %42, %47 : vector<24x128xf32>
    %c0_53 = arith.constant 0 : index
    %c0_54 = arith.constant 0 : index
    %c14 = arith.constant 14 : index
    %c0_55 = arith.constant 0 : index
    %49 = vector.load %arg1[%c0_53, %c0_54, %c14, %c0_55] : memref<1x1x42x128xbf16, #tpu.memory_space<vmem>>, vector<1x1x24x128xbf16>
    %50 = vector.shape_cast %49 : vector<1x1x24x128xbf16> to vector<24x128xbf16>
    %c8_56 = arith.constant 8 : index
    %c0_57 = arith.constant 0 : index
    %c0_58 = arith.constant 0 : index
    %51 = vector.load %arg2[%c8_56, %c0_57, %c0_58] : memref<9x128x128xbf16, #tpu.memory_space<vmem>>, vector<1x128x128xbf16>
    %52 = vector.shape_cast %51 : vector<1x128x128xbf16> to vector<128x128xbf16>
    %cst_59 = arith.constant dense<0.000000e+00> : vector<24x128xf32>
    %53 = tpu.matmul %50, %52, %cst_59 {dimension_numbers = #tpu.dot_dimension_numbers<[1], [0], [0], [1], [0, 0, 1, 1], [], []>} : vector<24x128xbf16>, vector<128x128xbf16>, vector<24x128xf32> -> vector<24x128xf32>
    %54 = arith.addf %48, %53 : vector<24x128xf32>
    %c0_60 = arith.constant 0 : index
    %c0_61 = arith.constant 0 : index
    %55 = vector.load %arg3[%c0_60, %c0_61] : memref<1x128xf32, #tpu.memory_space<vmem>>, vector<1x128xf32>
    %56 = vector.broadcast %55 : vector<1x128xf32> to vector<24x128xf32>
    %57 = arith.mulf %54, %56 : vector<24x128xf32>
    %c0_62 = arith.constant 0 : index
    %c0_63 = arith.constant 0 : index
    %58 = vector.load %arg4[%c0_62, %c0_63] : memref<1x128xf32, #tpu.memory_space<vmem>>, vector<1x128xf32>
    %59 = vector.broadcast %58 : vector<1x128xf32> to vector<24x128xf32>
    %60 = arith.addf %57, %59 : vector<24x128xf32>
    %cst_64 = arith.constant 0.000000e+00 : f32
    %61 = vector.broadcast %cst_64 : f32 to vector<24x128xf32>
    %62 = arith.maximumf %60, %61 : vector<24x128xf32>
    %63 = arith.truncf %62 : vector<24x128xf32> to vector<24x128xbf16>
    %c0_65 = arith.constant 0 : index
    %c0_66 = arith.constant 0 : index
    %c0_67 = arith.constant 0 : index
    %64 = vector.load %arg5[%c0_65, %c0_66, %c0_67] : memref<1x24x128xbf16, #tpu.memory_space<vmem>>, vector<1x24x128xbf16>
    %65 = vector.shape_cast %64 : vector<1x24x128xbf16> to vector<24x128xbf16>
    %66 = vector.shape_cast %63 : vector<24x128xbf16> to vector<1x24x128xbf16>
    tpu.vector_store %arg5[%c0_65, %c0_66, %c0_67], %66 {strides = array<i32>} : memref<1x24x128xbf16, #tpu.memory_space<vmem>>, vector<1x24x128xbf16>,
    return
  }
  func.func @transform_0(%arg0: i32) -> (i32, i32, i32, i32) {
    %c0_i32 = arith.constant 0 : i32
    %c0_i32_0 = arith.constant 0 : i32
    %c0_i32_1 = arith.constant 0 : i32
    %c0_i32_2 = arith.constant 0 : i32
    return %arg0, %c0_i32, %c0_i32_0, %c0_i32_1 : i32, i32, i32, i32
  }
  func.func @transform_1(%arg0: i32) -> (i32, i32, i32) {
    %c0_i32 = arith.constant 0 : i32
    %c0_i32_0 = arith.constant 0 : i32
    %c0_i32_1 = arith.constant 0 : i32
    %c0_i32_2 = arith.constant 0 : i32
    return %c0_i32, %c0_i32_0, %c0_i32_1 : i32, i32, i32
  }
  func.func @transform_2(%arg0: i32) -> (i32, i32) {
    %c0_i32 = arith.constant 0 : i32
    %c0_i32_0 = arith.constant 0 : i32
    %c0_i32_1 = arith.constant 0 : i32
    return %c0_i32, %c0_i32_0 : i32, i32
  }
  func.func @transform_3(%arg0: i32) -> (i32, i32) {
    %c0_i32 = arith.constant 0 : i32
    %c0_i32_0 = arith.constant 0 : i32
    %c0_i32_1 = arith.constant 0 : i32
    return %c0_i32, %c0_i32_0 : i32, i32
  }
  func.func @transform_4(%arg0: i32) -> (i32, i32, i32) {
    %c0_i32 = arith.constant 0 : i32
    %c0_i32_0 = arith.constant 0 : i32
    %c0_i32_1 = arith.constant 0 : i32
    return %arg0, %c0_i32, %c0_i32_0 : i32, i32, i32
  }
}

module attributes {stable_mosaic.version = 11 : i64} {
  func.func @_direct_conv_bn_kernel(%arg0: i32, %arg1: memref<1x4x12x128xbf16, #tpu.memory_space<vmem>>, %arg2: memref<9x128x128xbf16, #tpu.memory_space<vmem>>, %arg3: memref<1x128xf32, #tpu.memory_space<vmem>>, %arg4: memref<1x128xf32, #tpu.memory_space<vmem>>, %arg5: memref<1x6x128xbf16, #tpu.memory_space<vmem>>) attributes {dimension_semantics = [#tpu.dimension_semantics<parallel>], iteration_bounds = array<i64: 2>, scalar_prefetch = 0 : i64, scratch_operands = 0 : i64, tpu.core_type = #tpu.core_type<tc>, window_params = [{transform_indices = @transform_0, window_bounds = array<i64: 1, 4, 12, 128>}, {pipeline_mode = #tpu.pipeline_mode<synchronous>, transform_indices = @transform_1, window_bounds = array<i64: 9, 128, 128>}, {pipeline_mode = #tpu.pipeline_mode<synchronous>, transform_indices = @transform_2, window_bounds = array<i64: 1, 128>}, {pipeline_mode = #tpu.pipeline_mode<synchronous>, transform_indices = @transform_3, window_bounds = array<i64: 1, 128>}, {transform_indices = @transform_4, window_bounds = array<i64: 1, 6, 128>}]} {
    %cst = arith.constant 0.000000e+00 : f32
    %0 = vector.broadcast %cst : f32 to vector<6x128xf32>
    %c0 = arith.constant 0 : index
    %c0_0 = arith.constant 0 : index
    %c0_1 = arith.constant 0 : index
    %c0_2 = arith.constant 0 : index
    %1 = vector.load %arg1[%c0, %c0_0, %c0_1, %c0_2] : memref<1x4x12x128xbf16, #tpu.memory_space<vmem>>, vector<1x1x6x128xbf16>
    %2 = vector.shape_cast %1 : vector<1x1x6x128xbf16> to vector<6x128xbf16>
    %c0_3 = arith.constant 0 : index
    %c0_4 = arith.constant 0 : index
    %c0_5 = arith.constant 0 : index
    %3 = vector.load %arg2[%c0_3, %c0_4, %c0_5] : memref<9x128x128xbf16, #tpu.memory_space<vmem>>, vector<1x128x128xbf16>
    %4 = vector.shape_cast %3 : vector<1x128x128xbf16> to vector<128x128xbf16>
    %cst_6 = arith.constant dense<0.000000e+00> : vector<6x128xf32>
    %5 = tpu.matmul %2, %4, %cst_6 {dimension_numbers = #tpu.dot_dimension_numbers<[1], [0], [0], [1], [0, 0, 1, 1], [], []>} : vector<6x128xbf16>, vector<128x128xbf16>, vector<6x128xf32> -> vector<6x128xf32>
    %6 = arith.addf %0, %5 : vector<6x128xf32>
    %c0_7 = arith.constant 0 : index
    %c1 = arith.constant 1 : index
    %c0_8 = arith.constant 0 : index
    %c0_9 = arith.constant 0 : index
    %7 = vector.load %arg1[%c0_7, %c1, %c0_8, %c0_9] : memref<1x4x12x128xbf16, #tpu.memory_space<vmem>>, vector<1x1x6x128xbf16>
    %8 = vector.shape_cast %7 : vector<1x1x6x128xbf16> to vector<6x128xbf16>
    %c1_10 = arith.constant 1 : index
    %c0_11 = arith.constant 0 : index
    %c0_12 = arith.constant 0 : index
    %9 = vector.load %arg2[%c1_10, %c0_11, %c0_12] : memref<9x128x128xbf16, #tpu.memory_space<vmem>>, vector<1x128x128xbf16>
    %10 = vector.shape_cast %9 : vector<1x128x128xbf16> to vector<128x128xbf16>
    %cst_13 = arith.constant dense<0.000000e+00> : vector<6x128xf32>
    %11 = tpu.matmul %8, %10, %cst_13 {dimension_numbers = #tpu.dot_dimension_numbers<[1], [0], [0], [1], [0, 0, 1, 1], [], []>} : vector<6x128xbf16>, vector<128x128xbf16>, vector<6x128xf32> -> vector<6x128xf32>
    %12 = arith.addf %6, %11 : vector<6x128xf32>
    %c0_14 = arith.constant 0 : index
    %c0_15 = arith.constant 0 : index
    %c1_16 = arith.constant 1 : index
    %c0_17 = arith.constant 0 : index
    %13 = vector.load %arg1[%c0_14, %c0_15, %c1_16, %c0_17] : memref<1x4x12x128xbf16, #tpu.memory_space<vmem>>, vector<1x1x6x128xbf16>
    %14 = vector.shape_cast %13 : vector<1x1x6x128xbf16> to vector<6x128xbf16>
    %c2 = arith.constant 2 : index
    %c0_18 = arith.constant 0 : index
    %c0_19 = arith.constant 0 : index
    %15 = vector.load %arg2[%c2, %c0_18, %c0_19] : memref<9x128x128xbf16, #tpu.memory_space<vmem>>, vector<1x128x128xbf16>
    %16 = vector.shape_cast %15 : vector<1x128x128xbf16> to vector<128x128xbf16>
    %cst_20 = arith.constant dense<0.000000e+00> : vector<6x128xf32>
    %17 = tpu.matmul %14, %16, %cst_20 {dimension_numbers = #tpu.dot_dimension_numbers<[1], [0], [0], [1], [0, 0, 1, 1], [], []>} : vector<6x128xbf16>, vector<128x128xbf16>, vector<6x128xf32> -> vector<6x128xf32>
    %18 = arith.addf %12, %17 : vector<6x128xf32>
    %c0_21 = arith.constant 0 : index
    %c2_22 = arith.constant 2 : index
    %c0_23 = arith.constant 0 : index
    %c0_24 = arith.constant 0 : index
    %19 = vector.load %arg1[%c0_21, %c2_22, %c0_23, %c0_24] : memref<1x4x12x128xbf16, #tpu.memory_space<vmem>>, vector<1x1x6x128xbf16>
    %20 = vector.shape_cast %19 : vector<1x1x6x128xbf16> to vector<6x128xbf16>
    %c3 = arith.constant 3 : index
    %c0_25 = arith.constant 0 : index
    %c0_26 = arith.constant 0 : index
    %21 = vector.load %arg2[%c3, %c0_25, %c0_26] : memref<9x128x128xbf16, #tpu.memory_space<vmem>>, vector<1x128x128xbf16>
    %22 = vector.shape_cast %21 : vector<1x128x128xbf16> to vector<128x128xbf16>
    %cst_27 = arith.constant dense<0.000000e+00> : vector<6x128xf32>
    %23 = tpu.matmul %20, %22, %cst_27 {dimension_numbers = #tpu.dot_dimension_numbers<[1], [0], [0], [1], [0, 0, 1, 1], [], []>} : vector<6x128xbf16>, vector<128x128xbf16>, vector<6x128xf32> -> vector<6x128xf32>
    %24 = arith.addf %18, %23 : vector<6x128xf32>
    %c0_28 = arith.constant 0 : index
    %c3_29 = arith.constant 3 : index
    %c0_30 = arith.constant 0 : index
    %c0_31 = arith.constant 0 : index
    %25 = vector.load %arg1[%c0_28, %c3_29, %c0_30, %c0_31] : memref<1x4x12x128xbf16, #tpu.memory_space<vmem>>, vector<1x1x6x128xbf16>
    %26 = vector.shape_cast %25 : vector<1x1x6x128xbf16> to vector<6x128xbf16>
    %c4 = arith.constant 4 : index
    %c0_32 = arith.constant 0 : index
    %c0_33 = arith.constant 0 : index
    %27 = vector.load %arg2[%c4, %c0_32, %c0_33] : memref<9x128x128xbf16, #tpu.memory_space<vmem>>, vector<1x128x128xbf16>
    %28 = vector.shape_cast %27 : vector<1x128x128xbf16> to vector<128x128xbf16>
    %cst_34 = arith.constant dense<0.000000e+00> : vector<6x128xf32>
    %29 = tpu.matmul %26, %28, %cst_34 {dimension_numbers = #tpu.dot_dimension_numbers<[1], [0], [0], [1], [0, 0, 1, 1], [], []>} : vector<6x128xbf16>, vector<128x128xbf16>, vector<6x128xf32> -> vector<6x128xf32>
    %30 = arith.addf %24, %29 : vector<6x128xf32>
    %c0_35 = arith.constant 0 : index
    %c2_36 = arith.constant 2 : index
    %c1_37 = arith.constant 1 : index
    %c0_38 = arith.constant 0 : index
    %31 = vector.load %arg1[%c0_35, %c2_36, %c1_37, %c0_38] : memref<1x4x12x128xbf16, #tpu.memory_space<vmem>>, vector<1x1x6x128xbf16>
    %32 = vector.shape_cast %31 : vector<1x1x6x128xbf16> to vector<6x128xbf16>
    %c5 = arith.constant 5 : index
    %c0_39 = arith.constant 0 : index
    %c0_40 = arith.constant 0 : index
    %33 = vector.load %arg2[%c5, %c0_39, %c0_40] : memref<9x128x128xbf16, #tpu.memory_space<vmem>>, vector<1x128x128xbf16>
    %34 = vector.shape_cast %33 : vector<1x128x128xbf16> to vector<128x128xbf16>
    %cst_41 = arith.constant dense<0.000000e+00> : vector<6x128xf32>
    %35 = tpu.matmul %32, %34, %cst_41 {dimension_numbers = #tpu.dot_dimension_numbers<[1], [0], [0], [1], [0, 0, 1, 1], [], []>} : vector<6x128xbf16>, vector<128x128xbf16>, vector<6x128xf32> -> vector<6x128xf32>
    %36 = arith.addf %30, %35 : vector<6x128xf32>
    %c0_42 = arith.constant 0 : index
    %c0_43 = arith.constant 0 : index
    %c3_44 = arith.constant 3 : index
    %c0_45 = arith.constant 0 : index
    %37 = vector.load %arg1[%c0_42, %c0_43, %c3_44, %c0_45] : memref<1x4x12x128xbf16, #tpu.memory_space<vmem>>, vector<1x1x6x128xbf16>
    %38 = vector.shape_cast %37 : vector<1x1x6x128xbf16> to vector<6x128xbf16>
    %c6 = arith.constant 6 : index
    %c0_46 = arith.constant 0 : index
    %c0_47 = arith.constant 0 : index
    %39 = vector.load %arg2[%c6, %c0_46, %c0_47] : memref<9x128x128xbf16, #tpu.memory_space<vmem>>, vector<1x128x128xbf16>
    %40 = vector.shape_cast %39 : vector<1x128x128xbf16> to vector<128x128xbf16>
    %cst_48 = arith.constant dense<0.000000e+00> : vector<6x128xf32>
    %41 = tpu.matmul %38, %40, %cst_48 {dimension_numbers = #tpu.dot_dimension_numbers<[1], [0], [0], [1], [0, 0, 1, 1], [], []>} : vector<6x128xbf16>, vector<128x128xbf16>, vector<6x128xf32> -> vector<6x128xf32>
    %42 = arith.addf %36, %41 : vector<6x128xf32>
    %c0_49 = arith.constant 0 : index
    %c1_50 = arith.constant 1 : index
    %c3_51 = arith.constant 3 : index
    %c0_52 = arith.constant 0 : index
    %43 = vector.load %arg1[%c0_49, %c1_50, %c3_51, %c0_52] : memref<1x4x12x128xbf16, #tpu.memory_space<vmem>>, vector<1x1x6x128xbf16>
    %44 = vector.shape_cast %43 : vector<1x1x6x128xbf16> to vector<6x128xbf16>
    %c7 = arith.constant 7 : index
    %c0_53 = arith.constant 0 : index
    %c0_54 = arith.constant 0 : index
    %45 = vector.load %arg2[%c7, %c0_53, %c0_54] : memref<9x128x128xbf16, #tpu.memory_space<vmem>>, vector<1x128x128xbf16>
    %46 = vector.shape_cast %45 : vector<1x128x128xbf16> to vector<128x128xbf16>
    %cst_55 = arith.constant dense<0.000000e+00> : vector<6x128xf32>
    %47 = tpu.matmul %44, %46, %cst_55 {dimension_numbers = #tpu.dot_dimension_numbers<[1], [0], [0], [1], [0, 0, 1, 1], [], []>} : vector<6x128xbf16>, vector<128x128xbf16>, vector<6x128xf32> -> vector<6x128xf32>
    %48 = arith.addf %42, %47 : vector<6x128xf32>
    %c0_56 = arith.constant 0 : index
    %c0_57 = arith.constant 0 : index
    %c4_58 = arith.constant 4 : index
    %c0_59 = arith.constant 0 : index
    %49 = vector.load %arg1[%c0_56, %c0_57, %c4_58, %c0_59] : memref<1x4x12x128xbf16, #tpu.memory_space<vmem>>, vector<1x1x6x128xbf16>
    %50 = vector.shape_cast %49 : vector<1x1x6x128xbf16> to vector<6x128xbf16>
    %c8 = arith.constant 8 : index
    %c0_60 = arith.constant 0 : index
    %c0_61 = arith.constant 0 : index
    %51 = vector.load %arg2[%c8, %c0_60, %c0_61] : memref<9x128x128xbf16, #tpu.memory_space<vmem>>, vector<1x128x128xbf16>
    %52 = vector.shape_cast %51 : vector<1x128x128xbf16> to vector<128x128xbf16>
    %cst_62 = arith.constant dense<0.000000e+00> : vector<6x128xf32>
    %53 = tpu.matmul %50, %52, %cst_62 {dimension_numbers = #tpu.dot_dimension_numbers<[1], [0], [0], [1], [0, 0, 1, 1], [], []>} : vector<6x128xbf16>, vector<128x128xbf16>, vector<6x128xf32> -> vector<6x128xf32>
    %54 = arith.addf %48, %53 : vector<6x128xf32>
    %c0_63 = arith.constant 0 : index
    %c0_64 = arith.constant 0 : index
    %55 = vector.load %arg3[%c0_63, %c0_64] : memref<1x128xf32, #tpu.memory_space<vmem>>, vector<1x128xf32>
    %56 = vector.broadcast %55 : vector<1x128xf32> to vector<6x128xf32>
    %57 = arith.mulf %54, %56 : vector<6x128xf32>
    %c0_65 = arith.constant 0 : index
    %c0_66 = arith.constant 0 : index
    %58 = vector.load %arg4[%c0_65, %c0_66] : memref<1x128xf32, #tpu.memory_space<vmem>>, vector<1x128xf32>
    %59 = vector.broadcast %58 : vector<1x128xf32> to vector<6x128xf32>
    %60 = arith.addf %57, %59 : vector<6x128xf32>
    %cst_67 = arith.constant 0.000000e+00 : f32
    %61 = vector.broadcast %cst_67 : f32 to vector<6x128xf32>
    %62 = arith.maximumf %60, %61 : vector<6x128xf32>
    %63 = arith.truncf %62 : vector<6x128xf32> to vector<6x128xbf16>
    %c0_68 = arith.constant 0 : index
    %c0_69 = arith.constant 0 : index
    %c0_70 = arith.constant 0 : index
    %64 = vector.load %arg5[%c0_68, %c0_69, %c0_70] : memref<1x6x128xbf16, #tpu.memory_space<vmem>>, vector<1x6x128xbf16>
    %65 = vector.shape_cast %64 : vector<1x6x128xbf16> to vector<6x128xbf16>
    %66 = vector.shape_cast %63 : vector<6x128xbf16> to vector<1x6x128xbf16>
    tpu.vector_store %arg5[%c0_68, %c0_69, %c0_70], %66 {strides = array<i32>} : memref<1x6x128xbf16, #tpu.memory_space<vmem>>, vector<1x6x128xbf16>,
    return
  }
  func.func @transform_0(%arg0: i32) -> (i32, i32, i32, i32) {
    %c0_i32 = arith.constant 0 : i32
    %c0_i32_0 = arith.constant 0 : i32
    %c0_i32_1 = arith.constant 0 : i32
    %c0_i32_2 = arith.constant 0 : i32
    return %arg0, %c0_i32, %c0_i32_0, %c0_i32_1 : i32, i32, i32, i32
  }
  func.func @transform_1(%arg0: i32) -> (i32, i32, i32) {
    %c0_i32 = arith.constant 0 : i32
    %c0_i32_0 = arith.constant 0 : i32
    %c0_i32_1 = arith.constant 0 : i32
    %c0_i32_2 = arith.constant 0 : i32
    return %c0_i32, %c0_i32_0, %c0_i32_1 : i32, i32, i32
  }
  func.func @transform_2(%arg0: i32) -> (i32, i32) {
    %c0_i32 = arith.constant 0 : i32
    %c0_i32_0 = arith.constant 0 : i32
    %c0_i32_1 = arith.constant 0 : i32
    return %c0_i32, %c0_i32_0 : i32, i32
  }
  func.func @transform_3(%arg0: i32) -> (i32, i32) {
    %c0_i32 = arith.constant 0 : i32
    %c0_i32_0 = arith.constant 0 : i32
    %c0_i32_1 = arith.constant 0 : i32
    return %c0_i32, %c0_i32_0 : i32, i32
  }
  func.func @transform_4(%arg0: i32) -> (i32, i32, i32) {
    %c0_i32 = arith.constant 0 : i32
    %c0_i32_0 = arith.constant 0 : i32
    %c0_i32_1 = arith.constant 0 : i32
    return %arg0, %c0_i32, %c0_i32_0 : i32, i32, i32
  }
}

module attributes {stable_mosaic.version = 11 : i64} {
  func.func @_matmul_bn_kernel(%arg0: i32, %arg1: i32, %arg2: i32, %arg3: memref<8x128xbf16, #tpu.memory_space<vmem>>, %arg4: memref<128x128xbf16, #tpu.memory_space<vmem>>, %arg5: memref<1x128xf32, #tpu.memory_space<vmem>>, %arg6: memref<1x128xf32, #tpu.memory_space<vmem>>, %arg7: memref<8x128xbf16, #tpu.memory_space<vmem>>, %arg8: memref<8x128xf32, #tpu.memory_space<vmem>>) attributes {dimension_semantics = [#tpu.dimension_semantics<parallel>, #tpu.dimension_semantics<parallel>, #tpu.dimension_semantics<arbitrary>], iteration_bounds = array<i64: 1, 1, 1>, scalar_prefetch = 0 : i64, scratch_operands = 1 : i64, tpu.core_type = #tpu.core_type<tc>, window_params = [{transform_indices = @transform_0, window_bounds = array<i64: 8, 128>}, {transform_indices = @transform_1, window_bounds = array<i64: 128, 128>}, {transform_indices = @transform_2, window_bounds = array<i64: 1, 128>}, {transform_indices = @transform_3, window_bounds = array<i64: 1, 128>}, {transform_indices = @transform_4, window_bounds = array<i64: 8, 128>}]} {
    %c0_i32 = arith.constant 0 : i32
    %0 = arith.cmpi eq, %arg2, %c0_i32 : i32
    %1 = arith.extui %0 : i1 to i32
    %c0_i32_0 = arith.constant 0 : i32
    %2 = arith.cmpi ne, %1, %c0_i32_0 : i32
    scf.if %2 {
      %cst_10 = arith.constant 0.000000e+00 : f32
      %12 = vector.broadcast %cst_10 : f32 to vector<8x128xf32>
      %c0_11 = arith.constant 0 : index
      %c0_12 = arith.constant 0 : index
      %13 = vector.load %arg8[%c0_11, %c0_12] : memref<8x128xf32, #tpu.memory_space<vmem>>, vector<8x128xf32>
      tpu.vector_store %arg8[%c0_11, %c0_12], %12 {strides = array<i32>} : memref<8x128xf32, #tpu.memory_space<vmem>>, vector<8x128xf32>,
    } else {
    }
    %c0 = arith.constant 0 : index
    %c0_1 = arith.constant 0 : index
    %3 = vector.load %arg8[%c0, %c0_1] : memref<8x128xf32, #tpu.memory_space<vmem>>, vector<8x128xf32>
    %c0_2 = arith.constant 0 : index
    %c0_3 = arith.constant 0 : index
    %4 = vector.load %arg3[%c0_2, %c0_3] : memref<8x128xbf16, #tpu.memory_space<vmem>>, vector<8x128xbf16>
    %c0_4 = arith.constant 0 : index
    %c0_5 = arith.constant 0 : index
    %5 = vector.load %arg4[%c0_4, %c0_5] : memref<128x128xbf16, #tpu.memory_space<vmem>>, vector<128x128xbf16>
    %cst = arith.constant dense<0.000000e+00> : vector<8x128xf32>
    %6 = tpu.matmul %4, %5, %cst {dimension_numbers = #tpu.dot_dimension_numbers<[1], [0], [0], [1], [0, 0, 1, 1], [], []>} : vector<8x128xbf16>, vector<128x128xbf16>, vector<8x128xf32> -> vector<8x128xf32>
    %7 = arith.addf %3, %6 : vector<8x128xf32>
    %c0_6 = arith.constant 0 : index
    %c0_7 = arith.constant 0 : index
    %8 = vector.load %arg8[%c0_6, %c0_7] : memref<8x128xf32, #tpu.memory_space<vmem>>, vector<8x128xf32>
    tpu.vector_store %arg8[%c0_6, %c0_7], %7 {strides = array<i32>} : memref<8x128xf32, #tpu.memory_space<vmem>>, vector<8x128xf32>,
    %c0_i32_8 = arith.constant 0 : i32
    %9 = arith.cmpi eq, %arg2, %c0_i32_8 : i32
    %10 = arith.extui %9 : i1 to i32
    %c0_i32_9 = arith.constant 0 : i32
    %11 = arith.cmpi ne, %10, %c0_i32_9 : i32
    scf.if %11 {
      %c0_10 = arith.constant 0 : index
      %c0_11 = arith.constant 0 : index
      %12 = vector.load %arg8[%c0_10, %c0_11] : memref<8x128xf32, #tpu.memory_space<vmem>>, vector<8x128xf32>
      %c0_12 = arith.constant 0 : index
      %c0_13 = arith.constant 0 : index
      %13 = vector.load %arg5[%c0_12, %c0_13] : memref<1x128xf32, #tpu.memory_space<vmem>>, vector<1x128xf32>
      %14 = vector.broadcast %13 : vector<1x128xf32> to vector<8x128xf32>
      %15 = arith.mulf %12, %14 : vector<8x128xf32>
      %c0_14 = arith.constant 0 : index
      %c0_15 = arith.constant 0 : index
      %16 = vector.load %arg6[%c0_14, %c0_15] : memref<1x128xf32, #tpu.memory_space<vmem>>, vector<1x128xf32>
      %17 = vector.broadcast %16 : vector<1x128xf32> to vector<8x128xf32>
      %18 = arith.addf %15, %17 : vector<8x128xf32>
      %19 = arith.truncf %18 : vector<8x128xf32> to vector<8x128xbf16>
      %c0_16 = arith.constant 0 : index
      %c0_17 = arith.constant 0 : index
      %20 = vector.load %arg7[%c0_16, %c0_17] : memref<8x128xbf16, #tpu.memory_space<vmem>>, vector<8x128xbf16>
      tpu.vector_store %arg7[%c0_16, %c0_17], %19 {strides = array<i32>} : memref<8x128xbf16, #tpu.memory_space<vmem>>, vector<8x128xbf16>,
    } else {
    }
    return
  }
  func.func @transform_0(%arg0: i32, %arg1: i32, %arg2: i32) -> (i32, i32) {
    %c0_i32 = arith.constant 0 : i32
    return %arg0, %arg2 : i32, i32
  }
  func.func @transform_1(%arg0: i32, %arg1: i32, %arg2: i32) -> (i32, i32) {
    %c0_i32 = arith.constant 0 : i32
    return %arg2, %arg1 : i32, i32
  }
  func.func @transform_2(%arg0: i32, %arg1: i32, %arg2: i32) -> (i32, i32) {
    %c0_i32 = arith.constant 0 : i32
    %c0_i32_0 = arith.constant 0 : i32
    return %c0_i32, %arg1 : i32, i32
  }
  func.func @transform_3(%arg0: i32, %arg1: i32, %arg2: i32) -> (i32, i32) {
    %c0_i32 = arith.constant 0 : i32
    %c0_i32_0 = arith.constant 0 : i32
    return %c0_i32, %arg1 : i32, i32
  }
  func.func @transform_4(%arg0: i32, %arg1: i32, %arg2: i32) -> (i32, i32) {
    %c0_i32 = arith.constant 0 : i32
    return %arg0, %arg1 : i32, i32
  }
}

module attributes {stable_mosaic.version = 11 : i64} {
  func.func @_matmul_bn_res_kernel(%arg0: i32, %arg1: i32, %arg2: i32, %arg3: memref<8x128xbf16, #tpu.memory_space<vmem>>, %arg4: memref<128x128xbf16, #tpu.memory_space<vmem>>, %arg5: memref<1x128xf32, #tpu.memory_space<vmem>>, %arg6: memref<1x128xf32, #tpu.memory_space<vmem>>, %arg7: memref<8x128xbf16, #tpu.memory_space<vmem>>, %arg8: memref<8x128xbf16, #tpu.memory_space<vmem>>, %arg9: memref<8x128xf32, #tpu.memory_space<vmem>>) attributes {dimension_semantics = [#tpu.dimension_semantics<parallel>, #tpu.dimension_semantics<parallel>, #tpu.dimension_semantics<arbitrary>], iteration_bounds = array<i64: 1, 1, 1>, scalar_prefetch = 0 : i64, scratch_operands = 1 : i64, tpu.core_type = #tpu.core_type<tc>, window_params = [{transform_indices = @transform_0, window_bounds = array<i64: 8, 128>}, {transform_indices = @transform_1, window_bounds = array<i64: 128, 128>}, {transform_indices = @transform_2, window_bounds = array<i64: 1, 128>}, {transform_indices = @transform_3, window_bounds = array<i64: 1, 128>}, {transform_indices = @transform_4, window_bounds = array<i64: 8, 128>}, {transform_indices = @transform_5, window_bounds = array<i64: 8, 128>}]} {
    %c0_i32 = arith.constant 0 : i32
    %0 = arith.cmpi eq, %arg2, %c0_i32 : i32
    %1 = arith.extui %0 : i1 to i32
    %c0_i32_0 = arith.constant 0 : i32
    %2 = arith.cmpi ne, %1, %c0_i32_0 : i32
    scf.if %2 {
      %cst_10 = arith.constant 0.000000e+00 : f32
      %12 = vector.broadcast %cst_10 : f32 to vector<8x128xf32>
      %c0_11 = arith.constant 0 : index
      %c0_12 = arith.constant 0 : index
      %13 = vector.load %arg9[%c0_11, %c0_12] : memref<8x128xf32, #tpu.memory_space<vmem>>, vector<8x128xf32>
      tpu.vector_store %arg9[%c0_11, %c0_12], %12 {strides = array<i32>} : memref<8x128xf32, #tpu.memory_space<vmem>>, vector<8x128xf32>,
    } else {
    }
    %c0 = arith.constant 0 : index
    %c0_1 = arith.constant 0 : index
    %3 = vector.load %arg9[%c0, %c0_1] : memref<8x128xf32, #tpu.memory_space<vmem>>, vector<8x128xf32>
    %c0_2 = arith.constant 0 : index
    %c0_3 = arith.constant 0 : index
    %4 = vector.load %arg3[%c0_2, %c0_3] : memref<8x128xbf16, #tpu.memory_space<vmem>>, vector<8x128xbf16>
    %c0_4 = arith.constant 0 : index
    %c0_5 = arith.constant 0 : index
    %5 = vector.load %arg4[%c0_4, %c0_5] : memref<128x128xbf16, #tpu.memory_space<vmem>>, vector<128x128xbf16>
    %cst = arith.constant dense<0.000000e+00> : vector<8x128xf32>
    %6 = tpu.matmul %4, %5, %cst {dimension_numbers = #tpu.dot_dimension_numbers<[1], [0], [0], [1], [0, 0, 1, 1], [], []>} : vector<8x128xbf16>, vector<128x128xbf16>, vector<8x128xf32> -> vector<8x128xf32>
    %7 = arith.addf %3, %6 : vector<8x128xf32>
    %c0_6 = arith.constant 0 : index
    %c0_7 = arith.constant 0 : index
    %8 = vector.load %arg9[%c0_6, %c0_7] : memref<8x128xf32, #tpu.memory_space<vmem>>, vector<8x128xf32>
    tpu.vector_store %arg9[%c0_6, %c0_7], %7 {strides = array<i32>} : memref<8x128xf32, #tpu.memory_space<vmem>>, vector<8x128xf32>,
    %c0_i32_8 = arith.constant 0 : i32
    %9 = arith.cmpi eq, %arg2, %c0_i32_8 : i32
    %10 = arith.extui %9 : i1 to i32
    %c0_i32_9 = arith.constant 0 : i32
    %11 = arith.cmpi ne, %10, %c0_i32_9 : i32
    scf.if %11 {
      %c0_10 = arith.constant 0 : index
      %c0_11 = arith.constant 0 : index
      %12 = vector.load %arg9[%c0_10, %c0_11] : memref<8x128xf32, #tpu.memory_space<vmem>>, vector<8x128xf32>
      %c0_12 = arith.constant 0 : index
      %c0_13 = arith.constant 0 : index
      %13 = vector.load %arg5[%c0_12, %c0_13] : memref<1x128xf32, #tpu.memory_space<vmem>>, vector<1x128xf32>
      %14 = vector.broadcast %13 : vector<1x128xf32> to vector<8x128xf32>
      %15 = arith.mulf %12, %14 : vector<8x128xf32>
      %c0_14 = arith.constant 0 : index
      %c0_15 = arith.constant 0 : index
      %16 = vector.load %arg6[%c0_14, %c0_15] : memref<1x128xf32, #tpu.memory_space<vmem>>, vector<1x128xf32>
      %17 = vector.broadcast %16 : vector<1x128xf32> to vector<8x128xf32>
      %18 = arith.addf %15, %17 : vector<8x128xf32>
      %c0_16 = arith.constant 0 : index
      %c0_17 = arith.constant 0 : index
      %19 = vector.load %arg7[%c0_16, %c0_17] : memref<8x128xbf16, #tpu.memory_space<vmem>>, vector<8x128xbf16>
      %20 = arith.extf %19 : vector<8x128xbf16> to vector<8x128xf32>
      %21 = arith.addf %18, %20 : vector<8x128xf32>
      %cst_18 = arith.constant 0.000000e+00 : f32
      %22 = vector.broadcast %cst_18 : f32 to vector<8x128xf32>
      %23 = arith.maximumf %21, %22 : vector<8x128xf32>
      %24 = arith.truncf %23 : vector<8x128xf32> to vector<8x128xbf16>
      %c0_19 = arith.constant 0 : index
      %c0_20 = arith.constant 0 : index
      %25 = vector.load %arg8[%c0_19, %c0_20] : memref<8x128xbf16, #tpu.memory_space<vmem>>, vector<8x128xbf16>
      tpu.vector_store %arg8[%c0_19, %c0_20], %24 {strides = array<i32>} : memref<8x128xbf16, #tpu.memory_space<vmem>>, vector<8x128xbf16>,
    } else {
    }
    return
  }
  func.func @transform_0(%arg0: i32, %arg1: i32, %arg2: i32) -> (i32, i32) {
    %c0_i32 = arith.constant 0 : i32
    return %arg0, %arg2 : i32, i32
  }
  func.func @transform_1(%arg0: i32, %arg1: i32, %arg2: i32) -> (i32, i32) {
    %c0_i32 = arith.constant 0 : i32
    return %arg2, %arg1 : i32, i32
  }
  func.func @transform_2(%arg0: i32, %arg1: i32, %arg2: i32) -> (i32, i32) {
    %c0_i32 = arith.constant 0 : i32
    %c0_i32_0 = arith.constant 0 : i32
    return %c0_i32, %arg1 : i32, i32
  }
  func.func @transform_3(%arg0: i32, %arg1: i32, %arg2: i32) -> (i32, i32) {
    %c0_i32 = arith.constant 0 : i32
    %c0_i32_0 = arith.constant 0 : i32
    return %c0_i32, %arg1 : i32, i32
  }
  func.func @transform_4(%arg0: i32, %arg1: i32, %arg2: i32) -> (i32, i32) {
    %c0_i32 = arith.constant 0 : i32
    return %arg0, %arg1 : i32, i32
  }
  func.func @transform_5(%arg0: i32, %arg1: i32, %arg2: i32) -> (i32, i32) {
    %c0_i32 = arith.constant 0 : i32
    return %arg0, %arg1 : i32, i32
  }
}

module attributes {stable_mosaic.version = 11 : i64} {
  func.func @_classifier_kernel(%arg0: i32, %arg1: memref<2x4x128xbf16, #tpu.memory_space<vmem>>, %arg2: memref<128x128xbf16, #tpu.memory_space<vmem>>, %arg3: memref<1x128xf32, #tpu.memory_space<vmem>>, %arg4: memref<2x128xf32, #tpu.memory_space<vmem>>, %arg5: memref<2x128xf32, #tpu.memory_space<vmem>>) attributes {dimension_semantics = [#tpu.dimension_semantics<arbitrary>], iteration_bounds = array<i64: 1>, scalar_prefetch = 0 : i64, scratch_operands = 1 : i64, tpu.core_type = #tpu.core_type<tc>, window_params = [{transform_indices = @transform_0, window_bounds = array<i64: 2, 4, 128>}, {pipeline_mode = #tpu.pipeline_mode<synchronous>, transform_indices = @transform_1, window_bounds = array<i64: 128, 128>}, {pipeline_mode = #tpu.pipeline_mode<synchronous>, transform_indices = @transform_2, window_bounds = array<i64: 1, 128>}, {pipeline_mode = #tpu.pipeline_mode<synchronous>, transform_indices = @transform_3, window_bounds = array<i64: 2, 128>}]} {
    %c0_i32 = arith.constant 0 : i32
    %0 = arith.cmpi eq, %arg0, %c0_i32 : i32
    %1 = arith.extui %0 : i1 to i32
    %c0_i32_0 = arith.constant 0 : i32
    %2 = arith.cmpi ne, %1, %c0_i32_0 : i32
    scf.if %2 {
      %cst_9 = arith.constant 0.000000e+00 : f32
      %12 = vector.broadcast %cst_9 : f32 to vector<2x128xf32>
      %c0_10 = arith.constant 0 : index
      %c0_11 = arith.constant 0 : index
      %13 = vector.load %arg5[%c0_10, %c0_11] : memref<2x128xf32, #tpu.memory_space<vmem>>, vector<2x128xf32>
      tpu.vector_store %arg5[%c0_10, %c0_11], %12 {strides = array<i32>} : memref<2x128xf32, #tpu.memory_space<vmem>>, vector<2x128xf32>,
    } else {
    }
    %c0 = arith.constant 0 : index
    %c0_1 = arith.constant 0 : index
    %3 = vector.load %arg5[%c0, %c0_1] : memref<2x128xf32, #tpu.memory_space<vmem>>, vector<2x128xf32>
    %c0_2 = arith.constant 0 : index
    %c0_3 = arith.constant 0 : index
    %c0_4 = arith.constant 0 : index
    %4 = vector.load %arg1[%c0_2, %c0_3, %c0_4] : memref<2x4x128xbf16, #tpu.memory_space<vmem>>, vector<2x4x128xbf16>
    %5 = arith.extf %4 : vector<2x4x128xbf16> to vector<2x4x128xf32>
    %cst = arith.constant dense<0.000000e+00> : vector<2x128xf32>
    %6 = vector.multi_reduction <add>, %5, %cst [1] : vector<2x4x128xf32> to vector<2x128xf32>
    %7 = arith.addf %3, %6 : vector<2x128xf32>
    %c0_5 = arith.constant 0 : index
    %c0_6 = arith.constant 0 : index
    %8 = vector.load %arg5[%c0_5, %c0_6] : memref<2x128xf32, #tpu.memory_space<vmem>>, vector<2x128xf32>
    tpu.vector_store %arg5[%c0_5, %c0_6], %7 {strides = array<i32>} : memref<2x128xf32, #tpu.memory_space<vmem>>, vector<2x128xf32>,
    %c0_i32_7 = arith.constant 0 : i32
    %9 = arith.cmpi eq, %arg0, %c0_i32_7 : i32
    %10 = arith.extui %9 : i1 to i32
    %c0_i32_8 = arith.constant 0 : i32
    %11 = arith.cmpi ne, %10, %c0_i32_8 : i32
    scf.if %11 {
      %c0_9 = arith.constant 0 : index
      %c0_10 = arith.constant 0 : index
      %12 = vector.load %arg5[%c0_9, %c0_10] : memref<2x128xf32, #tpu.memory_space<vmem>>, vector<2x128xf32>
      %cst_11 = arith.constant 2.500000e-01 : f32
      %13 = vector.broadcast %cst_11 : f32 to vector<2x128xf32>
      %14 = arith.mulf %12, %13 : vector<2x128xf32>
      %15 = arith.truncf %14 : vector<2x128xf32> to vector<2x128xbf16>
      %c0_12 = arith.constant 0 : index
      %c0_13 = arith.constant 0 : index
      %16 = vector.load %arg2[%c0_12, %c0_13] : memref<128x128xbf16, #tpu.memory_space<vmem>>, vector<128x128xbf16>
      %cst_14 = arith.constant dense<0.000000e+00> : vector<2x128xf32>
      %17 = tpu.matmul %15, %16, %cst_14 {dimension_numbers = #tpu.dot_dimension_numbers<[1], [0], [0], [1], [0, 0, 1, 1], [], []>} : vector<2x128xbf16>, vector<128x128xbf16>, vector<2x128xf32> -> vector<2x128xf32>
      %c0_15 = arith.constant 0 : index
      %c0_16 = arith.constant 0 : index
      %18 = vector.load %arg3[%c0_15, %c0_16] : memref<1x128xf32, #tpu.memory_space<vmem>>, vector<1x128xf32>
      %19 = vector.broadcast %18 : vector<1x128xf32> to vector<2x128xf32>
      %20 = arith.addf %17, %19 : vector<2x128xf32>
      %c0_17 = arith.constant 0 : index
      %c0_18 = arith.constant 0 : index
      %21 = vector.load %arg4[%c0_17, %c0_18] : memref<2x128xf32, #tpu.memory_space<vmem>>, vector<2x128xf32>
      tpu.vector_store %arg4[%c0_17, %c0_18], %20 {strides = array<i32>} : memref<2x128xf32, #tpu.memory_space<vmem>>, vector<2x128xf32>,
    } else {
    }
    return
  }
  func.func @transform_0(%arg0: i32) -> (i32, i32, i32) {
    %c0_i32 = arith.constant 0 : i32
    %c0_i32_0 = arith.constant 0 : i32
    %c0_i32_1 = arith.constant 0 : i32
    return %c0_i32, %arg0, %c0_i32_0 : i32, i32, i32
  }
  func.func @transform_1(%arg0: i32) -> (i32, i32) {
    %c0_i32 = arith.constant 0 : i32
    %c0_i32_0 = arith.constant 0 : i32
    %c0_i32_1 = arith.constant 0 : i32
    return %c0_i32, %c0_i32_0 : i32, i32
  }
  func.func @transform_2(%arg0: i32) -> (i32, i32) {
    %c0_i32 = arith.constant 0 : i32
    %c0_i32_0 = arith.constant 0 : i32
    %c0_i32_1 = arith.constant 0 : i32
    return %c0_i32, %c0_i32_0 : i32, i32
  }
  func.func @transform_3(%arg0: i32) -> (i32, i32) {
    %c0_i32 = arith.constant 0 : i32
    %c0_i32_0 = arith.constant 0 : i32
    %c0_i32_1 = arith.constant 0 : i32
    return %c0_i32, %c0_i32_0 : i32, i32
  }
}

</mosaic_0001>

<llo_original>
// kernel: resnext_forward.15
$region0: #{resnext_forward.15}
  #allocation0 [shape = 'u32[]', space=smem, size = 0x4, offset = 0x4, fixed_abs, tag = 'smem constant byte address 0x4 - core index']
  #allocation1 [shape = 'u32[144,128]{1,0:T(1,128)}', space=vmem, size = 0x12000, scoped, tag = 'internal scratch']
  #allocation2 [shape = 'f32[128,128]{1,0:T(8,128)}', space=vmem, size = 0x10000, scoped, tag = 'scratch operand']
  %s0 = inlined_call_operand.hbm [shape: bf16[128,128], index: 0, kind: input, shape index: {}]
  %s1 = inlined_call_operand.hbm [shape: bf16[128,128], index: 1, kind: input, shape index: {}]
  %s2 = inlined_call_operand.hbm [shape: f32[1,128], index: 2, kind: input, shape index: {}]
  %s3 = inlined_call_operand.hbm [shape: f32[1,128], index: 3, kind: input, shape index: {}]
  %s4 = inlined_call_operand.hbm [shape: bf16[128,128], index: 4, kind: output, shape index: {}]
  %s5 = sld [smem:[#allocation0]]
  $region50: #{resnext_forward.15} parent=0
    _
  %s7 = ssub.s32 1, %s5
  %s8 = scalar_select 0, %s7, %s5
  $region1: #{resnext_forward.15} parent=0
    #allocation3 [shape = 'u8[32768]{0}', space=vmem, size = 0x8000, scoped, tag = 'input window, operand 0, single buffered']
    #allocation4 [shape = 's32[1]{0}', space=sflag, size = 0x4, scoped, tag = 'scoped memory for resnext_forward.15']
    #allocation5 [shape = 's32[1]{0}', space=sflag, size = 0x4, scoped, tag = 'scoped memory for resnext_forward.15']
    #allocation6 [shape = 'u8[32768]{0}', space=vmem, size = 0x8000, scoped, tag = 'input window, operand 1, single buffered']
    #allocation7 [shape = 's32[1]{0}', space=sflag, size = 0x4, scoped, tag = 'scoped memory for resnext_forward.15']
    #allocation8 [shape = 'u8[512]{0}', space=vmem, size = 0x400, scoped, tag = 'input window, operand 2, single buffered']
    #allocation9 [shape = 'u8[512]{0}', space=vmem, size = 0x400, scoped, tag = 'input window, operand 3, single buffered']
    #allocation10 [shape = 's32[1]{0}', space=sflag, size = 0x4, scoped, tag = 'scoped memory for resnext_forward.15']
    #allocation11 [shape = 'u8[32768]{0}', space=vmem, size = 0x8000, scoped, tag = 'output window, operand 0, single buffered']
    %9 = vsyncpa [#allocation4], 0
    %10 = vsyncpa [#allocation7], 0
    %11 = vsyncpa [#allocation10], 0
    %12 = vsyncpa [#allocation5], 0
    // Predicated region
    $region2: #{resnext_forward.15} parent=1 // pred_check
      _
    $region3: #{resnext_forward.15} parent=1 // pred_check_branch
      %14 = sbr.rel (0) target = $region5
    $region4: #{resnext_forward.15} parent=1 // pred_region
      %s16 = ssub.s32 1024, 1024
      %17 = vsyncadd [#allocation4], %s16
      %s18 = sshll.u32 [#allocation3], 4
      %s19 = int_to_ptr.vmem [resolvable:$true] %s18
      %24 = dma.hbm_to_vmem [thread:$0]  %s0, 1024, %s19, [#allocation4], 64, 64, 4
    $region5: #{resnext_forward.15} parent=1 // pred_fallthru
      _
    // Predicated region
    $region6: #{resnext_forward.15} parent=1 // pred_check
      _
    $region7: #{resnext_forward.15} parent=1 // pred_check_branch
      %26 = sbr.rel (0) target = $region9
    $region8: #{resnext_forward.15} parent=1 // pred_region
      %s28 = ssub.s32 1024, 1024
      %29 = vsyncadd [#allocation7], %s28
      %s30 = sshll.u32 [#allocation6], 4
      %s31 = int_to_ptr.vmem [resolvable:$true] %s30
      %36 = dma.hbm_to_vmem [thread:$0]  %s1, 1024, %s31, [#allocation7], 64, 64, 4
    $region9: #{resnext_forward.15} parent=1 // pred_fallthru
      _
    // Predicated region
    $region10: #{resnext_forward.15} parent=1 // pred_check
      _
    $region11: #{resnext_forward.15} parent=1 // pred_check_branch
      %38 = sbr.rel (0) target = $region13
    $region12: #{resnext_forward.15} parent=1 // pred_region
      %s40 = ssub.s32 16, 16
      %41 = vsyncadd [#allocation7], %s40
      %s43 = sshll.u32 [#allocation8], 4
      %s44 = int_to_ptr.vmem [resolvable:$true] %s43
      %46 = dma.hbm_to_vmem [thread:$0]  %s2, 16, %s44, [#allocation7]
    $region13: #{resnext_forward.15} parent=1 // pred_fallthru
      _
    // Predicated region
    $region14: #{resnext_forward.15} parent=1 // pred_check
      _
    $region15: #{resnext_forward.15} parent=1 // pred_check_branch
      %48 = sbr.rel (0) target = $region17
    $region16: #{resnext_forward.15} parent=1 // pred_region
      %s50 = ssub.s32 16, 16
      %51 = vsyncadd [#allocation10], %s50
      %s53 = sshll.u32 [#allocation9], 4
      %s54 = int_to_ptr.vmem [resolvable:$true] %s53
      %56 = dma.hbm_to_vmem [thread:$0]  %s3, 16, %s54, [#allocation10]
    $region17: #{resnext_forward.15} parent=1 // pred_fallthru
      _
    // Predicated region
    $region18: #{resnext_forward.15} parent=1 // pred_check
      _
    $region19: #{resnext_forward.15} parent=1 // pred_check_branch
      %58 = sbr.rel (0) target = $region21
    $region20: #{resnext_forward.15} parent=1 // pred_region
      %59 = dma.done [#allocation4], 1024
    $region21: #{resnext_forward.15} parent=1 // pred_fallthru
      _
    // Predicated region
    $region22: #{resnext_forward.15} parent=1 // pred_check
      _
    $region23: #{resnext_forward.15} parent=1 // pred_check_branch
      %61 = sbr.rel (0) target = $region25
    $region24: #{resnext_forward.15} parent=1 // pred_region
      %62 = dma.done [#allocation7], 1024
    $region25: #{resnext_forward.15} parent=1 // pred_fallthru
      _
    // Predicated region
    $region26: #{resnext_forward.15} parent=1 // pred_check
      _
    $region27: #{resnext_forward.15} parent=1 // pred_check_branch
      %64 = sbr.rel (0) target = $region29
    $region28: #{resnext_forward.15} parent=1 // pred_region
      %65 = dma.done [#allocation7], 16
    $region29: #{resnext_forward.15} parent=1 // pred_fallthru
      _
    // Predicated region
    $region30: #{resnext_forward.15} parent=1 // pred_check
      _
    $region31: #{resnext_forward.15} parent=1 // pred_check_branch
      %67 = sbr.rel (0) target = $region33
    $region32: #{resnext_forward.15} parent=1 // pred_region
      %68 = dma.done [#allocation10], 16
    $region33: #{resnext_forward.15} parent=1 // pred_fallthru
      _
    %p70 = scmp.eq.s32.totalorder 0, 0
    // Predicated region
    $region34: #{resnext_forward.15} parent=1 // pred_check
      %p71 = pneg %p70
    $region35: #{resnext_forward.15} parent=1 // pred_check_branch
      %73 = sbr.rel (%p71) target = $region37
    $region36: #{resnext_forward.15} parent=1 // pred_region
      %74 = vst [vmem:[#allocation2] sm:$0xff] 0.0
      %75 = vst [vmem:[#allocation2 + $0x8] sm:$0xff] 0.0
      %76 = vst [vmem:[#allocation2 + $0x10] sm:$0xff] 0.0
      %77 = vst [vmem:[#allocation2 + $0x18] sm:$0xff] 0.0
      %78 = vst [vmem:[#allocation2 + $0x20] sm:$0xff] 0.0
      %79 = vst [vmem:[#allocation2 + $0x28] sm:$0xff] 0.0
      %80 = vst [vmem:[#allocation2 + $0x30] sm:$0xff] 0.0
      %81 = vst [vmem:[#allocation2 + $0x38] sm:$0xff] 0.0
      %82 = vst [vmem:[#allocation2 + $0x40] sm:$0xff] 0.0
      %83 = vst [vmem:[#allocation2 + $0x48] sm:$0xff] 0.0
      %84 = vst [vmem:[#allocation2 + $0x50] sm:$0xff] 0.0
      %85 = vst [vmem:[#allocation2 + $0x58] sm:$0xff] 0.0
      %86 = vst [vmem:[#allocation2 + $0x60] sm:$0xff] 0.0
      %87 = vst [vmem:[#allocation2 + $0x68] sm:$0xff] 0.0
      %88 = vst [vmem:[#allocation2 + $0x70] sm:$0xff] 0.0
      %89 = vst [vmem:[#allocation2 + $0x78] sm:$0xff] 0.0
    $region37: #{resnext_forward.15} parent=1 // pred_fallthru
      _
    %v90 = vld [vmem:[#allocation2] sm:$0xff]
    %v91 = vld [vmem:[#allocation2 + $0x8] sm:$0xff]
    %v92 = vld [vmem:[#allocation2 + $0x10] sm:$0xff]
    %v93 = vld [vmem:[#allocation2 + $0x18] sm:$0xff]
    %v94 = vld [vmem:[#allocation2 + $0x20] sm:$0xff]
    %v95 = vld [vmem:[#allocation2 + $0x28] sm:$0xff]
    %v96 = vld [vmem:[#allocation2 + $0x30] sm:$0xff]
    %v97 = vld [vmem:[#allocation2 + $0x38] sm:$0xff]
    %v98 = vld [vmem:[#allocation2 + $0x40] sm:$0xff]
    %v99 = vld [vmem:[#allocation2 + $0x48] sm:$0xff]
    %v100 = vld [vmem:[#allocation2 + $0x50] sm:$0xff]
    %v101 = vld [vmem:[#allocation2 + $0x58] sm:$0xff]
    %v102 = vld [vmem:[#allocation2 + $0x60] sm:$0xff]
    %v103 = vld [vmem:[#allocation2 + $0x68] sm:$0xff]
    %v104 = vld [vmem:[#allocation2 + $0x70] sm:$0xff]
    %v105 = vld [vmem:[#allocation2 + $0x78] sm:$0xff]
    %v106 = vld [vmem:[#allocation3] sm:$0xf]
    %v107 = vld [vmem:[#allocation3 + $0x4] sm:$0xf]
    %v108 = vld [vmem:[#allocation3 + $0x8] sm:$0xf]
    %v109 = vld [vmem:[#allocation3 + $0xc] sm:$0xf]
    %v110 = vld [vmem:[#allocation3 + $0x10] sm:$0xf]
    %v111 = vld [vmem:[#allocation3 + $0x14] sm:$0xf]
    %v112 = vld [vmem:[#allocation3 + $0x18] sm:$0xf]
    %v113 = vld [vmem:[#allocation3 + $0x1c] sm:$0xf]
    %v114 = vld [vmem:[#allocation3 + $0x20] sm:$0xf]
    %v115 = vld [vmem:[#allocation3 + $0x24] sm:$0xf]
    %v116 = vld [vmem:[#allocation3 + $0x28] sm:$0xf]
    %v117 = vld [vmem:[#allocation3 + $0x2c] sm:$0xf]
    %v118 = vld [vmem:[#allocation3 + $0x30] sm:$0xf]
    %v119 = vld [vmem:[#allocation3 + $0x34] sm:$0xf]
    %v120 = vld [vmem:[#allocation3 + $0x38] sm:$0xf]
    %v121 = vld [vmem:[#allocation3 + $0x3c] sm:$0xf]
    %v122 = vld [vmem:[#allocation6] sm:$0xf]
    %v123 = vld [vmem:[#allocation6 + $0x4] sm:$0xf]
    %v124 = vld [vmem:[#allocation6 + $0x8] sm:$0xf]
    %v125 = vld [vmem:[#allocation6 + $0xc] sm:$0xf]
    %v126 = vld [vmem:[#allocation6 + $0x10] sm:$0xf]
    %v127 = vld [vmem:[#allocation6 + $0x14] sm:$0xf]
    %v128 = vld [vmem:[#allocation6 + $0x18] sm:$0xf]
    %v129 = vld [vmem:[#allocation6 + $0x1c] sm:$0xf]
    %v130 = vld [vmem:[#allocation6 + $0x20] sm:$0xf]
    %v131 = vld [vmem:[#allocation6 + $0x24] sm:$0xf]
    %v132 = vld [vmem:[#allocation6 + $0x28] sm:$0xf]
    %v133 = vld [vmem:[#allocation6 + $0x2c] sm:$0xf]
    %v134 = vld [vmem:[#allocation6 + $0x30] sm:$0xf]
    %v135 = vld [vmem:[#allocation6 + $0x34] sm:$0xf]
    %v136 = vld [vmem:[#allocation6 + $0x38] sm:$0xf]
    %v137 = vld [vmem:[#allocation6 + $0x3c] sm:$0xf]
    %v154 = vunpack.c.l.b16 %v106
    %v155 = vunpack.c.l.b16 %v107
    %v156 = vunpack.c.l.b16 %v108
    %v157 = vunpack.c.l.b16 %v109
    %v158 = vunpack.c.l.b16 %v110
    %v159 = vunpack.c.l.b16 %v111
    %v160 = vunpack.c.l.b16 %v112
    %v161 = vunpack.c.l.b16 %v113
    %v162 = vunpack.c.l.b16 %v114
    %v163 = vunpack.c.l.b16 %v115
    %v164 = vunpack.c.l.b16 %v116
    %v165 = vunpack.c.l.b16 %v117
    %v166 = vunpack.c.l.b16 %v118
    %v167 = vunpack.c.l.b16 %v119
    %v168 = vunpack.c.l.b16 %v120
    %v169 = vunpack.c.l.b16 %v121
    %v170 = vpack.c.b16 %v155, %v154
    %v171 = vpack.c.b16 %v157, %v156
    %v172 = vpack.c.b16 %v159, %v158
    %v173 = vpack.c.b16 %v161, %v160
    %v174 = vpack.c.b16 %v163, %v162
    %v175 = vpack.c.b16 %v165, %v164
    %v176 = vpack.c.b16 %v167, %v166
    %v177 = vpack.c.b16 %v169, %v168
    %v202 = vunpack.c.l.b16 %v122
    %v203 = vunpack.c.l.b16 %v123
    %v204 = vunpack.c.l.b16 %v124
    %v205 = vunpack.c.l.b16 %v125
    %v206 = vunpack.c.l.b16 %v126
    %v207 = vunpack.c.l.b16 %v127
    %v208 = vunpack.c.l.b16 %v128
    %v209 = vunpack.c.l.b16 %v129
    %v210 = vunpack.c.l.b16 %v130
    %v211 = vunpack.c.l.b16 %v131
    %v212 = vunpack.c.l.b16 %v132
    %v213 = vunpack.c.l.b16 %v133
    %v214 = vunpack.c.l.b16 %v134
    %v215 = vunpack.c.l.b16 %v135
    %v216 = vunpack.c.l.b16 %v136
    %v217 = vunpack.c.l.b16 %v137
    %v218 = vpack.c.b16 %v203, %v202
    %v219 = vpack.c.b16 %v205, %v204
    %v220 = vpack.c.b16 %v207, %v206
    %v221 = vpack.c.b16 %v209, %v208
    %v222 = vpack.c.b16 %v211, %v210
    %v223 = vpack.c.b16 %v213, %v212
    %v224 = vpack.c.b16 %v215, %v214
    %v225 = vpack.c.b16 %v217, %v216
    %234 = vmatprep.subr.bf16.mxu0 0
    %235 = vmatpush1.bf16.msra.mxu0 %v218
    %236 = vmatprep.subr.bf16.mxu0 0
    %237 = vmatpush1.bf16.msra.mxu0 %v219
    %238 = vmatprep.subr.bf16.mxu0 0
    %239 = vmatpush1.bf16.msra.mxu0 %v220
    %240 = vmatprep.subr.bf16.mxu0 0
    %241 = vmatpush1.bf16.msra.mxu0 %v221
    %242 = vmatprep.subr.bf16.mxu0 0
    %243 = vmatpush1.bf16.msra.mxu0 %v222
    %244 = vmatprep.subr.bf16.mxu0 0
    %245 = vmatpush1.bf16.msra.mxu0 %v223
    %246 = vmatprep.subr.bf16.mxu0 0
    %247 = vmatpush1.bf16.msra.mxu0 %v224
    %248 = vmatprep.subr.bf16.mxu0 0
    %249 = vmatpush1.bf16.msra.mxu0 %v225
    %250 = vmatprep.subr.bf16.mxu0 0
    %251 = vmatpush1.bf16.msra.mxu0 0
    %252 = vmatprep.subr.bf16.mxu0 0
    %253 = vmatpush1.bf16.msra.mxu0 0
    %254 = vmatprep.subr.bf16.mxu0 0
    %255 = vmatpush1.bf16.msra.mxu0 0
    %256 = vmatprep.subr.bf16.mxu0 0
    %257 = vmatpush1.bf16.msra.mxu0 0
    %258 = vmatprep.subr.bf16.mxu0 0
    %259 = vmatpush1.bf16.msra.mxu0 0
    %260 = vmatprep.subr.bf16.mxu0 0
    %261 = vmatpush1.bf16.msra.mxu0 0
    %262 = vmatprep.subr.bf16.mxu0 0
    %263 = vmatpush1.bf16.msra.mxu0 0
    %264 = vmatprep.subr.bf16.mxu0 0
    %265 = vmatpush1.bf16.msra.mxu0 0
    %266 = vmatprep.mubr.bf16.mxu0 0
    %267 = vmatmul.mubr.bf16.gmra.mrb[0].mxu0 %v170
    %v268 = vpop.f32.mrb[0].mxu0
    %v269 = vadd.f32 0.0, %v268
    %v270 = vpop.f32.mrb[0].mxu0
    %v271 = vpop.f32.mrb[0].mxu0
    %v272 = vadd.f32 0.0, %v271
    %v273 = vpop.f32.mrb[0].mxu0
    %274 = vmatprep.mubr.bf16.mxu0 0
    %275 = vmatmul.mubr.bf16.gmra.mrb[0].mxu0 %v171
    %v276 = vpop.f32.mrb[0].mxu0
    %v277 = vadd.f32 0.0, %v276
    %v278 = vpop.f32.mrb[0].mxu0
    %v279 = vpop.f32.mrb[0].mxu0
    %v280 = vadd.f32 0.0, %v279
    %v281 = vpop.f32.mrb[0].mxu0
    %282 = vmatprep.mubr.bf16.mxu0 0
    %283 = vmatmul.mubr.bf16.gmra.mrb[0].mxu0 %v172
    %v284 = vpop.f32.mrb[0].mxu0
    %v285 = vadd.f32 0.0, %v284
    %v286 = vpop.f32.mrb[0].mxu0
    %v287 = vpop.f32.mrb[0].mxu0
    %v288 = vadd.f32 0.0, %v287
    %v289 = vpop.f32.mrb[0].mxu0
    %290 = vmatprep.mubr.bf16.mxu0 0
    %291 = vmatmul.mubr.bf16.gmra.mrb[0].mxu0 %v173
    %v292 = vpop.f32.mrb[0].mxu0
    %v293 = vadd.f32 0.0, %v292
    %v294 = vpop.f32.mrb[0].mxu0
    %v295 = vpop.f32.mrb[0].mxu0
    %v296 = vadd.f32 0.0, %v295
    %v297 = vpop.f32.mrb[0].mxu0
    %298 = vmatprep.mubr.bf16.mxu0 0
    %299 = vmatmul.mubr.bf16.gmra.mrb[0].mxu0 %v174
    %v300 = vpop.f32.mrb[0].mxu0
    %v301 = vadd.f32 0.0, %v300
    %v302 = vpop.f32.mrb[0].mxu0
    %v303 = vpop.f32.mrb[0].mxu0
    %v304 = vadd.f32 0.0, %v303
    %v305 = vpop.f32.mrb[0].mxu0
    %306 = vmatprep.mubr.bf16.mxu0 0
    %307 = vmatmul.mubr.bf16.gmra.mrb[0].mxu0 %v175
    %v308 = vpop.f32.mrb[0].mxu0
    %v309 = vadd.f32 0.0, %v308
    %v310 = vpop.f32.mrb[0].mxu0
    %v311 = vpop.f32.mrb[0].mxu0
    %v312 = vadd.f32 0.0, %v311
    %v313 = vpop.f32.mrb[0].mxu0
    %314 = vmatprep.mubr.bf16.mxu0 0
    %315 = vmatmul.mubr.bf16.gmra.mrb[0].mxu0 %v176
    %v316 = vpop.f32.mrb[0].mxu0
    %v317 = vadd.f32 0.0, %v316
    %v318 = vpop.f32.mrb[0].mxu0
    %v319 = vpop.f32.mrb[0].mxu0
    %v320 = vadd.f32 0.0, %v319
    %v321 = vpop.f32.mrb[0].mxu0
    %322 = vmatprep.mubr.bf16.mxu0 0
    %323 = vmatmul.mubr.bf16.gmra.mrb[0].mxu0 %v177
    %v324 = vpop.f32.mrb[0].mxu0
    %v325 = vadd.f32 0.0, %v324
    %v326 = vpop.f32.mrb[0].mxu0
    %v327 = vpop.f32.mrb[0].mxu0
    %v328 = vadd.f32 0.0, %v327
    %v329 = vpop.f32.mrb[0].mxu0
    %330 = vdwg.mxu0
    %v331 = vadd.f32 %v90, %v269
    %v332 = vadd.f32 %v91, %v272
    %v333 = vadd.f32 %v92, %v277
    %v334 = vadd.f32 %v93, %v280
    %v335 = vadd.f32 %v94, %v285
    %v336 = vadd.f32 %v95, %v288
    %v337 = vadd.f32 %v96, %v293
    %v338 = vadd.f32 %v97, %v296
    %v339 = vadd.f32 %v98, %v301
    %v340 = vadd.f32 %v99, %v304
    %v341 = vadd.f32 %v100, %v309
    %v342 = vadd.f32 %v101, %v312
    %v343 = vadd.f32 %v102, %v317
    %v344 = vadd.f32 %v103, %v320
    %v345 = vadd.f32 %v104, %v325
    %v346 = vadd.f32 %v105, %v328
    %347 = vst [vmem:[#allocation2] sm:$0xff] %v331
    %348 = vst [vmem:[#allocation2 + $0x8] sm:$0xff] %v332
    %349 = vst [vmem:[#allocation2 + $0x10] sm:$0xff] %v333
    %350 = vst [vmem:[#allocation2 + $0x18] sm:$0xff] %v334
    %351 = vst [vmem:[#allocation2 + $0x20] sm:$0xff] %v335
    %352 = vst [vmem:[#allocation2 + $0x28] sm:$0xff] %v336
    %353 = vst [vmem:[#allocation2 + $0x30] sm:$0xff] %v337
    %354 = vst [vmem:[#allocation2 + $0x38] sm:$0xff] %v338
    %355 = vst [vmem:[#allocation2 + $0x40] sm:$0xff] %v339
    %356 = vst [vmem:[#allocation2 + $0x48] sm:$0xff] %v340
    %357 = vst [vmem:[#allocation2 + $0x50] sm:$0xff] %v341
    %358 = vst [vmem:[#allocation2 + $0x58] sm:$0xff] %v342
    %359 = vst [vmem:[#allocation2 + $0x60] sm:$0xff] %v343
    %360 = vst [vmem:[#allocation2 + $0x68] sm:$0xff] %v344
    %361 = vst [vmem:[#allocation2 + $0x70] sm:$0xff] %v345
    %362 = vst [vmem:[#allocation2 + $0x78] sm:$0xff] %v346
    // Predicated region
    $region38: #{resnext_forward.15} parent=1 // pred_check
      %p363 = pneg %p70
    $region39: #{resnext_forward.15} parent=1 // pred_check_branch
      %365 = sbr.rel (%p363) target = $region41
    $region40: #{resnext_forward.15} parent=1 // pred_region
      %v366 = vld [vmem:[#allocation2] sm:$0xff]
      %v367 = vld [vmem:[#allocation2 + $0x8] sm:$0xff]
      %v368 = vld [vmem:[#allocation2 + $0x10] sm:$0xff]
      %v369 = vld [vmem:[#allocation2 + $0x18] sm:$0xff]
      %v370 = vld [vmem:[#allocation2 + $0x20] sm:$0xff]
      %v371 = vld [vmem:[#allocation2 + $0x28] sm:$0xff]
      %v372 = vld [vmem:[#allocation2 + $0x30] sm:$0xff]
      %v373 = vld [vmem:[#allocation2 + $0x38] sm:$0xff]
      %v374 = vld [vmem:[#allocation2 + $0x40] sm:$0xff]
      %v375 = vld [vmem:[#allocation2 + $0x48] sm:$0xff]
      %v376 = vld [vmem:[#allocation2 + $0x50] sm:$0xff]
      %v377 = vld [vmem:[#allocation2 + $0x58] sm:$0xff]
      %v378 = vld [vmem:[#allocation2 + $0x60] sm:$0xff]
      %v379 = vld [vmem:[#allocation2 + $0x68] sm:$0xff]
      %v380 = vld [vmem:[#allocation2 + $0x70] sm:$0xff]
      %v381 = vld [vmem:[#allocation2 + $0x78] sm:$0xff]
      %v382 = vld [vmem:[#allocation8] sm:$0x1]
      %v384 = vlaneseq
      %v385 = vshrl.u32 %v384, 7
      %v386 = vsub.s32 0, %v385
      %v387 = vrot.slane %v382, %v386
      %v389 = vmul.f32 %v366, %v387
      %v390 = vmul.f32 %v367, %v387
      %v391 = vmul.f32 %v368, %v387
      %v392 = vmul.f32 %v369, %v387
      %v393 = vmul.f32 %v370, %v387
      %v394 = vmul.f32 %v371, %v387
      %v395 = vmul.f32 %v372, %v387
      %v396 = vmul.f32 %v373, %v387
      %v397 = vmul.f32 %v374, %v387
      %v398 = vmul.f32 %v375, %v387
      %v399 = vmul.f32 %v376, %v387
      %v400 = vmul.f32 %v377, %v387
      %v401 = vmul.f32 %v378, %v387
      %v402 = vmul.f32 %v379, %v387
      %v403 = vmul.f32 %v380, %v387
      %v404 = vmul.f32 %v381, %v387
      %v405 = vld [vmem:[#allocation9] sm:$0x1]
      %v407 = vlaneseq
      %v408 = vshrl.u32 %v407, 7
      %v409 = vsub.s32 0, %v408
      %v410 = vrot.slane %v405, %v409
      %v412 = vadd.f32 %v389, %v410
      %v413 = vadd.f32 %v390, %v410
      %v414 = vadd.f32 %v391, %v410
      %v415 = vadd.f32 %v392, %v410
      %v416 = vadd.f32 %v393, %v410
      %v417 = vadd.f32 %v394, %v410
      %v418 = vadd.f32 %v395, %v410
      %v419 = vadd.f32 %v396, %v410
      %v420 = vadd.f32 %v397, %v410
      %v421 = vadd.f32 %v398, %v410
      %v422 = vadd.f32 %v399, %v410
      %v423 = vadd.f32 %v400, %v410
      %v424 = vadd.f32 %v401, %v410
      %v425 = vadd.f32 %v402, %v410
      %v426 = vadd.f32 %v403, %v410
      %v427 = vadd.f32 %v404, %v410
      %v428 = vmax.f32 %v412, 0.0
      %v429 = vmax.f32 %v413, 0.0
      %v430 = vmax.f32 %v414, 0.0
      %v431 = vmax.f32 %v415, 0.0
      %v432 = vmax.f32 %v416, 0.0
      %v433 = vmax.f32 %v417, 0.0
      %v434 = vmax.f32 %v418, 0.0
      %v435 = vmax.f32 %v419, 0.0
      %v436 = vmax.f32 %v420, 0.0
      %v437 = vmax.f32 %v421, 0.0
      %v438 = vmax.f32 %v422, 0.0
      %v439 = vmax.f32 %v423, 0.0
      %v440 = vmax.f32 %v424, 0.0
      %v441 = vmax.f32 %v425, 0.0
      %v442 = vmax.f32 %v426, 0.0
      %v443 = vmax.f32 %v427, 0.0
      %v444 = vpack.c.bf16 %v429, %v428
      %v445 = vpack.c.bf16 %v431, %v430
      %v446 = vpack.c.bf16 %v433, %v432
      %v447 = vpack.c.bf16 %v435, %v434
      %v448 = vpack.c.bf16 %v437, %v436
      %v449 = vpack.c.bf16 %v439, %v438
      %v450 = vpack.c.bf16 %v441, %v440
      %v451 = vpack.c.bf16 %v443, %v442
      %v460 = vunpack.c.l.b16 %v444
      %v461 = vunpack.c.h.b16 %v444
      %v462 = vunpack.c.l.b16 %v445
      %v463 = vunpack.c.h.b16 %v445
      %v464 = vunpack.c.l.b16 %v446
      %v465 = vunpack.c.h.b16 %v446
      %v466 = vunpack.c.l.b16 %v447
      %v467 = vunpack.c.h.b16 %v447
      %v468 = vunpack.c.l.b16 %v448
      %v469 = vunpack.c.h.b16 %v448
      %v470 = vunpack.c.l.b16 %v449
      %v471 = vunpack.c.h.b16 %v449
      %v472 = vunpack.c.l.b16 %v450
      %v473 = vunpack.c.h.b16 %v450
      %v474 = vunpack.c.l.b16 %v451
      %v475 = vunpack.c.h.b16 %v451
      %v476 = vpack.c.b16 %v460, %v460
      %v477 = vpack.c.b16 %v461, %v461
      %v478 = vpack.c.b16 %v462, %v462
      %v479 = vpack.c.b16 %v463, %v463
      %v480 = vpack.c.b16 %v464, %v464
      %v481 = vpack.c.b16 %v465, %v465
      %v482 = vpack.c.b16 %v466, %v466
      %v483 = vpack.c.b16 %v467, %v467
      %v484 = vpack.c.b16 %v468, %v468
      %v485 = vpack.c.b16 %v469, %v469
      %v486 = vpack.c.b16 %v470, %v470
      %v487 = vpack.c.b16 %v471, %v471
      %v488 = vpack.c.b16 %v472, %v472
      %v489 = vpack.c.b16 %v473, %v473
      %v490 = vpack.c.b16 %v474, %v474
      %v491 = vpack.c.b16 %v475, %v475
      %508 = vst [vmem:[#allocation11] sm:$0xf] %v476
      %509 = vst [vmem:[#allocation11 + $0x4] sm:$0xf] %v477
      %510 = vst [vmem:[#allocation11 + $0x8] sm:$0xf] %v478
      %511 = vst [vmem:[#allocation11 + $0xc] sm:$0xf] %v479
      %512 = vst [vmem:[#allocation11 + $0x10] sm:$0xf] %v480
      %513 = vst [vmem:[#allocation11 + $0x14] sm:$0xf] %v481
      %514 = vst [vmem:[#allocation11 + $0x18] sm:$0xf] %v482
      %515 = vst [vmem:[#allocation11 + $0x1c] sm:$0xf] %v483
      %516 = vst [vmem:[#allocation11 + $0x20] sm:$0xf] %v484
      %517 = vst [vmem:[#allocation11 + $0x24] sm:$0xf] %v485
      %518 = vst [vmem:[#allocation11 + $0x28] sm:$0xf] %v486
      %519 = vst [vmem:[#allocation11 + $0x2c] sm:$0xf] %v487
      %520 = vst [vmem:[#allocation11 + $0x30] sm:$0xf] %v488
      %521 = vst [vmem:[#allocation11 + $0x34] sm:$0xf] %v489
      %522 = vst [vmem:[#allocation11 + $0x38] sm:$0xf] %v490
      %523 = vst [vmem:[#allocation11 + $0x3c] sm:$0xf] %v491
    $region41: #{resnext_forward.15} parent=1 // pred_fallthru
      _
    // Predicated region
    $region42: #{resnext_forward.15} parent=1 // pred_check
      _
    $region43: #{resnext_forward.15} parent=1 // pred_check_branch
      %525 = sbr.rel (0) target = $region45
    $region44: #{resnext_forward.15} parent=1 // pred_region
      %s527 = ssub.s32 1024, 1024
      %528 = vsyncadd [#allocation5], %s527
      %s529 = sshll.u32 [#allocation11], 4
      %s530 = int_to_ptr.vmem [resolvable:$true] %s529
      %535 = dma.vmem_to_hbm [thread:$0]  %s530, 1024, %s4, [#allocation5], 64, 64, 4
    $region45: #{resnext_forward.15} parent=1 // pred_fallthru
      _
    // Predicated region
    $region46: #{resnext_forward.15} parent=1 // pred_check
      _
    $region47: #{resnext_forward.15} parent=1 // pred_check_branch
      %537 = sbr.rel (0) target = $region49
    $region48: #{resnext_forward.15} parent=1 // pred_region
      %538 = dma.done [#allocation5], 1024
    $region49: #{resnext_forward.15} parent=1 // pred_fallthru
      _
    %539 = vsyncpa [#allocation4], 1
    %540 = vsyncpa [#allocation7], 1
    %541 = vsyncpa [#allocation10], 1
    %542 = vsyncpa [#allocation5], 1

// kernel: resnext_forward.13
$region0: #{resnext_forward.13}
  #allocation0 [shape = 'u32[]', space=smem, size = 0x4, offset = 0x4, fixed_abs, tag = 'smem constant byte address 0x4 - core index']
  #allocation1 [shape = 'u32[144,128]{1,0:T(1,128)}', space=vmem, size = 0x12000, scoped, tag = 'internal scratch']
  #allocation2 [shape = 'f32[128,128]{1,0:T(8,128)}', space=vmem, size = 0x10000, scoped, tag = 'scratch operand']
  %s0 = inlined_call_operand.hbm [shape: bf16[128,256], index: 0, kind: input, shape index: {}]
  %s1 = inlined_call_operand.hbm [shape: bf16[256,128], index: 1, kind: input, shape index: {}]
  %s2 = inlined_call_operand.hbm [shape: f32[1,128], index: 2, kind: input, shape index: {}]
  %s3 = inlined_call_operand.hbm [shape: f32[1,128], index: 3, kind: input, shape index: {}]
  %s4 = inlined_call_operand.hbm [shape: bf16[128,128], index: 4, kind: output, shape index: {}]
  %s5 = sld [smem:[#allocation0]]
  $region50: #{resnext_forward.13} parent=0
    _
  %s7 = ssub.s32 1, %s5
  %s8 = scalar_select 0, %s7, %s5
  $region1: #{resnext_forward.13} parent=0
    #allocation3 [shape = 'u8[65536]{0}', space=vmem, size = 0x10000, scoped, tag = 'input window, operand 0, single buffered']
    #allocation4 [shape = 's32[1]{0}', space=sflag, size = 0x4, scoped, tag = 'scoped memory for resnext_forward.13']
    #allocation5 [shape = 's32[1]{0}', space=sflag, size = 0x4, scoped, tag = 'scoped memory for resnext_forward.13']
    #allocation6 [shape = 'u8[65536]{0}', space=vmem, size = 0x10000, scoped, tag = 'input window, operand 1, single buffered']
    #allocation7 [shape = 's32[1]{0}', space=sflag, size = 0x4, scoped, tag = 'scoped memory for resnext_forward.13']
    #allocation8 [shape = 'u8[512]{0}', space=vmem, size = 0x400, scoped, tag = 'input window, operand 2, single buffered']
    #allocation9 [shape = 'u8[512]{0}', space=vmem, size = 0x400, scoped, tag = 'input window, operand 3, single buffered']
    #allocation10 [shape = 's32[1]{0}', space=sflag, size = 0x4, scoped, tag = 'scoped memory for resnext_forward.13']
    #allocation11 [shape = 'u8[32768]{0}', space=vmem, size = 0x8000, scoped, tag = 'output window, operand 0, single buffered']
    %9 = vsyncpa [#allocation4], 0
    %10 = vsyncpa [#allocation7], 0
    %11 = vsyncpa [#allocation10], 0
    %12 = vsyncpa [#allocation5], 0
    // Predicated region
    $region2: #{resnext_forward.13} parent=1 // pred_check
      _
    $region3: #{resnext_forward.13} parent=1 // pred_check_branch
      %14 = sbr.rel (0) target = $region5
    $region4: #{resnext_forward.13} parent=1 // pred_region
      %s16 = ssub.s32 2048, 2048
      %17 = vsyncadd [#allocation4], %s16
      %s18 = sshll.u32 [#allocation3], 4
      %s19 = int_to_ptr.vmem [resolvable:$true] %s18
      %24 = dma.hbm_to_vmem [thread:$0]  %s0, 2048, %s19, [#allocation4], 128, 128, 8
    $region5: #{resnext_forward.13} parent=1 // pred_fallthru
      _
    // Predicated region
    $region6: #{resnext_forward.13} parent=1 // pred_check
      _
    $region7: #{resnext_forward.13} parent=1 // pred_check_branch
      %26 = sbr.rel (0) target = $region9
    $region8: #{resnext_forward.13} parent=1 // pred_region
      %s28 = ssub.s32 2048, 2048
      %29 = vsyncadd [#allocation7], %s28
      %s30 = sshll.u32 [#allocation6], 4
      %s31 = int_to_ptr.vmem [resolvable:$true] %s30
      %36 = dma.hbm_to_vmem [thread:$0]  %s1, 2048, %s31, [#allocation7], 64, 64, 4
    $region9: #{resnext_forward.13} parent=1 // pred_fallthru
      _
    // Predicated region
    $region10: #{resnext_forward.13} parent=1 // pred_check
      _
    $region11: #{resnext_forward.13} parent=1 // pred_check_branch
      %38 = sbr.rel (0) target = $region13
    $region12: #{resnext_forward.13} parent=1 // pred_region
      %s40 = ssub.s32 16, 16
      %41 = vsyncadd [#allocation7], %s40
      %s43 = sshll.u32 [#allocation8], 4
      %s44 = int_to_ptr.vmem [resolvable:$true] %s43
      %46 = dma.hbm_to_vmem [thread:$0]  %s2, 16, %s44, [#allocation7]
    $region13: #{resnext_forward.13} parent=1 // pred_fallthru
      _
    // Predicated region
    $region14: #{resnext_forward.13} parent=1 // pred_check
      _
    $region15: #{resnext_forward.13} parent=1 // pred_check_branch
      %48 = sbr.rel (0) target = $region17
    $region16: #{resnext_forward.13} parent=1 // pred_region
      %s50 = ssub.s32 16, 16
      %51 = vsyncadd [#allocation10], %s50
      %s53 = sshll.u32 [#allocation9], 4
      %s54 = int_to_ptr.vmem [resolvable:$true] %s53
      %56 = dma.hbm_to_vmem [thread:$0]  %s3, 16, %s54, [#allocation10]
    $region17: #{resnext_forward.13} parent=1 // pred_fallthru
      _
    // Predicated region
    $region18: #{resnext_forward.13} parent=1 // pred_check
      _
    $region19: #{resnext_forward.13} parent=1 // pred_check_branch
      %58 = sbr.rel (0) target = $region21
    $region20: #{resnext_forward.13} parent=1 // pred_region
      %59 = dma.done [#allocation4], 2048
    $region21: #{resnext_forward.13} parent=1 // pred_fallthru
      _
    // Predicated region
    $region22: #{resnext_forward.13} parent=1 // pred_check
      _
    $region23: #{resnext_forward.13} parent=1 // pred_check_branch
      %61 = sbr.rel (0) target = $region25
    $region24: #{resnext_forward.13} parent=1 // pred_region
      %62 = dma.done [#allocation7], 2048
    $region25: #{resnext_forward.13} parent=1 // pred_fallthru
      _
    // Predicated region
    $region26: #{resnext_forward.13} parent=1 // pred_check
      _
    $region27: #{resnext_forward.13} parent=1 // pred_check_branch
      %64 = sbr.rel (0) target = $region29
    $region28: #{resnext_forward.13} parent=1 // pred_region
      %65 = dma.done [#allocation7], 16
    $region29: #{resnext_forward.13} parent=1 // pred_fallthru
      _
    // Predicated region
    $region30: #{resnext_forward.13} parent=1 // pred_check
      _
    $region31: #{resnext_forward.13} parent=1 // pred_check_branch
      %67 = sbr.rel (0) target = $region33
    $region32: #{resnext_forward.13} parent=1 // pred_region
      %68 = dma.done [#allocation10], 16
    $region33: #{resnext_forward.13} parent=1 // pred_fallthru
      _
    %p70 = scmp.eq.s32.totalorder 0, 0
    // Predicated region
    $region34: #{resnext_forward.13} parent=1 // pred_check
      %p71 = pneg %p70
    $region35: #{resnext_forward.13} parent=1 // pred_check_branch
      %73 = sbr.rel (%p71) target = $region37
    $region36: #{resnext_forward.13} parent=1 // pred_region
      %74 = vst [vmem:[#allocation2] sm:$0xff] 0.0
      %75 = vst [vmem:[#allocation2 + $0x8] sm:$0xff] 0.0
      %76 = vst [vmem:[#allocation2 + $0x10] sm:$0xff] 0.0
      %77 = vst [vmem:[#allocation2 + $0x18] sm:$0xff] 0.0
      %78 = vst [vmem:[#allocation2 + $0x20] sm:$0xff] 0.0
      %79 = vst [vmem:[#allocation2 + $0x28] sm:$0xff] 0.0
      %80 = vst [vmem:[#allocation2 + $0x30] sm:$0xff] 0.0
      %81 = vst [vmem:[#allocation2 + $0x38] sm:$0xff] 0.0
      %82 = vst [vmem:[#allocation2 + $0x40] sm:$0xff] 0.0
      %83 = vst [vmem:[#allocation2 + $0x48] sm:$0xff] 0.0
      %84 = vst [vmem:[#allocation2 + $0x50] sm:$0xff] 0.0
      %85 = vst [vmem:[#allocation2 + $0x58] sm:$0xff] 0.0
      %86 = vst [vmem:[#allocation2 + $0x60] sm:$0xff] 0.0
      %87 = vst [vmem:[#allocation2 + $0x68] sm:$0xff] 0.0
      %88 = vst [vmem:[#allocation2 + $0x70] sm:$0xff] 0.0
      %89 = vst [vmem:[#allocation2 + $0x78] sm:$0xff] 0.0
    $region37: #{resnext_forward.13} parent=1 // pred_fallthru
      _
    %v90 = vld [vmem:[#allocation2] sm:$0xff]
    %v91 = vld [vmem:[#allocation2 + $0x8] sm:$0xff]
    %v92 = vld [vmem:[#allocation2 + $0x10] sm:$0xff]
    %v93 = vld [vmem:[#allocation2 + $0x18] sm:$0xff]
    %v94 = vld [vmem:[#allocation2 + $0x20] sm:$0xff]
    %v95 = vld [vmem:[#allocation2 + $0x28] sm:$0xff]
    %v96 = vld [vmem:[#allocation2 + $0x30] sm:$0xff]
    %v97 = vld [vmem:[#allocation2 + $0x38] sm:$0xff]
    %v98 = vld [vmem:[#allocation2 + $0x40] sm:$0xff]
    %v99 = vld [vmem:[#allocation2 + $0x48] sm:$0xff]
    %v100 = vld [vmem:[#allocation2 + $0x50] sm:$0xff]
    %v101 = vld [vmem:[#allocation2 + $0x58] sm:$0xff]
    %v102 = vld [vmem:[#allocation2 + $0x60] sm:$0xff]
    %v103 = vld [vmem:[#allocation2 + $0x68] sm:$0xff]
    %v104 = vld [vmem:[#allocation2 + $0x70] sm:$0xff]
    %v105 = vld [vmem:[#allocation2 + $0x78] sm:$0xff]
    %v106 = vld [vmem:[#allocation3] sm:$0xff]
    %v107 = vld [vmem:[#allocation3 + $0x8] sm:$0xff]
    %v108 = vld [vmem:[#allocation3 + $0x10] sm:$0xff]
    %v109 = vld [vmem:[#allocation3 + $0x18] sm:$0xff]
    %v110 = vld [vmem:[#allocation3 + $0x20] sm:$0xff]
    %v111 = vld [vmem:[#allocation3 + $0x28] sm:$0xff]
    %v112 = vld [vmem:[#allocation3 + $0x30] sm:$0xff]
    %v113 = vld [vmem:[#allocation3 + $0x38] sm:$0xff]
    %v114 = vld [vmem:[#allocation3 + $0x40] sm:$0xff]
    %v115 = vld [vmem:[#allocation3 + $0x48] sm:$0xff]
    %v116 = vld [vmem:[#allocation3 + $0x50] sm:$0xff]
    %v117 = vld [vmem:[#allocation3 + $0x58] sm:$0xff]
    %v118 = vld [vmem:[#allocation3 + $0x60] sm:$0xff]
    %v119 = vld [vmem:[#allocation3 + $0x68] sm:$0xff]
    %v120 = vld [vmem:[#allocation3 + $0x70] sm:$0xff]
    %v121 = vld [vmem:[#allocation3 + $0x78] sm:$0xff]
    %v122 = vld [vmem:[#allocation6] sm:$0xf]
    %v123 = vld [vmem:[#allocation6 + $0x4] sm:$0xf]
    %v124 = vld [vmem:[#allocation6 + $0x8] sm:$0xf]
    %v125 = vld [vmem:[#allocation6 + $0xc] sm:$0xf]
    %v126 = vld [vmem:[#allocation6 + $0x10] sm:$0xf]
    %v127 = vld [vmem:[#allocation6 + $0x14] sm:$0xf]
    %v128 = vld [vmem:[#allocation6 + $0x18] sm:$0xf]
    %v129 = vld [vmem:[#allocation6 + $0x1c] sm:$0xf]
    %v130 = vld [vmem:[#allocation6 + $0x20] sm:$0xf]
    %v131 = vld [vmem:[#allocation6 + $0x24] sm:$0xf]
    %v132 = vld [vmem:[#allocation6 + $0x28] sm:$0xf]
    %v133 = vld [vmem:[#allocation6 + $0x2c] sm:$0xf]
    %v134 = vld [vmem:[#allocation6 + $0x30] sm:$0xf]
    %v135 = vld [vmem:[#allocation6 + $0x34] sm:$0xf]
    %v136 = vld [vmem:[#allocation6 + $0x38] sm:$0xf]
    %v137 = vld [vmem:[#allocation6 + $0x3c] sm:$0xf]
    %v138 = vld [vmem:[#allocation6 + $0x40] sm:$0xf]
    %v139 = vld [vmem:[#allocation6 + $0x44] sm:$0xf]
    %v140 = vld [vmem:[#allocation6 + $0x48] sm:$0xf]
    %v141 = vld [vmem:[#allocation6 + $0x4c] sm:$0xf]
    %v142 = vld [vmem:[#allocation6 + $0x50] sm:$0xf]
    %v143 = vld [vmem:[#allocation6 + $0x54] sm:$0xf]
    %v144 = vld [vmem:[#allocation6 + $0x58] sm:$0xf]
    %v145 = vld [vmem:[#allocation6 + $0x5c] sm:$0xf]
    %v146 = vld [vmem:[#allocation6 + $0x60] sm:$0xf]
    %v147 = vld [vmem:[#allocation6 + $0x64] sm:$0xf]
    %v148 = vld [vmem:[#allocation6 + $0x68] sm:$0xf]
    %v149 = vld [vmem:[#allocation6 + $0x6c] sm:$0xf]
    %v150 = vld [vmem:[#allocation6 + $0x70] sm:$0xf]
    %v151 = vld [vmem:[#allocation6 + $0x74] sm:$0xf]
    %v152 = vld [vmem:[#allocation6 + $0x78] sm:$0xf]
    %v153 = vld [vmem:[#allocation6 + $0x7c] sm:$0xf]
    %v170 = vunpack.c.l.b16 %v106
    %v171 = vunpack.c.h.b16 %v106
    %v172 = vunpack.c.l.b16 %v107
    %v173 = vunpack.c.h.b16 %v107
    %v174 = vunpack.c.l.b16 %v108
    %v175 = vunpack.c.h.b16 %v108
    %v176 = vunpack.c.l.b16 %v109
    %v177 = vunpack.c.h.b16 %v109
    %v178 = vunpack.c.l.b16 %v110
    %v179 = vunpack.c.h.b16 %v110
    %v180 = vunpack.c.l.b16 %v111
    %v181 = vunpack.c.h.b16 %v111
    %v182 = vunpack.c.l.b16 %v112
    %v183 = vunpack.c.h.b16 %v112
    %v184 = vunpack.c.l.b16 %v113
    %v185 = vunpack.c.h.b16 %v113
    %v186 = vunpack.c.l.b16 %v114
    %v187 = vunpack.c.h.b16 %v114
    %v188 = vunpack.c.l.b16 %v115
    %v189 = vunpack.c.h.b16 %v115
    %v190 = vunpack.c.l.b16 %v116
    %v191 = vunpack.c.h.b16 %v116
    %v192 = vunpack.c.l.b16 %v117
    %v193 = vunpack.c.h.b16 %v117
    %v194 = vunpack.c.l.b16 %v118
    %v195 = vunpack.c.h.b16 %v118
    %v196 = vunpack.c.l.b16 %v119
    %v197 = vunpack.c.h.b16 %v119
    %v198 = vunpack.c.l.b16 %v120
    %v199 = vunpack.c.h.b16 %v120
    %v200 = vunpack.c.l.b16 %v121
    %v201 = vunpack.c.h.b16 %v121
    %v202 = vpack.c.b16 %v172, %v170
    %v203 = vpack.c.b16 %v173, %v171
    %v204 = vpack.c.b16 %v176, %v174
    %v205 = vpack.c.b16 %v177, %v175
    %v206 = vpack.c.b16 %v180, %v178
    %v207 = vpack.c.b16 %v181, %v179
    %v208 = vpack.c.b16 %v184, %v182
    %v209 = vpack.c.b16 %v185, %v183
    %v210 = vpack.c.b16 %v188, %v186
    %v211 = vpack.c.b16 %v189, %v187
    %v212 = vpack.c.b16 %v192, %v190
    %v213 = vpack.c.b16 %v193, %v191
    %v214 = vpack.c.b16 %v196, %v194
    %v215 = vpack.c.b16 %v197, %v195
    %v216 = vpack.c.b16 %v200, %v198
    %v217 = vpack.c.b16 %v201, %v199
    %v266 = vunpack.c.l.b16 %v122
    %v267 = vunpack.c.l.b16 %v123
    %v268 = vunpack.c.l.b16 %v124
    %v269 = vunpack.c.l.b16 %v125
    %v270 = vunpack.c.l.b16 %v126
    %v271 = vunpack.c.l.b16 %v127
    %v272 = vunpack.c.l.b16 %v128
    %v273 = vunpack.c.l.b16 %v129
    %v274 = vunpack.c.l.b16 %v130
    %v275 = vunpack.c.l.b16 %v131
    %v276 = vunpack.c.l.b16 %v132
    %v277 = vunpack.c.l.b16 %v133
    %v278 = vunpack.c.l.b16 %v134
    %v279 = vunpack.c.l.b16 %v135
    %v280 = vunpack.c.l.b16 %v136
    %v281 = vunpack.c.l.b16 %v137
    %v282 = vunpack.c.l.b16 %v138
    %v283 = vunpack.c.l.b16 %v139
    %v284 = vunpack.c.l.b16 %v140
    %v285 = vunpack.c.l.b16 %v141
    %v286 = vunpack.c.l.b16 %v142
    %v287 = vunpack.c.l.b16 %v143
    %v288 = vunpack.c.l.b16 %v144
    %v289 = vunpack.c.l.b16 %v145
    %v290 = vunpack.c.l.b16 %v146
    %v291 = vunpack.c.l.b16 %v147
    %v292 = vunpack.c.l.b16 %v148
    %v293 = vunpack.c.l.b16 %v149
    %v294 = vunpack.c.l.b16 %v150
    %v295 = vunpack.c.l.b16 %v151
    %v296 = vunpack.c.l.b16 %v152
    %v297 = vunpack.c.l.b16 %v153
    %v298 = vpack.c.b16 %v267, %v266
    %v299 = vpack.c.b16 %v269, %v268
    %v300 = vpack.c.b16 %v271, %v270
    %v301 = vpack.c.b16 %v273, %v272
    %v302 = vpack.c.b16 %v275, %v274
    %v303 = vpack.c.b16 %v277, %v276
    %v304 = vpack.c.b16 %v279, %v278
    %v305 = vpack.c.b16 %v281, %v280
    %v306 = vpack.c.b16 %v283, %v282
    %v307 = vpack.c.b16 %v285, %v284
    %v308 = vpack.c.b16 %v287, %v286
    %v309 = vpack.c.b16 %v289, %v288
    %v310 = vpack.c.b16 %v291, %v290
    %v311 = vpack.c.b16 %v293, %v292
    %v312 = vpack.c.b16 %v295, %v294
    %v313 = vpack.c.b16 %v297, %v296
    %330 = vmatprep.subr.bf16.mxu0 0
    %331 = vmatpush1.bf16.msra.mxu0 %v298
    %332 = vmatprep.subr.bf16.mxu0 0
    %333 = vmatpush1.bf16.msra.mxu0 %v299
    %334 = vmatprep.subr.bf16.mxu0 0
    %335 = vmatpush1.bf16.msra.mxu0 %v300
    %336 = vmatprep.subr.bf16.mxu0 0
    %337 = vmatpush1.bf16.msra.mxu0 %v301
    %338 = vmatprep.subr.bf16.mxu0 0
    %339 = vmatpush1.bf16.msra.mxu0 %v302
    %340 = vmatprep.subr.bf16.mxu0 0
    %341 = vmatpush1.bf16.msra.mxu0 %v303
    %342 = vmatprep.subr.bf16.mxu0 0
    %343 = vmatpush1.bf16.msra.mxu0 %v304
    %344 = vmatprep.subr.bf16.mxu0 0
    %345 = vmatpush1.bf16.msra.mxu0 %v305
    %346 = vmatprep.subr.bf16.mxu0 0
    %347 = vmatpush1.bf16.msra.mxu0 %v306
    %348 = vmatprep.subr.bf16.mxu0 0
    %349 = vmatpush1.bf16.msra.mxu0 %v307
    %350 = vmatprep.subr.bf16.mxu0 0
    %351 = vmatpush1.bf16.msra.mxu0 %v308
    %352 = vmatprep.subr.bf16.mxu0 0
    %353 = vmatpush1.bf16.msra.mxu0 %v309
    %354 = vmatprep.subr.bf16.mxu0 0
    %355 = vmatpush1.bf16.msra.mxu0 %v310
    %356 = vmatprep.subr.bf16.mxu0 0
    %357 = vmatpush1.bf16.msra.mxu0 %v311
    %358 = vmatprep.subr.bf16.mxu0 0
    %359 = vmatpush1.bf16.msra.mxu0 %v312
    %360 = vmatprep.subr.bf16.mxu0 0
    %361 = vmatpush1.bf16.msra.mxu0 %v313
    %362 = vmatprep.mubr.bf16.mxu0 %v203
    %363 = vmatmul.mubr.bf16.gmra.mrb[0].mxu0 %v202
    %v364 = vpop.f32.mrb[0].mxu0
    %v365 = vadd.f32 0.0, %v364
    %v366 = vpop.f32.mrb[0].mxu0
    %v367 = vpop.f32.mrb[0].mxu0
    %v368 = vadd.f32 0.0, %v367
    %v369 = vpop.f32.mrb[0].mxu0
    %370 = vmatprep.mubr.bf16.mxu0 %v205
    %371 = vmatmul.mubr.bf16.gmra.mrb[0].mxu0 %v204
    %v372 = vpop.f32.mrb[0].mxu0
    %v373 = vadd.f32 0.0, %v372
    %v374 = vpop.f32.mrb[0].mxu0
    %v375 = vpop.f32.mrb[0].mxu0
    %v376 = vadd.f32 0.0, %v375
    %v377 = vpop.f32.mrb[0].mxu0
    %378 = vmatprep.mubr.bf16.mxu0 %v207
    %379 = vmatmul.mubr.bf16.gmra.mrb[0].mxu0 %v206
    %v380 = vpop.f32.mrb[0].mxu0
    %v381 = vadd.f32 0.0, %v380
    %v382 = vpop.f32.mrb[0].mxu0
    %v383 = vpop.f32.mrb[0].mxu0
    %v384 = vadd.f32 0.0, %v383
    %v385 = vpop.f32.mrb[0].mxu0
    %386 = vmatprep.mubr.bf16.mxu0 %v209
    %387 = vmatmul.mubr.bf16.gmra.mrb[0].mxu0 %v208
    %v388 = vpop.f32.mrb[0].mxu0
    %v389 = vadd.f32 0.0, %v388
    %v390 = vpop.f32.mrb[0].mxu0
    %v391 = vpop.f32.mrb[0].mxu0
    %v392 = vadd.f32 0.0, %v391
    %v393 = vpop.f32.mrb[0].mxu0
    %394 = vmatprep.mubr.bf16.mxu0 %v211
    %395 = vmatmul.mubr.bf16.gmra.mrb[0].mxu0 %v210
    %v396 = vpop.f32.mrb[0].mxu0
    %v397 = vadd.f32 0.0, %v396
    %v398 = vpop.f32.mrb[0].mxu0
    %v399 = vpop.f32.mrb[0].mxu0
    %v400 = vadd.f32 0.0, %v399
    %v401 = vpop.f32.mrb[0].mxu0
    %402 = vmatprep.mubr.bf16.mxu0 %v213
    %403 = vmatmul.mubr.bf16.gmra.mrb[0].mxu0 %v212
    %v404 = vpop.f32.mrb[0].mxu0
    %v405 = vadd.f32 0.0, %v404
    %v406 = vpop.f32.mrb[0].mxu0
    %v407 = vpop.f32.mrb[0].mxu0
    %v408 = vadd.f32 0.0, %v407
    %v409 = vpop.f32.mrb[0].mxu0
    %410 = vmatprep.mubr.bf16.mxu0 %v215
    %411 = vmatmul.mubr.bf16.gmra.mrb[0].mxu0 %v214
    %v412 = vpop.f32.mrb[0].mxu0
    %v413 = vadd.f32 0.0, %v412
    %v414 = vpop.f32.mrb[0].mxu0
    %v415 = vpop.f32.mrb[0].mxu0
    %v416 = vadd.f32 0.0, %v415
    %v417 = vpop.f32.mrb[0].mxu0
    %418 = vmatprep.mubr.bf16.mxu0 %v217
    %419 = vmatmul.mubr.bf16.gmra.mrb[0].mxu0 %v216
    %v420 = vpop.f32.mrb[0].mxu0
    %v421 = vadd.f32 0.0, %v420
    %v422 = vpop.f32.mrb[0].mxu0
    %v423 = vpop.f32.mrb[0].mxu0
    %v424 = vadd.f32 0.0, %v423
    %v425 = vpop.f32.mrb[0].mxu0
    %426 = vdwg.mxu0
    %v427 = vadd.f32 %v90, %v365
    %v428 = vadd.f32 %v91, %v368
    %v429 = vadd.f32 %v92, %v373
    %v430 = vadd.f32 %v93, %v376
    %v431 = vadd.f32 %v94, %v381
    %v432 = vadd.f32 %v95, %v384
    %v433 = vadd.f32 %v96, %v389
    %v434 = vadd.f32 %v97, %v392
    %v435 = vadd.f32 %v98, %v397
    %v436 = vadd.f32 %v99, %v400
    %v437 = vadd.f32 %v100, %v405
    %v438 = vadd.f32 %v101, %v408
    %v439 = vadd.f32 %v102, %v413
    %v440 = vadd.f32 %v103, %v416
    %v441 = vadd.f32 %v104, %v421
    %v442 = vadd.f32 %v105, %v424
    %443 = vst [vmem:[#allocation2] sm:$0xff] %v427
    %444 = vst [vmem:[#allocation2 + $0x8] sm:$0xff] %v428
    %445 = vst [vmem:[#allocation2 + $0x10] sm:$0xff] %v429
    %446 = vst [vmem:[#allocation2 + $0x18] sm:$0xff] %v430
    %447 = vst [vmem:[#allocation2 + $0x20] sm:$0xff] %v431
    %448 = vst [vmem:[#allocation2 + $0x28] sm:$0xff] %v432
    %449 = vst [vmem:[#allocation2 + $0x30] sm:$0xff] %v433
    %450 = vst [vmem:[#allocation2 + $0x38] sm:$0xff] %v434
    %451 = vst [vmem:[#allocation2 + $0x40] sm:$0xff] %v435
    %452 = vst [vmem:[#allocation2 + $0x48] sm:$0xff] %v436
    %453 = vst [vmem:[#allocation2 + $0x50] sm:$0xff] %v437
    %454 = vst [vmem:[#allocation2 + $0x58] sm:$0xff] %v438
    %455 = vst [vmem:[#allocation2 + $0x60] sm:$0xff] %v439
    %456 = vst [vmem:[#allocation2 + $0x68] sm:$0xff] %v440
    %457 = vst [vmem:[#allocation2 + $0x70] sm:$0xff] %v441
    %458 = vst [vmem:[#allocation2 + $0x78] sm:$0xff] %v442
    // Predicated region
    $region38: #{resnext_forward.13} parent=1 // pred_check
      %p459 = pneg %p70
    $region39: #{resnext_forward.13} parent=1 // pred_check_branch
      %461 = sbr.rel (%p459) target = $region41
    $region40: #{resnext_forward.13} parent=1 // pred_region
      %v462 = vld [vmem:[#allocation2] sm:$0xff]
      %v463 = vld [vmem:[#allocation2 + $0x8] sm:$0xff]
      %v464 = vld [vmem:[#allocation2 + $0x10] sm:$0xff]
      %v465 = vld [vmem:[#allocation2 + $0x18] sm:$0xff]
      %v466 = vld [vmem:[#allocation2 + $0x20] sm:$0xff]
      %v467 = vld [vmem:[#allocation2 + $0x28] sm:$0xff]
      %v468 = vld [vmem:[#allocation2 + $0x30] sm:$0xff]
      %v469 = vld [vmem:[#allocation2 + $0x38] sm:$0xff]
      %v470 = vld [vmem:[#allocation2 + $0x40] sm:$0xff]
      %v471 = vld [vmem:[#allocation2 + $0x48] sm:$0xff]
      %v472 = vld [vmem:[#allocation2 + $0x50] sm:$0xff]
      %v473 = vld [vmem:[#allocation2 + $0x58] sm:$0xff]
      %v474 = vld [vmem:[#allocation2 + $0x60] sm:$0xff]
      %v475 = vld [vmem:[#allocation2 + $0x68] sm:$0xff]
      %v476 = vld [vmem:[#allocation2 + $0x70] sm:$0xff]
      %v477 = vld [vmem:[#allocation2 + $0x78] sm:$0xff]
      %v478 = vld [vmem:[#allocation8] sm:$0x1]
      %v480 = vlaneseq
      %v481 = vshrl.u32 %v480, 7
      %v482 = vsub.s32 0, %v481
      %v483 = vrot.slane %v478, %v482
      %v485 = vmul.f32 %v462, %v483
      %v486 = vmul.f32 %v463, %v483
      %v487 = vmul.f32 %v464, %v483
      %v488 = vmul.f32 %v465, %v483
      %v489 = vmul.f32 %v466, %v483
      %v490 = vmul.f32 %v467, %v483
      %v491 = vmul.f32 %v468, %v483
      %v492 = vmul.f32 %v469, %v483
      %v493 = vmul.f32 %v470, %v483
      %v494 = vmul.f32 %v471, %v483
      %v495 = vmul.f32 %v472, %v483
      %v496 = vmul.f32 %v473, %v483
      %v497 = vmul.f32 %v474, %v483
      %v498 = vmul.f32 %v475, %v483
      %v499 = vmul.f32 %v476, %v483
      %v500 = vmul.f32 %v477, %v483
      %v501 = vld [vmem:[#allocation9] sm:$0x1]
      %v503 = vlaneseq
      %v504 = vshrl.u32 %v503, 7
      %v505 = vsub.s32 0, %v504
      %v506 = vrot.slane %v501, %v505
      %v508 = vadd.f32 %v485, %v506
      %v509 = vadd.f32 %v486, %v506
      %v510 = vadd.f32 %v487, %v506
      %v511 = vadd.f32 %v488, %v506
      %v512 = vadd.f32 %v489, %v506
      %v513 = vadd.f32 %v490, %v506
      %v514 = vadd.f32 %v491, %v506
      %v515 = vadd.f32 %v492, %v506
      %v516 = vadd.f32 %v493, %v506
      %v517 = vadd.f32 %v494, %v506
      %v518 = vadd.f32 %v495, %v506
      %v519 = vadd.f32 %v496, %v506
      %v520 = vadd.f32 %v497, %v506
      %v521 = vadd.f32 %v498, %v506
      %v522 = vadd.f32 %v499, %v506
      %v523 = vadd.f32 %v500, %v506
      %v524 = vmax.f32 %v508, 0.0
      %v525 = vmax.f32 %v509, 0.0
      %v526 = vmax.f32 %v510, 0.0
      %v527 = vmax.f32 %v511, 0.0
      %v528 = vmax.f32 %v512, 0.0
      %v529 = vmax.f32 %v513, 0.0
      %v530 = vmax.f32 %v514, 0.0
      %v531 = vmax.f32 %v515, 0.0
      %v532 = vmax.f32 %v516, 0.0
      %v533 = vmax.f32 %v517, 0.0
      %v534 = vmax.f32 %v518, 0.0
      %v535 = vmax.f32 %v519, 0.0
      %v536 = vmax.f32 %v520, 0.0
      %v537 = vmax.f32 %v521, 0.0
      %v538 = vmax.f32 %v522, 0.0
      %v539 = vmax.f32 %v523, 0.0
      %v540 = vpack.c.bf16 %v525, %v524
      %v541 = vpack.c.bf16 %v527, %v526
      %v542 = vpack.c.bf16 %v529, %v528
      %v543 = vpack.c.bf16 %v531, %v530
      %v544 = vpack.c.bf16 %v533, %v532
      %v545 = vpack.c.bf16 %v535, %v534
      %v546 = vpack.c.bf16 %v537, %v536
      %v547 = vpack.c.bf16 %v539, %v538
      %v556 = vunpack.c.l.b16 %v540
      %v557 = vunpack.c.h.b16 %v540
      %v558 = vunpack.c.l.b16 %v541
      %v559 = vunpack.c.h.b16 %v541
      %v560 = vunpack.c.l.b16 %v542
      %v561 = vunpack.c.h.b16 %v542
      %v562 = vunpack.c.l.b16 %v543
      %v563 = vunpack.c.h.b16 %v543
      %v564 = vunpack.c.l.b16 %v544
      %v565 = vunpack.c.h.b16 %v544
      %v566 = vunpack.c.l.b16 %v545
      %v567 = vunpack.c.h.b16 %v545
      %v568 = vunpack.c.l.b16 %v546
      %v569 = vunpack.c.h.b16 %v546
      %v570 = vunpack.c.l.b16 %v547
      %v571 = vunpack.c.h.b16 %v547
      %v572 = vpack.c.b16 %v556, %v556
      %v573 = vpack.c.b16 %v557, %v557
      %v574 = vpack.c.b16 %v558, %v558
      %v575 = vpack.c.b16 %v559, %v559
      %v576 = vpack.c.b16 %v560, %v560
      %v577 = vpack.c.b16 %v561, %v561
      %v578 = vpack.c.b16 %v562, %v562
      %v579 = vpack.c.b16 %v563, %v563
      %v580 = vpack.c.b16 %v564, %v564
      %v581 = vpack.c.b16 %v565, %v565
      %v582 = vpack.c.b16 %v566, %v566
      %v583 = vpack.c.b16 %v567, %v567
      %v584 = vpack.c.b16 %v568, %v568
      %v585 = vpack.c.b16 %v569, %v569
      %v586 = vpack.c.b16 %v570, %v570
      %v587 = vpack.c.b16 %v571, %v571
      %604 = vst [vmem:[#allocation11] sm:$0xf] %v572
      %605 = vst [vmem:[#allocation11 + $0x4] sm:$0xf] %v573
      %606 = vst [vmem:[#allocation11 + $0x8] sm:$0xf] %v574
      %607 = vst [vmem:[#allocation11 + $0xc] sm:$0xf] %v575
      %608 = vst [vmem:[#allocation11 + $0x10] sm:$0xf] %v576
      %609 = vst [vmem:[#allocation11 + $0x14] sm:$0xf] %v577
      %610 = vst [vmem:[#allocation11 + $0x18] sm:$0xf] %v578
      %611 = vst [vmem:[#allocation11 + $0x1c] sm:$0xf] %v579
      %612 = vst [vmem:[#allocation11 + $0x20] sm:$0xf] %v580
      %613 = vst [vmem:[#allocation11 + $0x24] sm:$0xf] %v581
      %614 = vst [vmem:[#allocation11 + $0x28] sm:$0xf] %v582
      %615 = vst [vmem:[#allocation11 + $0x2c] sm:$0xf] %v583
      %616 = vst [vmem:[#allocation11 + $0x30] sm:$0xf] %v584
      %617 = vst [vmem:[#allocation11 + $0x34] sm:$0xf] %v585
      %618 = vst [vmem:[#allocation11 + $0x38] sm:$0xf] %v586
      %619 = vst [vmem:[#allocation11 + $0x3c] sm:$0xf] %v587
    $region41: #{resnext_forward.13} parent=1 // pred_fallthru
      _
    // Predicated region
    $region42: #{resnext_forward.13} parent=1 // pred_check
      _
    $region43: #{resnext_forward.13} parent=1 // pred_check_branch
      %621 = sbr.rel (0) target = $region45
    $region44: #{resnext_forward.13} parent=1 // pred_region
      %s623 = ssub.s32 1024, 1024
      %624 = vsyncadd [#allocation5], %s623
      %s625 = sshll.u32 [#allocation11], 4
      %s626 = int_to_ptr.vmem [resolvable:$true] %s625
      %631 = dma.vmem_to_hbm [thread:$0]  %s626, 1024, %s4, [#allocation5], 64, 64, 4
    $region45: #{resnext_forward.13} parent=1 // pred_fallthru
      _
    // Predicated region
    $region46: #{resnext_forward.13} parent=1 // pred_check
      _
    $region47: #{resnext_forward.13} parent=1 // pred_check_branch
      %633 = sbr.rel (0) target = $region49
    $region48: #{resnext_forward.13} parent=1 // pred_region
      %634 = dma.done [#allocation5], 1024
    $region49: #{resnext_forward.13} parent=1 // pred_fallthru
      _
    %635 = vsyncpa [#allocation4], 1
    %636 = vsyncpa [#allocation7], 1
    %637 = vsyncpa [#allocation10], 1
    %638 = vsyncpa [#allocation5], 1

// kernel: resnext_forward.14
$region0: #{resnext_forward.14}
  #allocation0 [shape = 'u32[]', space=smem, size = 0x4, offset = 0x4, fixed_abs, tag = 'smem constant byte address 0x4 - core index']
  #allocation1 [shape = 'u32[144,128]{1,0:T(1,128)}', space=vmem, size = 0x12000, scoped, tag = 'internal scratch']
  #allocation2 [shape = 'f32[32,128]{1,0:T(8,128)}', space=vmem, size = 0x4000, scoped, tag = 'scratch operand']
  %s0 = inlined_call_operand.hbm [shape: bf16[32,128], index: 0, kind: input, shape index: {}]
  %s1 = inlined_call_operand.hbm [shape: bf16[128,128], index: 1, kind: input, shape index: {}]
  %s2 = inlined_call_operand.hbm [shape: f32[1,128], index: 2, kind: input, shape index: {}]
  %s3 = inlined_call_operand.hbm [shape: f32[1,128], index: 3, kind: input, shape index: {}]
  %s4 = inlined_call_operand.hbm [shape: bf16[32,128], index: 4, kind: output, shape index: {}]
  %s5 = sld [smem:[#allocation0]]
  $region50: #{resnext_forward.14} parent=0
    _
  %s7 = ssub.s32 1, %s5
  %s8 = scalar_select 0, %s7, %s5
  $region1: #{resnext_forward.14} parent=0
    #allocation3 [shape = 'u8[8192]{0}', space=vmem, size = 0x2000, scoped, tag = 'input window, operand 0, single buffered']
    #allocation4 [shape = 's32[1]{0}', space=sflag, size = 0x4, scoped, tag = 'scoped memory for resnext_forward.14']
    #allocation5 [shape = 's32[1]{0}', space=sflag, size = 0x4, scoped, tag = 'scoped memory for resnext_forward.14']
    #allocation6 [shape = 'u8[32768]{0}', space=vmem, size = 0x8000, scoped, tag = 'input window, operand 1, single buffered']
    #allocation7 [shape = 's32[1]{0}', space=sflag, size = 0x4, scoped, tag = 'scoped memory for resnext_forward.14']
    #allocation8 [shape = 'u8[512]{0}', space=vmem, size = 0x400, scoped, tag = 'input window, operand 2, single buffered']
    #allocation9 [shape = 'u8[512]{0}', space=vmem, size = 0x400, scoped, tag = 'input window, operand 3, single buffered']
    #allocation10 [shape = 's32[1]{0}', space=sflag, size = 0x4, scoped, tag = 'scoped memory for resnext_forward.14']
    #allocation11 [shape = 'u8[8192]{0}', space=vmem, size = 0x2000, scoped, tag = 'output window, operand 0, single buffered']
    %9 = vsyncpa [#allocation4], 0
    %10 = vsyncpa [#allocation7], 0
    %11 = vsyncpa [#allocation10], 0
    %12 = vsyncpa [#allocation5], 0
    // Predicated region
    $region2: #{resnext_forward.14} parent=1 // pred_check
      _
    $region3: #{resnext_forward.14} parent=1 // pred_check_branch
      %14 = sbr.rel (0) target = $region5
    $region4: #{resnext_forward.14} parent=1 // pred_region
      %s16 = ssub.s32 256, 256
      %17 = vsyncadd [#allocation4], %s16
      %s18 = sshll.u32 [#allocation3], 4
      %s19 = int_to_ptr.vmem [resolvable:$true] %s18
      %24 = dma.hbm_to_vmem [thread:$0]  %s0, 256, %s19, [#allocation4], 64, 64, 4
    $region5: #{resnext_forward.14} parent=1 // pred_fallthru
      _
    // Predicated region
    $region6: #{resnext_forward.14} parent=1 // pred_check
      _
    $region7: #{resnext_forward.14} parent=1 // pred_check_branch
      %26 = sbr.rel (0) target = $region9
    $region8: #{resnext_forward.14} parent=1 // pred_region
      %s28 = ssub.s32 1024, 1024
      %29 = vsyncadd [#allocation7], %s28
      %s30 = sshll.u32 [#allocation6], 4
      %s31 = int_to_ptr.vmem [resolvable:$true] %s30
      %36 = dma.hbm_to_vmem [thread:$0]  %s1, 1024, %s31, [#allocation7], 64, 64, 4
    $region9: #{resnext_forward.14} parent=1 // pred_fallthru
      _
    // Predicated region
    $region10: #{resnext_forward.14} parent=1 // pred_check
      _
    $region11: #{resnext_forward.14} parent=1 // pred_check_branch
      %38 = sbr.rel (0) target = $region13
    $region12: #{resnext_forward.14} parent=1 // pred_region
      %s40 = ssub.s32 16, 16
      %41 = vsyncadd [#allocation7], %s40
      %s43 = sshll.u32 [#allocation8], 4
      %s44 = int_to_ptr.vmem [resolvable:$true] %s43
      %46 = dma.hbm_to_vmem [thread:$0]  %s2, 16, %s44, [#allocation7]
    $region13: #{resnext_forward.14} parent=1 // pred_fallthru
      _
    // Predicated region
    $region14: #{resnext_forward.14} parent=1 // pred_check
      _
    $region15: #{resnext_forward.14} parent=1 // pred_check_branch
      %48 = sbr.rel (0) target = $region17
    $region16: #{resnext_forward.14} parent=1 // pred_region
      %s50 = ssub.s32 16, 16
      %51 = vsyncadd [#allocation10], %s50
      %s53 = sshll.u32 [#allocation9], 4
      %s54 = int_to_ptr.vmem [resolvable:$true] %s53
      %56 = dma.hbm_to_vmem [thread:$0]  %s3, 16, %s54, [#allocation10]
    $region17: #{resnext_forward.14} parent=1 // pred_fallthru
      _
    // Predicated region
    $region18: #{resnext_forward.14} parent=1 // pred_check
      _
    $region19: #{resnext_forward.14} parent=1 // pred_check_branch
      %58 = sbr.rel (0) target = $region21
    $region20: #{resnext_forward.14} parent=1 // pred_region
      %59 = dma.done [#allocation4], 256
    $region21: #{resnext_forward.14} parent=1 // pred_fallthru
      _
    // Predicated region
    $region22: #{resnext_forward.14} parent=1 // pred_check
      _
    $region23: #{resnext_forward.14} parent=1 // pred_check_branch
      %61 = sbr.rel (0) target = $region25
    $region24: #{resnext_forward.14} parent=1 // pred_region
      %62 = dma.done [#allocation7], 1024
    $region25: #{resnext_forward.14} parent=1 // pred_fallthru
      _
    // Predicated region
    $region26: #{resnext_forward.14} parent=1 // pred_check
      _
    $region27: #{resnext_forward.14} parent=1 // pred_check_branch
      %64 = sbr.rel (0) target = $region29
    $region28: #{resnext_forward.14} parent=1 // pred_region
      %65 = dma.done [#allocation7], 16
    $region29: #{resnext_forward.14} parent=1 // pred_fallthru
      _
    // Predicated region
    $region30: #{resnext_forward.14} parent=1 // pred_check
      _
    $region31: #{resnext_forward.14} parent=1 // pred_check_branch
      %67 = sbr.rel (0) target = $region33
    $region32: #{resnext_forward.14} parent=1 // pred_region
      %68 = dma.done [#allocation10], 16
    $region33: #{resnext_forward.14} parent=1 // pred_fallthru
      _
    %p70 = scmp.eq.s32.totalorder 0, 0
    // Predicated region
    $region34: #{resnext_forward.14} parent=1 // pred_check
      %p71 = pneg %p70
    $region35: #{resnext_forward.14} parent=1 // pred_check_branch
      %73 = sbr.rel (%p71) target = $region37
    $region36: #{resnext_forward.14} parent=1 // pred_region
      %74 = vst [vmem:[#allocation2] sm:$0xff] 0.0
      %75 = vst [vmem:[#allocation2 + $0x8] sm:$0xff] 0.0
      %76 = vst [vmem:[#allocation2 + $0x10] sm:$0xff] 0.0
      %77 = vst [vmem:[#allocation2 + $0x18] sm:$0xff] 0.0
    $region37: #{resnext_forward.14} parent=1 // pred_fallthru
      _
    %v78 = vld [vmem:[#allocation2] sm:$0xff]
    %v79 = vld [vmem:[#allocation2 + $0x8] sm:$0xff]
    %v80 = vld [vmem:[#allocation2 + $0x10] sm:$0xff]
    %v81 = vld [vmem:[#allocation2 + $0x18] sm:$0xff]
    %v82 = vld [vmem:[#allocation3] sm:$0xf]
    %v83 = vld [vmem:[#allocation3 + $0x4] sm:$0xf]
    %v84 = vld [vmem:[#allocation3 + $0x8] sm:$0xf]
    %v85 = vld [vmem:[#allocation3 + $0xc] sm:$0xf]
    %v86 = vld [vmem:[#allocation6] sm:$0xf]
    %v87 = vld [vmem:[#allocation6 + $0x4] sm:$0xf]
    %v88 = vld [vmem:[#allocation6 + $0x8] sm:$0xf]
    %v89 = vld [vmem:[#allocation6 + $0xc] sm:$0xf]
    %v90 = vld [vmem:[#allocation6 + $0x10] sm:$0xf]
    %v91 = vld [vmem:[#allocation6 + $0x14] sm:$0xf]
    %v92 = vld [vmem:[#allocation6 + $0x18] sm:$0xf]
    %v93 = vld [vmem:[#allocation6 + $0x1c] sm:$0xf]
    %v94 = vld [vmem:[#allocation6 + $0x20] sm:$0xf]
    %v95 = vld [vmem:[#allocation6 + $0x24] sm:$0xf]
    %v96 = vld [vmem:[#allocation6 + $0x28] sm:$0xf]
    %v97 = vld [vmem:[#allocation6 + $0x2c] sm:$0xf]
    %v98 = vld [vmem:[#allocation6 + $0x30] sm:$0xf]
    %v99 = vld [vmem:[#allocation6 + $0x34] sm:$0xf]
    %v100 = vld [vmem:[#allocation6 + $0x38] sm:$0xf]
    %v101 = vld [vmem:[#allocation6 + $0x3c] sm:$0xf]
    %v106 = vunpack.c.l.b16 %v82
    %v107 = vunpack.c.l.b16 %v83
    %v108 = vunpack.c.l.b16 %v84
    %v109 = vunpack.c.l.b16 %v85
    %v110 = vpack.c.b16 %v107, %v106
    %v111 = vpack.c.b16 %v109, %v108
    %v130 = vunpack.c.l.b16 %v86
    %v131 = vunpack.c.l.b16 %v87
    %v132 = vunpack.c.l.b16 %v88
    %v133 = vunpack.c.l.b16 %v89
    %v134 = vunpack.c.l.b16 %v90
    %v135 = vunpack.c.l.b16 %v91
    %v136 = vunpack.c.l.b16 %v92
    %v137 = vunpack.c.l.b16 %v93
    %v138 = vunpack.c.l.b16 %v94
    %v139 = vunpack.c.l.b16 %v95
    %v140 = vunpack.c.l.b16 %v96
    %v141 = vunpack.c.l.b16 %v97
    %v142 = vunpack.c.l.b16 %v98
    %v143 = vunpack.c.l.b16 %v99
    %v144 = vunpack.c.l.b16 %v100
    %v145 = vunpack.c.l.b16 %v101
    %v146 = vpack.c.b16 %v131, %v130
    %v147 = vpack.c.b16 %v133, %v132
    %v148 = vpack.c.b16 %v135, %v134
    %v149 = vpack.c.b16 %v137, %v136
    %v150 = vpack.c.b16 %v139, %v138
    %v151 = vpack.c.b16 %v141, %v140
    %v152 = vpack.c.b16 %v143, %v142
    %v153 = vpack.c.b16 %v145, %v144
    %162 = vmatprep.subr.bf16.mxu0 0
    %163 = vmatpush1.bf16.msra.mxu0 %v146
    %164 = vmatprep.subr.bf16.mxu0 0
    %165 = vmatpush1.bf16.msra.mxu0 %v147
    %166 = vmatprep.subr.bf16.mxu0 0
    %167 = vmatpush1.bf16.msra.mxu0 %v148
    %168 = vmatprep.subr.bf16.mxu0 0
    %169 = vmatpush1.bf16.msra.mxu0 %v149
    %170 = vmatprep.subr.bf16.mxu0 0
    %171 = vmatpush1.bf16.msra.mxu0 %v150
    %172 = vmatprep.subr.bf16.mxu0 0
    %173 = vmatpush1.bf16.msra.mxu0 %v151
    %174 = vmatprep.subr.bf16.mxu0 0
    %175 = vmatpush1.bf16.msra.mxu0 %v152
    %176 = vmatprep.subr.bf16.mxu0 0
    %177 = vmatpush1.bf16.msra.mxu0 %v153
    %178 = vmatprep.subr.bf16.mxu0 0
    %179 = vmatpush1.bf16.msra.mxu0 0
    %180 = vmatprep.subr.bf16.mxu0 0
    %181 = vmatpush1.bf16.msra.mxu0 0
    %182 = vmatprep.subr.bf16.mxu0 0
    %183 = vmatpush1.bf16.msra.mxu0 0
    %184 = vmatprep.subr.bf16.mxu0 0
    %185 = vmatpush1.bf16.msra.mxu0 0
    %186 = vmatprep.subr.bf16.mxu0 0
    %187 = vmatpush1.bf16.msra.mxu0 0
    %188 = vmatprep.subr.bf16.mxu0 0
    %189 = vmatpush1.bf16.msra.mxu0 0
    %190 = vmatprep.subr.bf16.mxu0 0
    %191 = vmatpush1.bf16.msra.mxu0 0
    %192 = vmatprep.subr.bf16.mxu0 0
    %193 = vmatpush1.bf16.msra.mxu0 0
    %194 = vmatprep.mubr.bf16.mxu0 0
    %195 = vmatmul.mubr.bf16.gmra.mrb[0].mxu0 %v110
    %v196 = vpop.f32.mrb[0].mxu0
    %v197 = vadd.f32 0.0, %v196
    %v198 = vpop.f32.mrb[0].mxu0
    %v199 = vpop.f32.mrb[0].mxu0
    %v200 = vadd.f32 0.0, %v199
    %v201 = vpop.f32.mrb[0].mxu0
    %202 = vmatprep.mubr.bf16.mxu0 0
    %203 = vmatmul.mubr.bf16.gmra.mrb[0].mxu0 %v111
    %v204 = vpop.f32.mrb[0].mxu0
    %v205 = vadd.f32 0.0, %v204
    %v206 = vpop.f32.mrb[0].mxu0
    %v207 = vpop.f32.mrb[0].mxu0
    %v208 = vadd.f32 0.0, %v207
    %v209 = vpop.f32.mrb[0].mxu0
    %210 = vdwg.mxu0
    %v211 = vadd.f32 %v78, %v197
    %v212 = vadd.f32 %v79, %v200
    %v213 = vadd.f32 %v80, %v205
    %v214 = vadd.f32 %v81, %v208
    %215 = vst [vmem:[#allocation2] sm:$0xff] %v211
    %216 = vst [vmem:[#allocation2 + $0x8] sm:$0xff] %v212
    %217 = vst [vmem:[#allocation2 + $0x10] sm:$0xff] %v213
    %218 = vst [vmem:[#allocation2 + $0x18] sm:$0xff] %v214
    // Predicated region
    $region38: #{resnext_forward.14} parent=1 // pred_check
      %p219 = pneg %p70
    $region39: #{resnext_forward.14} parent=1 // pred_check_branch
      %221 = sbr.rel (%p219) target = $region41
    $region40: #{resnext_forward.14} parent=1 // pred_region
      %v222 = vld [vmem:[#allocation2] sm:$0xff]
      %v223 = vld [vmem:[#allocation2 + $0x8] sm:$0xff]
      %v224 = vld [vmem:[#allocation2 + $0x10] sm:$0xff]
      %v225 = vld [vmem:[#allocation2 + $0x18] sm:$0xff]
      %v226 = vld [vmem:[#allocation8] sm:$0x1]
      %v228 = vlaneseq
      %v229 = vshrl.u32 %v228, 7
      %v230 = vsub.s32 0, %v229
      %v231 = vrot.slane %v226, %v230
      %v233 = vmul.f32 %v222, %v231
      %v234 = vmul.f32 %v223, %v231
      %v235 = vmul.f32 %v224, %v231
      %v236 = vmul.f32 %v225, %v231
      %v237 = vld [vmem:[#allocation9] sm:$0x1]
      %v239 = vlaneseq
      %v240 = vshrl.u32 %v239, 7
      %v241 = vsub.s32 0, %v240
      %v242 = vrot.slane %v237, %v241
      %v244 = vadd.f32 %v233, %v242
      %v245 = vadd.f32 %v234, %v242
      %v246 = vadd.f32 %v235, %v242
      %v247 = vadd.f32 %v236, %v242
      %v248 = vpack.c.bf16 %v245, %v244
      %v249 = vpack.c.bf16 %v247, %v246
      %v252 = vunpack.c.l.b16 %v248
      %v253 = vunpack.c.h.b16 %v248
      %v254 = vunpack.c.l.b16 %v249
      %v255 = vunpack.c.h.b16 %v249
      %v256 = vpack.c.b16 %v252, %v252
      %v257 = vpack.c.b16 %v253, %v253
      %v258 = vpack.c.b16 %v254, %v254
      %v259 = vpack.c.b16 %v255, %v255
      %264 = vst [vmem:[#allocation11] sm:$0xf] %v256
      %265 = vst [vmem:[#allocation11 + $0x4] sm:$0xf] %v257
      %266 = vst [vmem:[#allocation11 + $0x8] sm:$0xf] %v258
      %267 = vst [vmem:[#allocation11 + $0xc] sm:$0xf] %v259
    $region41: #{resnext_forward.14} parent=1 // pred_fallthru
      _
    // Predicated region
    $region42: #{resnext_forward.14} parent=1 // pred_check
      _
    $region43: #{resnext_forward.14} parent=1 // pred_check_branch
      %269 = sbr.rel (0) target = $region45
    $region44: #{resnext_forward.14} parent=1 // pred_region
      %s271 = ssub.s32 256, 256
      %272 = vsyncadd [#allocation5], %s271
      %s273 = sshll.u32 [#allocation11], 4
      %s274 = int_to_ptr.vmem [resolvable:$true] %s273
      %279 = dma.vmem_to_hbm [thread:$0]  %s274, 256, %s4, [#allocation5], 64, 64, 4
    $region45: #{resnext_forward.14} parent=1 // pred_fallthru
      _
    // Predicated region
    $region46: #{resnext_forward.14} parent=1 // pred_check
      _
    $region47: #{resnext_forward.14} parent=1 // pred_check_branch
      %281 = sbr.rel (0) target = $region49
    $region48: #{resnext_forward.14} parent=1 // pred_region
      %282 = dma.done [#allocation5], 256
    $region49: #{resnext_forward.14} parent=1 // pred_fallthru
      _
    %283 = vsyncpa [#allocation4], 1
    %284 = vsyncpa [#allocation7], 1
    %285 = vsyncpa [#allocation10], 1
    %286 = vsyncpa [#allocation5], 1

// kernel: resnext_forward.16
$region0: #{resnext_forward.16}
  #allocation0 [shape = 'u32[]', space=smem, size = 0x4, offset = 0x4, fixed_abs, tag = 'smem constant byte address 0x4 - core index']
  #allocation1 [shape = 'u32[144,128]{1,0:T(1,128)}', space=vmem, size = 0x12000, scoped, tag = 'internal scratch']
  %s0 = inlined_call_operand.hbm [shape: bf16[2,4,30,128], index: 0, kind: input, shape index: {}]
  %s1 = inlined_call_operand.hbm [shape: bf16[9,128,128], index: 1, kind: input, shape index: {}]
  %s2 = inlined_call_operand.hbm [shape: f32[1,128], index: 2, kind: input, shape index: {}]
  %s3 = inlined_call_operand.hbm [shape: f32[1,128], index: 3, kind: input, shape index: {}]
  %s4 = inlined_call_operand.hbm [shape: bf16[2,20,128], index: 4, kind: output, shape index: {}]
  %s5 = sld [smem:[#allocation0]]
  $region65: #{resnext_forward.16} parent=0
    _
  %s7 = ssub.s32 1, %s5
  %s8 = scalar_select 0, %s7, %s5
  $region1: #{resnext_forward.16} parent=0
    #allocation2 [shape = 'u8[65536]{0}', space=vmem, size = 0x10000, scoped, tag = 'input window, operand 0']
    #allocation3 [shape = 's32[2]{0}', space=sflag, size = 0x8, scoped, tag = 'scoped memory for resnext_forward.16']
    #allocation4 [shape = 's32[2]{0}', space=sflag, size = 0x8, scoped, tag = 'scoped memory for resnext_forward.16']
    #allocation5 [shape = 'u8[294912]{0}', space=vmem, size = 0x48000, scoped, tag = 'input window, operand 1, single buffered']
    #allocation6 [shape = 's32[1]{0}', space=sflag, size = 0x4, scoped, tag = 'scoped memory for resnext_forward.16']
    #allocation7 [shape = 'u8[512]{0}', space=vmem, size = 0x400, scoped, tag = 'input window, operand 2, single buffered']
    #allocation8 [shape = 'u8[512]{0}', space=vmem, size = 0x400, scoped, tag = 'input window, operand 3, single buffered']
    #allocation9 [shape = 's32[1]{0}', space=sflag, size = 0x4, scoped, tag = 'scoped memory for resnext_forward.16']
    #allocation10 [shape = 'u8[12288]{0}', space=vmem, size = 0x3000, scoped, tag = 'output window, operand 0']
    %9 = vsyncpa [#allocation3], 0
    %s10 = scalar_lea.sflag [#allocation3], 1
    %11 = vsyncpa %s10, 0
    %12 = vsyncpa [#allocation6], 0
    %13 = vsyncpa [#allocation9], 0
    %14 = vsyncpa [#allocation4], 0
    %s15 = scalar_lea.sflag [#allocation4], 1
    %16 = vsyncpa %s15, 0
    loop: start=0, step=1, limit=4
    $region2: #{resnext_forward.16} parent=1 // loop_pre_header
      _
    $region3: #{resnext_forward.16} parent=1 // loop_header
      %s18 = sphi 0, %s22
      %p19 = scmp.ge.s32.totalorder %s18, 4
      %s28 = sphi 0, %s30
      %s31 = sphi 0, %s28
      %s32 = sphi 0, %s31
      %s48 = sphi 0, %s32
      %s52 = sphi 0, %s52
      %s54 = sphi 0, %s52
      %s55 = sphi 0, %s54
      %s69 = sphi 0, %s55
      %s73 = sphi 0, %s73
      %s75 = sphi 0, %s73
      %s76 = sphi 0, %s75
      %s90 = sphi 0, %s76
      %s94 = sphi 0, %s94
      %s96 = sphi 0, %s94
      %s97 = sphi 0, %s96
      %s111 = sphi 0, %s97
      %s117 = sphi 0, %s119
      %s120 = sphi 0, %s117
      %s121 = sphi 0, %s120
      %s137 = sphi 0, %s121
    $region4: #{resnext_forward.16} parent=1 // loop_header_branch
      %21 = sbr.rel (%p19) target = $region8
    $region5: #{resnext_forward.16} parent=1 // loop_body
      %s23 = ssub.s32 %s18, 1
      %s24 = ssub.s32 %s18, 2
      %s25 = sadd.s32 %s18, 1
      %s26 = ssub.s32 %s18, %s25
      %p27 = scmp.eq.s32.totalorder %s26, 0
      %s29 = sadd.s32 %s28, 1
      %s30 = scalar_select %p27, %s28, %s29
      %p33 = pneg %p27
      %p34 = scmp.eq.s32.totalorder %s18, 1
      %p35 = por %p33, %p34
      %p36 = scmp.ne.s32.totalorder %s28, %s31
      %p37 = scmp.eq.s32.totalorder %s18, 0
      %p38 = por %p36, %p37
      %p39 = scmp.ne.s32.totalorder %s28, %s31
      %p40 = scmp.eq.s32.totalorder %s23, 1
      %p41 = por %p39, %p40
      %p42 = scmp.ne.s32.totalorder %s31, %s32
      %p43 = scmp.eq.s32.totalorder %s23, 0
      %p44 = por %p42, %p43
      %p45 = scmp.ne.s32.totalorder %s31, %s32
      %p46 = scmp.eq.s32.totalorder %s24, 1
      %p47 = por %p45, %p46
      %p49 = scmp.ne.s32.totalorder %s32, %s48
      %p50 = scmp.eq.s32.totalorder %s24, 0
      %p51 = por %p49, %p50
      %s53 = sadd.s32 %s52, 1
      %p56 = scmp.eq.s32.totalorder %s18, 1
      %p57 = scmp.ne.s32.totalorder %s52, %s54
      %p58 = scmp.eq.s32.totalorder %s18, 0
      %p59 = por %p57, %p58
      %p60 = scmp.ne.s32.totalorder %s52, %s54
      %p61 = scmp.eq.s32.totalorder %s23, 1
      %p62 = por %p60, %p61
      %p63 = scmp.ne.s32.totalorder %s54, %s55
      %p64 = scmp.eq.s32.totalorder %s23, 0
      %p65 = por %p63, %p64
      %p66 = scmp.ne.s32.totalorder %s54, %s55
      %p67 = scmp.eq.s32.totalorder %s24, 1
      %p68 = por %p66, %p67
      %p70 = scmp.ne.s32.totalorder %s55, %s69
      %p71 = scmp.eq.s32.totalorder %s24, 0
      %p72 = por %p70, %p71
      %s74 = sadd.s32 %s73, 1
      %p77 = scmp.eq.s32.totalorder %s18, 1
      %p78 = scmp.ne.s32.totalorder %s73, %s75
      %p79 = scmp.eq.s32.totalorder %s18, 0
      %p80 = por %p78, %p79
      %p81 = scmp.ne.s32.totalorder %s73, %s75
      %p82 = scmp.eq.s32.totalorder %s23, 1
      %p83 = por %p81, %p82
      %p84 = scmp.ne.s32.totalorder %s75, %s76
      %p85 = scmp.eq.s32.totalorder %s23, 0
      %p86 = por %p84, %p85
      %p87 = scmp.ne.s32.totalorder %s75, %s76
      %p88 = scmp.eq.s32.totalorder %s24, 1
      %p89 = por %p87, %p88
      %p91 = scmp.ne.s32.totalorder %s76, %s90
      %p92 = scmp.eq.s32.totalorder %s24, 0
      %p93 = por %p91, %p92
      %s95 = sadd.s32 %s94, 1
      %p98 = scmp.eq.s32.totalorder %s18, 1
      %p99 = scmp.ne.s32.totalorder %s94, %s96
      %p100 = scmp.eq.s32.totalorder %s18, 0
      %p101 = por %p99, %p100
      %p102 = scmp.ne.s32.totalorder %s94, %s96
      %p103 = scmp.eq.s32.totalorder %s23, 1
      %p104 = por %p102, %p103
      %p105 = scmp.ne.s32.totalorder %s96, %s97
      %p106 = scmp.eq.s32.totalorder %s23, 0
      %p107 = por %p105, %p106
      %p108 = scmp.ne.s32.totalorder %s96, %s97
      %p109 = scmp.eq.s32.totalorder %s24, 1
      %p110 = por %p108, %p109
      %p112 = scmp.ne.s32.totalorder %s97, %s111
      %p113 = scmp.eq.s32.totalorder %s24, 0
      %p114 = por %p112, %p113
      %s115 = ssub.s32 %s18, %s25
      %p116 = scmp.eq.s32.totalorder %s115, 0
      %s118 = sadd.s32 %s117, 1
      %s119 = scalar_select %p116, %s117, %s118
      %p122 = pneg %p116
      %p123 = scmp.eq.s32.totalorder %s18, 1
      %p124 = por %p122, %p123
      %p125 = scmp.ne.s32.totalorder %s117, %s120
      %p126 = scmp.eq.s32.totalorder %s18, 0
      %p127 = por %p125, %p126
      %p128 = scmp.ne.s32.totalorder %s117, %s120
      %p129 = scmp.eq.s32.totalorder %s23, 1
      %p130 = por %p128, %p129
      %p131 = scmp.ne.s32.totalorder %s120, %s121
      %p132 = scmp.eq.s32.totalorder %s23, 0
      %p133 = por %p131, %p132
      %p134 = scmp.ne.s32.totalorder %s120, %s121
      %p135 = scmp.eq.s32.totalorder %s24, 1
      %p136 = por %p134, %p135
      %p138 = scmp.ne.s32.totalorder %s121, %s137
      %p139 = scmp.eq.s32.totalorder %s24, 0
      %p140 = por %p138, %p139
      %p141 = scmp.le.s32.totalorder 1, %s18
      %p142 = scmp.lt.s32.totalorder %s18, 3
      %p143 = pnand %p141, %p142
      %p144 = pneg %p143
      // Predicated region
      $region9: #{resnext_forward.16} parent=5 // pred_check
        _
      $region10: #{resnext_forward.16} parent=5 // pred_check_branch
        %146 = sbr.rel (%p143) target = $region12
      $region11: #{resnext_forward.16} parent=5 // pred_region
        %s147 = ssub.s32 %s18, 1
        // Predicated region
        $region13: #{resnext_forward.16} parent=11 // pred_check
          %p148 = pneg %p65
        $region14: #{resnext_forward.16} parent=11 // pred_check_branch
          %150 = sbr.rel (%p148) target = $region16
        $region15: #{resnext_forward.16} parent=11 // pred_region
          %s152 = ssub.s32 9216, 9216
          %153 = vsyncadd [#allocation6], %s152
          %s154 = sshll.u32 [#allocation5], 4
          %s155 = int_to_ptr.vmem [resolvable:$true] %s154
          %160 = dma.hbm_to_vmem [thread:$0]  %s1, 9216, %s155, [#allocation6], 64, 64, 4
        $region16: #{resnext_forward.16} parent=11 // pred_fallthru
          _
        // Predicated region
        $region17: #{resnext_forward.16} parent=11 // pred_check
          %p161 = pneg %p86
        $region18: #{resnext_forward.16} parent=11 // pred_check_branch
          %163 = sbr.rel (%p161) target = $region20
        $region19: #{resnext_forward.16} parent=11 // pred_region
          %s165 = ssub.s32 16, 16
          %166 = vsyncadd [#allocation6], %s165
          %s168 = sshll.u32 [#allocation7], 4
          %s169 = int_to_ptr.vmem [resolvable:$true] %s168
          %171 = dma.hbm_to_vmem [thread:$0]  %s2, 16, %s169, [#allocation6]
        $region20: #{resnext_forward.16} parent=11 // pred_fallthru
          _
        // Predicated region
        $region21: #{resnext_forward.16} parent=11 // pred_check
          %p172 = pneg %p107
        $region22: #{resnext_forward.16} parent=11 // pred_check_branch
          %174 = sbr.rel (%p172) target = $region24
        $region23: #{resnext_forward.16} parent=11 // pred_region
          %s176 = ssub.s32 16, 16
          %177 = vsyncadd [#allocation9], %s176
          %s179 = sshll.u32 [#allocation8], 4
          %s180 = int_to_ptr.vmem [resolvable:$true] %s179
          %182 = dma.hbm_to_vmem [thread:$0]  %s3, 16, %s180, [#allocation9]
        $region24: #{resnext_forward.16} parent=11 // pred_fallthru
          _
      $region12: #{resnext_forward.16} parent=5 // pred_fallthru
        _
      %p183 = scmp.lt.s32.totalorder %s18, 2
      // Predicated region
      $region25: #{resnext_forward.16} parent=5 // pred_check
        %p184 = pneg %p183
      $region26: #{resnext_forward.16} parent=5 // pred_check_branch
        %186 = sbr.rel (%p184) target = $region28
      $region27: #{resnext_forward.16} parent=5 // pred_region
        // Predicated region
        $region29: #{resnext_forward.16} parent=27 // pred_check
          %p187 = pneg %p38
        $region30: #{resnext_forward.16} parent=27 // pred_check_branch
          %189 = sbr.rel (%p187) target = $region32
        $region31: #{resnext_forward.16} parent=27 // pred_region
          %s190 = sand.u32 %s28, 1
          %s191 = scalar_lea.sflag [#allocation3], %s190
          %s192 = sand.u32 %s28, 1
          %s193 = smul.addr %s192, 64
          %s194 = scalar_lea.vmem [#allocation2], %s193
          %s196 = ssub.s32 1024, 1024
          %197 = vsyncadd %s191, %s196
          %s198 = smul.addr %s18, 16
          %s199 = smul.addr %s198, 64
          %s200 = scalar_lea.hbm %s0, %s199
          %s201 = sshll.u32 %s194, 4
          %s202 = int_to_ptr.vmem [resolvable:$true] %s201
          %207 = dma.hbm_to_vmem [thread:$0]  %s200, 1024, %s202, %s191, 64, 64, 4
        $region32: #{resnext_forward.16} parent=27 // pred_fallthru
          _
      $region28: #{resnext_forward.16} parent=5 // pred_fallthru
        _
      %p208 = scmp.le.s32.totalorder 1, %s18
      %p209 = scmp.lt.s32.totalorder %s18, 3
      %p210 = pnand %p208, %p209
      %p211 = pneg %p210
      // Predicated region
      $region33: #{resnext_forward.16} parent=5 // pred_check
        _
      $region34: #{resnext_forward.16} parent=5 // pred_check_branch
        %213 = sbr.rel (%p210) target = $region36
      $region35: #{resnext_forward.16} parent=5 // pred_region
        %s214 = ssub.s32 %s18, 1
        %s215 = sand.u32 %s31, 1
        %s216 = scalar_lea.sflag [#allocation3], %s215
        %s217 = sand.u32 %s31, 1
        %s218 = smul.addr %s217, 64
        %s219 = scalar_lea.vmem [#allocation2], %s218
        // Predicated region
        $region37: #{resnext_forward.16} parent=35 // pred_check
          %p220 = pneg %p44
        $region38: #{resnext_forward.16} parent=35 // pred_check_branch
          %222 = sbr.rel (%p220) target = $region40
        $region39: #{resnext_forward.16} parent=35 // pred_region
          %223 = dma.done %s216, 1024
        $region40: #{resnext_forward.16} parent=35 // pred_fallthru
          _
        // Predicated region
        $region41: #{resnext_forward.16} parent=35 // pred_check
          %p224 = pneg %p65
        $region42: #{resnext_forward.16} parent=35 // pred_check_branch
          %226 = sbr.rel (%p224) target = $region44
        $region43: #{resnext_forward.16} parent=35 // pred_region
          %227 = dma.done [#allocation6], 9216
        $region44: #{resnext_forward.16} parent=35 // pred_fallthru
          _
        // Predicated region
        $region45: #{resnext_forward.16} parent=35 // pred_check
          %p228 = pneg %p86
        $region46: #{resnext_forward.16} parent=35 // pred_check_branch
          %230 = sbr.rel (%p228) target = $region48
        $region47: #{resnext_forward.16} parent=35 // pred_region
          %231 = dma.done [#allocation6], 16
        $region48: #{resnext_forward.16} parent=35 // pred_fallthru
          _
        // Predicated region
        $region49: #{resnext_forward.16} parent=35 // pred_check
          %p232 = pneg %p107
        $region50: #{resnext_forward.16} parent=35 // pred_check_branch
          %234 = sbr.rel (%p232) target = $region52
        $region51: #{resnext_forward.16} parent=35 // pred_region
          %235 = dma.done [#allocation9], 16
        $region52: #{resnext_forward.16} parent=35 // pred_fallthru
          _
        %s236 = sand.u32 %s31, 1
        %s237 = scalar_lea.sflag [#allocation3], %s236
        %s238 = sand.u32 %s31, 1
        %s239 = smul.addr %s238, 64
        %s240 = scalar_lea.vmem [#allocation2], %s239
        %p241 = pneg %p44
        %p242 = pneg %p41
        %p243 = pneg %p65
        %p244 = pneg %p62
        %p245 = pneg %p86
        %p246 = pneg %p83
        %p247 = pneg %p107
        %p248 = pneg %p104
        %p249 = pneg %p133
        %p250 = pneg %p130
        %s251 = sand.u32 %s120, 1
        %s252 = scalar_lea.sflag [#allocation4], %s251
        %s253 = sand.u32 %s120, 1
        %s254 = smul.addr %s253, 12
        %s255 = scalar_lea.vmem [#allocation10], %s254
        %v257 = vld [vmem:[%s219] sm:$0xf]
        %v258 = vld [vmem:[%s219 + $0x4] sm:$0xf]
        %v259 = vld [vmem:[%s219 + $0x8] sm:$0x3]
        %v260 = vld [vmem:[#allocation5] sm:$0xf]
        %v261 = vld [vmem:[#allocation5 + $0x4] sm:$0xf]
        %v262 = vld [vmem:[#allocation5 + $0x8] sm:$0xf]
        %v263 = vld [vmem:[#allocation5 + $0xc] sm:$0xf]
        %v264 = vld [vmem:[#allocation5 + $0x10] sm:$0xf]
        %v265 = vld [vmem:[#allocation5 + $0x14] sm:$0xf]
        %v266 = vld [vmem:[#allocation5 + $0x18] sm:$0xf]
        %v267 = vld [vmem:[#allocation5 + $0x1c] sm:$0xf]
        %v268 = vld [vmem:[#allocation5 + $0x20] sm:$0xf]
        %v269 = vld [vmem:[#allocation5 + $0x24] sm:$0xf]
        %v270 = vld [vmem:[#allocation5 + $0x28] sm:$0xf]
        %v271 = vld [vmem:[#allocation5 + $0x2c] sm:$0xf]
        %v272 = vld [vmem:[#allocation5 + $0x30] sm:$0xf]
        %v273 = vld [vmem:[#allocation5 + $0x34] sm:$0xf]
        %v274 = vld [vmem:[#allocation5 + $0x38] sm:$0xf]
        %v275 = vld [vmem:[#allocation5 + $0x3c] sm:$0xf]
        %s276 = scalar_lea.vmem %s219, 16 [#allocation2]
        %v277 = vld [vmem:[%s276] sm:$0xf]
        %v278 = vld [vmem:[%s276 + $0x4] sm:$0xf]
        %v279 = vld [vmem:[%s276 + $0x8] sm:$0x3]
        %s280 = scalar_lea.vmem [#allocation5], 64
        %v281 = vld [vmem:[%s280] sm:$0xf]
        %v282 = vld [vmem:[%s280 + $0x4] sm:$0xf]
        %v283 = vld [vmem:[%s280 + $0x8] sm:$0xf]
        %v284 = vld [vmem:[%s280 + $0xc] sm:$0xf]
        %v285 = vld [vmem:[%s280 + $0x10] sm:$0xf]
        %v286 = vld [vmem:[%s280 + $0x14] sm:$0xf]
        %v287 = vld [vmem:[%s280 + $0x18] sm:$0xf]
        %v288 = vld [vmem:[%s280 + $0x1c] sm:$0xf]
        %v289 = vld [vmem:[%s280 + $0x20] sm:$0xf]
        %v290 = vld [vmem:[%s280 + $0x24] sm:$0xf]
        %v291 = vld [vmem:[%s280 + $0x28] sm:$0xf]
        %v292 = vld [vmem:[%s280 + $0x2c] sm:$0xf]
        %v293 = vld [vmem:[%s280 + $0x30] sm:$0xf]
        %v294 = vld [vmem:[%s280 + $0x34] sm:$0xf]
        %v295 = vld [vmem:[%s280 + $0x38] sm:$0xf]
        %v296 = vld [vmem:[%s280 + $0x3c] sm:$0xf]
        %v300 = vunpack.c.l.b16 %v277
        %v301 = vunpack.c.l.b16 %v278
        %v302 = vunpack.c.l.b16 %v279
        %v303 = vpack.c.b16 %v301, %v300
        %v304 = vpack.c.b16 %v302, %v302
        %v323 = vunpack.c.l.b16 %v281
        %v324 = vunpack.c.l.b16 %v282
        %v325 = vunpack.c.l.b16 %v283
        %v326 = vunpack.c.l.b16 %v284
        %v327 = vunpack.c.l.b16 %v285
        %v328 = vunpack.c.l.b16 %v286
        %v329 = vunpack.c.l.b16 %v287
        %v330 = vunpack.c.l.b16 %v288
        %v331 = vunpack.c.l.b16 %v289
        %v332 = vunpack.c.l.b16 %v290
        %v333 = vunpack.c.l.b16 %v291
        %v334 = vunpack.c.l.b16 %v292
        %v335 = vunpack.c.l.b16 %v293
        %v336 = vunpack.c.l.b16 %v294
        %v337 = vunpack.c.l.b16 %v295
        %v338 = vunpack.c.l.b16 %v296
        %v339 = vpack.c.b16 %v324, %v323
        %v340 = vpack.c.b16 %v326, %v325
        %v341 = vpack.c.b16 %v328, %v327
        %v342 = vpack.c.b16 %v330, %v329
        %v343 = vpack.c.b16 %v332, %v331
        %v344 = vpack.c.b16 %v334, %v333
        %v345 = vpack.c.b16 %v336, %v335
        %v346 = vpack.c.b16 %v338, %v337
        %355 = vmatprep.subr.bf16.mxu0 0
        %356 = vmatpush1.bf16.msra.mxu0 %v339
        %357 = vmatprep.subr.bf16.mxu0 0
        %358 = vmatpush1.bf16.msra.mxu0 %v340
        %359 = vmatprep.subr.bf16.mxu0 0
        %360 = vmatpush1.bf16.msra.mxu0 %v341
        %361 = vmatprep.subr.bf16.mxu0 0
        %362 = vmatpush1.bf16.msra.mxu0 %v342
        %363 = vmatprep.subr.bf16.mxu0 0
        %364 = vmatpush1.bf16.msra.mxu0 %v343
        %365 = vmatprep.subr.bf16.mxu0 0
        %366 = vmatpush1.bf16.msra.mxu0 %v344
        %367 = vmatprep.subr.bf16.mxu0 0
        %368 = vmatpush1.bf16.msra.mxu0 %v345
        %369 = vmatprep.subr.bf16.mxu0 0
        %370 = vmatpush1.bf16.msra.mxu0 %v346
        %371 = vmatprep.subr.bf16.mxu0 0
        %372 = vmatpush1.bf16.msra.mxu0 0
        %373 = vmatprep.subr.bf16.mxu0 0
        %374 = vmatpush1.bf16.msra.mxu0 0
        %375 = vmatprep.subr.bf16.mxu0 0
        %376 = vmatpush1.bf16.msra.mxu0 0
        %377 = vmatprep.subr.bf16.mxu0 0
        %378 = vmatpush1.bf16.msra.mxu0 0
        %379 = vmatprep.subr.bf16.mxu0 0
        %380 = vmatpush1.bf16.msra.mxu0 0
        %381 = vmatprep.subr.bf16.mxu0 0
        %382 = vmatpush1.bf16.msra.mxu0 0
        %383 = vmatprep.subr.bf16.mxu0 0
        %384 = vmatpush1.bf16.msra.mxu0 0
        %385 = vmatprep.subr.bf16.mxu0 0
        %386 = vmatpush1.bf16.msra.mxu0 0
        %387 = vmatprep.mubr.bf16.mxu0 0
        %388 = vmatmul.mubr.bf16.gmra.mrb[0].mxu0 %v303
        %v389 = vpop.f32.mrb[0].mxu0
        %v390 = vadd.f32 0.0, %v389
        %v391 = vpop.f32.mrb[0].mxu0
        %v392 = vpop.f32.mrb[0].mxu0
        %v393 = vadd.f32 0.0, %v392
        %v394 = vpop.f32.mrb[0].mxu0
        %395 = vmatprep.mubr.bf16.mxu0 0
        %396 = vmatmul.mubr.bf16.gmra.mrb[0].mxu0 %v304
        %v397 = vpop.f32.mrb[0].mxu0
        %v398 = vadd.f32 0.0, %v397
        %v399 = vpop.f32.mrb[0].mxu0
        %v400 = vpop.f32.mrb[0].mxu0
        %v401 = vpop.f32.mrb[0].mxu0
        %402 = vdwg.mxu0
        %v406 = vunpack.c.l.b16 %v257
        %v407 = vunpack.c.l.b16 %v258
        %v408 = vunpack.c.l.b16 %v259
        %v409 = vpack.c.b16 %v407, %v406
        %v410 = vpack.c.b16 %v408, %v408
        %v429 = vunpack.c.l.b16 %v260
        %v430 = vunpack.c.l.b16 %v261
        %v431 = vunpack.c.l.b16 %v262
        %v432 = vunpack.c.l.b16 %v263
        %v433 = vunpack.c.l.b16 %v264
        %v434 = vunpack.c.l.b16 %v265
        %v435 = vunpack.c.l.b16 %v266
        %v436 = vunpack.c.l.b16 %v267
        %v437 = vunpack.c.l.b16 %v268
        %v438 = vunpack.c.l.b16 %v269
        %v439 = vunpack.c.l.b16 %v270
        %v440 = vunpack.c.l.b16 %v271
        %v441 = vunpack.c.l.b16 %v272
        %v442 = vunpack.c.l.b16 %v273
        %v443 = vunpack.c.l.b16 %v274
        %v444 = vunpack.c.l.b16 %v275
        %v445 = vpack.c.b16 %v430, %v429
        %v446 = vpack.c.b16 %v432, %v431
        %v447 = vpack.c.b16 %v434, %v433
        %v448 = vpack.c.b16 %v436, %v435
        %v449 = vpack.c.b16 %v438, %v437
        %v450 = vpack.c.b16 %v440, %v439
        %v451 = vpack.c.b16 %v442, %v441
        %v452 = vpack.c.b16 %v444, %v443
        %461 = vmatprep.subr.bf16.mxu0 0
        %462 = vmatpush1.bf16.msra.mxu0 %v445
        %463 = vmatprep.subr.bf16.mxu0 0
        %464 = vmatpush1.bf16.msra.mxu0 %v446
        %465 = vmatprep.subr.bf16.mxu0 0
        %466 = vmatpush1.bf16.msra.mxu0 %v447
        %467 = vmatprep.subr.bf16.mxu0 0
        %468 = vmatpush1.bf16.msra.mxu0 %v448
        %469 = vmatprep.subr.bf16.mxu0 0
        %470 = vmatpush1.bf16.msra.mxu0 %v449
        %471 = vmatprep.subr.bf16.mxu0 0
        %472 = vmatpush1.bf16.msra.mxu0 %v450
        %473 = vmatprep.subr.bf16.mxu0 0
        %474 = vmatpush1.bf16.msra.mxu0 %v451
        %475 = vmatprep.subr.bf16.mxu0 0
        %476 = vmatpush1.bf16.msra.mxu0 %v452
        %477 = vmatprep.subr.bf16.mxu0 0
        %478 = vmatpush1.bf16.msra.mxu0 0
        %479 = vmatprep.subr.bf16.mxu0 0
        %480 = vmatpush1.bf16.msra.mxu0 0
        %481 = vmatprep.subr.bf16.mxu0 0
        %482 = vmatpush1.bf16.msra.mxu0 0
        %483 = vmatprep.subr.bf16.mxu0 0
        %484 = vmatpush1.bf16.msra.mxu0 0
        %485 = vmatprep.subr.bf16.mxu0 0
        %486 = vmatpush1.bf16.msra.mxu0 0
        %487 = vmatprep.subr.bf16.mxu0 0
        %488 = vmatpush1.bf16.msra.mxu0 0
        %489 = vmatprep.subr.bf16.mxu0 0
        %490 = vmatpush1.bf16.msra.mxu0 0
        %491 = vmatprep.subr.bf16.mxu0 0
        %492 = vmatpush1.bf16.msra.mxu0 0
        %493 = vmatprep.mubr.bf16.mxu0 0
        %494 = vmatmul.mubr.bf16.gmra.mrb[0].mxu0 %v409
        %v495 = vpop.f32.mrb[0].mxu0
        %v496 = vadd.f32 %v390, %v495
        %v497 = vpop.f32.mrb[0].mxu0
        %v498 = vpop.f32.mrb[0].mxu0
        %v499 = vadd.f32 %v393, %v498
        %v500 = vpop.f32.mrb[0].mxu0
        %501 = vmatprep.mubr.bf16.mxu0 0
        %502 = vmatmul.mubr.bf16.gmra.mrb[0].mxu0 %v410
        %v503 = vpop.f32.mrb[0].mxu0
        %v504 = vadd.f32 %v398, %v503
        %v505 = vpop.f32.mrb[0].mxu0
        %v506 = vpop.f32.mrb[0].mxu0
        %v507 = vpop.f32.mrb[0].mxu0
        %508 = vdwg.mxu0
        %v509 = vld [vmem:[%s219 + $0x8] sm:$0x7]
        %s510 = scalar_lea.vmem [#allocation5], 128
        %v511 = vld [vmem:[%s510] sm:$0xf]
        %v512 = vld [vmem:[%s510 + $0x4] sm:$0xf]
        %v513 = vld [vmem:[%s510 + $0x8] sm:$0xf]
        %v514 = vld [vmem:[%s510 + $0xc] sm:$0xf]
        %v515 = vld [vmem:[%s510 + $0x10] sm:$0xf]
        %v516 = vld [vmem:[%s510 + $0x14] sm:$0xf]
        %v517 = vld [vmem:[%s510 + $0x18] sm:$0xf]
        %v518 = vld [vmem:[%s510 + $0x1c] sm:$0xf]
        %v519 = vld [vmem:[%s510 + $0x20] sm:$0xf]
        %v520 = vld [vmem:[%s510 + $0x24] sm:$0xf]
        %v521 = vld [vmem:[%s510 + $0x28] sm:$0xf]
        %v522 = vld [vmem:[%s510 + $0x2c] sm:$0xf]
        %v523 = vld [vmem:[%s510 + $0x30] sm:$0xf]
        %v524 = vld [vmem:[%s510 + $0x34] sm:$0xf]
        %v525 = vld [vmem:[%s510 + $0x38] sm:$0xf]
        %v526 = vld [vmem:[%s510 + $0x3c] sm:$0xf]
        %v528 = vunpack.c.l.b16 %v509
        %v529 = vpack.c.b16 %v528, %v528
        %vm530 = vsmask.f32 7424
        %v532 = vshrl.u32 %v409, 16
        %v534 = vshll.u32 %v409, 16
        %v536 = vrot.slane %v534, 1
        %v537 = vor.u32 %v532, %v536
        %v539 = vshll.u32 %v529, 16
        %v541 = vrot.slane %v539, 1
        %v542 = vsel %vm530, %v537, %v541
        %v543 = vshrl.u32 %v529, 16
        %v545 = vor.u32 %v543, %v541
        %v564 = vunpack.c.l.b16 %v511
        %v565 = vunpack.c.l.b16 %v512
        %v566 = vunpack.c.l.b16 %v513
        %v567 = vunpack.c.l.b16 %v514
        %v568 = vunpack.c.l.b16 %v515
        %v569 = vunpack.c.l.b16 %v516
        %v570 = vunpack.c.l.b16 %v517
        %v571 = vunpack.c.l.b16 %v518
        %v572 = vunpack.c.l.b16 %v519
        %v573 = vunpack.c.l.b16 %v520
        %v574 = vunpack.c.l.b16 %v521
        %v575 = vunpack.c.l.b16 %v522
        %v576 = vunpack.c.l.b16 %v523
        %v577 = vunpack.c.l.b16 %v524
        %v578 = vunpack.c.l.b16 %v525
        %v579 = vunpack.c.l.b16 %v526
        %v580 = vpack.c.b16 %v565, %v564
        %v581 = vpack.c.b16 %v567, %v566
        %v582 = vpack.c.b16 %v569, %v568
        %v583 = vpack.c.b16 %v571, %v570
        %v584 = vpack.c.b16 %v573, %v572
        %v585 = vpack.c.b16 %v575, %v574
        %v586 = vpack.c.b16 %v577, %v576
        %v587 = vpack.c.b16 %v579, %v578
        %596 = vmatprep.subr.bf16.mxu0 0
        %597 = vmatpush1.bf16.msra.mxu0 %v580
        %598 = vmatprep.subr.bf16.mxu0 0
        %599 = vmatpush1.bf16.msra.mxu0 %v581
        %600 = vmatprep.subr.bf16.mxu0 0
        %601 = vmatpush1.bf16.msra.mxu0 %v582
        %602 = vmatprep.subr.bf16.mxu0 0
        %603 = vmatpush1.bf16.msra.mxu0 %v583
        %604 = vmatprep.subr.bf16.mxu0 0
        %605 = vmatpush1.bf16.msra.mxu0 %v584
        %606 = vmatprep.subr.bf16.mxu0 0
        %607 = vmatpush1.bf16.msra.mxu0 %v585
        %608 = vmatprep.subr.bf16.mxu0 0
        %609 = vmatpush1.bf16.msra.mxu0 %v586
        %610 = vmatprep.subr.bf16.mxu0 0
        %611 = vmatpush1.bf16.msra.mxu0 %v587
        %612 = vmatprep.subr.bf16.mxu0 0
        %613 = vmatpush1.bf16.msra.mxu0 0
        %614 = vmatprep.subr.bf16.mxu0 0
        %615 = vmatpush1.bf16.msra.mxu0 0
        %616 = vmatprep.subr.bf16.mxu0 0
        %617 = vmatpush1.bf16.msra.mxu0 0
        %618 = vmatprep.subr.bf16.mxu0 0
        %619 = vmatpush1.bf16.msra.mxu0 0
        %620 = vmatprep.subr.bf16.mxu0 0
        %621 = vmatpush1.bf16.msra.mxu0 0
        %622 = vmatprep.subr.bf16.mxu0 0
        %623 = vmatpush1.bf16.msra.mxu0 0
        %624 = vmatprep.subr.bf16.mxu0 0
        %625 = vmatpush1.bf16.msra.mxu0 0
        %626 = vmatprep.subr.bf16.mxu0 0
        %627 = vmatpush1.bf16.msra.mxu0 0
        %628 = vmatprep.mubr.bf16.mxu0 0
        %629 = vmatmul.mubr.bf16.gmra.mrb[0].mxu0 %v542
        %v630 = vpop.f32.mrb[0].mxu0
        %v631 = vadd.f32 0.0, %v630
        %v632 = vpop.f32.mrb[0].mxu0
        %v633 = vpop.f32.mrb[0].mxu0
        %v634 = vadd.f32 0.0, %v633
        %v635 = vpop.f32.mrb[0].mxu0
        %636 = vmatprep.mubr.bf16.mxu0 0
        %637 = vmatmul.mubr.bf16.gmra.mrb[0].mxu0 %v545
        %v638 = vpop.f32.mrb[0].mxu0
        %v639 = vadd.f32 0.0, %v638
        %v640 = vpop.f32.mrb[0].mxu0
        %v641 = vpop.f32.mrb[0].mxu0
        %v642 = vpop.f32.mrb[0].mxu0
        %643 = vdwg.mxu0
        %v644 = vadd.f32 %v496, %v631
        %v645 = vadd.f32 %v499, %v634
        %v646 = vadd.f32 %v504, %v639
        %s647 = scalar_lea.vmem %s219, 32 [#allocation2]
        %v648 = vld [vmem:[%s647] sm:$0xf]
        %v649 = vld [vmem:[%s647 + $0x4] sm:$0xf]
        %v650 = vld [vmem:[%s647 + $0x8] sm:$0x3]
        %s651 = scalar_lea.vmem [#allocation5], 192
        %v652 = vld [vmem:[%s651] sm:$0xf]
        %v653 = vld [vmem:[%s651 + $0x4] sm:$0xf]
        %v654 = vld [vmem:[%s651 + $0x8] sm:$0xf]
        %v655 = vld [vmem:[%s651 + $0xc] sm:$0xf]
        %v656 = vld [vmem:[%s651 + $0x10] sm:$0xf]
        %v657 = vld [vmem:[%s651 + $0x14] sm:$0xf]
        %v658 = vld [vmem:[%s651 + $0x18] sm:$0xf]
        %v659 = vld [vmem:[%s651 + $0x1c] sm:$0xf]
        %v660 = vld [vmem:[%s651 + $0x20] sm:$0xf]
        %v661 = vld [vmem:[%s651 + $0x24] sm:$0xf]
        %v662 = vld [vmem:[%s651 + $0x28] sm:$0xf]
        %v663 = vld [vmem:[%s651 + $0x2c] sm:$0xf]
        %v664 = vld [vmem:[%s651 + $0x30] sm:$0xf]
        %v665 = vld [vmem:[%s651 + $0x34] sm:$0xf]
        %v666 = vld [vmem:[%s651 + $0x38] sm:$0xf]
        %v667 = vld [vmem:[%s651 + $0x3c] sm:$0xf]
        %v671 = vunpack.c.l.b16 %v648
        %v672 = vunpack.c.l.b16 %v649
        %v673 = vunpack.c.l.b16 %v650
        %v674 = vpack.c.b16 %v672, %v671
        %v675 = vpack.c.b16 %v673, %v673
        %v694 = vunpack.c.l.b16 %v652
        %v695 = vunpack.c.l.b16 %v653
        %v696 = vunpack.c.l.b16 %v654
        %v697 = vunpack.c.l.b16 %v655
        %v698 = vunpack.c.l.b16 %v656
        %v699 = vunpack.c.l.b16 %v657
        %v700 = vunpack.c.l.b16 %v658
        %v701 = vunpack.c.l.b16 %v659
        %v702 = vunpack.c.l.b16 %v660
        %v703 = vunpack.c.l.b16 %v661
        %v704 = vunpack.c.l.b16 %v662
        %v705 = vunpack.c.l.b16 %v663
        %v706 = vunpack.c.l.b16 %v664
        %v707 = vunpack.c.l.b16 %v665
        %v708 = vunpack.c.l.b16 %v666
        %v709 = vunpack.c.l.b16 %v667
        %v710 = vpack.c.b16 %v695, %v694
        %v711 = vpack.c.b16 %v697, %v696
        %v712 = vpack.c.b16 %v699, %v698
        %v713 = vpack.c.b16 %v701, %v700
        %v714 = vpack.c.b16 %v703, %v702
        %v715 = vpack.c.b16 %v705, %v704
        %v716 = vpack.c.b16 %v707, %v706
        %v717 = vpack.c.b16 %v709, %v708
        %726 = vmatprep.subr.bf16.mxu0 0
        %727 = vmatpush1.bf16.msra.mxu0 %v710
        %728 = vmatprep.subr.bf16.mxu0 0
        %729 = vmatpush1.bf16.msra.mxu0 %v711
        %730 = vmatprep.subr.bf16.mxu0 0
        %731 = vmatpush1.bf16.msra.mxu0 %v712
        %732 = vmatprep.subr.bf16.mxu0 0
        %733 = vmatpush1.bf16.msra.mxu0 %v713
        %734 = vmatprep.subr.bf16.mxu0 0
        %735 = vmatpush1.bf16.msra.mxu0 %v714
        %736 = vmatprep.subr.bf16.mxu0 0
        %737 = vmatpush1.bf16.msra.mxu0 %v715
        %738 = vmatprep.subr.bf16.mxu0 0
        %739 = vmatpush1.bf16.msra.mxu0 %v716
        %740 = vmatprep.subr.bf16.mxu0 0
        %741 = vmatpush1.bf16.msra.mxu0 %v717
        %742 = vmatprep.subr.bf16.mxu0 0
        %743 = vmatpush1.bf16.msra.mxu0 0
        %744 = vmatprep.subr.bf16.mxu0 0
        %745 = vmatpush1.bf16.msra.mxu0 0
        %746 = vmatprep.subr.bf16.mxu0 0
        %747 = vmatpush1.bf16.msra.mxu0 0
        %748 = vmatprep.subr.bf16.mxu0 0
        %749 = vmatpush1.bf16.msra.mxu0 0
        %750 = vmatprep.subr.bf16.mxu0 0
        %751 = vmatpush1.bf16.msra.mxu0 0
        %752 = vmatprep.subr.bf16.mxu0 0
        %753 = vmatpush1.bf16.msra.mxu0 0
        %754 = vmatprep.subr.bf16.mxu0 0
        %755 = vmatpush1.bf16.msra.mxu0 0
        %756 = vmatprep.subr.bf16.mxu0 0
        %757 = vmatpush1.bf16.msra.mxu0 0
        %758 = vmatprep.mubr.bf16.mxu0 0
        %759 = vmatmul.mubr.bf16.gmra.mrb[0].mxu0 %v674
        %v760 = vpop.f32.mrb[0].mxu0
        %v761 = vadd.f32 0.0, %v760
        %v762 = vpop.f32.mrb[0].mxu0
        %v763 = vpop.f32.mrb[0].mxu0
        %v764 = vadd.f32 0.0, %v763
        %v765 = vpop.f32.mrb[0].mxu0
        %766 = vmatprep.mubr.bf16.mxu0 0
        %767 = vmatmul.mubr.bf16.gmra.mrb[0].mxu0 %v675
        %v768 = vpop.f32.mrb[0].mxu0
        %v769 = vadd.f32 0.0, %v768
        %v770 = vpop.f32.mrb[0].mxu0
        %v771 = vpop.f32.mrb[0].mxu0
        %v772 = vpop.f32.mrb[0].mxu0
        %773 = vdwg.mxu0
        %v774 = vadd.f32 %v644, %v761
        %v775 = vadd.f32 %v645, %v764
        %v776 = vadd.f32 %v646, %v769
        %s777 = scalar_lea.vmem %s219, 48 [#allocation2]
        %v778 = vld [vmem:[%s777] sm:$0xf]
        %v779 = vld [vmem:[%s777 + $0x4] sm:$0xf]
        %v780 = vld [vmem:[%s777 + $0x8] sm:$0x3]
        %s781 = scalar_lea.vmem [#allocation5], 256
        %v782 = vld [vmem:[%s781] sm:$0xf]
        %v783 = vld [vmem:[%s781 + $0x4] sm:$0xf]
        %v784 = vld [vmem:[%s781 + $0x8] sm:$0xf]
        %v785 = vld [vmem:[%s781 + $0xc] sm:$0xf]
        %v786 = vld [vmem:[%s781 + $0x10] sm:$0xf]
        %v787 = vld [vmem:[%s781 + $0x14] sm:$0xf]
        %v788 = vld [vmem:[%s781 + $0x18] sm:$0xf]
        %v789 = vld [vmem:[%s781 + $0x1c] sm:$0xf]
        %v790 = vld [vmem:[%s781 + $0x20] sm:$0xf]
        %v791 = vld [vmem:[%s781 + $0x24] sm:$0xf]
        %v792 = vld [vmem:[%s781 + $0x28] sm:$0xf]
        %v793 = vld [vmem:[%s781 + $0x2c] sm:$0xf]
        %v794 = vld [vmem:[%s781 + $0x30] sm:$0xf]
        %v795 = vld [vmem:[%s781 + $0x34] sm:$0xf]
        %v796 = vld [vmem:[%s781 + $0x38] sm:$0xf]
        %v797 = vld [vmem:[%s781 + $0x3c] sm:$0xf]
        %v801 = vunpack.c.l.b16 %v778
        %v802 = vunpack.c.l.b16 %v779
        %v803 = vunpack.c.l.b16 %v780
        %v804 = vpack.c.b16 %v802, %v801
        %v805 = vpack.c.b16 %v803, %v803
        %v824 = vunpack.c.l.b16 %v782
        %v825 = vunpack.c.l.b16 %v783
        %v826 = vunpack.c.l.b16 %v784
        %v827 = vunpack.c.l.b16 %v785
        %v828 = vunpack.c.l.b16 %v786
        %v829 = vunpack.c.l.b16 %v787
        %v830 = vunpack.c.l.b16 %v788
        %v831 = vunpack.c.l.b16 %v789
        %v832 = vunpack.c.l.b16 %v790
        %v833 = vunpack.c.l.b16 %v791
        %v834 = vunpack.c.l.b16 %v792
        %v835 = vunpack.c.l.b16 %v793
        %v836 = vunpack.c.l.b16 %v794
        %v837 = vunpack.c.l.b16 %v795
        %v838 = vunpack.c.l.b16 %v796
        %v839 = vunpack.c.l.b16 %v797
        %v840 = vpack.c.b16 %v825, %v824
        %v841 = vpack.c.b16 %v827, %v826
        %v842 = vpack.c.b16 %v829, %v828
        %v843 = vpack.c.b16 %v831, %v830
        %v844 = vpack.c.b16 %v833, %v832
        %v845 = vpack.c.b16 %v835, %v834
        %v846 = vpack.c.b16 %v837, %v836
        %v847 = vpack.c.b16 %v839, %v838
        %856 = vmatprep.subr.bf16.mxu0 0
        %857 = vmatpush1.bf16.msra.mxu0 %v840
        %858 = vmatprep.subr.bf16.mxu0 0
        %859 = vmatpush1.bf16.msra.mxu0 %v841
        %860 = vmatprep.subr.bf16.mxu0 0
        %861 = vmatpush1.bf16.msra.mxu0 %v842
        %862 = vmatprep.subr.bf16.mxu0 0
        %863 = vmatpush1.bf16.msra.mxu0 %v843
        %864 = vmatprep.subr.bf16.mxu0 0
        %865 = vmatpush1.bf16.msra.mxu0 %v844
        %866 = vmatprep.subr.bf16.mxu0 0
        %867 = vmatpush1.bf16.msra.mxu0 %v845
        %868 = vmatprep.subr.bf16.mxu0 0
        %869 = vmatpush1.bf16.msra.mxu0 %v846
        %870 = vmatprep.subr.bf16.mxu0 0
        %871 = vmatpush1.bf16.msra.mxu0 %v847
        %872 = vmatprep.subr.bf16.mxu0 0
        %873 = vmatpush1.bf16.msra.mxu0 0
        %874 = vmatprep.subr.bf16.mxu0 0
        %875 = vmatpush1.bf16.msra.mxu0 0
        %876 = vmatprep.subr.bf16.mxu0 0
        %877 = vmatpush1.bf16.msra.mxu0 0
        %878 = vmatprep.subr.bf16.mxu0 0
        %879 = vmatpush1.bf16.msra.mxu0 0
        %880 = vmatprep.subr.bf16.mxu0 0
        %881 = vmatpush1.bf16.msra.mxu0 0
        %882 = vmatprep.subr.bf16.mxu0 0
        %883 = vmatpush1.bf16.msra.mxu0 0
        %884 = vmatprep.subr.bf16.mxu0 0
        %885 = vmatpush1.bf16.msra.mxu0 0
        %886 = vmatprep.subr.bf16.mxu0 0
        %887 = vmatpush1.bf16.msra.mxu0 0
        %888 = vmatprep.mubr.bf16.mxu0 0
        %889 = vmatmul.mubr.bf16.gmra.mrb[0].mxu0 %v804
        %v890 = vpop.f32.mrb[0].mxu0
        %v891 = vadd.f32 0.0, %v890
        %v892 = vpop.f32.mrb[0].mxu0
        %v893 = vpop.f32.mrb[0].mxu0
        %v894 = vadd.f32 0.0, %v893
        %v895 = vpop.f32.mrb[0].mxu0
        %896 = vmatprep.mubr.bf16.mxu0 0
        %897 = vmatmul.mubr.bf16.gmra.mrb[0].mxu0 %v805
        %v898 = vpop.f32.mrb[0].mxu0
        %v899 = vadd.f32 0.0, %v898
        %v900 = vpop.f32.mrb[0].mxu0
        %v901 = vpop.f32.mrb[0].mxu0
        %v902 = vpop.f32.mrb[0].mxu0
        %903 = vdwg.mxu0
        %v904 = vadd.f32 %v774, %v891
        %v905 = vadd.f32 %v775, %v894
        %v906 = vadd.f32 %v776, %v899
        %v907 = vld [vmem:[%s647 + $0x8] sm:$0x7]
        %s908 = scalar_lea.vmem [#allocation5], 320
        %v909 = vld [vmem:[%s908] sm:$0xf]
        %v910 = vld [vmem:[%s908 + $0x4] sm:$0xf]
        %v911 = vld [vmem:[%s908 + $0x8] sm:$0xf]
        %v912 = vld [vmem:[%s908 + $0xc] sm:$0xf]
        %v913 = vld [vmem:[%s908 + $0x10] sm:$0xf]
        %v914 = vld [vmem:[%s908 + $0x14] sm:$0xf]
        %v915 = vld [vmem:[%s908 + $0x18] sm:$0xf]
        %v916 = vld [vmem:[%s908 + $0x1c] sm:$0xf]
        %v917 = vld [vmem:[%s908 + $0x20] sm:$0xf]
        %v918 = vld [vmem:[%s908 + $0x24] sm:$0xf]
        %v919 = vld [vmem:[%s908 + $0x28] sm:$0xf]
        %v920 = vld [vmem:[%s908 + $0x2c] sm:$0xf]
        %v921 = vld [vmem:[%s908 + $0x30] sm:$0xf]
        %v922 = vld [vmem:[%s908 + $0x34] sm:$0xf]
        %v923 = vld [vmem:[%s908 + $0x38] sm:$0xf]
        %v924 = vld [vmem:[%s908 + $0x3c] sm:$0xf]
        %v926 = vunpack.c.l.b16 %v907
        %v927 = vpack.c.b16 %v926, %v926
        %v929 = vshrl.u32 %v674, 16
        %v931 = vshll.u32 %v674, 16
        %v933 = vrot.slane %v931, 1
        %v934 = vor.u32 %v929, %v933
        %v936 = vshll.u32 %v927, 16
        %v938 = vrot.slane %v936, 1
        %v939 = vsel %vm530, %v934, %v938
        %v940 = vshrl.u32 %v927, 16
        %v942 = vor.u32 %v940, %v938
        %v961 = vunpack.c.l.b16 %v909
        %v962 = vunpack.c.l.b16 %v910
        %v963 = vunpack.c.l.b16 %v911
        %v964 = vunpack.c.l.b16 %v912
        %v965 = vunpack.c.l.b16 %v913
        %v966 = vunpack.c.l.b16 %v914
        %v967 = vunpack.c.l.b16 %v915
        %v968 = vunpack.c.l.b16 %v916
        %v969 = vunpack.c.l.b16 %v917
        %v970 = vunpack.c.l.b16 %v918
        %v971 = vunpack.c.l.b16 %v919
        %v972 = vunpack.c.l.b16 %v920
        %v973 = vunpack.c.l.b16 %v921
        %v974 = vunpack.c.l.b16 %v922
        %v975 = vunpack.c.l.b16 %v923
        %v976 = vunpack.c.l.b16 %v924
        %v977 = vpack.c.b16 %v962, %v961
        %v978 = vpack.c.b16 %v964, %v963
        %v979 = vpack.c.b16 %v966, %v965
        %v980 = vpack.c.b16 %v968, %v967
        %v981 = vpack.c.b16 %v970, %v969
        %v982 = vpack.c.b16 %v972, %v971
        %v983 = vpack.c.b16 %v974, %v973
        %v984 = vpack.c.b16 %v976, %v975
        %993 = vmatprep.subr.bf16.mxu0 0
        %994 = vmatpush1.bf16.msra.mxu0 %v977
        %995 = vmatprep.subr.bf16.mxu0 0
        %996 = vmatpush1.bf16.msra.mxu0 %v978
        %997 = vmatprep.subr.bf16.mxu0 0
        %998 = vmatpush1.bf16.msra.mxu0 %v979
        %999 = vmatprep.subr.bf16.mxu0 0
        %1000 = vmatpush1.bf16.msra.mxu0 %v980
        %1001 = vmatprep.subr.bf16.mxu0 0
        %1002 = vmatpush1.bf16.msra.mxu0 %v981
        %1003 = vmatprep.subr.bf16.mxu0 0
        %1004 = vmatpush1.bf16.msra.mxu0 %v982
        %1005 = vmatprep.subr.bf16.mxu0 0
        %1006 = vmatpush1.bf16.msra.mxu0 %v983
        %1007 = vmatprep.subr.bf16.mxu0 0
        %1008 = vmatpush1.bf16.msra.mxu0 %v984
        %1009 = vmatprep.subr.bf16.mxu0 0
        %1010 = vmatpush1.bf16.msra.mxu0 0
        %1011 = vmatprep.subr.bf16.mxu0 0
        %1012 = vmatpush1.bf16.msra.mxu0 0
        %1013 = vmatprep.subr.bf16.mxu0 0
        %1014 = vmatpush1.bf16.msra.mxu0 0
        %1015 = vmatprep.subr.bf16.mxu0 0
        %1016 = vmatpush1.bf16.msra.mxu0 0
        %1017 = vmatprep.subr.bf16.mxu0 0
        %1018 = vmatpush1.bf16.msra.mxu0 0
        %1019 = vmatprep.subr.bf16.mxu0 0
        %1020 = vmatpush1.bf16.msra.mxu0 0
        %1021 = vmatprep.subr.bf16.mxu0 0
        %1022 = vmatpush1.bf16.msra.mxu0 0
        %1023 = vmatprep.subr.bf16.mxu0 0
        %1024 = vmatpush1.bf16.msra.mxu0 0
        %1025 = vmatprep.mubr.bf16.mxu0 0
        %1026 = vmatmul.mubr.bf16.gmra.mrb[0].mxu0 %v939
        %v1027 = vpop.f32.mrb[0].mxu0
        %v1028 = vadd.f32 0.0, %v1027
        %v1029 = vpop.f32.mrb[0].mxu0
        %v1030 = vpop.f32.mrb[0].mxu0
        %v1031 = vadd.f32 0.0, %v1030
        %v1032 = vpop.f32.mrb[0].mxu0
        %1033 = vmatprep.mubr.bf16.mxu0 0
        %1034 = vmatmul.mubr.bf16.gmra.mrb[0].mxu0 %v942
        %v1035 = vpop.f32.mrb[0].mxu0
        %v1036 = vadd.f32 0.0, %v1035
        %v1037 = vpop.f32.mrb[0].mxu0
        %v1038 = vpop.f32.mrb[0].mxu0
        %v1039 = vpop.f32.mrb[0].mxu0
        %1040 = vdwg.mxu0
        %v1041 = vadd.f32 %v904, %v1028
        %v1042 = vadd.f32 %v905, %v1031
        %v1043 = vadd.f32 %v906, %v1036
        %v1044 = vld [vmem:[%s219] sm:$0xc]
        %v1045 = vld [vmem:[%s219 + $0x4] sm:$0xf]
        %v1046 = vld [vmem:[%s219 + $0x8] sm:$0xf]
        %v1047 = vld [vmem:[%s219 + $0xc] sm:$0x1]
        %s1048 = scalar_lea.vmem [#allocation5], 384
        %v1049 = vld [vmem:[%s1048] sm:$0xf]
        %v1050 = vld [vmem:[%s1048 + $0x4] sm:$0xf]
        %v1051 = vld [vmem:[%s1048 + $0x8] sm:$0xf]
        %v1052 = vld [vmem:[%s1048 + $0xc] sm:$0xf]
        %v1053 = vld [vmem:[%s1048 + $0x10] sm:$0xf]
        %v1054 = vld [vmem:[%s1048 + $0x14] sm:$0xf]
        %v1055 = vld [vmem:[%s1048 + $0x18] sm:$0xf]
        %v1056 = vld [vmem:[%s1048 + $0x1c] sm:$0xf]
        %v1057 = vld [vmem:[%s1048 + $0x20] sm:$0xf]
        %v1058 = vld [vmem:[%s1048 + $0x24] sm:$0xf]
        %v1059 = vld [vmem:[%s1048 + $0x28] sm:$0xf]
        %v1060 = vld [vmem:[%s1048 + $0x2c] sm:$0xf]
        %v1061 = vld [vmem:[%s1048 + $0x30] sm:$0xf]
        %v1062 = vld [vmem:[%s1048 + $0x34] sm:$0xf]
        %v1063 = vld [vmem:[%s1048 + $0x38] sm:$0xf]
        %v1064 = vld [vmem:[%s1048 + $0x3c] sm:$0xf]
        %v1069 = vunpack.c.l.b16 %v1044
        %v1070 = vunpack.c.l.b16 %v1045
        %v1071 = vunpack.c.l.b16 %v1046
        %v1072 = vunpack.c.l.b16 %v1047
        %v1073 = vpack.c.b16 %v1070, %v1069
        %v1074 = vpack.c.b16 %v1072, %v1071
        %vm1075 = vsmask.f32 5376
        %v1077 = vshrl.u32 %v1073, 16
        %v1079 = vrot.slane %v1077, 2
        %v1080 = vshll.u32 %v1073, 16
        %v1082 = vrot.slane %v1080, 3
        %v1083 = vor.u32 %v1079, %v1082
        %v1085 = vshrl.u32 %v1074, 16
        %v1087 = vrot.slane %v1085, 2
        %v1088 = vshll.u32 %v1074, 16
        %v1090 = vrot.slane %v1088, 3
        %v1091 = vor.u32 %v1087, %v1090
        %v1092 = vsel %vm1075, %v1083, %v1091
        %v1111 = vunpack.c.l.b16 %v1049
        %v1112 = vunpack.c.l.b16 %v1050
        %v1113 = vunpack.c.l.b16 %v1051
        %v1114 = vunpack.c.l.b16 %v1052
        %v1115 = vunpack.c.l.b16 %v1053
        %v1116 = vunpack.c.l.b16 %v1054
        %v1117 = vunpack.c.l.b16 %v1055
        %v1118 = vunpack.c.l.b16 %v1056
        %v1119 = vunpack.c.l.b16 %v1057
        %v1120 = vunpack.c.l.b16 %v1058
        %v1121 = vunpack.c.l.b16 %v1059
        %v1122 = vunpack.c.l.b16 %v1060
        %v1123 = vunpack.c.l.b16 %v1061
        %v1124 = vunpack.c.l.b16 %v1062
        %v1125 = vunpack.c.l.b16 %v1063
        %v1126 = vunpack.c.l.b16 %v1064
        %v1127 = vpack.c.b16 %v1112, %v1111
        %v1128 = vpack.c.b16 %v1114, %v1113
        %v1129 = vpack.c.b16 %v1116, %v1115
        %v1130 = vpack.c.b16 %v1118, %v1117
        %v1131 = vpack.c.b16 %v1120, %v1119
        %v1132 = vpack.c.b16 %v1122, %v1121
        %v1133 = vpack.c.b16 %v1124, %v1123
        %v1134 = vpack.c.b16 %v1126, %v1125
        %1143 = vmatprep.subr.bf16.mxu0 0
        %1144 = vmatpush1.bf16.msra.mxu0 %v1127
        %1145 = vmatprep.subr.bf16.mxu0 0
        %1146 = vmatpush1.bf16.msra.mxu0 %v1128
        %1147 = vmatprep.subr.bf16.mxu0 0
        %1148 = vmatpush1.bf16.msra.mxu0 %v1129
        %1149 = vmatprep.subr.bf16.mxu0 0
        %1150 = vmatpush1.bf16.msra.mxu0 %v1130
        %1151 = vmatprep.subr.bf16.mxu0 0
        %1152 = vmatpush1.bf16.msra.mxu0 %v1131
        %1153 = vmatprep.subr.bf16.mxu0 0
        %1154 = vmatpush1.bf16.msra.mxu0 %v1132
        %1155 = vmatprep.subr.bf16.mxu0 0
        %1156 = vmatpush1.bf16.msra.mxu0 %v1133
        %1157 = vmatprep.subr.bf16.mxu0 0
        %1158 = vmatpush1.bf16.msra.mxu0 %v1134
        %1159 = vmatprep.subr.bf16.mxu0 0
        %1160 = vmatpush1.bf16.msra.mxu0 0
        %1161 = vmatprep.subr.bf16.mxu0 0
        %1162 = vmatpush1.bf16.msra.mxu0 0
        %1163 = vmatprep.subr.bf16.mxu0 0
        %1164 = vmatpush1.bf16.msra.mxu0 0
        %1165 = vmatprep.subr.bf16.mxu0 0
        %1166 = vmatpush1.bf16.msra.mxu0 0
        %1167 = vmatprep.subr.bf16.mxu0 0
        %1168 = vmatpush1.bf16.msra.mxu0 0
        %1169 = vmatprep.subr.bf16.mxu0 0
        %1170 = vmatpush1.bf16.msra.mxu0 0
        %1171 = vmatprep.subr.bf16.mxu0 0
        %1172 = vmatpush1.bf16.msra.mxu0 0
        %1173 = vmatprep.subr.bf16.mxu0 0
        %1174 = vmatpush1.bf16.msra.mxu0 0
        %1175 = vmatprep.mubr.bf16.mxu0 0
        %1176 = vmatmul.mubr.bf16.gmra.mrb[0].mxu0 %v1092
        %v1177 = vpop.f32.mrb[0].mxu0
        %v1178 = vadd.f32 0.0, %v1177
        %v1179 = vpop.f32.mrb[0].mxu0
        %v1180 = vpop.f32.mrb[0].mxu0
        %v1181 = vadd.f32 0.0, %v1180
        %v1182 = vpop.f32.mrb[0].mxu0
        %1183 = vmatprep.mubr.bf16.mxu0 0
        %1184 = vmatmul.mubr.bf16.gmra.mrb[0].mxu0 %v1091
        %v1185 = vpop.f32.mrb[0].mxu0
        %v1186 = vadd.f32 0.0, %v1185
        %v1187 = vpop.f32.mrb[0].mxu0
        %v1188 = vpop.f32.mrb[0].mxu0
        %v1189 = vpop.f32.mrb[0].mxu0
        %1190 = vdwg.mxu0
        %v1191 = vadd.f32 %v1041, %v1178
        %v1192 = vadd.f32 %v1042, %v1181
        %v1193 = vadd.f32 %v1043, %v1186
        %v1194 = vld [vmem:[%s276] sm:$0xc]
        %v1195 = vld [vmem:[%s276 + $0x4] sm:$0xf]
        %v1196 = vld [vmem:[%s276 + $0x8] sm:$0xf]
        %v1197 = vld [vmem:[%s276 + $0xc] sm:$0x1]
        %s1198 = scalar_lea.vmem [#allocation5], 448
        %v1199 = vld [vmem:[%s1198] sm:$0xf]
        %v1200 = vld [vmem:[%s1198 + $0x4] sm:$0xf]
        %v1201 = vld [vmem:[%s1198 + $0x8] sm:$0xf]
        %v1202 = vld [vmem:[%s1198 + $0xc] sm:$0xf]
        %v1203 = vld [vmem:[%s1198 + $0x10] sm:$0xf]
        %v1204 = vld [vmem:[%s1198 + $0x14] sm:$0xf]
        %v1205 = vld [vmem:[%s1198 + $0x18] sm:$0xf]
        %v1206 = vld [vmem:[%s1198 + $0x1c] sm:$0xf]
        %v1207 = vld [vmem:[%s1198 + $0x20] sm:$0xf]
        %v1208 = vld [vmem:[%s1198 + $0x24] sm:$0xf]
        %v1209 = vld [vmem:[%s1198 + $0x28] sm:$0xf]
        %v1210 = vld [vmem:[%s1198 + $0x2c] sm:$0xf]
        %v1211 = vld [vmem:[%s1198 + $0x30] sm:$0xf]
        %v1212 = vld [vmem:[%s1198 + $0x34] sm:$0xf]
        %v1213 = vld [vmem:[%s1198 + $0x38] sm:$0xf]
        %v1214 = vld [vmem:[%s1198 + $0x3c] sm:$0xf]
        %v1219 = vunpack.c.l.b16 %v1194
        %v1220 = vunpack.c.l.b16 %v1195
        %v1221 = vunpack.c.l.b16 %v1196
        %v1222 = vunpack.c.l.b16 %v1197
        %v1223 = vpack.c.b16 %v1220, %v1219
        %v1224 = vpack.c.b16 %v1222, %v1221
        %v1226 = vshrl.u32 %v1223, 16
        %v1228 = vrot.slane %v1226, 2
        %v1229 = vshll.u32 %v1223, 16
        %v1231 = vrot.slane %v1229, 3
        %v1232 = vor.u32 %v1228, %v1231
        %v1234 = vshrl.u32 %v1224, 16
        %v1236 = vrot.slane %v1234, 2
        %v1237 = vshll.u32 %v1224, 16
        %v1239 = vrot.slane %v1237, 3
        %v1240 = vor.u32 %v1236, %v1239
        %v1241 = vsel %vm1075, %v1232, %v1240
        %v1260 = vunpack.c.l.b16 %v1199
        %v1261 = vunpack.c.l.b16 %v1200
        %v1262 = vunpack.c.l.b16 %v1201
        %v1263 = vunpack.c.l.b16 %v1202
        %v1264 = vunpack.c.l.b16 %v1203
        %v1265 = vunpack.c.l.b16 %v1204
        %v1266 = vunpack.c.l.b16 %v1205
        %v1267 = vunpack.c.l.b16 %v1206
        %v1268 = vunpack.c.l.b16 %v1207
        %v1269 = vunpack.c.l.b16 %v1208
        %v1270 = vunpack.c.l.b16 %v1209
        %v1271 = vunpack.c.l.b16 %v1210
        %v1272 = vunpack.c.l.b16 %v1211
        %v1273 = vunpack.c.l.b16 %v1212
        %v1274 = vunpack.c.l.b16 %v1213
        %v1275 = vunpack.c.l.b16 %v1214
        %v1276 = vpack.c.b16 %v1261, %v1260
        %v1277 = vpack.c.b16 %v1263, %v1262
        %v1278 = vpack.c.b16 %v1265, %v1264
        %v1279 = vpack.c.b16 %v1267, %v1266
        %v1280 = vpack.c.b16 %v1269, %v1268
        %v1281 = vpack.c.b16 %v1271, %v1270
        %v1282 = vpack.c.b16 %v1273, %v1272
        %v1283 = vpack.c.b16 %v1275, %v1274
        %1292 = vmatprep.subr.bf16.mxu0 0
        %1293 = vmatpush1.bf16.msra.mxu0 %v1276
        %1294 = vmatprep.subr.bf16.mxu0 0
        %1295 = vmatpush1.bf16.msra.mxu0 %v1277
        %1296 = vmatprep.subr.bf16.mxu0 0
        %1297 = vmatpush1.bf16.msra.mxu0 %v1278
        %1298 = vmatprep.subr.bf16.mxu0 0
        %1299 = vmatpush1.bf16.msra.mxu0 %v1279
        %1300 = vmatprep.subr.bf16.mxu0 0
        %1301 = vmatpush1.bf16.msra.mxu0 %v1280
        %1302 = vmatprep.subr.bf16.mxu0 0
        %1303 = vmatpush1.bf16.msra.mxu0 %v1281
        %1304 = vmatprep.subr.bf16.mxu0 0
        %1305 = vmatpush1.bf16.msra.mxu0 %v1282
        %1306 = vmatprep.subr.bf16.mxu0 0
        %1307 = vmatpush1.bf16.msra.mxu0 %v1283
        %1308 = vmatprep.subr.bf16.mxu0 0
        %1309 = vmatpush1.bf16.msra.mxu0 0
        %1310 = vmatprep.subr.bf16.mxu0 0
        %1311 = vmatpush1.bf16.msra.mxu0 0
        %1312 = vmatprep.subr.bf16.mxu0 0
        %1313 = vmatpush1.bf16.msra.mxu0 0
        %1314 = vmatprep.subr.bf16.mxu0 0
        %1315 = vmatpush1.bf16.msra.mxu0 0
        %1316 = vmatprep.subr.bf16.mxu0 0
        %1317 = vmatpush1.bf16.msra.mxu0 0
        %1318 = vmatprep.subr.bf16.mxu0 0
        %1319 = vmatpush1.bf16.msra.mxu0 0
        %1320 = vmatprep.subr.bf16.mxu0 0
        %1321 = vmatpush1.bf16.msra.mxu0 0
        %1322 = vmatprep.subr.bf16.mxu0 0
        %1323 = vmatpush1.bf16.msra.mxu0 0
        %1324 = vmatprep.mubr.bf16.mxu0 0
        %1325 = vmatmul.mubr.bf16.gmra.mrb[0].mxu0 %v1241
        %v1326 = vpop.f32.mrb[0].mxu0
        %v1327 = vadd.f32 0.0, %v1326
        %v1328 = vpop.f32.mrb[0].mxu0
        %v1329 = vpop.f32.mrb[0].mxu0
        %v1330 = vadd.f32 0.0, %v1329
        %v1331 = vpop.f32.mrb[0].mxu0
        %1332 = vmatprep.mubr.bf16.mxu0 0
        %1333 = vmatmul.mubr.bf16.gmra.mrb[0].mxu0 %v1240
        %v1334 = vpop.f32.mrb[0].mxu0
        %v1335 = vadd.f32 0.0, %v1334
        %v1336 = vpop.f32.mrb[0].mxu0
        %v1337 = vpop.f32.mrb[0].mxu0
        %v1338 = vpop.f32.mrb[0].mxu0
        %1339 = vdwg.mxu0
        %v1340 = vadd.f32 %v1191, %v1327
        %v1341 = vadd.f32 %v1192, %v1330
        %v1342 = vadd.f32 %v1193, %v1335
        %v1343 = vld [vmem:[%s219] sm:$0x8]
        %s1344 = scalar_lea.vmem [#allocation5], 512
        %v1345 = vld [vmem:[%s1344] sm:$0xf]
        %v1346 = vld [vmem:[%s1344 + $0x4] sm:$0xf]
        %v1347 = vld [vmem:[%s1344 + $0x8] sm:$0xf]
        %v1348 = vld [vmem:[%s1344 + $0xc] sm:$0xf]
        %v1349 = vld [vmem:[%s1344 + $0x10] sm:$0xf]
        %v1350 = vld [vmem:[%s1344 + $0x14] sm:$0xf]
        %v1351 = vld [vmem:[%s1344 + $0x18] sm:$0xf]
        %v1352 = vld [vmem:[%s1344 + $0x1c] sm:$0xf]
        %v1353 = vld [vmem:[%s1344 + $0x20] sm:$0xf]
        %v1354 = vld [vmem:[%s1344 + $0x24] sm:$0xf]
        %v1355 = vld [vmem:[%s1344 + $0x28] sm:$0xf]
        %v1356 = vld [vmem:[%s1344 + $0x2c] sm:$0xf]
        %v1357 = vld [vmem:[%s1344 + $0x30] sm:$0xf]
        %v1358 = vld [vmem:[%s1344 + $0x34] sm:$0xf]
        %v1359 = vld [vmem:[%s1344 + $0x38] sm:$0xf]
        %v1360 = vld [vmem:[%s1344 + $0x3c] sm:$0xf]
        %v1362 = vunpack.c.l.b16 %v1343
        %v1363 = vpack.c.b16 %v1070, %v1362
        %vm1364 = vcmask 1044480
        %v1365 = vrot.slane %v1363, 3
        %v1366 = vrot.slane %v1074, 3
        %v1367 = vsel %vm1364, %v1365, %v1366
        %v1386 = vunpack.c.l.b16 %v1345
        %v1387 = vunpack.c.l.b16 %v1346
        %v1388 = vunpack.c.l.b16 %v1347
        %v1389 = vunpack.c.l.b16 %v1348
        %v1390 = vunpack.c.l.b16 %v1349
        %v1391 = vunpack.c.l.b16 %v1350
        %v1392 = vunpack.c.l.b16 %v1351
        %v1393 = vunpack.c.l.b16 %v1352
        %v1394 = vunpack.c.l.b16 %v1353
        %v1395 = vunpack.c.l.b16 %v1354
        %v1396 = vunpack.c.l.b16 %v1355
        %v1397 = vunpack.c.l.b16 %v1356
        %v1398 = vunpack.c.l.b16 %v1357
        %v1399 = vunpack.c.l.b16 %v1358
        %v1400 = vunpack.c.l.b16 %v1359
        %v1401 = vunpack.c.l.b16 %v1360
        %v1402 = vpack.c.b16 %v1387, %v1386
        %v1403 = vpack.c.b16 %v1389, %v1388
        %v1404 = vpack.c.b16 %v1391, %v1390
        %v1405 = vpack.c.b16 %v1393, %v1392
        %v1406 = vpack.c.b16 %v1395, %v1394
        %v1407 = vpack.c.b16 %v1397, %v1396
        %v1408 = vpack.c.b16 %v1399, %v1398
        %v1409 = vpack.c.b16 %v1401, %v1400
        %1418 = vmatprep.subr.bf16.mxu0 0
        %1419 = vmatpush1.bf16.msra.mxu0 %v1402
        %1420 = vmatprep.subr.bf16.mxu0 0
        %1421 = vmatpush1.bf16.msra.mxu0 %v1403
        %1422 = vmatprep.subr.bf16.mxu0 0
        %1423 = vmatpush1.bf16.msra.mxu0 %v1404
        %1424 = vmatprep.subr.bf16.mxu0 0
        %1425 = vmatpush1.bf16.msra.mxu0 %v1405
        %1426 = vmatprep.subr.bf16.mxu0 0
        %1427 = vmatpush1.bf16.msra.mxu0 %v1406
        %1428 = vmatprep.subr.bf16.mxu0 0
        %1429 = vmatpush1.bf16.msra.mxu0 %v1407
        %1430 = vmatprep.subr.bf16.mxu0 0
        %1431 = vmatpush1.bf16.msra.mxu0 %v1408
        %1432 = vmatprep.subr.bf16.mxu0 0
        %1433 = vmatpush1.bf16.msra.mxu0 %v1409
        %1434 = vmatprep.subr.bf16.mxu0 0
        %1435 = vmatpush1.bf16.msra.mxu0 0
        %1436 = vmatprep.subr.bf16.mxu0 0
        %1437 = vmatpush1.bf16.msra.mxu0 0
        %1438 = vmatprep.subr.bf16.mxu0 0
        %1439 = vmatpush1.bf16.msra.mxu0 0
        %1440 = vmatprep.subr.bf16.mxu0 0
        %1441 = vmatpush1.bf16.msra.mxu0 0
        %1442 = vmatprep.subr.bf16.mxu0 0
        %1443 = vmatpush1.bf16.msra.mxu0 0
        %1444 = vmatprep.subr.bf16.mxu0 0
        %1445 = vmatpush1.bf16.msra.mxu0 0
        %1446 = vmatprep.subr.bf16.mxu0 0
        %1447 = vmatpush1.bf16.msra.mxu0 0
        %1448 = vmatprep.subr.bf16.mxu0 0
        %1449 = vmatpush1.bf16.msra.mxu0 0
        %1450 = vmatprep.mubr.bf16.mxu0 0
        %1451 = vmatmul.mubr.bf16.gmra.mrb[0].mxu0 %v1367
        %v1452 = vpop.f32.mrb[0].mxu0
        %v1453 = vadd.f32 0.0, %v1452
        %v1454 = vpop.f32.mrb[0].mxu0
        %v1455 = vpop.f32.mrb[0].mxu0
        %v1456 = vadd.f32 0.0, %v1455
        %v1457 = vpop.f32.mrb[0].mxu0
        %1458 = vmatprep.mubr.bf16.mxu0 0
        %1459 = vmatmul.mubr.bf16.gmra.mrb[0].mxu0 %v1366
        %v1460 = vpop.f32.mrb[0].mxu0
        %v1461 = vadd.f32 0.0, %v1460
        %v1462 = vpop.f32.mrb[0].mxu0
        %v1463 = vpop.f32.mrb[0].mxu0
        %v1464 = vpop.f32.mrb[0].mxu0
        %1465 = vdwg.mxu0
        %v1466 = vadd.f32 %v1340, %v1453
        %v1467 = vadd.f32 %v1341, %v1456
        %v1468 = vadd.f32 %v1342, %v1461
        %v1469 = vld [vmem:[#allocation7] sm:$0x1]
        %v1471 = vlaneseq
        %v1472 = vshrl.u32 %v1471, 7
        %v1473 = vsub.s32 0, %v1472
        %v1474 = vrot.slane %v1469, %v1473
        %v1476 = vmul.f32 %v1466, %v1474
        %v1477 = vmul.f32 %v1467, %v1474
        %v1478 = vmul.f32 %v1468, %v1474
        %v1479 = vld [vmem:[#allocation8] sm:$0x1]
        %v1481 = vlaneseq
        %v1482 = vshrl.u32 %v1481, 7
        %v1483 = vsub.s32 0, %v1482
        %v1484 = vrot.slane %v1479, %v1483
        %v1486 = vadd.f32 %v1476, %v1484
        %v1487 = vadd.f32 %v1477, %v1484
        %v1488 = vadd.f32 %v1478, %v1484
        %v1489 = vmax.f32 %v1486, 0.0
        %v1490 = vmax.f32 %v1487, 0.0
        %v1491 = vmax.f32 %v1488, 0.0
        %v1492 = vpack.c.bf16 %v1490, %v1489
        %v1493 = vpack.c.bf16 %v1491, %v1491
        %v1496 = vunpack.c.l.b16 %v1492
        %v1497 = vunpack.c.h.b16 %v1492
        %v1498 = vunpack.c.l.b16 %v1493
        %v1499 = vpack.c.b16 %v1496, %v1496
        %v1500 = vpack.c.b16 %v1497, %v1497
        %v1501 = vpack.c.b16 %v1498, %v1498
        %1505 = vst [vmem:[%s255] sm:$0xf] %v1499
        %1506 = vst [vmem:[%s255 + $0x4] sm:$0xf] %v1500
        %1507 = vst [vmem:[%s255 + $0x8] sm:$0x3] %v1501
        %s1508 = sand.u32 %s120, 1
        %s1509 = scalar_lea.sflag [#allocation4], %s1508
        %s1510 = sand.u32 %s120, 1
        %s1511 = smul.addr %s1510, 12
        %s1512 = scalar_lea.vmem [#allocation10], %s1511
        // Predicated region
        $region53: #{resnext_forward.16} parent=35 // pred_check
          %p1513 = pneg %p130
        $region54: #{resnext_forward.16} parent=35 // pred_check_branch
          %1515 = sbr.rel (%p1513) target = $region56
        $region55: #{resnext_forward.16} parent=35 // pred_region
          %s1517 = ssub.s32 192, 192
          %1518 = vsyncadd %s1509, %s1517
          %s1519 = smul.addr %s23, 3
          %s1520 = smul.addr %s1519, 64
          %s1521 = scalar_lea.hbm %s4, %s1520
          %s1522 = sshll.u32 %s1512, 4
          %s1523 = int_to_ptr.vmem [resolvable:$true] %s1522
          %1528 = dma.vmem_to_hbm [thread:$0]  %s1523, 192, %s1521, %s1509, 64, 64, 4
        $region56: #{resnext_forward.16} parent=35 // pred_fallthru
          _
      $region36: #{resnext_forward.16} parent=5 // pred_fallthru
        _
      %p1529 = scmp.le.s32.totalorder 2, %s18
      // Predicated region
      $region57: #{resnext_forward.16} parent=5 // pred_check
        %p1530 = pneg %p1529
      $region58: #{resnext_forward.16} parent=5 // pred_check_branch
        %1532 = sbr.rel (%p1530) target = $region60
      $region59: #{resnext_forward.16} parent=5 // pred_region
        %s1533 = ssub.s32 %s18, 2
        // Predicated region
        $region61: #{resnext_forward.16} parent=59 // pred_check
          %p1534 = pneg %p136
        $region62: #{resnext_forward.16} parent=59 // pred_check_branch
          %1536 = sbr.rel (%p1534) target = $region64
        $region63: #{resnext_forward.16} parent=59 // pred_region
          %s1537 = sand.u32 %s121, 1
          %s1538 = scalar_lea.sflag [#allocation4], %s1537
          %s1539 = sand.u32 %s121, 1
          %s1540 = smul.addr %s1539, 12
          %s1541 = scalar_lea.vmem [#allocation10], %s1540
          %1542 = dma.done %s1538, 192
        $region64: #{resnext_forward.16} parent=59 // pred_fallthru
          _
      $region60: #{resnext_forward.16} parent=5 // pred_fallthru
        _
    $region6: #{resnext_forward.16} parent=1 // loop_footer
      %s22 = sadd.s32 1, %s18
    $region7: #{resnext_forward.16} parent=1 // loop_footer_branch
      %17 = sbr.rel target = $region3
    $region8: #{resnext_forward.16} parent=1 // loop_exit
      _
    %1543 = vsyncpa [#allocation3], 1
    %s1544 = scalar_lea.sflag [#allocation3], 1
    %1545 = vsyncpa %s1544, 1
    %1546 = vsyncpa [#allocation6], 1
    %1547 = vsyncpa [#allocation9], 1
    %1548 = vsyncpa [#allocation4], 1
    %s1549 = scalar_lea.sflag [#allocation4], 1
    %1550 = vsyncpa %s1549, 1

// kernel: resnext_forward.17
$region0: #{resnext_forward.17}
  #allocation0 [shape = 'u32[]', space=smem, size = 0x4, offset = 0x4, fixed_abs, tag = 'smem constant byte address 0x4 - core index']
  #allocation1 [shape = 'u32[144,128]{1,0:T(1,128)}', space=vmem, size = 0x12000, scoped, tag = 'internal scratch']
  #allocation2 [shape = 'f32[32,128]{1,0:T(8,128)}', space=vmem, size = 0x4000, scoped, tag = 'scratch operand']
  %s0 = inlined_call_operand.hbm [shape: bf16[32,128], index: 0, kind: input, shape index: {}]
  %s1 = inlined_call_operand.hbm [shape: bf16[128,128], index: 1, kind: input, shape index: {}]
  %s2 = inlined_call_operand.hbm [shape: f32[1,128], index: 2, kind: input, shape index: {}]
  %s3 = inlined_call_operand.hbm [shape: f32[1,128], index: 3, kind: input, shape index: {}]
  %s4 = inlined_call_operand.hbm [shape: bf16[32,128], index: 4, kind: input, shape index: {}]
  %s5 = inlined_call_operand.hbm [shape: bf16[32,128], index: 5, kind: output, shape index: {}]
  %s6 = sld [smem:[#allocation0]]
  $region58: #{resnext_forward.17} parent=0
    _
  %s8 = ssub.s32 1, %s6
  %s9 = scalar_select 0, %s8, %s6
  $region1: #{resnext_forward.17} parent=0
    #allocation3 [shape = 'u8[8192]{0}', space=vmem, size = 0x2000, scoped, tag = 'input window, operand 0, single buffered']
    #allocation4 [shape = 's32[1]{0}', space=sflag, size = 0x4, scoped, tag = 'scoped memory for resnext_forward.17']
    #allocation5 [shape = 's32[1]{0}', space=sflag, size = 0x4, scoped, tag = 'scoped memory for resnext_forward.17']
    #allocation6 [shape = 'u8[32768]{0}', space=vmem, size = 0x8000, scoped, tag = 'input window, operand 1, single buffered']
    #allocation7 [shape = 's32[1]{0}', space=sflag, size = 0x4, scoped, tag = 'scoped memory for resnext_forward.17']
    #allocation8 [shape = 'u8[512]{0}', space=vmem, size = 0x400, scoped, tag = 'input window, operand 2, single buffered']
    #allocation9 [shape = 'u8[512]{0}', space=vmem, size = 0x400, scoped, tag = 'input window, operand 3, single buffered']
    #allocation10 [shape = 's32[1]{0}', space=sflag, size = 0x4, scoped, tag = 'scoped memory for resnext_forward.17']
    #allocation11 [shape = 'u8[8192]{0}', space=vmem, size = 0x2000, scoped, tag = 'input window, operand 4, single buffered']
    #allocation12 [shape = 'u8[8192]{0}', space=vmem, size = 0x2000, scoped, tag = 'output window, operand 0, single buffered']
    %10 = vsyncpa [#allocation4], 0
    %11 = vsyncpa [#allocation7], 0
    %12 = vsyncpa [#allocation10], 0
    %13 = vsyncpa [#allocation5], 0
    // Predicated region
    $region2: #{resnext_forward.17} parent=1 // pred_check
      _
    $region3: #{resnext_forward.17} parent=1 // pred_check_branch
      %15 = sbr.rel (0) target = $region5
    $region4: #{resnext_forward.17} parent=1 // pred_region
      %s17 = ssub.s32 256, 256
      %18 = vsyncadd [#allocation4], %s17
      %s19 = sshll.u32 [#allocation3], 4
      %s20 = int_to_ptr.vmem [resolvable:$true] %s19
      %25 = dma.hbm_to_vmem [thread:$0]  %s0, 256, %s20, [#allocation4], 64, 64, 4
    $region5: #{resnext_forward.17} parent=1 // pred_fallthru
      _
    // Predicated region
    $region6: #{resnext_forward.17} parent=1 // pred_check
      _
    $region7: #{resnext_forward.17} parent=1 // pred_check_branch
      %27 = sbr.rel (0) target = $region9
    $region8: #{resnext_forward.17} parent=1 // pred_region
      %s29 = ssub.s32 1024, 1024
      %30 = vsyncadd [#allocation7], %s29
      %s31 = sshll.u32 [#allocation6], 4
      %s32 = int_to_ptr.vmem [resolvable:$true] %s31
      %37 = dma.hbm_to_vmem [thread:$0]  %s1, 1024, %s32, [#allocation7], 64, 64, 4
    $region9: #{resnext_forward.17} parent=1 // pred_fallthru
      _
    // Predicated region
    $region10: #{resnext_forward.17} parent=1 // pred_check
      _
    $region11: #{resnext_forward.17} parent=1 // pred_check_branch
      %39 = sbr.rel (0) target = $region13
    $region12: #{resnext_forward.17} parent=1 // pred_region
      %s41 = ssub.s32 16, 16
      %42 = vsyncadd [#allocation7], %s41
      %s44 = sshll.u32 [#allocation8], 4
      %s45 = int_to_ptr.vmem [resolvable:$true] %s44
      %47 = dma.hbm_to_vmem [thread:$0]  %s2, 16, %s45, [#allocation7]
    $region13: #{resnext_forward.17} parent=1 // pred_fallthru
      _
    // Predicated region
    $region14: #{resnext_forward.17} parent=1 // pred_check
      _
    $region15: #{resnext_forward.17} parent=1 // pred_check_branch
      %49 = sbr.rel (0) target = $region17
    $region16: #{resnext_forward.17} parent=1 // pred_region
      %s51 = ssub.s32 16, 16
      %52 = vsyncadd [#allocation10], %s51
      %s54 = sshll.u32 [#allocation9], 4
      %s55 = int_to_ptr.vmem [resolvable:$true] %s54
      %57 = dma.hbm_to_vmem [thread:$0]  %s3, 16, %s55, [#allocation10]
    $region17: #{resnext_forward.17} parent=1 // pred_fallthru
      _
    // Predicated region
    $region18: #{resnext_forward.17} parent=1 // pred_check
      _
    $region19: #{resnext_forward.17} parent=1 // pred_check_branch
      %59 = sbr.rel (0) target = $region21
    $region20: #{resnext_forward.17} parent=1 // pred_region
      %s61 = ssub.s32 256, 256
      %62 = vsyncadd [#allocation10], %s61
      %s63 = sshll.u32 [#allocation11], 4
      %s64 = int_to_ptr.vmem [resolvable:$true] %s63
      %69 = dma.hbm_to_vmem [thread:$0]  %s4, 256, %s64, [#allocation10], 64, 64, 4
    $region21: #{resnext_forward.17} parent=1 // pred_fallthru
      _
    // Predicated region
    $region22: #{resnext_forward.17} parent=1 // pred_check
      _
    $region23: #{resnext_forward.17} parent=1 // pred_check_branch
      %71 = sbr.rel (0) target = $region25
    $region24: #{resnext_forward.17} parent=1 // pred_region
      %72 = dma.done [#allocation4], 256
    $region25: #{resnext_forward.17} parent=1 // pred_fallthru
      _
    // Predicated region
    $region26: #{resnext_forward.17} parent=1 // pred_check
      _
    $region27: #{resnext_forward.17} parent=1 // pred_check_branch
      %74 = sbr.rel (0) target = $region29
    $region28: #{resnext_forward.17} parent=1 // pred_region
      %75 = dma.done [#allocation7], 1024
    $region29: #{resnext_forward.17} parent=1 // pred_fallthru
      _
    // Predicated region
    $region30: #{resnext_forward.17} parent=1 // pred_check
      _
    $region31: #{resnext_forward.17} parent=1 // pred_check_branch
      %77 = sbr.rel (0) target = $region33
    $region32: #{resnext_forward.17} parent=1 // pred_region
      %78 = dma.done [#allocation7], 16
    $region33: #{resnext_forward.17} parent=1 // pred_fallthru
      _
    // Predicated region
    $region34: #{resnext_forward.17} parent=1 // pred_check
      _
    $region35: #{resnext_forward.17} parent=1 // pred_check_branch
      %80 = sbr.rel (0) target = $region37
    $region36: #{resnext_forward.17} parent=1 // pred_region
      %81 = dma.done [#allocation10], 16
    $region37: #{resnext_forward.17} parent=1 // pred_fallthru
      _
    // Predicated region
    $region38: #{resnext_forward.17} parent=1 // pred_check
      _
    $region39: #{resnext_forward.17} parent=1 // pred_check_branch
      %83 = sbr.rel (0) target = $region41
    $region40: #{resnext_forward.17} parent=1 // pred_region
      %84 = dma.done [#allocation10], 256
    $region41: #{resnext_forward.17} parent=1 // pred_fallthru
      _
    %p86 = scmp.eq.s32.totalorder 0, 0
    // Predicated region
    $region42: #{resnext_forward.17} parent=1 // pred_check
      %p87 = pneg %p86
    $region43: #{resnext_forward.17} parent=1 // pred_check_branch
      %89 = sbr.rel (%p87) target = $region45
    $region44: #{resnext_forward.17} parent=1 // pred_region
      %90 = vst [vmem:[#allocation2] sm:$0xff] 0.0
      %91 = vst [vmem:[#allocation2 + $0x8] sm:$0xff] 0.0
      %92 = vst [vmem:[#allocation2 + $0x10] sm:$0xff] 0.0
      %93 = vst [vmem:[#allocation2 + $0x18] sm:$0xff] 0.0
    $region45: #{resnext_forward.17} parent=1 // pred_fallthru
      _
    %v94 = vld [vmem:[#allocation2] sm:$0xff]
    %v95 = vld [vmem:[#allocation2 + $0x8] sm:$0xff]
    %v96 = vld [vmem:[#allocation2 + $0x10] sm:$0xff]
    %v97 = vld [vmem:[#allocation2 + $0x18] sm:$0xff]
    %v98 = vld [vmem:[#allocation3] sm:$0xf]
    %v99 = vld [vmem:[#allocation3 + $0x4] sm:$0xf]
    %v100 = vld [vmem:[#allocation3 + $0x8] sm:$0xf]
    %v101 = vld [vmem:[#allocation3 + $0xc] sm:$0xf]
    %v102 = vld [vmem:[#allocation6] sm:$0xf]
    %v103 = vld [vmem:[#allocation6 + $0x4] sm:$0xf]
    %v104 = vld [vmem:[#allocation6 + $0x8] sm:$0xf]
    %v105 = vld [vmem:[#allocation6 + $0xc] sm:$0xf]
    %v106 = vld [vmem:[#allocation6 + $0x10] sm:$0xf]
    %v107 = vld [vmem:[#allocation6 + $0x14] sm:$0xf]
    %v108 = vld [vmem:[#allocation6 + $0x18] sm:$0xf]
    %v109 = vld [vmem:[#allocation6 + $0x1c] sm:$0xf]
    %v110 = vld [vmem:[#allocation6 + $0x20] sm:$0xf]
    %v111 = vld [vmem:[#allocation6 + $0x24] sm:$0xf]
    %v112 = vld [vmem:[#allocation6 + $0x28] sm:$0xf]
    %v113 = vld [vmem:[#allocation6 + $0x2c] sm:$0xf]
    %v114 = vld [vmem:[#allocation6 + $0x30] sm:$0xf]
    %v115 = vld [vmem:[#allocation6 + $0x34] sm:$0xf]
    %v116 = vld [vmem:[#allocation6 + $0x38] sm:$0xf]
    %v117 = vld [vmem:[#allocation6 + $0x3c] sm:$0xf]
    %v122 = vunpack.c.l.b16 %v98
    %v123 = vunpack.c.l.b16 %v99
    %v124 = vunpack.c.l.b16 %v100
    %v125 = vunpack.c.l.b16 %v101
    %v126 = vpack.c.b16 %v123, %v122
    %v127 = vpack.c.b16 %v125, %v124
    %v146 = vunpack.c.l.b16 %v102
    %v147 = vunpack.c.l.b16 %v103
    %v148 = vunpack.c.l.b16 %v104
    %v149 = vunpack.c.l.b16 %v105
    %v150 = vunpack.c.l.b16 %v106
    %v151 = vunpack.c.l.b16 %v107
    %v152 = vunpack.c.l.b16 %v108
    %v153 = vunpack.c.l.b16 %v109
    %v154 = vunpack.c.l.b16 %v110
    %v155 = vunpack.c.l.b16 %v111
    %v156 = vunpack.c.l.b16 %v112
    %v157 = vunpack.c.l.b16 %v113
    %v158 = vunpack.c.l.b16 %v114
    %v159 = vunpack.c.l.b16 %v115
    %v160 = vunpack.c.l.b16 %v116
    %v161 = vunpack.c.l.b16 %v117
    %v162 = vpack.c.b16 %v147, %v146
    %v163 = vpack.c.b16 %v149, %v148
    %v164 = vpack.c.b16 %v151, %v150
    %v165 = vpack.c.b16 %v153, %v152
    %v166 = vpack.c.b16 %v155, %v154
    %v167 = vpack.c.b16 %v157, %v156
    %v168 = vpack.c.b16 %v159, %v158
    %v169 = vpack.c.b16 %v161, %v160
    %178 = vmatprep.subr.bf16.mxu0 0
    %179 = vmatpush1.bf16.msra.mxu0 %v162
    %180 = vmatprep.subr.bf16.mxu0 0
    %181 = vmatpush1.bf16.msra.mxu0 %v163
    %182 = vmatprep.subr.bf16.mxu0 0
    %183 = vmatpush1.bf16.msra.mxu0 %v164
    %184 = vmatprep.subr.bf16.mxu0 0
    %185 = vmatpush1.bf16.msra.mxu0 %v165
    %186 = vmatprep.subr.bf16.mxu0 0
    %187 = vmatpush1.bf16.msra.mxu0 %v166
    %188 = vmatprep.subr.bf16.mxu0 0
    %189 = vmatpush1.bf16.msra.mxu0 %v167
    %190 = vmatprep.subr.bf16.mxu0 0
    %191 = vmatpush1.bf16.msra.mxu0 %v168
    %192 = vmatprep.subr.bf16.mxu0 0
    %193 = vmatpush1.bf16.msra.mxu0 %v169
    %194 = vmatprep.subr.bf16.mxu0 0
    %195 = vmatpush1.bf16.msra.mxu0 0
    %196 = vmatprep.subr.bf16.mxu0 0
    %197 = vmatpush1.bf16.msra.mxu0 0
    %198 = vmatprep.subr.bf16.mxu0 0
    %199 = vmatpush1.bf16.msra.mxu0 0
    %200 = vmatprep.subr.bf16.mxu0 0
    %201 = vmatpush1.bf16.msra.mxu0 0
    %202 = vmatprep.subr.bf16.mxu0 0
    %203 = vmatpush1.bf16.msra.mxu0 0
    %204 = vmatprep.subr.bf16.mxu0 0
    %205 = vmatpush1.bf16.msra.mxu0 0
    %206 = vmatprep.subr.bf16.mxu0 0
    %207 = vmatpush1.bf16.msra.mxu0 0
    %208 = vmatprep.subr.bf16.mxu0 0
    %209 = vmatpush1.bf16.msra.mxu0 0
    %210 = vmatprep.mubr.bf16.mxu0 0
    %211 = vmatmul.mubr.bf16.gmra.mrb[0].mxu0 %v126
    %v212 = vpop.f32.mrb[0].mxu0
    %v213 = vadd.f32 0.0, %v212
    %v214 = vpop.f32.mrb[0].mxu0
    %v215 = vpop.f32.mrb[0].mxu0
    %v216 = vadd.f32 0.0, %v215
    %v217 = vpop.f32.mrb[0].mxu0
    %218 = vmatprep.mubr.bf16.mxu0 0
    %219 = vmatmul.mubr.bf16.gmra.mrb[0].mxu0 %v127
    %v220 = vpop.f32.mrb[0].mxu0
    %v221 = vadd.f32 0.0, %v220
    %v222 = vpop.f32.mrb[0].mxu0
    %v223 = vpop.f32.mrb[0].mxu0
    %v224 = vadd.f32 0.0, %v223
    %v225 = vpop.f32.mrb[0].mxu0
    %226 = vdwg.mxu0
    %v227 = vadd.f32 %v94, %v213
    %v228 = vadd.f32 %v95, %v216
    %v229 = vadd.f32 %v96, %v221
    %v230 = vadd.f32 %v97, %v224
    %231 = vst [vmem:[#allocation2] sm:$0xff] %v227
    %232 = vst [vmem:[#allocation2 + $0x8] sm:$0xff] %v228
    %233 = vst [vmem:[#allocation2 + $0x10] sm:$0xff] %v229
    %234 = vst [vmem:[#allocation2 + $0x18] sm:$0xff] %v230
    // Predicated region
    $region46: #{resnext_forward.17} parent=1 // pred_check
      %p235 = pneg %p86
    $region47: #{resnext_forward.17} parent=1 // pred_check_branch
      %237 = sbr.rel (%p235) target = $region49
    $region48: #{resnext_forward.17} parent=1 // pred_region
      %v238 = vld [vmem:[#allocation2] sm:$0xff]
      %v239 = vld [vmem:[#allocation2 + $0x8] sm:$0xff]
      %v240 = vld [vmem:[#allocation2 + $0x10] sm:$0xff]
      %v241 = vld [vmem:[#allocation2 + $0x18] sm:$0xff]
      %v242 = vld [vmem:[#allocation8] sm:$0x1]
      %v244 = vlaneseq
      %v245 = vshrl.u32 %v244, 7
      %v246 = vsub.s32 0, %v245
      %v247 = vrot.slane %v242, %v246
      %v249 = vmul.f32 %v238, %v247
      %v250 = vmul.f32 %v239, %v247
      %v251 = vmul.f32 %v240, %v247
      %v252 = vmul.f32 %v241, %v247
      %v253 = vld [vmem:[#allocation9] sm:$0x1]
      %v255 = vlaneseq
      %v256 = vshrl.u32 %v255, 7
      %v257 = vsub.s32 0, %v256
      %v258 = vrot.slane %v253, %v257
      %v260 = vadd.f32 %v249, %v258
      %v261 = vadd.f32 %v250, %v258
      %v262 = vadd.f32 %v251, %v258
      %v263 = vadd.f32 %v252, %v258
      %v264 = vld [vmem:[#allocation11] sm:$0xf]
      %v265 = vld [vmem:[#allocation11 + $0x4] sm:$0xf]
      %v266 = vld [vmem:[#allocation11 + $0x8] sm:$0xf]
      %v267 = vld [vmem:[#allocation11 + $0xc] sm:$0xf]
      %v268 = vunpack.c.l.bf16 %v264
      %v269 = vunpack.c.l.bf16 %v265
      %v270 = vunpack.c.l.bf16 %v266
      %v271 = vunpack.c.l.bf16 %v267
      %v272 = vadd.f32 %v260, %v268
      %v273 = vadd.f32 %v261, %v269
      %v274 = vadd.f32 %v262, %v270
      %v275 = vadd.f32 %v263, %v271
      %v276 = vmax.f32 %v272, 0.0
      %v277 = vmax.f32 %v273, 0.0
      %v278 = vmax.f32 %v274, 0.0
      %v279 = vmax.f32 %v275, 0.0
      %v280 = vpack.c.bf16 %v277, %v276
      %v281 = vpack.c.bf16 %v279, %v278
      %v284 = vunpack.c.l.b16 %v280
      %v285 = vunpack.c.h.b16 %v280
      %v286 = vunpack.c.l.b16 %v281
      %v287 = vunpack.c.h.b16 %v281
      %v288 = vpack.c.b16 %v284, %v284
      %v289 = vpack.c.b16 %v285, %v285
      %v290 = vpack.c.b16 %v286, %v286
      %v291 = vpack.c.b16 %v287, %v287
      %296 = vst [vmem:[#allocation12] sm:$0xf] %v288
      %297 = vst [vmem:[#allocation12 + $0x4] sm:$0xf] %v289
      %298 = vst [vmem:[#allocation12 + $0x8] sm:$0xf] %v290
      %299 = vst [vmem:[#allocation12 + $0xc] sm:$0xf] %v291
    $region49: #{resnext_forward.17} parent=1 // pred_fallthru
      _
    // Predicated region
    $region50: #{resnext_forward.17} parent=1 // pred_check
      _
    $region51: #{resnext_forward.17} parent=1 // pred_check_branch
      %301 = sbr.rel (0) target = $region53
    $region52: #{resnext_forward.17} parent=1 // pred_region
      %s303 = ssub.s32 256, 256
      %304 = vsyncadd [#allocation5], %s303
      %s305 = sshll.u32 [#allocation12], 4
      %s306 = int_to_ptr.vmem [resolvable:$true] %s305
      %311 = dma.vmem_to_hbm [thread:$0]  %s306, 256, %s5, [#allocation5], 64, 64, 4
    $region53: #{resnext_forward.17} parent=1 // pred_fallthru
      _
    // Predicated region
    $region54: #{resnext_forward.17} parent=1 // pred_check
      _
    $region55: #{resnext_forward.17} parent=1 // pred_check_branch
      %313 = sbr.rel (0) target = $region57
    $region56: #{resnext_forward.17} parent=1 // pred_region
      %314 = dma.done [#allocation5], 256
    $region57: #{resnext_forward.17} parent=1 // pred_fallthru
      _
    %315 = vsyncpa [#allocation4], 1
    %316 = vsyncpa [#allocation7], 1
    %317 = vsyncpa [#allocation10], 1
    %318 = vsyncpa [#allocation5], 1

// kernel: resnext_forward.18
$region0: #{resnext_forward.18}
  #allocation0 [shape = 'u32[]', space=smem, size = 0x4, offset = 0x4, fixed_abs, tag = 'smem constant byte address 0x4 - core index']
  #allocation1 [shape = 'u32[144,128]{1,0:T(1,128)}', space=vmem, size = 0x12000, scoped, tag = 'internal scratch']
  #allocation2 [shape = 'f32[32,128]{1,0:T(8,128)}', space=vmem, size = 0x4000, scoped, tag = 'scratch operand']
  %s0 = inlined_call_operand.hbm [shape: bf16[32,128], index: 0, kind: input, shape index: {}]
  %s1 = inlined_call_operand.hbm [shape: bf16[128,128], index: 1, kind: input, shape index: {}]
  %s2 = inlined_call_operand.hbm [shape: f32[1,128], index: 2, kind: input, shape index: {}]
  %s3 = inlined_call_operand.hbm [shape: f32[1,128], index: 3, kind: input, shape index: {}]
  %s4 = inlined_call_operand.hbm [shape: bf16[32,128], index: 4, kind: output, shape index: {}]
  %s5 = sld [smem:[#allocation0]]
  $region50: #{resnext_forward.18} parent=0
    _
  %s7 = ssub.s32 1, %s5
  %s8 = scalar_select 0, %s7, %s5
  $region1: #{resnext_forward.18} parent=0
    #allocation3 [shape = 'u8[8192]{0}', space=vmem, size = 0x2000, scoped, tag = 'input window, operand 0, single buffered']
    #allocation4 [shape = 's32[1]{0}', space=sflag, size = 0x4, scoped, tag = 'scoped memory for resnext_forward.18']
    #allocation5 [shape = 's32[1]{0}', space=sflag, size = 0x4, scoped, tag = 'scoped memory for resnext_forward.18']
    #allocation6 [shape = 'u8[32768]{0}', space=vmem, size = 0x8000, scoped, tag = 'input window, operand 1, single buffered']
    #allocation7 [shape = 's32[1]{0}', space=sflag, size = 0x4, scoped, tag = 'scoped memory for resnext_forward.18']
    #allocation8 [shape = 'u8[512]{0}', space=vmem, size = 0x400, scoped, tag = 'input window, operand 2, single buffered']
    #allocation9 [shape = 'u8[512]{0}', space=vmem, size = 0x400, scoped, tag = 'input window, operand 3, single buffered']
    #allocation10 [shape = 's32[1]{0}', space=sflag, size = 0x4, scoped, tag = 'scoped memory for resnext_forward.18']
    #allocation11 [shape = 'u8[8192]{0}', space=vmem, size = 0x2000, scoped, tag = 'output window, operand 0, single buffered']
    %9 = vsyncpa [#allocation4], 0
    %10 = vsyncpa [#allocation7], 0
    %11 = vsyncpa [#allocation10], 0
    %12 = vsyncpa [#allocation5], 0
    // Predicated region
    $region2: #{resnext_forward.18} parent=1 // pred_check
      _
    $region3: #{resnext_forward.18} parent=1 // pred_check_branch
      %14 = sbr.rel (0) target = $region5
    $region4: #{resnext_forward.18} parent=1 // pred_region
      %s16 = ssub.s32 256, 256
      %17 = vsyncadd [#allocation4], %s16
      %s18 = sshll.u32 [#allocation3], 4
      %s19 = int_to_ptr.vmem [resolvable:$true] %s18
      %24 = dma.hbm_to_vmem [thread:$0]  %s0, 256, %s19, [#allocation4], 64, 64, 4
    $region5: #{resnext_forward.18} parent=1 // pred_fallthru
      _
    // Predicated region
    $region6: #{resnext_forward.18} parent=1 // pred_check
      _
    $region7: #{resnext_forward.18} parent=1 // pred_check_branch
      %26 = sbr.rel (0) target = $region9
    $region8: #{resnext_forward.18} parent=1 // pred_region
      %s28 = ssub.s32 1024, 1024
      %29 = vsyncadd [#allocation7], %s28
      %s30 = sshll.u32 [#allocation6], 4
      %s31 = int_to_ptr.vmem [resolvable:$true] %s30
      %36 = dma.hbm_to_vmem [thread:$0]  %s1, 1024, %s31, [#allocation7], 64, 64, 4
    $region9: #{resnext_forward.18} parent=1 // pred_fallthru
      _
    // Predicated region
    $region10: #{resnext_forward.18} parent=1 // pred_check
      _
    $region11: #{resnext_forward.18} parent=1 // pred_check_branch
      %38 = sbr.rel (0) target = $region13
    $region12: #{resnext_forward.18} parent=1 // pred_region
      %s40 = ssub.s32 16, 16
      %41 = vsyncadd [#allocation7], %s40
      %s43 = sshll.u32 [#allocation8], 4
      %s44 = int_to_ptr.vmem [resolvable:$true] %s43
      %46 = dma.hbm_to_vmem [thread:$0]  %s2, 16, %s44, [#allocation7]
    $region13: #{resnext_forward.18} parent=1 // pred_fallthru
      _
    // Predicated region
    $region14: #{resnext_forward.18} parent=1 // pred_check
      _
    $region15: #{resnext_forward.18} parent=1 // pred_check_branch
      %48 = sbr.rel (0) target = $region17
    $region16: #{resnext_forward.18} parent=1 // pred_region
      %s50 = ssub.s32 16, 16
      %51 = vsyncadd [#allocation10], %s50
      %s53 = sshll.u32 [#allocation9], 4
      %s54 = int_to_ptr.vmem [resolvable:$true] %s53
      %56 = dma.hbm_to_vmem [thread:$0]  %s3, 16, %s54, [#allocation10]
    $region17: #{resnext_forward.18} parent=1 // pred_fallthru
      _
    // Predicated region
    $region18: #{resnext_forward.18} parent=1 // pred_check
      _
    $region19: #{resnext_forward.18} parent=1 // pred_check_branch
      %58 = sbr.rel (0) target = $region21
    $region20: #{resnext_forward.18} parent=1 // pred_region
      %59 = dma.done [#allocation4], 256
    $region21: #{resnext_forward.18} parent=1 // pred_fallthru
      _
    // Predicated region
    $region22: #{resnext_forward.18} parent=1 // pred_check
      _
    $region23: #{resnext_forward.18} parent=1 // pred_check_branch
      %61 = sbr.rel (0) target = $region25
    $region24: #{resnext_forward.18} parent=1 // pred_region
      %62 = dma.done [#allocation7], 1024
    $region25: #{resnext_forward.18} parent=1 // pred_fallthru
      _
    // Predicated region
    $region26: #{resnext_forward.18} parent=1 // pred_check
      _
    $region27: #{resnext_forward.18} parent=1 // pred_check_branch
      %64 = sbr.rel (0) target = $region29
    $region28: #{resnext_forward.18} parent=1 // pred_region
      %65 = dma.done [#allocation7], 16
    $region29: #{resnext_forward.18} parent=1 // pred_fallthru
      _
    // Predicated region
    $region30: #{resnext_forward.18} parent=1 // pred_check
      _
    $region31: #{resnext_forward.18} parent=1 // pred_check_branch
      %67 = sbr.rel (0) target = $region33
    $region32: #{resnext_forward.18} parent=1 // pred_region
      %68 = dma.done [#allocation10], 16
    $region33: #{resnext_forward.18} parent=1 // pred_fallthru
      _
    %p70 = scmp.eq.s32.totalorder 0, 0
    // Predicated region
    $region34: #{resnext_forward.18} parent=1 // pred_check
      %p71 = pneg %p70
    $region35: #{resnext_forward.18} parent=1 // pred_check_branch
      %73 = sbr.rel (%p71) target = $region37
    $region36: #{resnext_forward.18} parent=1 // pred_region
      %74 = vst [vmem:[#allocation2] sm:$0xff] 0.0
      %75 = vst [vmem:[#allocation2 + $0x8] sm:$0xff] 0.0
      %76 = vst [vmem:[#allocation2 + $0x10] sm:$0xff] 0.0
      %77 = vst [vmem:[#allocation2 + $0x18] sm:$0xff] 0.0
    $region37: #{resnext_forward.18} parent=1 // pred_fallthru
      _
    %v78 = vld [vmem:[#allocation2] sm:$0xff]
    %v79 = vld [vmem:[#allocation2 + $0x8] sm:$0xff]
    %v80 = vld [vmem:[#allocation2 + $0x10] sm:$0xff]
    %v81 = vld [vmem:[#allocation2 + $0x18] sm:$0xff]
    %v82 = vld [vmem:[#allocation3] sm:$0xf]
    %v83 = vld [vmem:[#allocation3 + $0x4] sm:$0xf]
    %v84 = vld [vmem:[#allocation3 + $0x8] sm:$0xf]
    %v85 = vld [vmem:[#allocation3 + $0xc] sm:$0xf]
    %v86 = vld [vmem:[#allocation6] sm:$0xf]
    %v87 = vld [vmem:[#allocation6 + $0x4] sm:$0xf]
    %v88 = vld [vmem:[#allocation6 + $0x8] sm:$0xf]
    %v89 = vld [vmem:[#allocation6 + $0xc] sm:$0xf]
    %v90 = vld [vmem:[#allocation6 + $0x10] sm:$0xf]
    %v91 = vld [vmem:[#allocation6 + $0x14] sm:$0xf]
    %v92 = vld [vmem:[#allocation6 + $0x18] sm:$0xf]
    %v93 = vld [vmem:[#allocation6 + $0x1c] sm:$0xf]
    %v94 = vld [vmem:[#allocation6 + $0x20] sm:$0xf]
    %v95 = vld [vmem:[#allocation6 + $0x24] sm:$0xf]
    %v96 = vld [vmem:[#allocation6 + $0x28] sm:$0xf]
    %v97 = vld [vmem:[#allocation6 + $0x2c] sm:$0xf]
    %v98 = vld [vmem:[#allocation6 + $0x30] sm:$0xf]
    %v99 = vld [vmem:[#allocation6 + $0x34] sm:$0xf]
    %v100 = vld [vmem:[#allocation6 + $0x38] sm:$0xf]
    %v101 = vld [vmem:[#allocation6 + $0x3c] sm:$0xf]
    %v106 = vunpack.c.l.b16 %v82
    %v107 = vunpack.c.l.b16 %v83
    %v108 = vunpack.c.l.b16 %v84
    %v109 = vunpack.c.l.b16 %v85
    %v110 = vpack.c.b16 %v107, %v106
    %v111 = vpack.c.b16 %v109, %v108
    %v130 = vunpack.c.l.b16 %v86
    %v131 = vunpack.c.l.b16 %v87
    %v132 = vunpack.c.l.b16 %v88
    %v133 = vunpack.c.l.b16 %v89
    %v134 = vunpack.c.l.b16 %v90
    %v135 = vunpack.c.l.b16 %v91
    %v136 = vunpack.c.l.b16 %v92
    %v137 = vunpack.c.l.b16 %v93
    %v138 = vunpack.c.l.b16 %v94
    %v139 = vunpack.c.l.b16 %v95
    %v140 = vunpack.c.l.b16 %v96
    %v141 = vunpack.c.l.b16 %v97
    %v142 = vunpack.c.l.b16 %v98
    %v143 = vunpack.c.l.b16 %v99
    %v144 = vunpack.c.l.b16 %v100
    %v145 = vunpack.c.l.b16 %v101
    %v146 = vpack.c.b16 %v131, %v130
    %v147 = vpack.c.b16 %v133, %v132
    %v148 = vpack.c.b16 %v135, %v134
    %v149 = vpack.c.b16 %v137, %v136
    %v150 = vpack.c.b16 %v139, %v138
    %v151 = vpack.c.b16 %v141, %v140
    %v152 = vpack.c.b16 %v143, %v142
    %v153 = vpack.c.b16 %v145, %v144
    %162 = vmatprep.subr.bf16.mxu0 0
    %163 = vmatpush1.bf16.msra.mxu0 %v146
    %164 = vmatprep.subr.bf16.mxu0 0
    %165 = vmatpush1.bf16.msra.mxu0 %v147
    %166 = vmatprep.subr.bf16.mxu0 0
    %167 = vmatpush1.bf16.msra.mxu0 %v148
    %168 = vmatprep.subr.bf16.mxu0 0
    %169 = vmatpush1.bf16.msra.mxu0 %v149
    %170 = vmatprep.subr.bf16.mxu0 0
    %171 = vmatpush1.bf16.msra.mxu0 %v150
    %172 = vmatprep.subr.bf16.mxu0 0
    %173 = vmatpush1.bf16.msra.mxu0 %v151
    %174 = vmatprep.subr.bf16.mxu0 0
    %175 = vmatpush1.bf16.msra.mxu0 %v152
    %176 = vmatprep.subr.bf16.mxu0 0
    %177 = vmatpush1.bf16.msra.mxu0 %v153
    %178 = vmatprep.subr.bf16.mxu0 0
    %179 = vmatpush1.bf16.msra.mxu0 0
    %180 = vmatprep.subr.bf16.mxu0 0
    %181 = vmatpush1.bf16.msra.mxu0 0
    %182 = vmatprep.subr.bf16.mxu0 0
    %183 = vmatpush1.bf16.msra.mxu0 0
    %184 = vmatprep.subr.bf16.mxu0 0
    %185 = vmatpush1.bf16.msra.mxu0 0
    %186 = vmatprep.subr.bf16.mxu0 0
    %187 = vmatpush1.bf16.msra.mxu0 0
    %188 = vmatprep.subr.bf16.mxu0 0
    %189 = vmatpush1.bf16.msra.mxu0 0
    %190 = vmatprep.subr.bf16.mxu0 0
    %191 = vmatpush1.bf16.msra.mxu0 0
    %192 = vmatprep.subr.bf16.mxu0 0
    %193 = vmatpush1.bf16.msra.mxu0 0
    %194 = vmatprep.mubr.bf16.mxu0 0
    %195 = vmatmul.mubr.bf16.gmra.mrb[0].mxu0 %v110
    %v196 = vpop.f32.mrb[0].mxu0
    %v197 = vadd.f32 0.0, %v196
    %v198 = vpop.f32.mrb[0].mxu0
    %v199 = vpop.f32.mrb[0].mxu0
    %v200 = vadd.f32 0.0, %v199
    %v201 = vpop.f32.mrb[0].mxu0
    %202 = vmatprep.mubr.bf16.mxu0 0
    %203 = vmatmul.mubr.bf16.gmra.mrb[0].mxu0 %v111
    %v204 = vpop.f32.mrb[0].mxu0
    %v205 = vadd.f32 0.0, %v204
    %v206 = vpop.f32.mrb[0].mxu0
    %v207 = vpop.f32.mrb[0].mxu0
    %v208 = vadd.f32 0.0, %v207
    %v209 = vpop.f32.mrb[0].mxu0
    %210 = vdwg.mxu0
    %v211 = vadd.f32 %v78, %v197
    %v212 = vadd.f32 %v79, %v200
    %v213 = vadd.f32 %v80, %v205
    %v214 = vadd.f32 %v81, %v208
    %215 = vst [vmem:[#allocation2] sm:$0xff] %v211
    %216 = vst [vmem:[#allocation2 + $0x8] sm:$0xff] %v212
    %217 = vst [vmem:[#allocation2 + $0x10] sm:$0xff] %v213
    %218 = vst [vmem:[#allocation2 + $0x18] sm:$0xff] %v214
    // Predicated region
    $region38: #{resnext_forward.18} parent=1 // pred_check
      %p219 = pneg %p70
    $region39: #{resnext_forward.18} parent=1 // pred_check_branch
      %221 = sbr.rel (%p219) target = $region41
    $region40: #{resnext_forward.18} parent=1 // pred_region
      %v222 = vld [vmem:[#allocation2] sm:$0xff]
      %v223 = vld [vmem:[#allocation2 + $0x8] sm:$0xff]
      %v224 = vld [vmem:[#allocation2 + $0x10] sm:$0xff]
      %v225 = vld [vmem:[#allocation2 + $0x18] sm:$0xff]
      %v226 = vld [vmem:[#allocation8] sm:$0x1]
      %v228 = vlaneseq
      %v229 = vshrl.u32 %v228, 7
      %v230 = vsub.s32 0, %v229
      %v231 = vrot.slane %v226, %v230
      %v233 = vmul.f32 %v222, %v231
      %v234 = vmul.f32 %v223, %v231
      %v235 = vmul.f32 %v224, %v231
      %v236 = vmul.f32 %v225, %v231
      %v237 = vld [vmem:[#allocation9] sm:$0x1]
      %v239 = vlaneseq
      %v240 = vshrl.u32 %v239, 7
      %v241 = vsub.s32 0, %v240
      %v242 = vrot.slane %v237, %v241
      %v244 = vadd.f32 %v233, %v242
      %v245 = vadd.f32 %v234, %v242
      %v246 = vadd.f32 %v235, %v242
      %v247 = vadd.f32 %v236, %v242
      %v248 = vmax.f32 %v244, 0.0
      %v249 = vmax.f32 %v245, 0.0
      %v250 = vmax.f32 %v246, 0.0
      %v251 = vmax.f32 %v247, 0.0
      %v252 = vpack.c.bf16 %v249, %v248
      %v253 = vpack.c.bf16 %v251, %v250
      %v256 = vunpack.c.l.b16 %v252
      %v257 = vunpack.c.h.b16 %v252
      %v258 = vunpack.c.l.b16 %v253
      %v259 = vunpack.c.h.b16 %v253
      %v260 = vpack.c.b16 %v256, %v256
      %v261 = vpack.c.b16 %v257, %v257
      %v262 = vpack.c.b16 %v258, %v258
      %v263 = vpack.c.b16 %v259, %v259
      %268 = vst [vmem:[#allocation11] sm:$0xf] %v260
      %269 = vst [vmem:[#allocation11 + $0x4] sm:$0xf] %v261
      %270 = vst [vmem:[#allocation11 + $0x8] sm:$0xf] %v262
      %271 = vst [vmem:[#allocation11 + $0xc] sm:$0xf] %v263
    $region41: #{resnext_forward.18} parent=1 // pred_fallthru
      _
    // Predicated region
    $region42: #{resnext_forward.18} parent=1 // pred_check
      _
    $region43: #{resnext_forward.18} parent=1 // pred_check_branch
      %273 = sbr.rel (0) target = $region45
    $region44: #{resnext_forward.18} parent=1 // pred_region
      %s275 = ssub.s32 256, 256
      %276 = vsyncadd [#allocation5], %s275
      %s277 = sshll.u32 [#allocation11], 4
      %s278 = int_to_ptr.vmem [resolvable:$true] %s277
      %283 = dma.vmem_to_hbm [thread:$0]  %s278, 256, %s4, [#allocation5], 64, 64, 4
    $region45: #{resnext_forward.18} parent=1 // pred_fallthru
      _
    // Predicated region
    $region46: #{resnext_forward.18} parent=1 // pred_check
      _
    $region47: #{resnext_forward.18} parent=1 // pred_check_branch
      %285 = sbr.rel (0) target = $region49
    $region48: #{resnext_forward.18} parent=1 // pred_region
      %286 = dma.done [#allocation5], 256
    $region49: #{resnext_forward.18} parent=1 // pred_fallthru
      _
    %287 = vsyncpa [#allocation4], 1
    %288 = vsyncpa [#allocation7], 1
    %289 = vsyncpa [#allocation10], 1
    %290 = vsyncpa [#allocation5], 1

// kernel: resnext_forward.19
$region0: #{resnext_forward.19}
  #allocation0 [shape = 'u32[]', space=smem, size = 0x4, offset = 0x4, fixed_abs, tag = 'smem constant byte address 0x4 - core index']
  #allocation1 [shape = 'u32[144,128]{1,0:T(1,128)}', space=vmem, size = 0x12000, scoped, tag = 'internal scratch']
  %s0 = inlined_call_operand.hbm [shape: bf16[2,1,42,128], index: 0, kind: input, shape index: {}]
  %s1 = inlined_call_operand.hbm [shape: bf16[9,128,128], index: 1, kind: input, shape index: {}]
  %s2 = inlined_call_operand.hbm [shape: f32[1,128], index: 2, kind: input, shape index: {}]
  %s3 = inlined_call_operand.hbm [shape: f32[1,128], index: 3, kind: input, shape index: {}]
  %s4 = inlined_call_operand.hbm [shape: bf16[2,24,128], index: 4, kind: output, shape index: {}]
  %s5 = sld [smem:[#allocation0]]
  $region65: #{resnext_forward.19} parent=0
    _
  %s7 = ssub.s32 1, %s5
  %s8 = scalar_select 0, %s7, %s5
  $region1: #{resnext_forward.19} parent=0
    #allocation2 [shape = 'u8[24576]{0}', space=vmem, size = 0x6000, scoped, tag = 'input window, operand 0']
    #allocation3 [shape = 's32[2]{0}', space=sflag, size = 0x8, scoped, tag = 'scoped memory for resnext_forward.19']
    #allocation4 [shape = 's32[2]{0}', space=sflag, size = 0x8, scoped, tag = 'scoped memory for resnext_forward.19']
    #allocation5 [shape = 'u8[294912]{0}', space=vmem, size = 0x48000, scoped, tag = 'input window, operand 1, single buffered']
    #allocation6 [shape = 's32[1]{0}', space=sflag, size = 0x4, scoped, tag = 'scoped memory for resnext_forward.19']
    #allocation7 [shape = 'u8[512]{0}', space=vmem, size = 0x400, scoped, tag = 'input window, operand 2, single buffered']
    #allocation8 [shape = 'u8[512]{0}', space=vmem, size = 0x400, scoped, tag = 'input window, operand 3, single buffered']
    #allocation9 [shape = 's32[1]{0}', space=sflag, size = 0x4, scoped, tag = 'scoped memory for resnext_forward.19']
    #allocation10 [shape = 'u8[12288]{0}', space=vmem, size = 0x3000, scoped, tag = 'output window, operand 0']
    %9 = vsyncpa [#allocation3], 0
    %s10 = scalar_lea.sflag [#allocation3], 1
    %11 = vsyncpa %s10, 0
    %12 = vsyncpa [#allocation6], 0
    %13 = vsyncpa [#allocation9], 0
    %14 = vsyncpa [#allocation4], 0
    %s15 = scalar_lea.sflag [#allocation4], 1
    %16 = vsyncpa %s15, 0
    loop: start=0, step=1, limit=4
    $region2: #{resnext_forward.19} parent=1 // loop_pre_header
      _
    $region3: #{resnext_forward.19} parent=1 // loop_header
      %s18 = sphi 0, %s22
      %p19 = scmp.ge.s32.totalorder %s18, 4
      %s28 = sphi 0, %s30
      %s31 = sphi 0, %s28
      %s32 = sphi 0, %s31
      %s48 = sphi 0, %s32
      %s52 = sphi 0, %s52
      %s54 = sphi 0, %s52
      %s55 = sphi 0, %s54
      %s69 = sphi 0, %s55
      %s73 = sphi 0, %s73
      %s75 = sphi 0, %s73
      %s76 = sphi 0, %s75
      %s90 = sphi 0, %s76
      %s94 = sphi 0, %s94
      %s96 = sphi 0, %s94
      %s97 = sphi 0, %s96
      %s111 = sphi 0, %s97
      %s117 = sphi 0, %s119
      %s120 = sphi 0, %s117
      %s121 = sphi 0, %s120
      %s137 = sphi 0, %s121
    $region4: #{resnext_forward.19} parent=1 // loop_header_branch
      %21 = sbr.rel (%p19) target = $region8
    $region5: #{resnext_forward.19} parent=1 // loop_body
      %s23 = ssub.s32 %s18, 1
      %s24 = ssub.s32 %s18, 2
      %s25 = sadd.s32 %s18, 1
      %s26 = ssub.s32 %s18, %s25
      %p27 = scmp.eq.s32.totalorder %s26, 0
      %s29 = sadd.s32 %s28, 1
      %s30 = scalar_select %p27, %s28, %s29
      %p33 = pneg %p27
      %p34 = scmp.eq.s32.totalorder %s18, 1
      %p35 = por %p33, %p34
      %p36 = scmp.ne.s32.totalorder %s28, %s31
      %p37 = scmp.eq.s32.totalorder %s18, 0
      %p38 = por %p36, %p37
      %p39 = scmp.ne.s32.totalorder %s28, %s31
      %p40 = scmp.eq.s32.totalorder %s23, 1
      %p41 = por %p39, %p40
      %p42 = scmp.ne.s32.totalorder %s31, %s32
      %p43 = scmp.eq.s32.totalorder %s23, 0
      %p44 = por %p42, %p43
      %p45 = scmp.ne.s32.totalorder %s31, %s32
      %p46 = scmp.eq.s32.totalorder %s24, 1
      %p47 = por %p45, %p46
      %p49 = scmp.ne.s32.totalorder %s32, %s48
      %p50 = scmp.eq.s32.totalorder %s24, 0
      %p51 = por %p49, %p50
      %s53 = sadd.s32 %s52, 1
      %p56 = scmp.eq.s32.totalorder %s18, 1
      %p57 = scmp.ne.s32.totalorder %s52, %s54
      %p58 = scmp.eq.s32.totalorder %s18, 0
      %p59 = por %p57, %p58
      %p60 = scmp.ne.s32.totalorder %s52, %s54
      %p61 = scmp.eq.s32.totalorder %s23, 1
      %p62 = por %p60, %p61
      %p63 = scmp.ne.s32.totalorder %s54, %s55
      %p64 = scmp.eq.s32.totalorder %s23, 0
      %p65 = por %p63, %p64
      %p66 = scmp.ne.s32.totalorder %s54, %s55
      %p67 = scmp.eq.s32.totalorder %s24, 1
      %p68 = por %p66, %p67
      %p70 = scmp.ne.s32.totalorder %s55, %s69
      %p71 = scmp.eq.s32.totalorder %s24, 0
      %p72 = por %p70, %p71
      %s74 = sadd.s32 %s73, 1
      %p77 = scmp.eq.s32.totalorder %s18, 1
      %p78 = scmp.ne.s32.totalorder %s73, %s75
      %p79 = scmp.eq.s32.totalorder %s18, 0
      %p80 = por %p78, %p79
      %p81 = scmp.ne.s32.totalorder %s73, %s75
      %p82 = scmp.eq.s32.totalorder %s23, 1
      %p83 = por %p81, %p82
      %p84 = scmp.ne.s32.totalorder %s75, %s76
      %p85 = scmp.eq.s32.totalorder %s23, 0
      %p86 = por %p84, %p85
      %p87 = scmp.ne.s32.totalorder %s75, %s76
      %p88 = scmp.eq.s32.totalorder %s24, 1
      %p89 = por %p87, %p88
      %p91 = scmp.ne.s32.totalorder %s76, %s90
      %p92 = scmp.eq.s32.totalorder %s24, 0
      %p93 = por %p91, %p92
      %s95 = sadd.s32 %s94, 1
      %p98 = scmp.eq.s32.totalorder %s18, 1
      %p99 = scmp.ne.s32.totalorder %s94, %s96
      %p100 = scmp.eq.s32.totalorder %s18, 0
      %p101 = por %p99, %p100
      %p102 = scmp.ne.s32.totalorder %s94, %s96
      %p103 = scmp.eq.s32.totalorder %s23, 1
      %p104 = por %p102, %p103
      %p105 = scmp.ne.s32.totalorder %s96, %s97
      %p106 = scmp.eq.s32.totalorder %s23, 0
      %p107 = por %p105, %p106
      %p108 = scmp.ne.s32.totalorder %s96, %s97
      %p109 = scmp.eq.s32.totalorder %s24, 1
      %p110 = por %p108, %p109
      %p112 = scmp.ne.s32.totalorder %s97, %s111
      %p113 = scmp.eq.s32.totalorder %s24, 0
      %p114 = por %p112, %p113
      %s115 = ssub.s32 %s18, %s25
      %p116 = scmp.eq.s32.totalorder %s115, 0
      %s118 = sadd.s32 %s117, 1
      %s119 = scalar_select %p116, %s117, %s118
      %p122 = pneg %p116
      %p123 = scmp.eq.s32.totalorder %s18, 1
      %p124 = por %p122, %p123
      %p125 = scmp.ne.s32.totalorder %s117, %s120
      %p126 = scmp.eq.s32.totalorder %s18, 0
      %p127 = por %p125, %p126
      %p128 = scmp.ne.s32.totalorder %s117, %s120
      %p129 = scmp.eq.s32.totalorder %s23, 1
      %p130 = por %p128, %p129
      %p131 = scmp.ne.s32.totalorder %s120, %s121
      %p132 = scmp.eq.s32.totalorder %s23, 0
      %p133 = por %p131, %p132
      %p134 = scmp.ne.s32.totalorder %s120, %s121
      %p135 = scmp.eq.s32.totalorder %s24, 1
      %p136 = por %p134, %p135
      %p138 = scmp.ne.s32.totalorder %s121, %s137
      %p139 = scmp.eq.s32.totalorder %s24, 0
      %p140 = por %p138, %p139
      %p141 = scmp.le.s32.totalorder 1, %s18
      %p142 = scmp.lt.s32.totalorder %s18, 3
      %p143 = pnand %p141, %p142
      %p144 = pneg %p143
      // Predicated region
      $region9: #{resnext_forward.19} parent=5 // pred_check
        _
      $region10: #{resnext_forward.19} parent=5 // pred_check_branch
        %146 = sbr.rel (%p143) target = $region12
      $region11: #{resnext_forward.19} parent=5 // pred_region
        %s147 = ssub.s32 %s18, 1
        // Predicated region
        $region13: #{resnext_forward.19} parent=11 // pred_check
          %p148 = pneg %p65
        $region14: #{resnext_forward.19} parent=11 // pred_check_branch
          %150 = sbr.rel (%p148) target = $region16
        $region15: #{resnext_forward.19} parent=11 // pred_region
          %s152 = ssub.s32 9216, 9216
          %153 = vsyncadd [#allocation6], %s152
          %s154 = sshll.u32 [#allocation5], 4
          %s155 = int_to_ptr.vmem [resolvable:$true] %s154
          %160 = dma.hbm_to_vmem [thread:$0]  %s1, 9216, %s155, [#allocation6], 64, 64, 4
        $region16: #{resnext_forward.19} parent=11 // pred_fallthru
          _
        // Predicated region
        $region17: #{resnext_forward.19} parent=11 // pred_check
          %p161 = pneg %p86
        $region18: #{resnext_forward.19} parent=11 // pred_check_branch
          %163 = sbr.rel (%p161) target = $region20
        $region19: #{resnext_forward.19} parent=11 // pred_region
          %s165 = ssub.s32 16, 16
          %166 = vsyncadd [#allocation6], %s165
          %s168 = sshll.u32 [#allocation7], 4
          %s169 = int_to_ptr.vmem [resolvable:$true] %s168
          %171 = dma.hbm_to_vmem [thread:$0]  %s2, 16, %s169, [#allocation6]
        $region20: #{resnext_forward.19} parent=11 // pred_fallthru
          _
        // Predicated region
        $region21: #{resnext_forward.19} parent=11 // pred_check
          %p172 = pneg %p107
        $region22: #{resnext_forward.19} parent=11 // pred_check_branch
          %174 = sbr.rel (%p172) target = $region24
        $region23: #{resnext_forward.19} parent=11 // pred_region
          %s176 = ssub.s32 16, 16
          %177 = vsyncadd [#allocation9], %s176
          %s179 = sshll.u32 [#allocation8], 4
          %s180 = int_to_ptr.vmem [resolvable:$true] %s179
          %182 = dma.hbm_to_vmem [thread:$0]  %s3, 16, %s180, [#allocation9]
        $region24: #{resnext_forward.19} parent=11 // pred_fallthru
          _
      $region12: #{resnext_forward.19} parent=5 // pred_fallthru
        _
      %p183 = scmp.lt.s32.totalorder %s18, 2
      // Predicated region
      $region25: #{resnext_forward.19} parent=5 // pred_check
        %p184 = pneg %p183
      $region26: #{resnext_forward.19} parent=5 // pred_check_branch
        %186 = sbr.rel (%p184) target = $region28
      $region27: #{resnext_forward.19} parent=5 // pred_region
        // Predicated region
        $region29: #{resnext_forward.19} parent=27 // pred_check
          %p187 = pneg %p38
        $region30: #{resnext_forward.19} parent=27 // pred_check_branch
          %189 = sbr.rel (%p187) target = $region32
        $region31: #{resnext_forward.19} parent=27 // pred_region
          %s190 = sand.u32 %s28, 1
          %s191 = scalar_lea.sflag [#allocation3], %s190
          %s192 = sand.u32 %s28, 1
          %s193 = smul.addr %s192, 24
          %s194 = scalar_lea.vmem [#allocation2], %s193
          %s196 = ssub.s32 384, 384
          %197 = vsyncadd %s191, %s196
          %s198 = smul.addr %s18, 6
          %s199 = smul.addr %s198, 64
          %s200 = scalar_lea.hbm %s0, %s199
          %s201 = sshll.u32 %s194, 4
          %s202 = int_to_ptr.vmem [resolvable:$true] %s201
          %207 = dma.hbm_to_vmem [thread:$0]  %s200, 384, %s202, %s191, 64, 64, 4
        $region32: #{resnext_forward.19} parent=27 // pred_fallthru
          _
      $region28: #{resnext_forward.19} parent=5 // pred_fallthru
        _
      %p208 = scmp.le.s32.totalorder 1, %s18
      %p209 = scmp.lt.s32.totalorder %s18, 3
      %p210 = pnand %p208, %p209
      %p211 = pneg %p210
      // Predicated region
      $region33: #{resnext_forward.19} parent=5 // pred_check
        _
      $region34: #{resnext_forward.19} parent=5 // pred_check_branch
        %213 = sbr.rel (%p210) target = $region36
      $region35: #{resnext_forward.19} parent=5 // pred_region
        %s214 = ssub.s32 %s18, 1
        %s215 = sand.u32 %s31, 1
        %s216 = scalar_lea.sflag [#allocation3], %s215
        %s217 = sand.u32 %s31, 1
        %s218 = smul.addr %s217, 24
        %s219 = scalar_lea.vmem [#allocation2], %s218
        // Predicated region
        $region37: #{resnext_forward.19} parent=35 // pred_check
          %p220 = pneg %p44
        $region38: #{resnext_forward.19} parent=35 // pred_check_branch
          %222 = sbr.rel (%p220) target = $region40
        $region39: #{resnext_forward.19} parent=35 // pred_region
          %223 = dma.done %s216, 384
        $region40: #{resnext_forward.19} parent=35 // pred_fallthru
          _
        // Predicated region
        $region41: #{resnext_forward.19} parent=35 // pred_check
          %p224 = pneg %p65
        $region42: #{resnext_forward.19} parent=35 // pred_check_branch
          %226 = sbr.rel (%p224) target = $region44
        $region43: #{resnext_forward.19} parent=35 // pred_region
          %227 = dma.done [#allocation6], 9216
        $region44: #{resnext_forward.19} parent=35 // pred_fallthru
          _
        // Predicated region
        $region45: #{resnext_forward.19} parent=35 // pred_check
          %p228 = pneg %p86
        $region46: #{resnext_forward.19} parent=35 // pred_check_branch
          %230 = sbr.rel (%p228) target = $region48
        $region47: #{resnext_forward.19} parent=35 // pred_region
          %231 = dma.done [#allocation6], 16
        $region48: #{resnext_forward.19} parent=35 // pred_fallthru
          _
        // Predicated region
        $region49: #{resnext_forward.19} parent=35 // pred_check
          %p232 = pneg %p107
        $region50: #{resnext_forward.19} parent=35 // pred_check_branch
          %234 = sbr.rel (%p232) target = $region52
        $region51: #{resnext_forward.19} parent=35 // pred_region
          %235 = dma.done [#allocation9], 16
        $region52: #{resnext_forward.19} parent=35 // pred_fallthru
          _
        %s236 = sand.u32 %s31, 1
        %s237 = scalar_lea.sflag [#allocation3], %s236
        %s238 = sand.u32 %s31, 1
        %s239 = smul.addr %s238, 24
        %s240 = scalar_lea.vmem [#allocation2], %s239
        %p241 = pneg %p44
        %p242 = pneg %p41
        %p243 = pneg %p65
        %p244 = pneg %p62
        %p245 = pneg %p86
        %p246 = pneg %p83
        %p247 = pneg %p107
        %p248 = pneg %p104
        %p249 = pneg %p133
        %p250 = pneg %p130
        %s251 = sand.u32 %s120, 1
        %s252 = scalar_lea.sflag [#allocation4], %s251
        %s253 = sand.u32 %s120, 1
        %s254 = smul.addr %s253, 12
        %s255 = scalar_lea.vmem [#allocation10], %s254
        %v257 = vld [vmem:[%s219] sm:$0xf]
        %v258 = vld [vmem:[%s219 + $0x4] sm:$0xf]
        %v259 = vld [vmem:[%s219 + $0x8] sm:$0xf]
        %v260 = vld [vmem:[#allocation5] sm:$0xf]
        %v261 = vld [vmem:[#allocation5 + $0x4] sm:$0xf]
        %v262 = vld [vmem:[#allocation5 + $0x8] sm:$0xf]
        %v263 = vld [vmem:[#allocation5 + $0xc] sm:$0xf]
        %v264 = vld [vmem:[#allocation5 + $0x10] sm:$0xf]
        %v265 = vld [vmem:[#allocation5 + $0x14] sm:$0xf]
        %v266 = vld [vmem:[#allocation5 + $0x18] sm:$0xf]
        %v267 = vld [vmem:[#allocation5 + $0x1c] sm:$0xf]
        %v268 = vld [vmem:[#allocation5 + $0x20] sm:$0xf]
        %v269 = vld [vmem:[#allocation5 + $0x24] sm:$0xf]
        %v270 = vld [vmem:[#allocation5 + $0x28] sm:$0xf]
        %v271 = vld [vmem:[#allocation5 + $0x2c] sm:$0xf]
        %v272 = vld [vmem:[#allocation5 + $0x30] sm:$0xf]
        %v273 = vld [vmem:[#allocation5 + $0x34] sm:$0xf]
        %v274 = vld [vmem:[#allocation5 + $0x38] sm:$0xf]
        %v275 = vld [vmem:[#allocation5 + $0x3c] sm:$0xf]
        %v276 = vld [vmem:[%s219 + $0xc] sm:$0x1]
        %s277 = scalar_lea.vmem [#allocation5], 64
        %v278 = vld [vmem:[%s277] sm:$0xf]
        %v279 = vld [vmem:[%s277 + $0x4] sm:$0xf]
        %v280 = vld [vmem:[%s277 + $0x8] sm:$0xf]
        %v281 = vld [vmem:[%s277 + $0xc] sm:$0xf]
        %v282 = vld [vmem:[%s277 + $0x10] sm:$0xf]
        %v283 = vld [vmem:[%s277 + $0x14] sm:$0xf]
        %v284 = vld [vmem:[%s277 + $0x18] sm:$0xf]
        %v285 = vld [vmem:[%s277 + $0x1c] sm:$0xf]
        %v286 = vld [vmem:[%s277 + $0x20] sm:$0xf]
        %v287 = vld [vmem:[%s277 + $0x24] sm:$0xf]
        %v288 = vld [vmem:[%s277 + $0x28] sm:$0xf]
        %v289 = vld [vmem:[%s277 + $0x2c] sm:$0xf]
        %v290 = vld [vmem:[%s277 + $0x30] sm:$0xf]
        %v291 = vld [vmem:[%s277 + $0x34] sm:$0xf]
        %v292 = vld [vmem:[%s277 + $0x38] sm:$0xf]
        %v293 = vld [vmem:[%s277 + $0x3c] sm:$0xf]
        %v298 = vunpack.c.l.b16 %v257
        %v299 = vunpack.c.l.b16 %v258
        %v300 = vunpack.c.l.b16 %v259
        %v301 = vunpack.c.l.b16 %v276
        %v302 = vpack.c.b16 %v299, %v298
        %v303 = vpack.c.b16 %v301, %v300
        %vm304 = vsmask.f32 7424
        %v306 = vshrl.u32 %v302, 16
        %v308 = vshll.u32 %v302, 16
        %v310 = vrot.slane %v308, 1
        %v311 = vor.u32 %v306, %v310
        %v313 = vshll.u32 %v303, 16
        %v315 = vrot.slane %v313, 1
        %v316 = vsel %vm304, %v311, %v315
        %v317 = vshrl.u32 %v303, 16
        %v319 = vor.u32 %v317, %v315
        %v338 = vunpack.c.l.b16 %v278
        %v339 = vunpack.c.l.b16 %v279
        %v340 = vunpack.c.l.b16 %v280
        %v341 = vunpack.c.l.b16 %v281
        %v342 = vunpack.c.l.b16 %v282
        %v343 = vunpack.c.l.b16 %v283
        %v344 = vunpack.c.l.b16 %v284
        %v345 = vunpack.c.l.b16 %v285
        %v346 = vunpack.c.l.b16 %v286
        %v347 = vunpack.c.l.b16 %v287
        %v348 = vunpack.c.l.b16 %v288
        %v349 = vunpack.c.l.b16 %v289
        %v350 = vunpack.c.l.b16 %v290
        %v351 = vunpack.c.l.b16 %v291
        %v352 = vunpack.c.l.b16 %v292
        %v353 = vunpack.c.l.b16 %v293
        %v354 = vpack.c.b16 %v339, %v338
        %v355 = vpack.c.b16 %v341, %v340
        %v356 = vpack.c.b16 %v343, %v342
        %v357 = vpack.c.b16 %v345, %v344
        %v358 = vpack.c.b16 %v347, %v346
        %v359 = vpack.c.b16 %v349, %v348
        %v360 = vpack.c.b16 %v351, %v350
        %v361 = vpack.c.b16 %v353, %v352
        %370 = vmatprep.subr.bf16.mxu0 0
        %371 = vmatpush1.bf16.msra.mxu0 %v354
        %372 = vmatprep.subr.bf16.mxu0 0
        %373 = vmatpush1.bf16.msra.mxu0 %v355
        %374 = vmatprep.subr.bf16.mxu0 0
        %375 = vmatpush1.bf16.msra.mxu0 %v356
        %376 = vmatprep.subr.bf16.mxu0 0
        %377 = vmatpush1.bf16.msra.mxu0 %v357
        %378 = vmatprep.subr.bf16.mxu0 0
        %379 = vmatpush1.bf16.msra.mxu0 %v358
        %380 = vmatprep.subr.bf16.mxu0 0
        %381 = vmatpush1.bf16.msra.mxu0 %v359
        %382 = vmatprep.subr.bf16.mxu0 0
        %383 = vmatpush1.bf16.msra.mxu0 %v360
        %384 = vmatprep.subr.bf16.mxu0 0
        %385 = vmatpush1.bf16.msra.mxu0 %v361
        %386 = vmatprep.subr.bf16.mxu0 0
        %387 = vmatpush1.bf16.msra.mxu0 0
        %388 = vmatprep.subr.bf16.mxu0 0
        %389 = vmatpush1.bf16.msra.mxu0 0
        %390 = vmatprep.subr.bf16.mxu0 0
        %391 = vmatpush1.bf16.msra.mxu0 0
        %392 = vmatprep.subr.bf16.mxu0 0
        %393 = vmatpush1.bf16.msra.mxu0 0
        %394 = vmatprep.subr.bf16.mxu0 0
        %395 = vmatpush1.bf16.msra.mxu0 0
        %396 = vmatprep.subr.bf16.mxu0 0
        %397 = vmatpush1.bf16.msra.mxu0 0
        %398 = vmatprep.subr.bf16.mxu0 0
        %399 = vmatpush1.bf16.msra.mxu0 0
        %400 = vmatprep.subr.bf16.mxu0 0
        %401 = vmatpush1.bf16.msra.mxu0 0
        %402 = vmatprep.mubr.bf16.mxu0 0
        %403 = vmatmul.mubr.bf16.gmra.mrb[0].mxu0 %v316
        %v404 = vpop.f32.mrb[0].mxu0
        %v405 = vadd.f32 0.0, %v404
        %v406 = vpop.f32.mrb[0].mxu0
        %v407 = vpop.f32.mrb[0].mxu0
        %v408 = vadd.f32 0.0, %v407
        %v409 = vpop.f32.mrb[0].mxu0
        %410 = vmatprep.mubr.bf16.mxu0 0
        %411 = vmatmul.mubr.bf16.gmra.mrb[0].mxu0 %v319
        %v412 = vpop.f32.mrb[0].mxu0
        %v413 = vadd.f32 0.0, %v412
        %v414 = vpop.f32.mrb[0].mxu0
        %v415 = vpop.f32.mrb[0].mxu0
        %v416 = vpop.f32.mrb[0].mxu0
        %417 = vdwg.mxu0
        %v418 = vpack.c.b16 %v300, %v300
        %v437 = vunpack.c.l.b16 %v260
        %v438 = vunpack.c.l.b16 %v261
        %v439 = vunpack.c.l.b16 %v262
        %v440 = vunpack.c.l.b16 %v263
        %v441 = vunpack.c.l.b16 %v264
        %v442 = vunpack.c.l.b16 %v265
        %v443 = vunpack.c.l.b16 %v266
        %v444 = vunpack.c.l.b16 %v267
        %v445 = vunpack.c.l.b16 %v268
        %v446 = vunpack.c.l.b16 %v269
        %v447 = vunpack.c.l.b16 %v270
        %v448 = vunpack.c.l.b16 %v271
        %v449 = vunpack.c.l.b16 %v272
        %v450 = vunpack.c.l.b16 %v273
        %v451 = vunpack.c.l.b16 %v274
        %v452 = vunpack.c.l.b16 %v275
        %v453 = vpack.c.b16 %v438, %v437
        %v454 = vpack.c.b16 %v440, %v439
        %v455 = vpack.c.b16 %v442, %v441
        %v456 = vpack.c.b16 %v444, %v443
        %v457 = vpack.c.b16 %v446, %v445
        %v458 = vpack.c.b16 %v448, %v447
        %v459 = vpack.c.b16 %v450, %v449
        %v460 = vpack.c.b16 %v452, %v451
        %469 = vmatprep.subr.bf16.mxu0 0
        %470 = vmatpush1.bf16.msra.mxu0 %v453
        %471 = vmatprep.subr.bf16.mxu0 0
        %472 = vmatpush1.bf16.msra.mxu0 %v454
        %473 = vmatprep.subr.bf16.mxu0 0
        %474 = vmatpush1.bf16.msra.mxu0 %v455
        %475 = vmatprep.subr.bf16.mxu0 0
        %476 = vmatpush1.bf16.msra.mxu0 %v456
        %477 = vmatprep.subr.bf16.mxu0 0
        %478 = vmatpush1.bf16.msra.mxu0 %v457
        %479 = vmatprep.subr.bf16.mxu0 0
        %480 = vmatpush1.bf16.msra.mxu0 %v458
        %481 = vmatprep.subr.bf16.mxu0 0
        %482 = vmatpush1.bf16.msra.mxu0 %v459
        %483 = vmatprep.subr.bf16.mxu0 0
        %484 = vmatpush1.bf16.msra.mxu0 %v460
        %485 = vmatprep.subr.bf16.mxu0 0
        %486 = vmatpush1.bf16.msra.mxu0 0
        %487 = vmatprep.subr.bf16.mxu0 0
        %488 = vmatpush1.bf16.msra.mxu0 0
        %489 = vmatprep.subr.bf16.mxu0 0
        %490 = vmatpush1.bf16.msra.mxu0 0
        %491 = vmatprep.subr.bf16.mxu0 0
        %492 = vmatpush1.bf16.msra.mxu0 0
        %493 = vmatprep.subr.bf16.mxu0 0
        %494 = vmatpush1.bf16.msra.mxu0 0
        %495 = vmatprep.subr.bf16.mxu0 0
        %496 = vmatpush1.bf16.msra.mxu0 0
        %497 = vmatprep.subr.bf16.mxu0 0
        %498 = vmatpush1.bf16.msra.mxu0 0
        %499 = vmatprep.subr.bf16.mxu0 0
        %500 = vmatpush1.bf16.msra.mxu0 0
        %501 = vmatprep.mubr.bf16.mxu0 0
        %502 = vmatmul.mubr.bf16.gmra.mrb[0].mxu0 %v302
        %v503 = vpop.f32.mrb[0].mxu0
        %v504 = vadd.f32 %v405, %v503
        %v505 = vpop.f32.mrb[0].mxu0
        %v506 = vpop.f32.mrb[0].mxu0
        %v507 = vadd.f32 %v408, %v506
        %v508 = vpop.f32.mrb[0].mxu0
        %509 = vmatprep.mubr.bf16.mxu0 0
        %510 = vmatmul.mubr.bf16.gmra.mrb[0].mxu0 %v418
        %v511 = vpop.f32.mrb[0].mxu0
        %v512 = vadd.f32 %v413, %v511
        %v513 = vpop.f32.mrb[0].mxu0
        %v514 = vpop.f32.mrb[0].mxu0
        %v515 = vpop.f32.mrb[0].mxu0
        %516 = vdwg.mxu0
        %v517 = vld [vmem:[%s219] sm:$0xe]
        %s518 = scalar_lea.vmem [#allocation5], 128
        %v519 = vld [vmem:[%s518] sm:$0xf]
        %v520 = vld [vmem:[%s518 + $0x4] sm:$0xf]
        %v521 = vld [vmem:[%s518 + $0x8] sm:$0xf]
        %v522 = vld [vmem:[%s518 + $0xc] sm:$0xf]
        %v523 = vld [vmem:[%s518 + $0x10] sm:$0xf]
        %v524 = vld [vmem:[%s518 + $0x14] sm:$0xf]
        %v525 = vld [vmem:[%s518 + $0x18] sm:$0xf]
        %v526 = vld [vmem:[%s518 + $0x1c] sm:$0xf]
        %v527 = vld [vmem:[%s518 + $0x20] sm:$0xf]
        %v528 = vld [vmem:[%s518 + $0x24] sm:$0xf]
        %v529 = vld [vmem:[%s518 + $0x28] sm:$0xf]
        %v530 = vld [vmem:[%s518 + $0x2c] sm:$0xf]
        %v531 = vld [vmem:[%s518 + $0x30] sm:$0xf]
        %v532 = vld [vmem:[%s518 + $0x34] sm:$0xf]
        %v533 = vld [vmem:[%s518 + $0x38] sm:$0xf]
        %v534 = vld [vmem:[%s518 + $0x3c] sm:$0xf]
        %v536 = vunpack.c.l.b16 %v517
        %v537 = vpack.c.b16 %v299, %v536
        %vm538 = vcmask 1046528
        %v539 = vrot.slane %v537, 1
        %v540 = vrot.slane %v303, 1
        %v541 = vsel %vm538, %v539, %v540
        %v560 = vunpack.c.l.b16 %v519
        %v561 = vunpack.c.l.b16 %v520
        %v562 = vunpack.c.l.b16 %v521
        %v563 = vunpack.c.l.b16 %v522
        %v564 = vunpack.c.l.b16 %v523
        %v565 = vunpack.c.l.b16 %v524
        %v566 = vunpack.c.l.b16 %v525
        %v567 = vunpack.c.l.b16 %v526
        %v568 = vunpack.c.l.b16 %v527
        %v569 = vunpack.c.l.b16 %v528
        %v570 = vunpack.c.l.b16 %v529
        %v571 = vunpack.c.l.b16 %v530
        %v572 = vunpack.c.l.b16 %v531
        %v573 = vunpack.c.l.b16 %v532
        %v574 = vunpack.c.l.b16 %v533
        %v575 = vunpack.c.l.b16 %v534
        %v576 = vpack.c.b16 %v561, %v560
        %v577 = vpack.c.b16 %v563, %v562
        %v578 = vpack.c.b16 %v565, %v564
        %v579 = vpack.c.b16 %v567, %v566
        %v580 = vpack.c.b16 %v569, %v568
        %v581 = vpack.c.b16 %v571, %v570
        %v582 = vpack.c.b16 %v573, %v572
        %v583 = vpack.c.b16 %v575, %v574
        %592 = vmatprep.subr.bf16.mxu0 0
        %593 = vmatpush1.bf16.msra.mxu0 %v576
        %594 = vmatprep.subr.bf16.mxu0 0
        %595 = vmatpush1.bf16.msra.mxu0 %v577
        %596 = vmatprep.subr.bf16.mxu0 0
        %597 = vmatpush1.bf16.msra.mxu0 %v578
        %598 = vmatprep.subr.bf16.mxu0 0
        %599 = vmatpush1.bf16.msra.mxu0 %v579
        %600 = vmatprep.subr.bf16.mxu0 0
        %601 = vmatpush1.bf16.msra.mxu0 %v580
        %602 = vmatprep.subr.bf16.mxu0 0
        %603 = vmatpush1.bf16.msra.mxu0 %v581
        %604 = vmatprep.subr.bf16.mxu0 0
        %605 = vmatpush1.bf16.msra.mxu0 %v582
        %606 = vmatprep.subr.bf16.mxu0 0
        %607 = vmatpush1.bf16.msra.mxu0 %v583
        %608 = vmatprep.subr.bf16.mxu0 0
        %609 = vmatpush1.bf16.msra.mxu0 0
        %610 = vmatprep.subr.bf16.mxu0 0
        %611 = vmatpush1.bf16.msra.mxu0 0
        %612 = vmatprep.subr.bf16.mxu0 0
        %613 = vmatpush1.bf16.msra.mxu0 0
        %614 = vmatprep.subr.bf16.mxu0 0
        %615 = vmatpush1.bf16.msra.mxu0 0
        %616 = vmatprep.subr.bf16.mxu0 0
        %617 = vmatpush1.bf16.msra.mxu0 0
        %618 = vmatprep.subr.bf16.mxu0 0
        %619 = vmatpush1.bf16.msra.mxu0 0
        %620 = vmatprep.subr.bf16.mxu0 0
        %621 = vmatpush1.bf16.msra.mxu0 0
        %622 = vmatprep.subr.bf16.mxu0 0
        %623 = vmatpush1.bf16.msra.mxu0 0
        %624 = vmatprep.mubr.bf16.mxu0 0
        %625 = vmatmul.mubr.bf16.gmra.mrb[0].mxu0 %v541
        %v626 = vpop.f32.mrb[0].mxu0
        %v627 = vadd.f32 0.0, %v626
        %v628 = vpop.f32.mrb[0].mxu0
        %v629 = vpop.f32.mrb[0].mxu0
        %v630 = vadd.f32 0.0, %v629
        %v631 = vpop.f32.mrb[0].mxu0
        %632 = vmatprep.mubr.bf16.mxu0 0
        %633 = vmatmul.mubr.bf16.gmra.mrb[0].mxu0 %v540
        %v634 = vpop.f32.mrb[0].mxu0
        %v635 = vadd.f32 0.0, %v634
        %v636 = vpop.f32.mrb[0].mxu0
        %v637 = vpop.f32.mrb[0].mxu0
        %v638 = vpop.f32.mrb[0].mxu0
        %639 = vdwg.mxu0
        %v640 = vadd.f32 %v504, %v627
        %v641 = vadd.f32 %v507, %v630
        %v642 = vadd.f32 %v512, %v635
        %v643 = vld [vmem:[%s219] sm:$0x8]
        %v644 = vld [vmem:[%s219 + $0xc] sm:$0x7]
        %s645 = scalar_lea.vmem [#allocation5], 192
        %v646 = vld [vmem:[%s645] sm:$0xf]
        %v647 = vld [vmem:[%s645 + $0x4] sm:$0xf]
        %v648 = vld [vmem:[%s645 + $0x8] sm:$0xf]
        %v649 = vld [vmem:[%s645 + $0xc] sm:$0xf]
        %v650 = vld [vmem:[%s645 + $0x10] sm:$0xf]
        %v651 = vld [vmem:[%s645 + $0x14] sm:$0xf]
        %v652 = vld [vmem:[%s645 + $0x18] sm:$0xf]
        %v653 = vld [vmem:[%s645 + $0x1c] sm:$0xf]
        %v654 = vld [vmem:[%s645 + $0x20] sm:$0xf]
        %v655 = vld [vmem:[%s645 + $0x24] sm:$0xf]
        %v656 = vld [vmem:[%s645 + $0x28] sm:$0xf]
        %v657 = vld [vmem:[%s645 + $0x2c] sm:$0xf]
        %v658 = vld [vmem:[%s645 + $0x30] sm:$0xf]
        %v659 = vld [vmem:[%s645 + $0x34] sm:$0xf]
        %v660 = vld [vmem:[%s645 + $0x38] sm:$0xf]
        %v661 = vld [vmem:[%s645 + $0x3c] sm:$0xf]
        %v664 = vunpack.c.l.b16 %v643
        %v665 = vunpack.c.l.b16 %v644
        %v666 = vpack.c.b16 %v299, %v664
        %v667 = vpack.c.b16 %v665, %v300
        %vm668 = vcmask 1044480
        %v669 = vrot.slane %v666, 3
        %v670 = vrot.slane %v667, 3
        %v671 = vsel %vm668, %v669, %v670
        %v690 = vunpack.c.l.b16 %v646
        %v691 = vunpack.c.l.b16 %v647
        %v692 = vunpack.c.l.b16 %v648
        %v693 = vunpack.c.l.b16 %v649
        %v694 = vunpack.c.l.b16 %v650
        %v695 = vunpack.c.l.b16 %v651
        %v696 = vunpack.c.l.b16 %v652
        %v697 = vunpack.c.l.b16 %v653
        %v698 = vunpack.c.l.b16 %v654
        %v699 = vunpack.c.l.b16 %v655
        %v700 = vunpack.c.l.b16 %v656
        %v701 = vunpack.c.l.b16 %v657
        %v702 = vunpack.c.l.b16 %v658
        %v703 = vunpack.c.l.b16 %v659
        %v704 = vunpack.c.l.b16 %v660
        %v705 = vunpack.c.l.b16 %v661
        %v706 = vpack.c.b16 %v691, %v690
        %v707 = vpack.c.b16 %v693, %v692
        %v708 = vpack.c.b16 %v695, %v694
        %v709 = vpack.c.b16 %v697, %v696
        %v710 = vpack.c.b16 %v699, %v698
        %v711 = vpack.c.b16 %v701, %v700
        %v712 = vpack.c.b16 %v703, %v702
        %v713 = vpack.c.b16 %v705, %v704
        %722 = vmatprep.subr.bf16.mxu0 0
        %723 = vmatpush1.bf16.msra.mxu0 %v706
        %724 = vmatprep.subr.bf16.mxu0 0
        %725 = vmatpush1.bf16.msra.mxu0 %v707
        %726 = vmatprep.subr.bf16.mxu0 0
        %727 = vmatpush1.bf16.msra.mxu0 %v708
        %728 = vmatprep.subr.bf16.mxu0 0
        %729 = vmatpush1.bf16.msra.mxu0 %v709
        %730 = vmatprep.subr.bf16.mxu0 0
        %731 = vmatpush1.bf16.msra.mxu0 %v710
        %732 = vmatprep.subr.bf16.mxu0 0
        %733 = vmatpush1.bf16.msra.mxu0 %v711
        %734 = vmatprep.subr.bf16.mxu0 0
        %735 = vmatpush1.bf16.msra.mxu0 %v712
        %736 = vmatprep.subr.bf16.mxu0 0
        %737 = vmatpush1.bf16.msra.mxu0 %v713
        %738 = vmatprep.subr.bf16.mxu0 0
        %739 = vmatpush1.bf16.msra.mxu0 0
        %740 = vmatprep.subr.bf16.mxu0 0
        %741 = vmatpush1.bf16.msra.mxu0 0
        %742 = vmatprep.subr.bf16.mxu0 0
        %743 = vmatpush1.bf16.msra.mxu0 0
        %744 = vmatprep.subr.bf16.mxu0 0
        %745 = vmatpush1.bf16.msra.mxu0 0
        %746 = vmatprep.subr.bf16.mxu0 0
        %747 = vmatpush1.bf16.msra.mxu0 0
        %748 = vmatprep.subr.bf16.mxu0 0
        %749 = vmatpush1.bf16.msra.mxu0 0
        %750 = vmatprep.subr.bf16.mxu0 0
        %751 = vmatpush1.bf16.msra.mxu0 0
        %752 = vmatprep.subr.bf16.mxu0 0
        %753 = vmatpush1.bf16.msra.mxu0 0
        %754 = vmatprep.mubr.bf16.mxu0 0
        %755 = vmatmul.mubr.bf16.gmra.mrb[0].mxu0 %v671
        %v756 = vpop.f32.mrb[0].mxu0
        %v757 = vadd.f32 0.0, %v756
        %v758 = vpop.f32.mrb[0].mxu0
        %v759 = vpop.f32.mrb[0].mxu0
        %v760 = vadd.f32 0.0, %v759
        %v761 = vpop.f32.mrb[0].mxu0
        %762 = vmatprep.mubr.bf16.mxu0 0
        %763 = vmatmul.mubr.bf16.gmra.mrb[0].mxu0 %v670
        %v764 = vpop.f32.mrb[0].mxu0
        %v765 = vadd.f32 0.0, %v764
        %v766 = vpop.f32.mrb[0].mxu0
        %v767 = vpop.f32.mrb[0].mxu0
        %v768 = vpop.f32.mrb[0].mxu0
        %769 = vdwg.mxu0
        %v770 = vadd.f32 %v640, %v757
        %v771 = vadd.f32 %v641, %v760
        %v772 = vadd.f32 %v642, %v765
        %v773 = vld [vmem:[%s219 + $0xc] sm:$0xf]
        %s774 = scalar_lea.vmem [#allocation5], 256
        %v775 = vld [vmem:[%s774] sm:$0xf]
        %v776 = vld [vmem:[%s774 + $0x4] sm:$0xf]
        %v777 = vld [vmem:[%s774 + $0x8] sm:$0xf]
        %v778 = vld [vmem:[%s774 + $0xc] sm:$0xf]
        %v779 = vld [vmem:[%s774 + $0x10] sm:$0xf]
        %v780 = vld [vmem:[%s774 + $0x14] sm:$0xf]
        %v781 = vld [vmem:[%s774 + $0x18] sm:$0xf]
        %v782 = vld [vmem:[%s774 + $0x1c] sm:$0xf]
        %v783 = vld [vmem:[%s774 + $0x20] sm:$0xf]
        %v784 = vld [vmem:[%s774 + $0x24] sm:$0xf]
        %v785 = vld [vmem:[%s774 + $0x28] sm:$0xf]
        %v786 = vld [vmem:[%s774 + $0x2c] sm:$0xf]
        %v787 = vld [vmem:[%s774 + $0x30] sm:$0xf]
        %v788 = vld [vmem:[%s774 + $0x34] sm:$0xf]
        %v789 = vld [vmem:[%s774 + $0x38] sm:$0xf]
        %v790 = vld [vmem:[%s774 + $0x3c] sm:$0xf]
        %v792 = vunpack.c.l.b16 %v773
        %v793 = vpack.c.b16 %v792, %v300
        %vm794 = vsmask.f32 4352
        %v796 = vshrl.u32 %v666, 16
        %v798 = vrot.slane %v796, 3
        %v799 = vshll.u32 %v666, 16
        %v801 = vrot.slane %v799, 4
        %v802 = vor.u32 %v798, %v801
        %v804 = vshrl.u32 %v793, 16
        %v806 = vrot.slane %v804, 3
        %v807 = vshll.u32 %v793, 16
        %v809 = vrot.slane %v807, 4
        %v810 = vor.u32 %v806, %v809
        %v811 = vsel %vm794, %v802, %v810
        %v830 = vunpack.c.l.b16 %v775
        %v831 = vunpack.c.l.b16 %v776
        %v832 = vunpack.c.l.b16 %v777
        %v833 = vunpack.c.l.b16 %v778
        %v834 = vunpack.c.l.b16 %v779
        %v835 = vunpack.c.l.b16 %v780
        %v836 = vunpack.c.l.b16 %v781
        %v837 = vunpack.c.l.b16 %v782
        %v838 = vunpack.c.l.b16 %v783
        %v839 = vunpack.c.l.b16 %v784
        %v840 = vunpack.c.l.b16 %v785
        %v841 = vunpack.c.l.b16 %v786
        %v842 = vunpack.c.l.b16 %v787
        %v843 = vunpack.c.l.b16 %v788
        %v844 = vunpack.c.l.b16 %v789
        %v845 = vunpack.c.l.b16 %v790
        %v846 = vpack.c.b16 %v831, %v830
        %v847 = vpack.c.b16 %v833, %v832
        %v848 = vpack.c.b16 %v835, %v834
        %v849 = vpack.c.b16 %v837, %v836
        %v850 = vpack.c.b16 %v839, %v838
        %v851 = vpack.c.b16 %v841, %v840
        %v852 = vpack.c.b16 %v843, %v842
        %v853 = vpack.c.b16 %v845, %v844
        %862 = vmatprep.subr.bf16.mxu0 0
        %863 = vmatpush1.bf16.msra.mxu0 %v846
        %864 = vmatprep.subr.bf16.mxu0 0
        %865 = vmatpush1.bf16.msra.mxu0 %v847
        %866 = vmatprep.subr.bf16.mxu0 0
        %867 = vmatpush1.bf16.msra.mxu0 %v848
        %868 = vmatprep.subr.bf16.mxu0 0
        %869 = vmatpush1.bf16.msra.mxu0 %v849
        %870 = vmatprep.subr.bf16.mxu0 0
        %871 = vmatpush1.bf16.msra.mxu0 %v850
        %872 = vmatprep.subr.bf16.mxu0 0
        %873 = vmatpush1.bf16.msra.mxu0 %v851
        %874 = vmatprep.subr.bf16.mxu0 0
        %875 = vmatpush1.bf16.msra.mxu0 %v852
        %876 = vmatprep.subr.bf16.mxu0 0
        %877 = vmatpush1.bf16.msra.mxu0 %v853
        %878 = vmatprep.subr.bf16.mxu0 0
        %879 = vmatpush1.bf16.msra.mxu0 0
        %880 = vmatprep.subr.bf16.mxu0 0
        %881 = vmatpush1.bf16.msra.mxu0 0
        %882 = vmatprep.subr.bf16.mxu0 0
        %883 = vmatpush1.bf16.msra.mxu0 0
        %884 = vmatprep.subr.bf16.mxu0 0
        %885 = vmatpush1.bf16.msra.mxu0 0
        %886 = vmatprep.subr.bf16.mxu0 0
        %887 = vmatpush1.bf16.msra.mxu0 0
        %888 = vmatprep.subr.bf16.mxu0 0
        %889 = vmatpush1.bf16.msra.mxu0 0
        %890 = vmatprep.subr.bf16.mxu0 0
        %891 = vmatpush1.bf16.msra.mxu0 0
        %892 = vmatprep.subr.bf16.mxu0 0
        %893 = vmatpush1.bf16.msra.mxu0 0
        %894 = vmatprep.mubr.bf16.mxu0 0
        %895 = vmatmul.mubr.bf16.gmra.mrb[0].mxu0 %v811
        %v896 = vpop.f32.mrb[0].mxu0
        %v897 = vadd.f32 0.0, %v896
        %v898 = vpop.f32.mrb[0].mxu0
        %v899 = vpop.f32.mrb[0].mxu0
        %v900 = vadd.f32 0.0, %v899
        %v901 = vpop.f32.mrb[0].mxu0
        %902 = vmatprep.mubr.bf16.mxu0 0
        %903 = vmatmul.mubr.bf16.gmra.mrb[0].mxu0 %v810
        %v904 = vpop.f32.mrb[0].mxu0
        %v905 = vadd.f32 0.0, %v904
        %v906 = vpop.f32.mrb[0].mxu0
        %v907 = vpop.f32.mrb[0].mxu0
        %v908 = vpop.f32.mrb[0].mxu0
        %909 = vdwg.mxu0
        %v910 = vadd.f32 %v770, %v897
        %v911 = vadd.f32 %v771, %v900
        %v912 = vadd.f32 %v772, %v905
        %s913 = scalar_lea.vmem [#allocation5], 320
        %v914 = vld [vmem:[%s913] sm:$0xf]
        %v915 = vld [vmem:[%s913 + $0x4] sm:$0xf]
        %v916 = vld [vmem:[%s913 + $0x8] sm:$0xf]
        %v917 = vld [vmem:[%s913 + $0xc] sm:$0xf]
        %v918 = vld [vmem:[%s913 + $0x10] sm:$0xf]
        %v919 = vld [vmem:[%s913 + $0x14] sm:$0xf]
        %v920 = vld [vmem:[%s913 + $0x18] sm:$0xf]
        %v921 = vld [vmem:[%s913 + $0x1c] sm:$0xf]
        %v922 = vld [vmem:[%s913 + $0x20] sm:$0xf]
        %v923 = vld [vmem:[%s913 + $0x24] sm:$0xf]
        %v924 = vld [vmem:[%s913 + $0x28] sm:$0xf]
        %v925 = vld [vmem:[%s913 + $0x2c] sm:$0xf]
        %v926 = vld [vmem:[%s913 + $0x30] sm:$0xf]
        %v927 = vld [vmem:[%s913 + $0x34] sm:$0xf]
        %v928 = vld [vmem:[%s913 + $0x38] sm:$0xf]
        %v929 = vld [vmem:[%s913 + $0x3c] sm:$0xf]
        %v930 = vpack.c.b16 %v300, %v299
        %v931 = vpack.c.b16 %v792, %v792
        %v950 = vunpack.c.l.b16 %v914
        %v951 = vunpack.c.l.b16 %v915
        %v952 = vunpack.c.l.b16 %v916
        %v953 = vunpack.c.l.b16 %v917
        %v954 = vunpack.c.l.b16 %v918
        %v955 = vunpack.c.l.b16 %v919
        %v956 = vunpack.c.l.b16 %v920
        %v957 = vunpack.c.l.b16 %v921
        %v958 = vunpack.c.l.b16 %v922
        %v959 = vunpack.c.l.b16 %v923
        %v960 = vunpack.c.l.b16 %v924
        %v961 = vunpack.c.l.b16 %v925
        %v962 = vunpack.c.l.b16 %v926
        %v963 = vunpack.c.l.b16 %v927
        %v964 = vunpack.c.l.b16 %v928
        %v965 = vunpack.c.l.b16 %v929
        %v966 = vpack.c.b16 %v951, %v950
        %v967 = vpack.c.b16 %v953, %v952
        %v968 = vpack.c.b16 %v955, %v954
        %v969 = vpack.c.b16 %v957, %v956
        %v970 = vpack.c.b16 %v959, %v958
        %v971 = vpack.c.b16 %v961, %v960
        %v972 = vpack.c.b16 %v963, %v962
        %v973 = vpack.c.b16 %v965, %v964
        %982 = vmatprep.subr.bf16.mxu0 0
        %983 = vmatpush1.bf16.msra.mxu0 %v966
        %984 = vmatprep.subr.bf16.mxu0 0
        %985 = vmatpush1.bf16.msra.mxu0 %v967
        %986 = vmatprep.subr.bf16.mxu0 0
        %987 = vmatpush1.bf16.msra.mxu0 %v968
        %988 = vmatprep.subr.bf16.mxu0 0
        %989 = vmatpush1.bf16.msra.mxu0 %v969
        %990 = vmatprep.subr.bf16.mxu0 0
        %991 = vmatpush1.bf16.msra.mxu0 %v970
        %992 = vmatprep.subr.bf16.mxu0 0
        %993 = vmatpush1.bf16.msra.mxu0 %v971
        %994 = vmatprep.subr.bf16.mxu0 0
        %995 = vmatpush1.bf16.msra.mxu0 %v972
        %996 = vmatprep.subr.bf16.mxu0 0
        %997 = vmatpush1.bf16.msra.mxu0 %v973
        %998 = vmatprep.subr.bf16.mxu0 0
        %999 = vmatpush1.bf16.msra.mxu0 0
        %1000 = vmatprep.subr.bf16.mxu0 0
        %1001 = vmatpush1.bf16.msra.mxu0 0
        %1002 = vmatprep.subr.bf16.mxu0 0
        %1003 = vmatpush1.bf16.msra.mxu0 0
        %1004 = vmatprep.subr.bf16.mxu0 0
        %1005 = vmatpush1.bf16.msra.mxu0 0
        %1006 = vmatprep.subr.bf16.mxu0 0
        %1007 = vmatpush1.bf16.msra.mxu0 0
        %1008 = vmatprep.subr.bf16.mxu0 0
        %1009 = vmatpush1.bf16.msra.mxu0 0
        %1010 = vmatprep.subr.bf16.mxu0 0
        %1011 = vmatpush1.bf16.msra.mxu0 0
        %1012 = vmatprep.subr.bf16.mxu0 0
        %1013 = vmatpush1.bf16.msra.mxu0 0
        %1014 = vmatprep.mubr.bf16.mxu0 0
        %1015 = vmatmul.mubr.bf16.gmra.mrb[0].mxu0 %v930
        %v1016 = vpop.f32.mrb[0].mxu0
        %v1017 = vadd.f32 0.0, %v1016
        %v1018 = vpop.f32.mrb[0].mxu0
        %v1019 = vpop.f32.mrb[0].mxu0
        %v1020 = vadd.f32 0.0, %v1019
        %v1021 = vpop.f32.mrb[0].mxu0
        %1022 = vmatprep.mubr.bf16.mxu0 0
        %1023 = vmatmul.mubr.bf16.gmra.mrb[0].mxu0 %v931
        %v1024 = vpop.f32.mrb[0].mxu0
        %v1025 = vadd.f32 0.0, %v1024
        %v1026 = vpop.f32.mrb[0].mxu0
        %v1027 = vpop.f32.mrb[0].mxu0
        %v1028 = vpop.f32.mrb[0].mxu0
        %1029 = vdwg.mxu0
        %v1030 = vadd.f32 %v910, %v1017
        %v1031 = vadd.f32 %v911, %v1020
        %v1032 = vadd.f32 %v912, %v1025
        %v1033 = vld [vmem:[%s219 + $0x4] sm:$0xc]
        %v1034 = vld [vmem:[%s219 + $0x8] sm:$0xf]
        %v1035 = vld [vmem:[%s219 + $0xc] sm:$0xf]
        %v1036 = vld [vmem:[%s219 + $0x10] sm:$0x3]
        %s1037 = scalar_lea.vmem [#allocation5], 384
        %v1038 = vld [vmem:[%s1037] sm:$0xf]
        %v1039 = vld [vmem:[%s1037 + $0x4] sm:$0xf]
        %v1040 = vld [vmem:[%s1037 + $0x8] sm:$0xf]
        %v1041 = vld [vmem:[%s1037 + $0xc] sm:$0xf]
        %v1042 = vld [vmem:[%s1037 + $0x10] sm:$0xf]
        %v1043 = vld [vmem:[%s1037 + $0x14] sm:$0xf]
        %v1044 = vld [vmem:[%s1037 + $0x18] sm:$0xf]
        %v1045 = vld [vmem:[%s1037 + $0x1c] sm:$0xf]
        %v1046 = vld [vmem:[%s1037 + $0x20] sm:$0xf]
        %v1047 = vld [vmem:[%s1037 + $0x24] sm:$0xf]
        %v1048 = vld [vmem:[%s1037 + $0x28] sm:$0xf]
        %v1049 = vld [vmem:[%s1037 + $0x2c] sm:$0xf]
        %v1050 = vld [vmem:[%s1037 + $0x30] sm:$0xf]
        %v1051 = vld [vmem:[%s1037 + $0x34] sm:$0xf]
        %v1052 = vld [vmem:[%s1037 + $0x38] sm:$0xf]
        %v1053 = vld [vmem:[%s1037 + $0x3c] sm:$0xf]
        %v1058 = vunpack.c.l.b16 %v1033
        %v1059 = vunpack.c.l.b16 %v1034
        %v1060 = vunpack.c.l.b16 %v1035
        %v1061 = vunpack.c.l.b16 %v1036
        %v1062 = vpack.c.b16 %v1059, %v1058
        %v1063 = vpack.c.b16 %v1061, %v1060
        %vm1064 = vcmask 1045504
        %v1065 = vrot.slane %v1062, 2
        %v1066 = vrot.slane %v1063, 2
        %v1067 = vsel %vm1064, %v1065, %v1066
        %v1086 = vunpack.c.l.b16 %v1038
        %v1087 = vunpack.c.l.b16 %v1039
        %v1088 = vunpack.c.l.b16 %v1040
        %v1089 = vunpack.c.l.b16 %v1041
        %v1090 = vunpack.c.l.b16 %v1042
        %v1091 = vunpack.c.l.b16 %v1043
        %v1092 = vunpack.c.l.b16 %v1044
        %v1093 = vunpack.c.l.b16 %v1045
        %v1094 = vunpack.c.l.b16 %v1046
        %v1095 = vunpack.c.l.b16 %v1047
        %v1096 = vunpack.c.l.b16 %v1048
        %v1097 = vunpack.c.l.b16 %v1049
        %v1098 = vunpack.c.l.b16 %v1050
        %v1099 = vunpack.c.l.b16 %v1051
        %v1100 = vunpack.c.l.b16 %v1052
        %v1101 = vunpack.c.l.b16 %v1053
        %v1102 = vpack.c.b16 %v1087, %v1086
        %v1103 = vpack.c.b16 %v1089, %v1088
        %v1104 = vpack.c.b16 %v1091, %v1090
        %v1105 = vpack.c.b16 %v1093, %v1092
        %v1106 = vpack.c.b16 %v1095, %v1094
        %v1107 = vpack.c.b16 %v1097, %v1096
        %v1108 = vpack.c.b16 %v1099, %v1098
        %v1109 = vpack.c.b16 %v1101, %v1100
        %1118 = vmatprep.subr.bf16.mxu0 0
        %1119 = vmatpush1.bf16.msra.mxu0 %v1102
        %1120 = vmatprep.subr.bf16.mxu0 0
        %1121 = vmatpush1.bf16.msra.mxu0 %v1103
        %1122 = vmatprep.subr.bf16.mxu0 0
        %1123 = vmatpush1.bf16.msra.mxu0 %v1104
        %1124 = vmatprep.subr.bf16.mxu0 0
        %1125 = vmatpush1.bf16.msra.mxu0 %v1105
        %1126 = vmatprep.subr.bf16.mxu0 0
        %1127 = vmatpush1.bf16.msra.mxu0 %v1106
        %1128 = vmatprep.subr.bf16.mxu0 0
        %1129 = vmatpush1.bf16.msra.mxu0 %v1107
        %1130 = vmatprep.subr.bf16.mxu0 0
        %1131 = vmatpush1.bf16.msra.mxu0 %v1108
        %1132 = vmatprep.subr.bf16.mxu0 0
        %1133 = vmatpush1.bf16.msra.mxu0 %v1109
        %1134 = vmatprep.subr.bf16.mxu0 0
        %1135 = vmatpush1.bf16.msra.mxu0 0
        %1136 = vmatprep.subr.bf16.mxu0 0
        %1137 = vmatpush1.bf16.msra.mxu0 0
        %1138 = vmatprep.subr.bf16.mxu0 0
        %1139 = vmatpush1.bf16.msra.mxu0 0
        %1140 = vmatprep.subr.bf16.mxu0 0
        %1141 = vmatpush1.bf16.msra.mxu0 0
        %1142 = vmatprep.subr.bf16.mxu0 0
        %1143 = vmatpush1.bf16.msra.mxu0 0
        %1144 = vmatprep.subr.bf16.mxu0 0
        %1145 = vmatpush1.bf16.msra.mxu0 0
        %1146 = vmatprep.subr.bf16.mxu0 0
        %1147 = vmatpush1.bf16.msra.mxu0 0
        %1148 = vmatprep.subr.bf16.mxu0 0
        %1149 = vmatpush1.bf16.msra.mxu0 0
        %1150 = vmatprep.mubr.bf16.mxu0 0
        %1151 = vmatmul.mubr.bf16.gmra.mrb[0].mxu0 %v1067
        %v1152 = vpop.f32.mrb[0].mxu0
        %v1153 = vadd.f32 0.0, %v1152
        %v1154 = vpop.f32.mrb[0].mxu0
        %v1155 = vpop.f32.mrb[0].mxu0
        %v1156 = vadd.f32 0.0, %v1155
        %v1157 = vpop.f32.mrb[0].mxu0
        %1158 = vmatprep.mubr.bf16.mxu0 0
        %1159 = vmatmul.mubr.bf16.gmra.mrb[0].mxu0 %v1066
        %v1160 = vpop.f32.mrb[0].mxu0
        %v1161 = vadd.f32 0.0, %v1160
        %v1162 = vpop.f32.mrb[0].mxu0
        %v1163 = vpop.f32.mrb[0].mxu0
        %v1164 = vpop.f32.mrb[0].mxu0
        %1165 = vdwg.mxu0
        %v1166 = vadd.f32 %v1030, %v1153
        %v1167 = vadd.f32 %v1031, %v1156
        %v1168 = vadd.f32 %v1032, %v1161
        %v1169 = vld [vmem:[%s219 + $0x10] sm:$0x7]
        %s1170 = scalar_lea.vmem [#allocation5], 448
        %v1171 = vld [vmem:[%s1170] sm:$0xf]
        %v1172 = vld [vmem:[%s1170 + $0x4] sm:$0xf]
        %v1173 = vld [vmem:[%s1170 + $0x8] sm:$0xf]
        %v1174 = vld [vmem:[%s1170 + $0xc] sm:$0xf]
        %v1175 = vld [vmem:[%s1170 + $0x10] sm:$0xf]
        %v1176 = vld [vmem:[%s1170 + $0x14] sm:$0xf]
        %v1177 = vld [vmem:[%s1170 + $0x18] sm:$0xf]
        %v1178 = vld [vmem:[%s1170 + $0x1c] sm:$0xf]
        %v1179 = vld [vmem:[%s1170 + $0x20] sm:$0xf]
        %v1180 = vld [vmem:[%s1170 + $0x24] sm:$0xf]
        %v1181 = vld [vmem:[%s1170 + $0x28] sm:$0xf]
        %v1182 = vld [vmem:[%s1170 + $0x2c] sm:$0xf]
        %v1183 = vld [vmem:[%s1170 + $0x30] sm:$0xf]
        %v1184 = vld [vmem:[%s1170 + $0x34] sm:$0xf]
        %v1185 = vld [vmem:[%s1170 + $0x38] sm:$0xf]
        %v1186 = vld [vmem:[%s1170 + $0x3c] sm:$0xf]
        %v1188 = vunpack.c.l.b16 %v1169
        %v1189 = vpack.c.b16 %v1188, %v1060
        %vm1190 = vsmask.f32 5376
        %v1192 = vshrl.u32 %v1062, 16
        %v1194 = vrot.slane %v1192, 2
        %v1195 = vshll.u32 %v1062, 16
        %v1197 = vrot.slane %v1195, 3
        %v1198 = vor.u32 %v1194, %v1197
        %v1200 = vshrl.u32 %v1189, 16
        %v1202 = vrot.slane %v1200, 2
        %v1203 = vshll.u32 %v1189, 16
        %v1205 = vrot.slane %v1203, 3
        %v1206 = vor.u32 %v1202, %v1205
        %v1207 = vsel %vm1190, %v1198, %v1206
        %v1226 = vunpack.c.l.b16 %v1171
        %v1227 = vunpack.c.l.b16 %v1172
        %v1228 = vunpack.c.l.b16 %v1173
        %v1229 = vunpack.c.l.b16 %v1174
        %v1230 = vunpack.c.l.b16 %v1175
        %v1231 = vunpack.c.l.b16 %v1176
        %v1232 = vunpack.c.l.b16 %v1177
        %v1233 = vunpack.c.l.b16 %v1178
        %v1234 = vunpack.c.l.b16 %v1179
        %v1235 = vunpack.c.l.b16 %v1180
        %v1236 = vunpack.c.l.b16 %v1181
        %v1237 = vunpack.c.l.b16 %v1182
        %v1238 = vunpack.c.l.b16 %v1183
        %v1239 = vunpack.c.l.b16 %v1184
        %v1240 = vunpack.c.l.b16 %v1185
        %v1241 = vunpack.c.l.b16 %v1186
        %v1242 = vpack.c.b16 %v1227, %v1226
        %v1243 = vpack.c.b16 %v1229, %v1228
        %v1244 = vpack.c.b16 %v1231, %v1230
        %v1245 = vpack.c.b16 %v1233, %v1232
        %v1246 = vpack.c.b16 %v1235, %v1234
        %v1247 = vpack.c.b16 %v1237, %v1236
        %v1248 = vpack.c.b16 %v1239, %v1238
        %v1249 = vpack.c.b16 %v1241, %v1240
        %1258 = vmatprep.subr.bf16.mxu0 0
        %1259 = vmatpush1.bf16.msra.mxu0 %v1242
        %1260 = vmatprep.subr.bf16.mxu0 0
        %1261 = vmatpush1.bf16.msra.mxu0 %v1243
        %1262 = vmatprep.subr.bf16.mxu0 0
        %1263 = vmatpush1.bf16.msra.mxu0 %v1244
        %1264 = vmatprep.subr.bf16.mxu0 0
        %1265 = vmatpush1.bf16.msra.mxu0 %v1245
        %1266 = vmatprep.subr.bf16.mxu0 0
        %1267 = vmatpush1.bf16.msra.mxu0 %v1246
        %1268 = vmatprep.subr.bf16.mxu0 0
        %1269 = vmatpush1.bf16.msra.mxu0 %v1247
        %1270 = vmatprep.subr.bf16.mxu0 0
        %1271 = vmatpush1.bf16.msra.mxu0 %v1248
        %1272 = vmatprep.subr.bf16.mxu0 0
        %1273 = vmatpush1.bf16.msra.mxu0 %v1249
        %1274 = vmatprep.subr.bf16.mxu0 0
        %1275 = vmatpush1.bf16.msra.mxu0 0
        %1276 = vmatprep.subr.bf16.mxu0 0
        %1277 = vmatpush1.bf16.msra.mxu0 0
        %1278 = vmatprep.subr.bf16.mxu0 0
        %1279 = vmatpush1.bf16.msra.mxu0 0
        %1280 = vmatprep.subr.bf16.mxu0 0
        %1281 = vmatpush1.bf16.msra.mxu0 0
        %1282 = vmatprep.subr.bf16.mxu0 0
        %1283 = vmatpush1.bf16.msra.mxu0 0
        %1284 = vmatprep.subr.bf16.mxu0 0
        %1285 = vmatpush1.bf16.msra.mxu0 0
        %1286 = vmatprep.subr.bf16.mxu0 0
        %1287 = vmatpush1.bf16.msra.mxu0 0
        %1288 = vmatprep.subr.bf16.mxu0 0
        %1289 = vmatpush1.bf16.msra.mxu0 0
        %1290 = vmatprep.mubr.bf16.mxu0 0
        %1291 = vmatmul.mubr.bf16.gmra.mrb[0].mxu0 %v1207
        %v1292 = vpop.f32.mrb[0].mxu0
        %v1293 = vadd.f32 0.0, %v1292
        %v1294 = vpop.f32.mrb[0].mxu0
        %v1295 = vpop.f32.mrb[0].mxu0
        %v1296 = vadd.f32 0.0, %v1295
        %v1297 = vpop.f32.mrb[0].mxu0
        %1298 = vmatprep.mubr.bf16.mxu0 0
        %1299 = vmatmul.mubr.bf16.gmra.mrb[0].mxu0 %v1206
        %v1300 = vpop.f32.mrb[0].mxu0
        %v1301 = vadd.f32 0.0, %v1300
        %v1302 = vpop.f32.mrb[0].mxu0
        %v1303 = vpop.f32.mrb[0].mxu0
        %v1304 = vpop.f32.mrb[0].mxu0
        %1305 = vdwg.mxu0
        %v1306 = vadd.f32 %v1166, %v1293
        %v1307 = vadd.f32 %v1167, %v1296
        %v1308 = vadd.f32 %v1168, %v1301
        %v1309 = vld [vmem:[%s219 + $0x4] sm:$0x8]
        %s1310 = scalar_lea.vmem [#allocation5], 512
        %v1311 = vld [vmem:[%s1310] sm:$0xf]
        %v1312 = vld [vmem:[%s1310 + $0x4] sm:$0xf]
        %v1313 = vld [vmem:[%s1310 + $0x8] sm:$0xf]
        %v1314 = vld [vmem:[%s1310 + $0xc] sm:$0xf]
        %v1315 = vld [vmem:[%s1310 + $0x10] sm:$0xf]
        %v1316 = vld [vmem:[%s1310 + $0x14] sm:$0xf]
        %v1317 = vld [vmem:[%s1310 + $0x18] sm:$0xf]
        %v1318 = vld [vmem:[%s1310 + $0x1c] sm:$0xf]
        %v1319 = vld [vmem:[%s1310 + $0x20] sm:$0xf]
        %v1320 = vld [vmem:[%s1310 + $0x24] sm:$0xf]
        %v1321 = vld [vmem:[%s1310 + $0x28] sm:$0xf]
        %v1322 = vld [vmem:[%s1310 + $0x2c] sm:$0xf]
        %v1323 = vld [vmem:[%s1310 + $0x30] sm:$0xf]
        %v1324 = vld [vmem:[%s1310 + $0x34] sm:$0xf]
        %v1325 = vld [vmem:[%s1310 + $0x38] sm:$0xf]
        %v1326 = vld [vmem:[%s1310 + $0x3c] sm:$0xf]
        %v1328 = vunpack.c.l.b16 %v1309
        %v1329 = vpack.c.b16 %v1059, %v1328
        %v1330 = vrot.slane %v1329, 3
        %v1331 = vrot.slane %v1189, 3
        %v1332 = vsel %vm668, %v1330, %v1331
        %v1351 = vunpack.c.l.b16 %v1311
        %v1352 = vunpack.c.l.b16 %v1312
        %v1353 = vunpack.c.l.b16 %v1313
        %v1354 = vunpack.c.l.b16 %v1314
        %v1355 = vunpack.c.l.b16 %v1315
        %v1356 = vunpack.c.l.b16 %v1316
        %v1357 = vunpack.c.l.b16 %v1317
        %v1358 = vunpack.c.l.b16 %v1318
        %v1359 = vunpack.c.l.b16 %v1319
        %v1360 = vunpack.c.l.b16 %v1320
        %v1361 = vunpack.c.l.b16 %v1321
        %v1362 = vunpack.c.l.b16 %v1322
        %v1363 = vunpack.c.l.b16 %v1323
        %v1364 = vunpack.c.l.b16 %v1324
        %v1365 = vunpack.c.l.b16 %v1325
        %v1366 = vunpack.c.l.b16 %v1326
        %v1367 = vpack.c.b16 %v1352, %v1351
        %v1368 = vpack.c.b16 %v1354, %v1353
        %v1369 = vpack.c.b16 %v1356, %v1355
        %v1370 = vpack.c.b16 %v1358, %v1357
        %v1371 = vpack.c.b16 %v1360, %v1359
        %v1372 = vpack.c.b16 %v1362, %v1361
        %v1373 = vpack.c.b16 %v1364, %v1363
        %v1374 = vpack.c.b16 %v1366, %v1365
        %1383 = vmatprep.subr.bf16.mxu0 0
        %1384 = vmatpush1.bf16.msra.mxu0 %v1367
        %1385 = vmatprep.subr.bf16.mxu0 0
        %1386 = vmatpush1.bf16.msra.mxu0 %v1368
        %1387 = vmatprep.subr.bf16.mxu0 0
        %1388 = vmatpush1.bf16.msra.mxu0 %v1369
        %1389 = vmatprep.subr.bf16.mxu0 0
        %1390 = vmatpush1.bf16.msra.mxu0 %v1370
        %1391 = vmatprep.subr.bf16.mxu0 0
        %1392 = vmatpush1.bf16.msra.mxu0 %v1371
        %1393 = vmatprep.subr.bf16.mxu0 0
        %1394 = vmatpush1.bf16.msra.mxu0 %v1372
        %1395 = vmatprep.subr.bf16.mxu0 0
        %1396 = vmatpush1.bf16.msra.mxu0 %v1373
        %1397 = vmatprep.subr.bf16.mxu0 0
        %1398 = vmatpush1.bf16.msra.mxu0 %v1374
        %1399 = vmatprep.subr.bf16.mxu0 0
        %1400 = vmatpush1.bf16.msra.mxu0 0
        %1401 = vmatprep.subr.bf16.mxu0 0
        %1402 = vmatpush1.bf16.msra.mxu0 0
        %1403 = vmatprep.subr.bf16.mxu0 0
        %1404 = vmatpush1.bf16.msra.mxu0 0
        %1405 = vmatprep.subr.bf16.mxu0 0
        %1406 = vmatpush1.bf16.msra.mxu0 0
        %1407 = vmatprep.subr.bf16.mxu0 0
        %1408 = vmatpush1.bf16.msra.mxu0 0
        %1409 = vmatprep.subr.bf16.mxu0 0
        %1410 = vmatpush1.bf16.msra.mxu0 0
        %1411 = vmatprep.subr.bf16.mxu0 0
        %1412 = vmatpush1.bf16.msra.mxu0 0
        %1413 = vmatprep.subr.bf16.mxu0 0
        %1414 = vmatpush1.bf16.msra.mxu0 0
        %1415 = vmatprep.mubr.bf16.mxu0 0
        %1416 = vmatmul.mubr.bf16.gmra.mrb[0].mxu0 %v1332
        %v1417 = vpop.f32.mrb[0].mxu0
        %v1418 = vadd.f32 0.0, %v1417
        %v1419 = vpop.f32.mrb[0].mxu0
        %v1420 = vpop.f32.mrb[0].mxu0
        %v1421 = vadd.f32 0.0, %v1420
        %v1422 = vpop.f32.mrb[0].mxu0
        %1423 = vmatprep.mubr.bf16.mxu0 0
        %1424 = vmatmul.mubr.bf16.gmra.mrb[0].mxu0 %v1331
        %v1425 = vpop.f32.mrb[0].mxu0
        %v1426 = vadd.f32 0.0, %v1425
        %v1427 = vpop.f32.mrb[0].mxu0
        %v1428 = vpop.f32.mrb[0].mxu0
        %v1429 = vpop.f32.mrb[0].mxu0
        %1430 = vdwg.mxu0
        %v1431 = vadd.f32 %v1306, %v1418
        %v1432 = vadd.f32 %v1307, %v1421
        %v1433 = vadd.f32 %v1308, %v1426
        %v1434 = vld [vmem:[#allocation7] sm:$0x1]
        %v1436 = vlaneseq
        %v1437 = vshrl.u32 %v1436, 7
        %v1438 = vsub.s32 0, %v1437
        %v1439 = vrot.slane %v1434, %v1438
        %v1441 = vmul.f32 %v1431, %v1439
        %v1442 = vmul.f32 %v1432, %v1439
        %v1443 = vmul.f32 %v1433, %v1439
        %v1444 = vld [vmem:[#allocation8] sm:$0x1]
        %v1446 = vlaneseq
        %v1447 = vshrl.u32 %v1446, 7
        %v1448 = vsub.s32 0, %v1447
        %v1449 = vrot.slane %v1444, %v1448
        %v1451 = vadd.f32 %v1441, %v1449
        %v1452 = vadd.f32 %v1442, %v1449
        %v1453 = vadd.f32 %v1443, %v1449
        %v1454 = vmax.f32 %v1451, 0.0
        %v1455 = vmax.f32 %v1452, 0.0
        %v1456 = vmax.f32 %v1453, 0.0
        %v1457 = vpack.c.bf16 %v1455, %v1454
        %v1458 = vpack.c.bf16 %v1456, %v1456
        %v1461 = vunpack.c.l.b16 %v1457
        %v1462 = vunpack.c.h.b16 %v1457
        %v1463 = vunpack.c.l.b16 %v1458
        %v1464 = vpack.c.b16 %v1461, %v1461
        %v1465 = vpack.c.b16 %v1462, %v1462
        %v1466 = vpack.c.b16 %v1463, %v1463
        %1470 = vst [vmem:[%s255] sm:$0xf] %v1464
        %1471 = vst [vmem:[%s255 + $0x4] sm:$0xf] %v1465
        %1472 = vst [vmem:[%s255 + $0x8] sm:$0xf] %v1466
        %s1473 = sand.u32 %s120, 1
        %s1474 = scalar_lea.sflag [#allocation4], %s1473
        %s1475 = sand.u32 %s120, 1
        %s1476 = smul.addr %s1475, 12
        %s1477 = scalar_lea.vmem [#allocation10], %s1476
        // Predicated region
        $region53: #{resnext_forward.19} parent=35 // pred_check
          %p1478 = pneg %p130
        $region54: #{resnext_forward.19} parent=35 // pred_check_branch
          %1480 = sbr.rel (%p1478) target = $region56
        $region55: #{resnext_forward.19} parent=35 // pred_region
          %s1482 = ssub.s32 192, 192
          %1483 = vsyncadd %s1474, %s1482
          %s1484 = smul.addr %s23, 3
          %s1485 = smul.addr %s1484, 64
          %s1486 = scalar_lea.hbm %s4, %s1485
          %s1487 = sshll.u32 %s1477, 4
          %s1488 = int_to_ptr.vmem [resolvable:$true] %s1487
          %1493 = dma.vmem_to_hbm [thread:$0]  %s1488, 192, %s1486, %s1474, 64, 64, 4
        $region56: #{resnext_forward.19} parent=35 // pred_fallthru
          _
      $region36: #{resnext_forward.19} parent=5 // pred_fallthru
        _
      %p1494 = scmp.le.s32.totalorder 2, %s18
      // Predicated region
      $region57: #{resnext_forward.19} parent=5 // pred_check
        %p1495 = pneg %p1494
      $region58: #{resnext_forward.19} parent=5 // pred_check_branch
        %1497 = sbr.rel (%p1495) target = $region60
      $region59: #{resnext_forward.19} parent=5 // pred_region
        %s1498 = ssub.s32 %s18, 2
        // Predicated region
        $region61: #{resnext_forward.19} parent=59 // pred_check
          %p1499 = pneg %p136
        $region62: #{resnext_forward.19} parent=59 // pred_check_branch
          %1501 = sbr.rel (%p1499) target = $region64
        $region63: #{resnext_forward.19} parent=59 // pred_region
          %s1502 = sand.u32 %s121, 1
          %s1503 = scalar_lea.sflag [#allocation4], %s1502
          %s1504 = sand.u32 %s121, 1
          %s1505 = smul.addr %s1504, 12
          %s1506 = scalar_lea.vmem [#allocation10], %s1505
          %1507 = dma.done %s1503, 192
        $region64: #{resnext_forward.19} parent=59 // pred_fallthru
          _
      $region60: #{resnext_forward.19} parent=5 // pred_fallthru
        _
    $region6: #{resnext_forward.19} parent=1 // loop_footer
      %s22 = sadd.s32 1, %s18
    $region7: #{resnext_forward.19} parent=1 // loop_footer_branch
      %17 = sbr.rel target = $region3
    $region8: #{resnext_forward.19} parent=1 // loop_exit
      _
    %1508 = vsyncpa [#allocation3], 1
    %s1509 = scalar_lea.sflag [#allocation3], 1
    %1510 = vsyncpa %s1509, 1
    %1511 = vsyncpa [#allocation6], 1
    %1512 = vsyncpa [#allocation9], 1
    %1513 = vsyncpa [#allocation4], 1
    %s1514 = scalar_lea.sflag [#allocation4], 1
    %1515 = vsyncpa %s1514, 1

// kernel: resnext_forward.24
$region0: #{resnext_forward.24}
  #allocation0 [shape = 'u32[]', space=smem, size = 0x4, offset = 0x4, fixed_abs, tag = 'smem constant byte address 0x4 - core index']
  #allocation1 [shape = 'u32[144,128]{1,0:T(1,128)}', space=vmem, size = 0x12000, scoped, tag = 'internal scratch']
  #allocation2 [shape = 'f32[8,128]{1,0:T(8,128)}', space=vmem, size = 0x1000, scoped, tag = 'scratch operand']
  %s0 = inlined_call_operand.hbm [shape: bf16[8,128], index: 0, kind: input, shape index: {}]
  %s1 = inlined_call_operand.hbm [shape: bf16[128,128], index: 1, kind: input, shape index: {}]
  %s2 = inlined_call_operand.hbm [shape: f32[1,128], index: 2, kind: input, shape index: {}]
  %s3 = inlined_call_operand.hbm [shape: f32[1,128], index: 3, kind: input, shape index: {}]
  %s4 = inlined_call_operand.hbm [shape: bf16[8,128], index: 4, kind: input, shape index: {}]
  %s5 = inlined_call_operand.hbm [shape: bf16[8,128], index: 5, kind: output, shape index: {}]
  %s6 = sld [smem:[#allocation0]]
  $region58: #{resnext_forward.24} parent=0
    _
  %s8 = ssub.s32 1, %s6
  %s9 = scalar_select 0, %s8, %s6
  $region1: #{resnext_forward.24} parent=0
    #allocation3 [shape = 'u8[2048]{0}', space=vmem, size = 0x800, scoped, tag = 'input window, operand 0, single buffered']
    #allocation4 [shape = 's32[1]{0}', space=sflag, size = 0x4, scoped, tag = 'scoped memory for resnext_forward.24']
    #allocation5 [shape = 's32[1]{0}', space=sflag, size = 0x4, scoped, tag = 'scoped memory for resnext_forward.24']
    #allocation6 [shape = 'u8[32768]{0}', space=vmem, size = 0x8000, scoped, tag = 'input window, operand 1, single buffered']
    #allocation7 [shape = 's32[1]{0}', space=sflag, size = 0x4, scoped, tag = 'scoped memory for resnext_forward.24']
    #allocation8 [shape = 'u8[512]{0}', space=vmem, size = 0x400, scoped, tag = 'input window, operand 2, single buffered']
    #allocation9 [shape = 'u8[512]{0}', space=vmem, size = 0x400, scoped, tag = 'input window, operand 3, single buffered']
    #allocation10 [shape = 's32[1]{0}', space=sflag, size = 0x4, scoped, tag = 'scoped memory for resnext_forward.24']
    #allocation11 [shape = 'u8[2048]{0}', space=vmem, size = 0x800, scoped, tag = 'input window, operand 4, single buffered']
    #allocation12 [shape = 'u8[2048]{0}', space=vmem, size = 0x800, scoped, tag = 'output window, operand 0, single buffered']
    %10 = vsyncpa [#allocation4], 0
    %11 = vsyncpa [#allocation7], 0
    %12 = vsyncpa [#allocation10], 0
    %13 = vsyncpa [#allocation5], 0
    // Predicated region
    $region2: #{resnext_forward.24} parent=1 // pred_check
      _
    $region3: #{resnext_forward.24} parent=1 // pred_check_branch
      %15 = sbr.rel (0) target = $region5
    $region4: #{resnext_forward.24} parent=1 // pred_region
      %s17 = ssub.s32 64, 64
      %18 = vsyncadd [#allocation4], %s17
      %s20 = sshll.u32 [#allocation3], 4
      %s21 = int_to_ptr.vmem [resolvable:$true] %s20
      %23 = dma.hbm_to_vmem [thread:$0]  %s0, 64, %s21, [#allocation4]
    $region5: #{resnext_forward.24} parent=1 // pred_fallthru
      _
    // Predicated region
    $region6: #{resnext_forward.24} parent=1 // pred_check
      _
    $region7: #{resnext_forward.24} parent=1 // pred_check_branch
      %25 = sbr.rel (0) target = $region9
    $region8: #{resnext_forward.24} parent=1 // pred_region
      %s27 = ssub.s32 1024, 1024
      %28 = vsyncadd [#allocation7], %s27
      %s29 = sshll.u32 [#allocation6], 4
      %s30 = int_to_ptr.vmem [resolvable:$true] %s29
      %35 = dma.hbm_to_vmem [thread:$0]  %s1, 1024, %s30, [#allocation7], 64, 64, 4
    $region9: #{resnext_forward.24} parent=1 // pred_fallthru
      _
    // Predicated region
    $region10: #{resnext_forward.24} parent=1 // pred_check
      _
    $region11: #{resnext_forward.24} parent=1 // pred_check_branch
      %37 = sbr.rel (0) target = $region13
    $region12: #{resnext_forward.24} parent=1 // pred_region
      %s39 = ssub.s32 16, 16
      %40 = vsyncadd [#allocation7], %s39
      %s42 = sshll.u32 [#allocation8], 4
      %s43 = int_to_ptr.vmem [resolvable:$true] %s42
      %45 = dma.hbm_to_vmem [thread:$0]  %s2, 16, %s43, [#allocation7]
    $region13: #{resnext_forward.24} parent=1 // pred_fallthru
      _
    // Predicated region
    $region14: #{resnext_forward.24} parent=1 // pred_check
      _
    $region15: #{resnext_forward.24} parent=1 // pred_check_branch
      %47 = sbr.rel (0) target = $region17
    $region16: #{resnext_forward.24} parent=1 // pred_region
      %s49 = ssub.s32 16, 16
      %50 = vsyncadd [#allocation10], %s49
      %s52 = sshll.u32 [#allocation9], 4
      %s53 = int_to_ptr.vmem [resolvable:$true] %s52
      %55 = dma.hbm_to_vmem [thread:$0]  %s3, 16, %s53, [#allocation10]
    $region17: #{resnext_forward.24} parent=1 // pred_fallthru
      _
    // Predicated region
    $region18: #{resnext_forward.24} parent=1 // pred_check
      _
    $region19: #{resnext_forward.24} parent=1 // pred_check_branch
      %57 = sbr.rel (0) target = $region21
    $region20: #{resnext_forward.24} parent=1 // pred_region
      %s59 = ssub.s32 64, 64
      %60 = vsyncadd [#allocation10], %s59
      %s62 = sshll.u32 [#allocation11], 4
      %s63 = int_to_ptr.vmem [resolvable:$true] %s62
      %65 = dma.hbm_to_vmem [thread:$0]  %s4, 64, %s63, [#allocation10]
    $region21: #{resnext_forward.24} parent=1 // pred_fallthru
      _
    // Predicated region
    $region22: #{resnext_forward.24} parent=1 // pred_check
      _
    $region23: #{resnext_forward.24} parent=1 // pred_check_branch
      %67 = sbr.rel (0) target = $region25
    $region24: #{resnext_forward.24} parent=1 // pred_region
      %68 = dma.done [#allocation4], 64
    $region25: #{resnext_forward.24} parent=1 // pred_fallthru
      _
    // Predicated region
    $region26: #{resnext_forward.24} parent=1 // pred_check
      _
    $region27: #{resnext_forward.24} parent=1 // pred_check_branch
      %70 = sbr.rel (0) target = $region29
    $region28: #{resnext_forward.24} parent=1 // pred_region
      %71 = dma.done [#allocation7], 1024
    $region29: #{resnext_forward.24} parent=1 // pred_fallthru
      _
    // Predicated region
    $region30: #{resnext_forward.24} parent=1 // pred_check
      _
    $region31: #{resnext_forward.24} parent=1 // pred_check_branch
      %73 = sbr.rel (0) target = $region33
    $region32: #{resnext_forward.24} parent=1 // pred_region
      %74 = dma.done [#allocation7], 16
    $region33: #{resnext_forward.24} parent=1 // pred_fallthru
      _
    // Predicated region
    $region34: #{resnext_forward.24} parent=1 // pred_check
      _
    $region35: #{resnext_forward.24} parent=1 // pred_check_branch
      %76 = sbr.rel (0) target = $region37
    $region36: #{resnext_forward.24} parent=1 // pred_region
      %77 = dma.done [#allocation10], 16
    $region37: #{resnext_forward.24} parent=1 // pred_fallthru
      _
    // Predicated region
    $region38: #{resnext_forward.24} parent=1 // pred_check
      _
    $region39: #{resnext_forward.24} parent=1 // pred_check_branch
      %79 = sbr.rel (0) target = $region41
    $region40: #{resnext_forward.24} parent=1 // pred_region
      %80 = dma.done [#allocation10], 64
    $region41: #{resnext_forward.24} parent=1 // pred_fallthru
      _
    %p82 = scmp.eq.s32.totalorder 0, 0
    // Predicated region
    $region42: #{resnext_forward.24} parent=1 // pred_check
      %p83 = pneg %p82
    $region43: #{resnext_forward.24} parent=1 // pred_check_branch
      %85 = sbr.rel (%p83) target = $region45
    $region44: #{resnext_forward.24} parent=1 // pred_region
      %86 = vst [vmem:[#allocation2] sm:$0xff] 0.0
    $region45: #{resnext_forward.24} parent=1 // pred_fallthru
      _
    %v87 = vld [vmem:[#allocation2] sm:$0xff]
    %v88 = vld [vmem:[#allocation3] sm:$0xf]
    %v89 = vld [vmem:[#allocation6] sm:$0xf]
    %v90 = vld [vmem:[#allocation6 + $0x4] sm:$0xf]
    %v91 = vld [vmem:[#allocation6 + $0x8] sm:$0xf]
    %v92 = vld [vmem:[#allocation6 + $0xc] sm:$0xf]
    %v93 = vld [vmem:[#allocation6 + $0x10] sm:$0xf]
    %v94 = vld [vmem:[#allocation6 + $0x14] sm:$0xf]
    %v95 = vld [vmem:[#allocation6 + $0x18] sm:$0xf]
    %v96 = vld [vmem:[#allocation6 + $0x1c] sm:$0xf]
    %v97 = vld [vmem:[#allocation6 + $0x20] sm:$0xf]
    %v98 = vld [vmem:[#allocation6 + $0x24] sm:$0xf]
    %v99 = vld [vmem:[#allocation6 + $0x28] sm:$0xf]
    %v100 = vld [vmem:[#allocation6 + $0x2c] sm:$0xf]
    %v101 = vld [vmem:[#allocation6 + $0x30] sm:$0xf]
    %v102 = vld [vmem:[#allocation6 + $0x34] sm:$0xf]
    %v103 = vld [vmem:[#allocation6 + $0x38] sm:$0xf]
    %v104 = vld [vmem:[#allocation6 + $0x3c] sm:$0xf]
    %v121 = vunpack.c.l.b16 %v89
    %v122 = vunpack.c.l.b16 %v90
    %v123 = vunpack.c.l.b16 %v91
    %v124 = vunpack.c.l.b16 %v92
    %v125 = vunpack.c.l.b16 %v93
    %v126 = vunpack.c.l.b16 %v94
    %v127 = vunpack.c.l.b16 %v95
    %v128 = vunpack.c.l.b16 %v96
    %v129 = vunpack.c.l.b16 %v97
    %v130 = vunpack.c.l.b16 %v98
    %v131 = vunpack.c.l.b16 %v99
    %v132 = vunpack.c.l.b16 %v100
    %v133 = vunpack.c.l.b16 %v101
    %v134 = vunpack.c.l.b16 %v102
    %v135 = vunpack.c.l.b16 %v103
    %v136 = vunpack.c.l.b16 %v104
    %v137 = vpack.c.b16 %v122, %v121
    %v138 = vpack.c.b16 %v124, %v123
    %v139 = vpack.c.b16 %v126, %v125
    %v140 = vpack.c.b16 %v128, %v127
    %v141 = vpack.c.b16 %v130, %v129
    %v142 = vpack.c.b16 %v132, %v131
    %v143 = vpack.c.b16 %v134, %v133
    %v144 = vpack.c.b16 %v136, %v135
    %153 = vmatprep.subr.bf16.mxu0 0
    %154 = vmatpush1.bf16.msra.mxu0 %v137
    %155 = vmatprep.subr.bf16.mxu0 0
    %156 = vmatpush1.bf16.msra.mxu0 %v138
    %157 = vmatprep.subr.bf16.mxu0 0
    %158 = vmatpush1.bf16.msra.mxu0 %v139
    %159 = vmatprep.subr.bf16.mxu0 0
    %160 = vmatpush1.bf16.msra.mxu0 %v140
    %161 = vmatprep.subr.bf16.mxu0 0
    %162 = vmatpush1.bf16.msra.mxu0 %v141
    %163 = vmatprep.subr.bf16.mxu0 0
    %164 = vmatpush1.bf16.msra.mxu0 %v142
    %165 = vmatprep.subr.bf16.mxu0 0
    %166 = vmatpush1.bf16.msra.mxu0 %v143
    %167 = vmatprep.subr.bf16.mxu0 0
    %168 = vmatpush1.bf16.msra.mxu0 %v144
    %169 = vmatprep.subr.bf16.mxu0 0
    %170 = vmatpush1.bf16.msra.mxu0 0
    %171 = vmatprep.subr.bf16.mxu0 0
    %172 = vmatpush1.bf16.msra.mxu0 0
    %173 = vmatprep.subr.bf16.mxu0 0
    %174 = vmatpush1.bf16.msra.mxu0 0
    %175 = vmatprep.subr.bf16.mxu0 0
    %176 = vmatpush1.bf16.msra.mxu0 0
    %177 = vmatprep.subr.bf16.mxu0 0
    %178 = vmatpush1.bf16.msra.mxu0 0
    %179 = vmatprep.subr.bf16.mxu0 0
    %180 = vmatpush1.bf16.msra.mxu0 0
    %181 = vmatprep.subr.bf16.mxu0 0
    %182 = vmatpush1.bf16.msra.mxu0 0
    %183 = vmatprep.subr.bf16.mxu0 0
    %184 = vmatpush1.bf16.msra.mxu0 0
    %185 = vmatprep.mubr.bf16.mxu0 0
    %186 = vmatmul.mubr.bf16.gmra.mrb[0].mxu0 %v88
    %v187 = vpop.f32.mrb[0].mxu0
    %v188 = vadd.f32 0.0, %v187
    %v189 = vpop.f32.mrb[0].mxu0
    %v190 = vpop.f32.mrb[0].mxu0
    %v191 = vpop.f32.mrb[0].mxu0
    %192 = vdwg.mxu0
    %v193 = vadd.f32 %v87, %v188
    %194 = vst [vmem:[#allocation2] sm:$0xff] %v193
    // Predicated region
    $region46: #{resnext_forward.24} parent=1 // pred_check
      %p195 = pneg %p82
    $region47: #{resnext_forward.24} parent=1 // pred_check_branch
      %197 = sbr.rel (%p195) target = $region49
    $region48: #{resnext_forward.24} parent=1 // pred_region
      %v198 = vld [vmem:[#allocation2] sm:$0xff]
      %v199 = vld [vmem:[#allocation8] sm:$0x1]
      %v201 = vlaneseq
      %v202 = vshrl.u32 %v201, 7
      %v203 = vsub.s32 0, %v202
      %v204 = vrot.slane %v199, %v203
      %v206 = vmul.f32 %v198, %v204
      %v207 = vld [vmem:[#allocation9] sm:$0x1]
      %v209 = vlaneseq
      %v210 = vshrl.u32 %v209, 7
      %v211 = vsub.s32 0, %v210
      %v212 = vrot.slane %v207, %v211
      %v214 = vadd.f32 %v206, %v212
      %v215 = vld [vmem:[#allocation11] sm:$0xf]
      %v216 = vunpack.c.l.bf16 %v215
      %v217 = vadd.f32 %v214, %v216
      %v218 = vmax.f32 %v217, 0.0
      %v219 = vpack.c.bf16 %v218, %v218
      %220 = vst [vmem:[#allocation12] sm:$0xf] %v219
    $region49: #{resnext_forward.24} parent=1 // pred_fallthru
      _
    // Predicated region
    $region50: #{resnext_forward.24} parent=1 // pred_check
      _
    $region51: #{resnext_forward.24} parent=1 // pred_check_branch
      %222 = sbr.rel (0) target = $region53
    $region52: #{resnext_forward.24} parent=1 // pred_region
      %s224 = ssub.s32 64, 64
      %225 = vsyncadd [#allocation5], %s224
      %s227 = sshll.u32 [#allocation12], 4
      %s228 = int_to_ptr.vmem [resolvable:$true] %s227
      %230 = dma.vmem_to_hbm [thread:$0]  %s228, 64, %s5, [#allocation5]
    $region53: #{resnext_forward.24} parent=1 // pred_fallthru
      _
    // Predicated region
    $region54: #{resnext_forward.24} parent=1 // pred_check
      _
    $region55: #{resnext_forward.24} parent=1 // pred_check_branch
      %232 = sbr.rel (0) target = $region57
    $region56: #{resnext_forward.24} parent=1 // pred_region
      %233 = dma.done [#allocation5], 64
    $region57: #{resnext_forward.24} parent=1 // pred_fallthru
      _
    %234 = vsyncpa [#allocation4], 1
    %235 = vsyncpa [#allocation7], 1
    %236 = vsyncpa [#allocation10], 1
    %237 = vsyncpa [#allocation5], 1

// kernel: resnext_forward.21
$region0: #{resnext_forward.21}
  #allocation0 [shape = 'u32[]', space=smem, size = 0x4, offset = 0x4, fixed_abs, tag = 'smem constant byte address 0x4 - core index']
  #allocation1 [shape = 'u32[144,128]{1,0:T(1,128)}', space=vmem, size = 0x12000, scoped, tag = 'internal scratch']
  #allocation2 [shape = 'f32[8,128]{1,0:T(8,128)}', space=vmem, size = 0x1000, scoped, tag = 'scratch operand']
  %s0 = inlined_call_operand.hbm [shape: bf16[8,128], index: 0, kind: input, shape index: {}]
  %s1 = inlined_call_operand.hbm [shape: bf16[128,128], index: 1, kind: input, shape index: {}]
  %s2 = inlined_call_operand.hbm [shape: f32[1,128], index: 2, kind: input, shape index: {}]
  %s3 = inlined_call_operand.hbm [shape: f32[1,128], index: 3, kind: input, shape index: {}]
  %s4 = inlined_call_operand.hbm [shape: bf16[8,128], index: 4, kind: output, shape index: {}]
  %s5 = sld [smem:[#allocation0]]
  $region50: #{resnext_forward.21} parent=0
    _
  %s7 = ssub.s32 1, %s5
  %s8 = scalar_select 0, %s7, %s5
  $region1: #{resnext_forward.21} parent=0
    #allocation3 [shape = 'u8[2048]{0}', space=vmem, size = 0x800, scoped, tag = 'input window, operand 0, single buffered']
    #allocation4 [shape = 's32[1]{0}', space=sflag, size = 0x4, scoped, tag = 'scoped memory for resnext_forward.21']
    #allocation5 [shape = 's32[1]{0}', space=sflag, size = 0x4, scoped, tag = 'scoped memory for resnext_forward.21']
    #allocation6 [shape = 'u8[32768]{0}', space=vmem, size = 0x8000, scoped, tag = 'input window, operand 1, single buffered']
    #allocation7 [shape = 's32[1]{0}', space=sflag, size = 0x4, scoped, tag = 'scoped memory for resnext_forward.21']
    #allocation8 [shape = 'u8[512]{0}', space=vmem, size = 0x400, scoped, tag = 'input window, operand 2, single buffered']
    #allocation9 [shape = 'u8[512]{0}', space=vmem, size = 0x400, scoped, tag = 'input window, operand 3, single buffered']
    #allocation10 [shape = 's32[1]{0}', space=sflag, size = 0x4, scoped, tag = 'scoped memory for resnext_forward.21']
    #allocation11 [shape = 'u8[2048]{0}', space=vmem, size = 0x800, scoped, tag = 'output window, operand 0, single buffered']
    %9 = vsyncpa [#allocation4], 0
    %10 = vsyncpa [#allocation7], 0
    %11 = vsyncpa [#allocation10], 0
    %12 = vsyncpa [#allocation5], 0
    // Predicated region
    $region2: #{resnext_forward.21} parent=1 // pred_check
      _
    $region3: #{resnext_forward.21} parent=1 // pred_check_branch
      %14 = sbr.rel (0) target = $region5
    $region4: #{resnext_forward.21} parent=1 // pred_region
      %s16 = ssub.s32 64, 64
      %17 = vsyncadd [#allocation4], %s16
      %s19 = sshll.u32 [#allocation3], 4
      %s20 = int_to_ptr.vmem [resolvable:$true] %s19
      %22 = dma.hbm_to_vmem [thread:$0]  %s0, 64, %s20, [#allocation4]
    $region5: #{resnext_forward.21} parent=1 // pred_fallthru
      _
    // Predicated region
    $region6: #{resnext_forward.21} parent=1 // pred_check
      _
    $region7: #{resnext_forward.21} parent=1 // pred_check_branch
      %24 = sbr.rel (0) target = $region9
    $region8: #{resnext_forward.21} parent=1 // pred_region
      %s26 = ssub.s32 1024, 1024
      %27 = vsyncadd [#allocation7], %s26
      %s28 = sshll.u32 [#allocation6], 4
      %s29 = int_to_ptr.vmem [resolvable:$true] %s28
      %34 = dma.hbm_to_vmem [thread:$0]  %s1, 1024, %s29, [#allocation7], 64, 64, 4
    $region9: #{resnext_forward.21} parent=1 // pred_fallthru
      _
    // Predicated region
    $region10: #{resnext_forward.21} parent=1 // pred_check
      _
    $region11: #{resnext_forward.21} parent=1 // pred_check_branch
      %36 = sbr.rel (0) target = $region13
    $region12: #{resnext_forward.21} parent=1 // pred_region
      %s38 = ssub.s32 16, 16
      %39 = vsyncadd [#allocation7], %s38
      %s41 = sshll.u32 [#allocation8], 4
      %s42 = int_to_ptr.vmem [resolvable:$true] %s41
      %44 = dma.hbm_to_vmem [thread:$0]  %s2, 16, %s42, [#allocation7]
    $region13: #{resnext_forward.21} parent=1 // pred_fallthru
      _
    // Predicated region
    $region14: #{resnext_forward.21} parent=1 // pred_check
      _
    $region15: #{resnext_forward.21} parent=1 // pred_check_branch
      %46 = sbr.rel (0) target = $region17
    $region16: #{resnext_forward.21} parent=1 // pred_region
      %s48 = ssub.s32 16, 16
      %49 = vsyncadd [#allocation10], %s48
      %s51 = sshll.u32 [#allocation9], 4
      %s52 = int_to_ptr.vmem [resolvable:$true] %s51
      %54 = dma.hbm_to_vmem [thread:$0]  %s3, 16, %s52, [#allocation10]
    $region17: #{resnext_forward.21} parent=1 // pred_fallthru
      _
    // Predicated region
    $region18: #{resnext_forward.21} parent=1 // pred_check
      _
    $region19: #{resnext_forward.21} parent=1 // pred_check_branch
      %56 = sbr.rel (0) target = $region21
    $region20: #{resnext_forward.21} parent=1 // pred_region
      %57 = dma.done [#allocation4], 64
    $region21: #{resnext_forward.21} parent=1 // pred_fallthru
      _
    // Predicated region
    $region22: #{resnext_forward.21} parent=1 // pred_check
      _
    $region23: #{resnext_forward.21} parent=1 // pred_check_branch
      %59 = sbr.rel (0) target = $region25
    $region24: #{resnext_forward.21} parent=1 // pred_region
      %60 = dma.done [#allocation7], 1024
    $region25: #{resnext_forward.21} parent=1 // pred_fallthru
      _
    // Predicated region
    $region26: #{resnext_forward.21} parent=1 // pred_check
      _
    $region27: #{resnext_forward.21} parent=1 // pred_check_branch
      %62 = sbr.rel (0) target = $region29
    $region28: #{resnext_forward.21} parent=1 // pred_region
      %63 = dma.done [#allocation7], 16
    $region29: #{resnext_forward.21} parent=1 // pred_fallthru
      _
    // Predicated region
    $region30: #{resnext_forward.21} parent=1 // pred_check
      _
    $region31: #{resnext_forward.21} parent=1 // pred_check_branch
      %65 = sbr.rel (0) target = $region33
    $region32: #{resnext_forward.21} parent=1 // pred_region
      %66 = dma.done [#allocation10], 16
    $region33: #{resnext_forward.21} parent=1 // pred_fallthru
      _
    %p68 = scmp.eq.s32.totalorder 0, 0
    // Predicated region
    $region34: #{resnext_forward.21} parent=1 // pred_check
      %p69 = pneg %p68
    $region35: #{resnext_forward.21} parent=1 // pred_check_branch
      %71 = sbr.rel (%p69) target = $region37
    $region36: #{resnext_forward.21} parent=1 // pred_region
      %72 = vst [vmem:[#allocation2] sm:$0xff] 0.0
    $region37: #{resnext_forward.21} parent=1 // pred_fallthru
      _
    %v73 = vld [vmem:[#allocation2] sm:$0xff]
    %v74 = vld [vmem:[#allocation3] sm:$0xf]
    %v75 = vld [vmem:[#allocation6] sm:$0xf]
    %v76 = vld [vmem:[#allocation6 + $0x4] sm:$0xf]
    %v77 = vld [vmem:[#allocation6 + $0x8] sm:$0xf]
    %v78 = vld [vmem:[#allocation6 + $0xc] sm:$0xf]
    %v79 = vld [vmem:[#allocation6 + $0x10] sm:$0xf]
    %v80 = vld [vmem:[#allocation6 + $0x14] sm:$0xf]
    %v81 = vld [vmem:[#allocation6 + $0x18] sm:$0xf]
    %v82 = vld [vmem:[#allocation6 + $0x1c] sm:$0xf]
    %v83 = vld [vmem:[#allocation6 + $0x20] sm:$0xf]
    %v84 = vld [vmem:[#allocation6 + $0x24] sm:$0xf]
    %v85 = vld [vmem:[#allocation6 + $0x28] sm:$0xf]
    %v86 = vld [vmem:[#allocation6 + $0x2c] sm:$0xf]
    %v87 = vld [vmem:[#allocation6 + $0x30] sm:$0xf]
    %v88 = vld [vmem:[#allocation6 + $0x34] sm:$0xf]
    %v89 = vld [vmem:[#allocation6 + $0x38] sm:$0xf]
    %v90 = vld [vmem:[#allocation6 + $0x3c] sm:$0xf]
    %v107 = vunpack.c.l.b16 %v75
    %v108 = vunpack.c.l.b16 %v76
    %v109 = vunpack.c.l.b16 %v77
    %v110 = vunpack.c.l.b16 %v78
    %v111 = vunpack.c.l.b16 %v79
    %v112 = vunpack.c.l.b16 %v80
    %v113 = vunpack.c.l.b16 %v81
    %v114 = vunpack.c.l.b16 %v82
    %v115 = vunpack.c.l.b16 %v83
    %v116 = vunpack.c.l.b16 %v84
    %v117 = vunpack.c.l.b16 %v85
    %v118 = vunpack.c.l.b16 %v86
    %v119 = vunpack.c.l.b16 %v87
    %v120 = vunpack.c.l.b16 %v88
    %v121 = vunpack.c.l.b16 %v89
    %v122 = vunpack.c.l.b16 %v90
    %v123 = vpack.c.b16 %v108, %v107
    %v124 = vpack.c.b16 %v110, %v109
    %v125 = vpack.c.b16 %v112, %v111
    %v126 = vpack.c.b16 %v114, %v113
    %v127 = vpack.c.b16 %v116, %v115
    %v128 = vpack.c.b16 %v118, %v117
    %v129 = vpack.c.b16 %v120, %v119
    %v130 = vpack.c.b16 %v122, %v121
    %139 = vmatprep.subr.bf16.mxu0 0
    %140 = vmatpush1.bf16.msra.mxu0 %v123
    %141 = vmatprep.subr.bf16.mxu0 0
    %142 = vmatpush1.bf16.msra.mxu0 %v124
    %143 = vmatprep.subr.bf16.mxu0 0
    %144 = vmatpush1.bf16.msra.mxu0 %v125
    %145 = vmatprep.subr.bf16.mxu0 0
    %146 = vmatpush1.bf16.msra.mxu0 %v126
    %147 = vmatprep.subr.bf16.mxu0 0
    %148 = vmatpush1.bf16.msra.mxu0 %v127
    %149 = vmatprep.subr.bf16.mxu0 0
    %150 = vmatpush1.bf16.msra.mxu0 %v128
    %151 = vmatprep.subr.bf16.mxu0 0
    %152 = vmatpush1.bf16.msra.mxu0 %v129
    %153 = vmatprep.subr.bf16.mxu0 0
    %154 = vmatpush1.bf16.msra.mxu0 %v130
    %155 = vmatprep.subr.bf16.mxu0 0
    %156 = vmatpush1.bf16.msra.mxu0 0
    %157 = vmatprep.subr.bf16.mxu0 0
    %158 = vmatpush1.bf16.msra.mxu0 0
    %159 = vmatprep.subr.bf16.mxu0 0
    %160 = vmatpush1.bf16.msra.mxu0 0
    %161 = vmatprep.subr.bf16.mxu0 0
    %162 = vmatpush1.bf16.msra.mxu0 0
    %163 = vmatprep.subr.bf16.mxu0 0
    %164 = vmatpush1.bf16.msra.mxu0 0
    %165 = vmatprep.subr.bf16.mxu0 0
    %166 = vmatpush1.bf16.msra.mxu0 0
    %167 = vmatprep.subr.bf16.mxu0 0
    %168 = vmatpush1.bf16.msra.mxu0 0
    %169 = vmatprep.subr.bf16.mxu0 0
    %170 = vmatpush1.bf16.msra.mxu0 0
    %171 = vmatprep.mubr.bf16.mxu0 0
    %172 = vmatmul.mubr.bf16.gmra.mrb[0].mxu0 %v74
    %v173 = vpop.f32.mrb[0].mxu0
    %v174 = vadd.f32 0.0, %v173
    %v175 = vpop.f32.mrb[0].mxu0
    %v176 = vpop.f32.mrb[0].mxu0
    %v177 = vpop.f32.mrb[0].mxu0
    %178 = vdwg.mxu0
    %v179 = vadd.f32 %v73, %v174
    %180 = vst [vmem:[#allocation2] sm:$0xff] %v179
    // Predicated region
    $region38: #{resnext_forward.21} parent=1 // pred_check
      %p181 = pneg %p68
    $region39: #{resnext_forward.21} parent=1 // pred_check_branch
      %183 = sbr.rel (%p181) target = $region41
    $region40: #{resnext_forward.21} parent=1 // pred_region
      %v184 = vld [vmem:[#allocation2] sm:$0xff]
      %v185 = vld [vmem:[#allocation8] sm:$0x1]
      %v187 = vlaneseq
      %v188 = vshrl.u32 %v187, 7
      %v189 = vsub.s32 0, %v188
      %v190 = vrot.slane %v185, %v189
      %v192 = vmul.f32 %v184, %v190
      %v193 = vld [vmem:[#allocation9] sm:$0x1]
      %v195 = vlaneseq
      %v196 = vshrl.u32 %v195, 7
      %v197 = vsub.s32 0, %v196
      %v198 = vrot.slane %v193, %v197
      %v200 = vadd.f32 %v192, %v198
      %v201 = vpack.c.bf16 %v200, %v200
      %202 = vst [vmem:[#allocation11] sm:$0xf] %v201
    $region41: #{resnext_forward.21} parent=1 // pred_fallthru
      _
    // Predicated region
    $region42: #{resnext_forward.21} parent=1 // pred_check
      _
    $region43: #{resnext_forward.21} parent=1 // pred_check_branch
      %204 = sbr.rel (0) target = $region45
    $region44: #{resnext_forward.21} parent=1 // pred_region
      %s206 = ssub.s32 64, 64
      %207 = vsyncadd [#allocation5], %s206
      %s209 = sshll.u32 [#allocation11], 4
      %s210 = int_to_ptr.vmem [resolvable:$true] %s209
      %212 = dma.vmem_to_hbm [thread:$0]  %s210, 64, %s4, [#allocation5]
    $region45: #{resnext_forward.21} parent=1 // pred_fallthru
      _
    // Predicated region
    $region46: #{resnext_forward.21} parent=1 // pred_check
      _
    $region47: #{resnext_forward.21} parent=1 // pred_check_branch
      %214 = sbr.rel (0) target = $region49
    $region48: #{resnext_forward.21} parent=1 // pred_region
      %215 = dma.done [#allocation5], 64
    $region49: #{resnext_forward.21} parent=1 // pred_fallthru
      _
    %216 = vsyncpa [#allocation4], 1
    %217 = vsyncpa [#allocation7], 1
    %218 = vsyncpa [#allocation10], 1
    %219 = vsyncpa [#allocation5], 1

// kernel: resnext_forward.23
$region0: #{resnext_forward.23}
  #allocation0 [shape = 'u32[]', space=smem, size = 0x4, offset = 0x4, fixed_abs, tag = 'smem constant byte address 0x4 - core index']
  #allocation1 [shape = 'u32[144,128]{1,0:T(1,128)}', space=vmem, size = 0x12000, scoped, tag = 'internal scratch']
  %s0 = inlined_call_operand.hbm [shape: bf16[2,4,12,128], index: 0, kind: input, shape index: {}]
  %s1 = inlined_call_operand.hbm [shape: bf16[9,128,128], index: 1, kind: input, shape index: {}]
  %s2 = inlined_call_operand.hbm [shape: f32[1,128], index: 2, kind: input, shape index: {}]
  %s3 = inlined_call_operand.hbm [shape: f32[1,128], index: 3, kind: input, shape index: {}]
  %s4 = inlined_call_operand.hbm [shape: bf16[2,6,128], index: 4, kind: output, shape index: {}]
  %s5 = sld [smem:[#allocation0]]
  $region65: #{resnext_forward.23} parent=0
    _
  %s7 = ssub.s32 1, %s5
  %s8 = scalar_select 0, %s7, %s5
  $region1: #{resnext_forward.23} parent=0
    #allocation2 [shape = 'u8[32768]{0}', space=vmem, size = 0x8000, scoped, tag = 'input window, operand 0']
    #allocation3 [shape = 's32[2]{0}', space=sflag, size = 0x8, scoped, tag = 'scoped memory for resnext_forward.23']
    #allocation4 [shape = 's32[2]{0}', space=sflag, size = 0x8, scoped, tag = 'scoped memory for resnext_forward.23']
    #allocation5 [shape = 'u8[294912]{0}', space=vmem, size = 0x48000, scoped, tag = 'input window, operand 1, single buffered']
    #allocation6 [shape = 's32[1]{0}', space=sflag, size = 0x4, scoped, tag = 'scoped memory for resnext_forward.23']
    #allocation7 [shape = 'u8[512]{0}', space=vmem, size = 0x400, scoped, tag = 'input window, operand 2, single buffered']
    #allocation8 [shape = 'u8[512]{0}', space=vmem, size = 0x400, scoped, tag = 'input window, operand 3, single buffered']
    #allocation9 [shape = 's32[1]{0}', space=sflag, size = 0x4, scoped, tag = 'scoped memory for resnext_forward.23']
    #allocation10 [shape = 'u8[4096]{0}', space=vmem, size = 0x1000, scoped, tag = 'output window, operand 0']
    %9 = vsyncpa [#allocation3], 0
    %s10 = scalar_lea.sflag [#allocation3], 1
    %11 = vsyncpa %s10, 0
    %12 = vsyncpa [#allocation6], 0
    %13 = vsyncpa [#allocation9], 0
    %14 = vsyncpa [#allocation4], 0
    %s15 = scalar_lea.sflag [#allocation4], 1
    %16 = vsyncpa %s15, 0
    loop: start=0, step=1, limit=4
    $region2: #{resnext_forward.23} parent=1 // loop_pre_header
      _
    $region3: #{resnext_forward.23} parent=1 // loop_header
      %s18 = sphi 0, %s22
      %p19 = scmp.ge.s32.totalorder %s18, 4
      %s28 = sphi 0, %s30
      %s31 = sphi 0, %s28
      %s32 = sphi 0, %s31
      %s48 = sphi 0, %s32
      %s52 = sphi 0, %s52
      %s54 = sphi 0, %s52
      %s55 = sphi 0, %s54
      %s69 = sphi 0, %s55
      %s73 = sphi 0, %s73
      %s75 = sphi 0, %s73
      %s76 = sphi 0, %s75
      %s90 = sphi 0, %s76
      %s94 = sphi 0, %s94
      %s96 = sphi 0, %s94
      %s97 = sphi 0, %s96
      %s111 = sphi 0, %s97
      %s117 = sphi 0, %s119
      %s120 = sphi 0, %s117
      %s121 = sphi 0, %s120
      %s137 = sphi 0, %s121
    $region4: #{resnext_forward.23} parent=1 // loop_header_branch
      %21 = sbr.rel (%p19) target = $region8
    $region5: #{resnext_forward.23} parent=1 // loop_body
      %s23 = ssub.s32 %s18, 1
      %s24 = ssub.s32 %s18, 2
      %s25 = sadd.s32 %s18, 1
      %s26 = ssub.s32 %s18, %s25
      %p27 = scmp.eq.s32.totalorder %s26, 0
      %s29 = sadd.s32 %s28, 1
      %s30 = scalar_select %p27, %s28, %s29
      %p33 = pneg %p27
      %p34 = scmp.eq.s32.totalorder %s18, 1
      %p35 = por %p33, %p34
      %p36 = scmp.ne.s32.totalorder %s28, %s31
      %p37 = scmp.eq.s32.totalorder %s18, 0
      %p38 = por %p36, %p37
      %p39 = scmp.ne.s32.totalorder %s28, %s31
      %p40 = scmp.eq.s32.totalorder %s23, 1
      %p41 = por %p39, %p40
      %p42 = scmp.ne.s32.totalorder %s31, %s32
      %p43 = scmp.eq.s32.totalorder %s23, 0
      %p44 = por %p42, %p43
      %p45 = scmp.ne.s32.totalorder %s31, %s32
      %p46 = scmp.eq.s32.totalorder %s24, 1
      %p47 = por %p45, %p46
      %p49 = scmp.ne.s32.totalorder %s32, %s48
      %p50 = scmp.eq.s32.totalorder %s24, 0
      %p51 = por %p49, %p50
      %s53 = sadd.s32 %s52, 1
      %p56 = scmp.eq.s32.totalorder %s18, 1
      %p57 = scmp.ne.s32.totalorder %s52, %s54
      %p58 = scmp.eq.s32.totalorder %s18, 0
      %p59 = por %p57, %p58
      %p60 = scmp.ne.s32.totalorder %s52, %s54
      %p61 = scmp.eq.s32.totalorder %s23, 1
      %p62 = por %p60, %p61
      %p63 = scmp.ne.s32.totalorder %s54, %s55
      %p64 = scmp.eq.s32.totalorder %s23, 0
      %p65 = por %p63, %p64
      %p66 = scmp.ne.s32.totalorder %s54, %s55
      %p67 = scmp.eq.s32.totalorder %s24, 1
      %p68 = por %p66, %p67
      %p70 = scmp.ne.s32.totalorder %s55, %s69
      %p71 = scmp.eq.s32.totalorder %s24, 0
      %p72 = por %p70, %p71
      %s74 = sadd.s32 %s73, 1
      %p77 = scmp.eq.s32.totalorder %s18, 1
      %p78 = scmp.ne.s32.totalorder %s73, %s75
      %p79 = scmp.eq.s32.totalorder %s18, 0
      %p80 = por %p78, %p79
      %p81 = scmp.ne.s32.totalorder %s73, %s75
      %p82 = scmp.eq.s32.totalorder %s23, 1
      %p83 = por %p81, %p82
      %p84 = scmp.ne.s32.totalorder %s75, %s76
      %p85 = scmp.eq.s32.totalorder %s23, 0
      %p86 = por %p84, %p85
      %p87 = scmp.ne.s32.totalorder %s75, %s76
      %p88 = scmp.eq.s32.totalorder %s24, 1
      %p89 = por %p87, %p88
      %p91 = scmp.ne.s32.totalorder %s76, %s90
      %p92 = scmp.eq.s32.totalorder %s24, 0
      %p93 = por %p91, %p92
      %s95 = sadd.s32 %s94, 1
      %p98 = scmp.eq.s32.totalorder %s18, 1
      %p99 = scmp.ne.s32.totalorder %s94, %s96
      %p100 = scmp.eq.s32.totalorder %s18, 0
      %p101 = por %p99, %p100
      %p102 = scmp.ne.s32.totalorder %s94, %s96
      %p103 = scmp.eq.s32.totalorder %s23, 1
      %p104 = por %p102, %p103
      %p105 = scmp.ne.s32.totalorder %s96, %s97
      %p106 = scmp.eq.s32.totalorder %s23, 0
      %p107 = por %p105, %p106
      %p108 = scmp.ne.s32.totalorder %s96, %s97
      %p109 = scmp.eq.s32.totalorder %s24, 1
      %p110 = por %p108, %p109
      %p112 = scmp.ne.s32.totalorder %s97, %s111
      %p113 = scmp.eq.s32.totalorder %s24, 0
      %p114 = por %p112, %p113
      %s115 = ssub.s32 %s18, %s25
      %p116 = scmp.eq.s32.totalorder %s115, 0
      %s118 = sadd.s32 %s117, 1
      %s119 = scalar_select %p116, %s117, %s118
      %p122 = pneg %p116
      %p123 = scmp.eq.s32.totalorder %s18, 1
      %p124 = por %p122, %p123
      %p125 = scmp.ne.s32.totalorder %s117, %s120
      %p126 = scmp.eq.s32.totalorder %s18, 0
      %p127 = por %p125, %p126
      %p128 = scmp.ne.s32.totalorder %s117, %s120
      %p129 = scmp.eq.s32.totalorder %s23, 1
      %p130 = por %p128, %p129
      %p131 = scmp.ne.s32.totalorder %s120, %s121
      %p132 = scmp.eq.s32.totalorder %s23, 0
      %p133 = por %p131, %p132
      %p134 = scmp.ne.s32.totalorder %s120, %s121
      %p135 = scmp.eq.s32.totalorder %s24, 1
      %p136 = por %p134, %p135
      %p138 = scmp.ne.s32.totalorder %s121, %s137
      %p139 = scmp.eq.s32.totalorder %s24, 0
      %p140 = por %p138, %p139
      %p141 = scmp.le.s32.totalorder 1, %s18
      %p142 = scmp.lt.s32.totalorder %s18, 3
      %p143 = pnand %p141, %p142
      %p144 = pneg %p143
      // Predicated region
      $region9: #{resnext_forward.23} parent=5 // pred_check
        _
      $region10: #{resnext_forward.23} parent=5 // pred_check_branch
        %146 = sbr.rel (%p143) target = $region12
      $region11: #{resnext_forward.23} parent=5 // pred_region
        %s147 = ssub.s32 %s18, 1
        // Predicated region
        $region13: #{resnext_forward.23} parent=11 // pred_check
          %p148 = pneg %p65
        $region14: #{resnext_forward.23} parent=11 // pred_check_branch
          %150 = sbr.rel (%p148) target = $region16
        $region15: #{resnext_forward.23} parent=11 // pred_region
          %s152 = ssub.s32 9216, 9216
          %153 = vsyncadd [#allocation6], %s152
          %s154 = sshll.u32 [#allocation5], 4
          %s155 = int_to_ptr.vmem [resolvable:$true] %s154
          %160 = dma.hbm_to_vmem [thread:$0]  %s1, 9216, %s155, [#allocation6], 64, 64, 4
        $region16: #{resnext_forward.23} parent=11 // pred_fallthru
          _
        // Predicated region
        $region17: #{resnext_forward.23} parent=11 // pred_check
          %p161 = pneg %p86
        $region18: #{resnext_forward.23} parent=11 // pred_check_branch
          %163 = sbr.rel (%p161) target = $region20
        $region19: #{resnext_forward.23} parent=11 // pred_region
          %s165 = ssub.s32 16, 16
          %166 = vsyncadd [#allocation6], %s165
          %s168 = sshll.u32 [#allocation7], 4
          %s169 = int_to_ptr.vmem [resolvable:$true] %s168
          %171 = dma.hbm_to_vmem [thread:$0]  %s2, 16, %s169, [#allocation6]
        $region20: #{resnext_forward.23} parent=11 // pred_fallthru
          _
        // Predicated region
        $region21: #{resnext_forward.23} parent=11 // pred_check
          %p172 = pneg %p107
        $region22: #{resnext_forward.23} parent=11 // pred_check_branch
          %174 = sbr.rel (%p172) target = $region24
        $region23: #{resnext_forward.23} parent=11 // pred_region
          %s176 = ssub.s32 16, 16
          %177 = vsyncadd [#allocation9], %s176
          %s179 = sshll.u32 [#allocation8], 4
          %s180 = int_to_ptr.vmem [resolvable:$true] %s179
          %182 = dma.hbm_to_vmem [thread:$0]  %s3, 16, %s180, [#allocation9]
        $region24: #{resnext_forward.23} parent=11 // pred_fallthru
          _
      $region12: #{resnext_forward.23} parent=5 // pred_fallthru
        _
      %p183 = scmp.lt.s32.totalorder %s18, 2
      // Predicated region
      $region25: #{resnext_forward.23} parent=5 // pred_check
        %p184 = pneg %p183
      $region26: #{resnext_forward.23} parent=5 // pred_check_branch
        %186 = sbr.rel (%p184) target = $region28
      $region27: #{resnext_forward.23} parent=5 // pred_region
        // Predicated region
        $region29: #{resnext_forward.23} parent=27 // pred_check
          %p187 = pneg %p38
        $region30: #{resnext_forward.23} parent=27 // pred_check_branch
          %189 = sbr.rel (%p187) target = $region32
        $region31: #{resnext_forward.23} parent=27 // pred_region
          %s190 = sand.u32 %s28, 1
          %s191 = scalar_lea.sflag [#allocation3], %s190
          %s192 = sand.u32 %s28, 1
          %s193 = smul.addr %s192, 32
          %s194 = scalar_lea.vmem [#allocation2], %s193
          %s196 = ssub.s32 512, 512
          %197 = vsyncadd %s191, %s196
          %s198 = smul.addr %s18, 8
          %s199 = smul.addr %s198, 64
          %s200 = scalar_lea.hbm %s0, %s199
          %s201 = sshll.u32 %s194, 4
          %s202 = int_to_ptr.vmem [resolvable:$true] %s201
          %207 = dma.hbm_to_vmem [thread:$0]  %s200, 512, %s202, %s191, 64, 64, 4
        $region32: #{resnext_forward.23} parent=27 // pred_fallthru
          _
      $region28: #{resnext_forward.23} parent=5 // pred_fallthru
        _
      %p208 = scmp.le.s32.totalorder 1, %s18
      %p209 = scmp.lt.s32.totalorder %s18, 3
      %p210 = pnand %p208, %p209
      %p211 = pneg %p210
      // Predicated region
      $region33: #{resnext_forward.23} parent=5 // pred_check
        _
      $region34: #{resnext_forward.23} parent=5 // pred_check_branch
        %213 = sbr.rel (%p210) target = $region36
      $region35: #{resnext_forward.23} parent=5 // pred_region
        %s214 = ssub.s32 %s18, 1
        %s215 = sand.u32 %s31, 1
        %s216 = scalar_lea.sflag [#allocation3], %s215
        %s217 = sand.u32 %s31, 1
        %s218 = smul.addr %s217, 32
        %s219 = scalar_lea.vmem [#allocation2], %s218
        // Predicated region
        $region37: #{resnext_forward.23} parent=35 // pred_check
          %p220 = pneg %p44
        $region38: #{resnext_forward.23} parent=35 // pred_check_branch
          %222 = sbr.rel (%p220) target = $region40
        $region39: #{resnext_forward.23} parent=35 // pred_region
          %223 = dma.done %s216, 512
        $region40: #{resnext_forward.23} parent=35 // pred_fallthru
          _
        // Predicated region
        $region41: #{resnext_forward.23} parent=35 // pred_check
          %p224 = pneg %p65
        $region42: #{resnext_forward.23} parent=35 // pred_check_branch
          %226 = sbr.rel (%p224) target = $region44
        $region43: #{resnext_forward.23} parent=35 // pred_region
          %227 = dma.done [#allocation6], 9216
        $region44: #{resnext_forward.23} parent=35 // pred_fallthru
          _
        // Predicated region
        $region45: #{resnext_forward.23} parent=35 // pred_check
          %p228 = pneg %p86
        $region46: #{resnext_forward.23} parent=35 // pred_check_branch
          %230 = sbr.rel (%p228) target = $region48
        $region47: #{resnext_forward.23} parent=35 // pred_region
          %231 = dma.done [#allocation6], 16
        $region48: #{resnext_forward.23} parent=35 // pred_fallthru
          _
        // Predicated region
        $region49: #{resnext_forward.23} parent=35 // pred_check
          %p232 = pneg %p107
        $region50: #{resnext_forward.23} parent=35 // pred_check_branch
          %234 = sbr.rel (%p232) target = $region52
        $region51: #{resnext_forward.23} parent=35 // pred_region
          %235 = dma.done [#allocation9], 16
        $region52: #{resnext_forward.23} parent=35 // pred_fallthru
          _
        %s236 = sand.u32 %s31, 1
        %s237 = scalar_lea.sflag [#allocation3], %s236
        %s238 = sand.u32 %s31, 1
        %s239 = smul.addr %s238, 32
        %s240 = scalar_lea.vmem [#allocation2], %s239
        %p241 = pneg %p44
        %p242 = pneg %p41
        %p243 = pneg %p65
        %p244 = pneg %p62
        %p245 = pneg %p86
        %p246 = pneg %p83
        %p247 = pneg %p107
        %p248 = pneg %p104
        %p249 = pneg %p133
        %p250 = pneg %p130
        %s251 = sand.u32 %s120, 1
        %s252 = scalar_lea.sflag [#allocation4], %s251
        %s253 = sand.u32 %s120, 1
        %s254 = smul.addr %s253, 4
        %s255 = scalar_lea.vmem [#allocation10], %s254
        %v257 = vld [vmem:[%s219] sm:$0x7]
        %v258 = vld [vmem:[#allocation5] sm:$0xf]
        %v259 = vld [vmem:[#allocation5 + $0x4] sm:$0xf]
        %v260 = vld [vmem:[#allocation5 + $0x8] sm:$0xf]
        %v261 = vld [vmem:[#allocation5 + $0xc] sm:$0xf]
        %v262 = vld [vmem:[#allocation5 + $0x10] sm:$0xf]
        %v263 = vld [vmem:[#allocation5 + $0x14] sm:$0xf]
        %v264 = vld [vmem:[#allocation5 + $0x18] sm:$0xf]
        %v265 = vld [vmem:[#allocation5 + $0x1c] sm:$0xf]
        %v266 = vld [vmem:[#allocation5 + $0x20] sm:$0xf]
        %v267 = vld [vmem:[#allocation5 + $0x24] sm:$0xf]
        %v268 = vld [vmem:[#allocation5 + $0x28] sm:$0xf]
        %v269 = vld [vmem:[#allocation5 + $0x2c] sm:$0xf]
        %v270 = vld [vmem:[#allocation5 + $0x30] sm:$0xf]
        %v271 = vld [vmem:[#allocation5 + $0x34] sm:$0xf]
        %v272 = vld [vmem:[#allocation5 + $0x38] sm:$0xf]
        %v273 = vld [vmem:[#allocation5 + $0x3c] sm:$0xf]
        %s274 = scalar_lea.vmem %s219, 8 [#allocation2]
        %v275 = vld [vmem:[%s274] sm:$0x7]
        %s276 = scalar_lea.vmem [#allocation5], 64
        %v277 = vld [vmem:[%s276] sm:$0xf]
        %v278 = vld [vmem:[%s276 + $0x4] sm:$0xf]
        %v279 = vld [vmem:[%s276 + $0x8] sm:$0xf]
        %v280 = vld [vmem:[%s276 + $0xc] sm:$0xf]
        %v281 = vld [vmem:[%s276 + $0x10] sm:$0xf]
        %v282 = vld [vmem:[%s276 + $0x14] sm:$0xf]
        %v283 = vld [vmem:[%s276 + $0x18] sm:$0xf]
        %v284 = vld [vmem:[%s276 + $0x1c] sm:$0xf]
        %v285 = vld [vmem:[%s276 + $0x20] sm:$0xf]
        %v286 = vld [vmem:[%s276 + $0x24] sm:$0xf]
        %v287 = vld [vmem:[%s276 + $0x28] sm:$0xf]
        %v288 = vld [vmem:[%s276 + $0x2c] sm:$0xf]
        %v289 = vld [vmem:[%s276 + $0x30] sm:$0xf]
        %v290 = vld [vmem:[%s276 + $0x34] sm:$0xf]
        %v291 = vld [vmem:[%s276 + $0x38] sm:$0xf]
        %v292 = vld [vmem:[%s276 + $0x3c] sm:$0xf]
        %v309 = vunpack.c.l.b16 %v277
        %v310 = vunpack.c.l.b16 %v278
        %v311 = vunpack.c.l.b16 %v279
        %v312 = vunpack.c.l.b16 %v280
        %v313 = vunpack.c.l.b16 %v281
        %v314 = vunpack.c.l.b16 %v282
        %v315 = vunpack.c.l.b16 %v283
        %v316 = vunpack.c.l.b16 %v284
        %v317 = vunpack.c.l.b16 %v285
        %v318 = vunpack.c.l.b16 %v286
        %v319 = vunpack.c.l.b16 %v287
        %v320 = vunpack.c.l.b16 %v288
        %v321 = vunpack.c.l.b16 %v289
        %v322 = vunpack.c.l.b16 %v290
        %v323 = vunpack.c.l.b16 %v291
        %v324 = vunpack.c.l.b16 %v292
        %v325 = vpack.c.b16 %v310, %v309
        %v326 = vpack.c.b16 %v312, %v311
        %v327 = vpack.c.b16 %v314, %v313
        %v328 = vpack.c.b16 %v316, %v315
        %v329 = vpack.c.b16 %v318, %v317
        %v330 = vpack.c.b16 %v320, %v319
        %v331 = vpack.c.b16 %v322, %v321
        %v332 = vpack.c.b16 %v324, %v323
        %341 = vmatprep.subr.bf16.mxu0 0
        %342 = vmatpush1.bf16.msra.mxu0 %v325
        %343 = vmatprep.subr.bf16.mxu0 0
        %344 = vmatpush1.bf16.msra.mxu0 %v326
        %345 = vmatprep.subr.bf16.mxu0 0
        %346 = vmatpush1.bf16.msra.mxu0 %v327
        %347 = vmatprep.subr.bf16.mxu0 0
        %348 = vmatpush1.bf16.msra.mxu0 %v328
        %349 = vmatprep.subr.bf16.mxu0 0
        %350 = vmatpush1.bf16.msra.mxu0 %v329
        %351 = vmatprep.subr.bf16.mxu0 0
        %352 = vmatpush1.bf16.msra.mxu0 %v330
        %353 = vmatprep.subr.bf16.mxu0 0
        %354 = vmatpush1.bf16.msra.mxu0 %v331
        %355 = vmatprep.subr.bf16.mxu0 0
        %356 = vmatpush1.bf16.msra.mxu0 %v332
        %357 = vmatprep.subr.bf16.mxu0 0
        %358 = vmatpush1.bf16.msra.mxu0 0
        %359 = vmatprep.subr.bf16.mxu0 0
        %360 = vmatpush1.bf16.msra.mxu0 0
        %361 = vmatprep.subr.bf16.mxu0 0
        %362 = vmatpush1.bf16.msra.mxu0 0
        %363 = vmatprep.subr.bf16.mxu0 0
        %364 = vmatpush1.bf16.msra.mxu0 0
        %365 = vmatprep.subr.bf16.mxu0 0
        %366 = vmatpush1.bf16.msra.mxu0 0
        %367 = vmatprep.subr.bf16.mxu0 0
        %368 = vmatpush1.bf16.msra.mxu0 0
        %369 = vmatprep.subr.bf16.mxu0 0
        %370 = vmatpush1.bf16.msra.mxu0 0
        %371 = vmatprep.subr.bf16.mxu0 0
        %372 = vmatpush1.bf16.msra.mxu0 0
        %373 = vmatprep.mubr.bf16.mxu0 0
        %374 = vmatmul.mubr.bf16.gmra.mrb[0].mxu0 %v275
        %v375 = vpop.f32.mrb[0].mxu0
        %v376 = vadd.f32 0.0, %v375
        %v377 = vpop.f32.mrb[0].mxu0
        %v378 = vpop.f32.mrb[0].mxu0
        %v379 = vpop.f32.mrb[0].mxu0
        %380 = vdwg.mxu0
        %v397 = vunpack.c.l.b16 %v258
        %v398 = vunpack.c.l.b16 %v259
        %v399 = vunpack.c.l.b16 %v260
        %v400 = vunpack.c.l.b16 %v261
        %v401 = vunpack.c.l.b16 %v262
        %v402 = vunpack.c.l.b16 %v263
        %v403 = vunpack.c.l.b16 %v264
        %v404 = vunpack.c.l.b16 %v265
        %v405 = vunpack.c.l.b16 %v266
        %v406 = vunpack.c.l.b16 %v267
        %v407 = vunpack.c.l.b16 %v268
        %v408 = vunpack.c.l.b16 %v269
        %v409 = vunpack.c.l.b16 %v270
        %v410 = vunpack.c.l.b16 %v271
        %v411 = vunpack.c.l.b16 %v272
        %v412 = vunpack.c.l.b16 %v273
        %v413 = vpack.c.b16 %v398, %v397
        %v414 = vpack.c.b16 %v400, %v399
        %v415 = vpack.c.b16 %v402, %v401
        %v416 = vpack.c.b16 %v404, %v403
        %v417 = vpack.c.b16 %v406, %v405
        %v418 = vpack.c.b16 %v408, %v407
        %v419 = vpack.c.b16 %v410, %v409
        %v420 = vpack.c.b16 %v412, %v411
        %429 = vmatprep.subr.bf16.mxu0 0
        %430 = vmatpush1.bf16.msra.mxu0 %v413
        %431 = vmatprep.subr.bf16.mxu0 0
        %432 = vmatpush1.bf16.msra.mxu0 %v414
        %433 = vmatprep.subr.bf16.mxu0 0
        %434 = vmatpush1.bf16.msra.mxu0 %v415
        %435 = vmatprep.subr.bf16.mxu0 0
        %436 = vmatpush1.bf16.msra.mxu0 %v416
        %437 = vmatprep.subr.bf16.mxu0 0
        %438 = vmatpush1.bf16.msra.mxu0 %v417
        %439 = vmatprep.subr.bf16.mxu0 0
        %440 = vmatpush1.bf16.msra.mxu0 %v418
        %441 = vmatprep.subr.bf16.mxu0 0
        %442 = vmatpush1.bf16.msra.mxu0 %v419
        %443 = vmatprep.subr.bf16.mxu0 0
        %444 = vmatpush1.bf16.msra.mxu0 %v420
        %445 = vmatprep.subr.bf16.mxu0 0
        %446 = vmatpush1.bf16.msra.mxu0 0
        %447 = vmatprep.subr.bf16.mxu0 0
        %448 = vmatpush1.bf16.msra.mxu0 0
        %449 = vmatprep.subr.bf16.mxu0 0
        %450 = vmatpush1.bf16.msra.mxu0 0
        %451 = vmatprep.subr.bf16.mxu0 0
        %452 = vmatpush1.bf16.msra.mxu0 0
        %453 = vmatprep.subr.bf16.mxu0 0
        %454 = vmatpush1.bf16.msra.mxu0 0
        %455 = vmatprep.subr.bf16.mxu0 0
        %456 = vmatpush1.bf16.msra.mxu0 0
        %457 = vmatprep.subr.bf16.mxu0 0
        %458 = vmatpush1.bf16.msra.mxu0 0
        %459 = vmatprep.subr.bf16.mxu0 0
        %460 = vmatpush1.bf16.msra.mxu0 0
        %461 = vmatprep.mubr.bf16.mxu0 0
        %462 = vmatmul.mubr.bf16.gmra.mrb[0].mxu0 %v257
        %v463 = vpop.f32.mrb[0].mxu0
        %v464 = vadd.f32 %v376, %v463
        %v465 = vpop.f32.mrb[0].mxu0
        %v466 = vpop.f32.mrb[0].mxu0
        %v467 = vpop.f32.mrb[0].mxu0
        %468 = vdwg.mxu0
        %v469 = vld [vmem:[%s219] sm:$0xf]
        %s470 = scalar_lea.vmem [#allocation5], 128
        %v471 = vld [vmem:[%s470] sm:$0xf]
        %v472 = vld [vmem:[%s470 + $0x4] sm:$0xf]
        %v473 = vld [vmem:[%s470 + $0x8] sm:$0xf]
        %v474 = vld [vmem:[%s470 + $0xc] sm:$0xf]
        %v475 = vld [vmem:[%s470 + $0x10] sm:$0xf]
        %v476 = vld [vmem:[%s470 + $0x14] sm:$0xf]
        %v477 = vld [vmem:[%s470 + $0x18] sm:$0xf]
        %v478 = vld [vmem:[%s470 + $0x1c] sm:$0xf]
        %v479 = vld [vmem:[%s470 + $0x20] sm:$0xf]
        %v480 = vld [vmem:[%s470 + $0x24] sm:$0xf]
        %v481 = vld [vmem:[%s470 + $0x28] sm:$0xf]
        %v482 = vld [vmem:[%s470 + $0x2c] sm:$0xf]
        %v483 = vld [vmem:[%s470 + $0x30] sm:$0xf]
        %v484 = vld [vmem:[%s470 + $0x34] sm:$0xf]
        %v485 = vld [vmem:[%s470 + $0x38] sm:$0xf]
        %v486 = vld [vmem:[%s470 + $0x3c] sm:$0xf]
        %v488 = vunpack.c.l.b16 %v469
        %v489 = vpack.c.b16 %v488, %v488
        %v491 = vshrl.u32 %v489, 16
        %v493 = vshll.u32 %v489, 16
        %v495 = vrot.slane %v493, 1
        %v496 = vor.u32 %v491, %v495
        %v514 = vunpack.c.l.b16 %v471
        %v515 = vunpack.c.l.b16 %v472
        %v516 = vunpack.c.l.b16 %v473
        %v517 = vunpack.c.l.b16 %v474
        %v518 = vunpack.c.l.b16 %v475
        %v519 = vunpack.c.l.b16 %v476
        %v520 = vunpack.c.l.b16 %v477
        %v521 = vunpack.c.l.b16 %v478
        %v522 = vunpack.c.l.b16 %v479
        %v523 = vunpack.c.l.b16 %v480
        %v524 = vunpack.c.l.b16 %v481
        %v525 = vunpack.c.l.b16 %v482
        %v526 = vunpack.c.l.b16 %v483
        %v527 = vunpack.c.l.b16 %v484
        %v528 = vunpack.c.l.b16 %v485
        %v529 = vunpack.c.l.b16 %v486
        %v530 = vpack.c.b16 %v515, %v514
        %v531 = vpack.c.b16 %v517, %v516
        %v532 = vpack.c.b16 %v519, %v518
        %v533 = vpack.c.b16 %v521, %v520
        %v534 = vpack.c.b16 %v523, %v522
        %v535 = vpack.c.b16 %v525, %v524
        %v536 = vpack.c.b16 %v527, %v526
        %v537 = vpack.c.b16 %v529, %v528
        %546 = vmatprep.subr.bf16.mxu0 0
        %547 = vmatpush1.bf16.msra.mxu0 %v530
        %548 = vmatprep.subr.bf16.mxu0 0
        %549 = vmatpush1.bf16.msra.mxu0 %v531
        %550 = vmatprep.subr.bf16.mxu0 0
        %551 = vmatpush1.bf16.msra.mxu0 %v532
        %552 = vmatprep.subr.bf16.mxu0 0
        %553 = vmatpush1.bf16.msra.mxu0 %v533
        %554 = vmatprep.subr.bf16.mxu0 0
        %555 = vmatpush1.bf16.msra.mxu0 %v534
        %556 = vmatprep.subr.bf16.mxu0 0
        %557 = vmatpush1.bf16.msra.mxu0 %v535
        %558 = vmatprep.subr.bf16.mxu0 0
        %559 = vmatpush1.bf16.msra.mxu0 %v536
        %560 = vmatprep.subr.bf16.mxu0 0
        %561 = vmatpush1.bf16.msra.mxu0 %v537
        %562 = vmatprep.subr.bf16.mxu0 0
        %563 = vmatpush1.bf16.msra.mxu0 0
        %564 = vmatprep.subr.bf16.mxu0 0
        %565 = vmatpush1.bf16.msra.mxu0 0
        %566 = vmatprep.subr.bf16.mxu0 0
        %567 = vmatpush1.bf16.msra.mxu0 0
        %568 = vmatprep.subr.bf16.mxu0 0
        %569 = vmatpush1.bf16.msra.mxu0 0
        %570 = vmatprep.subr.bf16.mxu0 0
        %571 = vmatpush1.bf16.msra.mxu0 0
        %572 = vmatprep.subr.bf16.mxu0 0
        %573 = vmatpush1.bf16.msra.mxu0 0
        %574 = vmatprep.subr.bf16.mxu0 0
        %575 = vmatpush1.bf16.msra.mxu0 0
        %576 = vmatprep.subr.bf16.mxu0 0
        %577 = vmatpush1.bf16.msra.mxu0 0
        %578 = vmatprep.mubr.bf16.mxu0 0
        %579 = vmatmul.mubr.bf16.gmra.mrb[0].mxu0 %v496
        %v580 = vpop.f32.mrb[0].mxu0
        %v581 = vadd.f32 0.0, %v580
        %v582 = vpop.f32.mrb[0].mxu0
        %v583 = vpop.f32.mrb[0].mxu0
        %v584 = vpop.f32.mrb[0].mxu0
        %585 = vdwg.mxu0
        %v586 = vadd.f32 %v464, %v581
        %s587 = scalar_lea.vmem %s219, 16 [#allocation2]
        %v588 = vld [vmem:[%s587] sm:$0x7]
        %s589 = scalar_lea.vmem [#allocation5], 192
        %v590 = vld [vmem:[%s589] sm:$0xf]
        %v591 = vld [vmem:[%s589 + $0x4] sm:$0xf]
        %v592 = vld [vmem:[%s589 + $0x8] sm:$0xf]
        %v593 = vld [vmem:[%s589 + $0xc] sm:$0xf]
        %v594 = vld [vmem:[%s589 + $0x10] sm:$0xf]
        %v595 = vld [vmem:[%s589 + $0x14] sm:$0xf]
        %v596 = vld [vmem:[%s589 + $0x18] sm:$0xf]
        %v597 = vld [vmem:[%s589 + $0x1c] sm:$0xf]
        %v598 = vld [vmem:[%s589 + $0x20] sm:$0xf]
        %v599 = vld [vmem:[%s589 + $0x24] sm:$0xf]
        %v600 = vld [vmem:[%s589 + $0x28] sm:$0xf]
        %v601 = vld [vmem:[%s589 + $0x2c] sm:$0xf]
        %v602 = vld [vmem:[%s589 + $0x30] sm:$0xf]
        %v603 = vld [vmem:[%s589 + $0x34] sm:$0xf]
        %v604 = vld [vmem:[%s589 + $0x38] sm:$0xf]
        %v605 = vld [vmem:[%s589 + $0x3c] sm:$0xf]
        %v622 = vunpack.c.l.b16 %v590
        %v623 = vunpack.c.l.b16 %v591
        %v624 = vunpack.c.l.b16 %v592
        %v625 = vunpack.c.l.b16 %v593
        %v626 = vunpack.c.l.b16 %v594
        %v627 = vunpack.c.l.b16 %v595
        %v628 = vunpack.c.l.b16 %v596
        %v629 = vunpack.c.l.b16 %v597
        %v630 = vunpack.c.l.b16 %v598
        %v631 = vunpack.c.l.b16 %v599
        %v632 = vunpack.c.l.b16 %v600
        %v633 = vunpack.c.l.b16 %v601
        %v634 = vunpack.c.l.b16 %v602
        %v635 = vunpack.c.l.b16 %v603
        %v636 = vunpack.c.l.b16 %v604
        %v637 = vunpack.c.l.b16 %v605
        %v638 = vpack.c.b16 %v623, %v622
        %v639 = vpack.c.b16 %v625, %v624
        %v640 = vpack.c.b16 %v627, %v626
        %v641 = vpack.c.b16 %v629, %v628
        %v642 = vpack.c.b16 %v631, %v630
        %v643 = vpack.c.b16 %v633, %v632
        %v644 = vpack.c.b16 %v635, %v634
        %v645 = vpack.c.b16 %v637, %v636
        %654 = vmatprep.subr.bf16.mxu0 0
        %655 = vmatpush1.bf16.msra.mxu0 %v638
        %656 = vmatprep.subr.bf16.mxu0 0
        %657 = vmatpush1.bf16.msra.mxu0 %v639
        %658 = vmatprep.subr.bf16.mxu0 0
        %659 = vmatpush1.bf16.msra.mxu0 %v640
        %660 = vmatprep.subr.bf16.mxu0 0
        %661 = vmatpush1.bf16.msra.mxu0 %v641
        %662 = vmatprep.subr.bf16.mxu0 0
        %663 = vmatpush1.bf16.msra.mxu0 %v642
        %664 = vmatprep.subr.bf16.mxu0 0
        %665 = vmatpush1.bf16.msra.mxu0 %v643
        %666 = vmatprep.subr.bf16.mxu0 0
        %667 = vmatpush1.bf16.msra.mxu0 %v644
        %668 = vmatprep.subr.bf16.mxu0 0
        %669 = vmatpush1.bf16.msra.mxu0 %v645
        %670 = vmatprep.subr.bf16.mxu0 0
        %671 = vmatpush1.bf16.msra.mxu0 0
        %672 = vmatprep.subr.bf16.mxu0 0
        %673 = vmatpush1.bf16.msra.mxu0 0
        %674 = vmatprep.subr.bf16.mxu0 0
        %675 = vmatpush1.bf16.msra.mxu0 0
        %676 = vmatprep.subr.bf16.mxu0 0
        %677 = vmatpush1.bf16.msra.mxu0 0
        %678 = vmatprep.subr.bf16.mxu0 0
        %679 = vmatpush1.bf16.msra.mxu0 0
        %680 = vmatprep.subr.bf16.mxu0 0
        %681 = vmatpush1.bf16.msra.mxu0 0
        %682 = vmatprep.subr.bf16.mxu0 0
        %683 = vmatpush1.bf16.msra.mxu0 0
        %684 = vmatprep.subr.bf16.mxu0 0
        %685 = vmatpush1.bf16.msra.mxu0 0
        %686 = vmatprep.mubr.bf16.mxu0 0
        %687 = vmatmul.mubr.bf16.gmra.mrb[0].mxu0 %v588
        %v688 = vpop.f32.mrb[0].mxu0
        %v689 = vadd.f32 0.0, %v688
        %v690 = vpop.f32.mrb[0].mxu0
        %v691 = vpop.f32.mrb[0].mxu0
        %v692 = vpop.f32.mrb[0].mxu0
        %693 = vdwg.mxu0
        %v694 = vadd.f32 %v586, %v689
        %s695 = scalar_lea.vmem %s219, 24 [#allocation2]
        %v696 = vld [vmem:[%s695] sm:$0x7]
        %s697 = scalar_lea.vmem [#allocation5], 256
        %v698 = vld [vmem:[%s697] sm:$0xf]
        %v699 = vld [vmem:[%s697 + $0x4] sm:$0xf]
        %v700 = vld [vmem:[%s697 + $0x8] sm:$0xf]
        %v701 = vld [vmem:[%s697 + $0xc] sm:$0xf]
        %v702 = vld [vmem:[%s697 + $0x10] sm:$0xf]
        %v703 = vld [vmem:[%s697 + $0x14] sm:$0xf]
        %v704 = vld [vmem:[%s697 + $0x18] sm:$0xf]
        %v705 = vld [vmem:[%s697 + $0x1c] sm:$0xf]
        %v706 = vld [vmem:[%s697 + $0x20] sm:$0xf]
        %v707 = vld [vmem:[%s697 + $0x24] sm:$0xf]
        %v708 = vld [vmem:[%s697 + $0x28] sm:$0xf]
        %v709 = vld [vmem:[%s697 + $0x2c] sm:$0xf]
        %v710 = vld [vmem:[%s697 + $0x30] sm:$0xf]
        %v711 = vld [vmem:[%s697 + $0x34] sm:$0xf]
        %v712 = vld [vmem:[%s697 + $0x38] sm:$0xf]
        %v713 = vld [vmem:[%s697 + $0x3c] sm:$0xf]
        %v730 = vunpack.c.l.b16 %v698
        %v731 = vunpack.c.l.b16 %v699
        %v732 = vunpack.c.l.b16 %v700
        %v733 = vunpack.c.l.b16 %v701
        %v734 = vunpack.c.l.b16 %v702
        %v735 = vunpack.c.l.b16 %v703
        %v736 = vunpack.c.l.b16 %v704
        %v737 = vunpack.c.l.b16 %v705
        %v738 = vunpack.c.l.b16 %v706
        %v739 = vunpack.c.l.b16 %v707
        %v740 = vunpack.c.l.b16 %v708
        %v741 = vunpack.c.l.b16 %v709
        %v742 = vunpack.c.l.b16 %v710
        %v743 = vunpack.c.l.b16 %v711
        %v744 = vunpack.c.l.b16 %v712
        %v745 = vunpack.c.l.b16 %v713
        %v746 = vpack.c.b16 %v731, %v730
        %v747 = vpack.c.b16 %v733, %v732
        %v748 = vpack.c.b16 %v735, %v734
        %v749 = vpack.c.b16 %v737, %v736
        %v750 = vpack.c.b16 %v739, %v738
        %v751 = vpack.c.b16 %v741, %v740
        %v752 = vpack.c.b16 %v743, %v742
        %v753 = vpack.c.b16 %v745, %v744
        %762 = vmatprep.subr.bf16.mxu0 0
        %763 = vmatpush1.bf16.msra.mxu0 %v746
        %764 = vmatprep.subr.bf16.mxu0 0
        %765 = vmatpush1.bf16.msra.mxu0 %v747
        %766 = vmatprep.subr.bf16.mxu0 0
        %767 = vmatpush1.bf16.msra.mxu0 %v748
        %768 = vmatprep.subr.bf16.mxu0 0
        %769 = vmatpush1.bf16.msra.mxu0 %v749
        %770 = vmatprep.subr.bf16.mxu0 0
        %771 = vmatpush1.bf16.msra.mxu0 %v750
        %772 = vmatprep.subr.bf16.mxu0 0
        %773 = vmatpush1.bf16.msra.mxu0 %v751
        %774 = vmatprep.subr.bf16.mxu0 0
        %775 = vmatpush1.bf16.msra.mxu0 %v752
        %776 = vmatprep.subr.bf16.mxu0 0
        %777 = vmatpush1.bf16.msra.mxu0 %v753
        %778 = vmatprep.subr.bf16.mxu0 0
        %779 = vmatpush1.bf16.msra.mxu0 0
        %780 = vmatprep.subr.bf16.mxu0 0
        %781 = vmatpush1.bf16.msra.mxu0 0
        %782 = vmatprep.subr.bf16.mxu0 0
        %783 = vmatpush1.bf16.msra.mxu0 0
        %784 = vmatprep.subr.bf16.mxu0 0
        %785 = vmatpush1.bf16.msra.mxu0 0
        %786 = vmatprep.subr.bf16.mxu0 0
        %787 = vmatpush1.bf16.msra.mxu0 0
        %788 = vmatprep.subr.bf16.mxu0 0
        %789 = vmatpush1.bf16.msra.mxu0 0
        %790 = vmatprep.subr.bf16.mxu0 0
        %791 = vmatpush1.bf16.msra.mxu0 0
        %792 = vmatprep.subr.bf16.mxu0 0
        %793 = vmatpush1.bf16.msra.mxu0 0
        %794 = vmatprep.mubr.bf16.mxu0 0
        %795 = vmatmul.mubr.bf16.gmra.mrb[0].mxu0 %v696
        %v796 = vpop.f32.mrb[0].mxu0
        %v797 = vadd.f32 0.0, %v796
        %v798 = vpop.f32.mrb[0].mxu0
        %v799 = vpop.f32.mrb[0].mxu0
        %v800 = vpop.f32.mrb[0].mxu0
        %801 = vdwg.mxu0
        %v802 = vadd.f32 %v694, %v797
        %v803 = vld [vmem:[%s587] sm:$0xf]
        %s804 = scalar_lea.vmem [#allocation5], 320
        %v805 = vld [vmem:[%s804] sm:$0xf]
        %v806 = vld [vmem:[%s804 + $0x4] sm:$0xf]
        %v807 = vld [vmem:[%s804 + $0x8] sm:$0xf]
        %v808 = vld [vmem:[%s804 + $0xc] sm:$0xf]
        %v809 = vld [vmem:[%s804 + $0x10] sm:$0xf]
        %v810 = vld [vmem:[%s804 + $0x14] sm:$0xf]
        %v811 = vld [vmem:[%s804 + $0x18] sm:$0xf]
        %v812 = vld [vmem:[%s804 + $0x1c] sm:$0xf]
        %v813 = vld [vmem:[%s804 + $0x20] sm:$0xf]
        %v814 = vld [vmem:[%s804 + $0x24] sm:$0xf]
        %v815 = vld [vmem:[%s804 + $0x28] sm:$0xf]
        %v816 = vld [vmem:[%s804 + $0x2c] sm:$0xf]
        %v817 = vld [vmem:[%s804 + $0x30] sm:$0xf]
        %v818 = vld [vmem:[%s804 + $0x34] sm:$0xf]
        %v819 = vld [vmem:[%s804 + $0x38] sm:$0xf]
        %v820 = vld [vmem:[%s804 + $0x3c] sm:$0xf]
        %v822 = vunpack.c.l.b16 %v803
        %v823 = vpack.c.b16 %v822, %v822
        %v825 = vshrl.u32 %v823, 16
        %v827 = vshll.u32 %v823, 16
        %v829 = vrot.slane %v827, 1
        %v830 = vor.u32 %v825, %v829
        %v848 = vunpack.c.l.b16 %v805
        %v849 = vunpack.c.l.b16 %v806
        %v850 = vunpack.c.l.b16 %v807
        %v851 = vunpack.c.l.b16 %v808
        %v852 = vunpack.c.l.b16 %v809
        %v853 = vunpack.c.l.b16 %v810
        %v854 = vunpack.c.l.b16 %v811
        %v855 = vunpack.c.l.b16 %v812
        %v856 = vunpack.c.l.b16 %v813
        %v857 = vunpack.c.l.b16 %v814
        %v858 = vunpack.c.l.b16 %v815
        %v859 = vunpack.c.l.b16 %v816
        %v860 = vunpack.c.l.b16 %v817
        %v861 = vunpack.c.l.b16 %v818
        %v862 = vunpack.c.l.b16 %v819
        %v863 = vunpack.c.l.b16 %v820
        %v864 = vpack.c.b16 %v849, %v848
        %v865 = vpack.c.b16 %v851, %v850
        %v866 = vpack.c.b16 %v853, %v852
        %v867 = vpack.c.b16 %v855, %v854
        %v868 = vpack.c.b16 %v857, %v856
        %v869 = vpack.c.b16 %v859, %v858
        %v870 = vpack.c.b16 %v861, %v860
        %v871 = vpack.c.b16 %v863, %v862
        %880 = vmatprep.subr.bf16.mxu0 0
        %881 = vmatpush1.bf16.msra.mxu0 %v864
        %882 = vmatprep.subr.bf16.mxu0 0
        %883 = vmatpush1.bf16.msra.mxu0 %v865
        %884 = vmatprep.subr.bf16.mxu0 0
        %885 = vmatpush1.bf16.msra.mxu0 %v866
        %886 = vmatprep.subr.bf16.mxu0 0
        %887 = vmatpush1.bf16.msra.mxu0 %v867
        %888 = vmatprep.subr.bf16.mxu0 0
        %889 = vmatpush1.bf16.msra.mxu0 %v868
        %890 = vmatprep.subr.bf16.mxu0 0
        %891 = vmatpush1.bf16.msra.mxu0 %v869
        %892 = vmatprep.subr.bf16.mxu0 0
        %893 = vmatpush1.bf16.msra.mxu0 %v870
        %894 = vmatprep.subr.bf16.mxu0 0
        %895 = vmatpush1.bf16.msra.mxu0 %v871
        %896 = vmatprep.subr.bf16.mxu0 0
        %897 = vmatpush1.bf16.msra.mxu0 0
        %898 = vmatprep.subr.bf16.mxu0 0
        %899 = vmatpush1.bf16.msra.mxu0 0
        %900 = vmatprep.subr.bf16.mxu0 0
        %901 = vmatpush1.bf16.msra.mxu0 0
        %902 = vmatprep.subr.bf16.mxu0 0
        %903 = vmatpush1.bf16.msra.mxu0 0
        %904 = vmatprep.subr.bf16.mxu0 0
        %905 = vmatpush1.bf16.msra.mxu0 0
        %906 = vmatprep.subr.bf16.mxu0 0
        %907 = vmatpush1.bf16.msra.mxu0 0
        %908 = vmatprep.subr.bf16.mxu0 0
        %909 = vmatpush1.bf16.msra.mxu0 0
        %910 = vmatprep.subr.bf16.mxu0 0
        %911 = vmatpush1.bf16.msra.mxu0 0
        %912 = vmatprep.mubr.bf16.mxu0 0
        %913 = vmatmul.mubr.bf16.gmra.mrb[0].mxu0 %v830
        %v914 = vpop.f32.mrb[0].mxu0
        %v915 = vadd.f32 0.0, %v914
        %v916 = vpop.f32.mrb[0].mxu0
        %v917 = vpop.f32.mrb[0].mxu0
        %v918 = vpop.f32.mrb[0].mxu0
        %919 = vdwg.mxu0
        %v920 = vadd.f32 %v802, %v915
        %v921 = vld [vmem:[%s219] sm:$0xe]
        %v922 = vld [vmem:[%s219 + $0x4] sm:$0x1]
        %s923 = scalar_lea.vmem [#allocation5], 384
        %v924 = vld [vmem:[%s923] sm:$0xf]
        %v925 = vld [vmem:[%s923 + $0x4] sm:$0xf]
        %v926 = vld [vmem:[%s923 + $0x8] sm:$0xf]
        %v927 = vld [vmem:[%s923 + $0xc] sm:$0xf]
        %v928 = vld [vmem:[%s923 + $0x10] sm:$0xf]
        %v929 = vld [vmem:[%s923 + $0x14] sm:$0xf]
        %v930 = vld [vmem:[%s923 + $0x18] sm:$0xf]
        %v931 = vld [vmem:[%s923 + $0x1c] sm:$0xf]
        %v932 = vld [vmem:[%s923 + $0x20] sm:$0xf]
        %v933 = vld [vmem:[%s923 + $0x24] sm:$0xf]
        %v934 = vld [vmem:[%s923 + $0x28] sm:$0xf]
        %v935 = vld [vmem:[%s923 + $0x2c] sm:$0xf]
        %v936 = vld [vmem:[%s923 + $0x30] sm:$0xf]
        %v937 = vld [vmem:[%s923 + $0x34] sm:$0xf]
        %v938 = vld [vmem:[%s923 + $0x38] sm:$0xf]
        %v939 = vld [vmem:[%s923 + $0x3c] sm:$0xf]
        %v942 = vunpack.c.l.b16 %v921
        %v943 = vunpack.c.l.b16 %v922
        %v944 = vpack.c.b16 %v943, %v942
        %v946 = vshrl.u32 %v944, 16
        %v948 = vrot.slane %v946, 1
        %v949 = vshll.u32 %v944, 16
        %v951 = vrot.slane %v949, 2
        %v952 = vor.u32 %v948, %v951
        %v970 = vunpack.c.l.b16 %v924
        %v971 = vunpack.c.l.b16 %v925
        %v972 = vunpack.c.l.b16 %v926
        %v973 = vunpack.c.l.b16 %v927
        %v974 = vunpack.c.l.b16 %v928
        %v975 = vunpack.c.l.b16 %v929
        %v976 = vunpack.c.l.b16 %v930
        %v977 = vunpack.c.l.b16 %v931
        %v978 = vunpack.c.l.b16 %v932
        %v979 = vunpack.c.l.b16 %v933
        %v980 = vunpack.c.l.b16 %v934
        %v981 = vunpack.c.l.b16 %v935
        %v982 = vunpack.c.l.b16 %v936
        %v983 = vunpack.c.l.b16 %v937
        %v984 = vunpack.c.l.b16 %v938
        %v985 = vunpack.c.l.b16 %v939
        %v986 = vpack.c.b16 %v971, %v970
        %v987 = vpack.c.b16 %v973, %v972
        %v988 = vpack.c.b16 %v975, %v974
        %v989 = vpack.c.b16 %v977, %v976
        %v990 = vpack.c.b16 %v979, %v978
        %v991 = vpack.c.b16 %v981, %v980
        %v992 = vpack.c.b16 %v983, %v982
        %v993 = vpack.c.b16 %v985, %v984
        %1002 = vmatprep.subr.bf16.mxu0 0
        %1003 = vmatpush1.bf16.msra.mxu0 %v986
        %1004 = vmatprep.subr.bf16.mxu0 0
        %1005 = vmatpush1.bf16.msra.mxu0 %v987
        %1006 = vmatprep.subr.bf16.mxu0 0
        %1007 = vmatpush1.bf16.msra.mxu0 %v988
        %1008 = vmatprep.subr.bf16.mxu0 0
        %1009 = vmatpush1.bf16.msra.mxu0 %v989
        %1010 = vmatprep.subr.bf16.mxu0 0
        %1011 = vmatpush1.bf16.msra.mxu0 %v990
        %1012 = vmatprep.subr.bf16.mxu0 0
        %1013 = vmatpush1.bf16.msra.mxu0 %v991
        %1014 = vmatprep.subr.bf16.mxu0 0
        %1015 = vmatpush1.bf16.msra.mxu0 %v992
        %1016 = vmatprep.subr.bf16.mxu0 0
        %1017 = vmatpush1.bf16.msra.mxu0 %v993
        %1018 = vmatprep.subr.bf16.mxu0 0
        %1019 = vmatpush1.bf16.msra.mxu0 0
        %1020 = vmatprep.subr.bf16.mxu0 0
        %1021 = vmatpush1.bf16.msra.mxu0 0
        %1022 = vmatprep.subr.bf16.mxu0 0
        %1023 = vmatpush1.bf16.msra.mxu0 0
        %1024 = vmatprep.subr.bf16.mxu0 0
        %1025 = vmatpush1.bf16.msra.mxu0 0
        %1026 = vmatprep.subr.bf16.mxu0 0
        %1027 = vmatpush1.bf16.msra.mxu0 0
        %1028 = vmatprep.subr.bf16.mxu0 0
        %1029 = vmatpush1.bf16.msra.mxu0 0
        %1030 = vmatprep.subr.bf16.mxu0 0
        %1031 = vmatpush1.bf16.msra.mxu0 0
        %1032 = vmatprep.subr.bf16.mxu0 0
        %1033 = vmatpush1.bf16.msra.mxu0 0
        %1034 = vmatprep.mubr.bf16.mxu0 0
        %1035 = vmatmul.mubr.bf16.gmra.mrb[0].mxu0 %v952
        %v1036 = vpop.f32.mrb[0].mxu0
        %v1037 = vadd.f32 0.0, %v1036
        %v1038 = vpop.f32.mrb[0].mxu0
        %v1039 = vpop.f32.mrb[0].mxu0
        %v1040 = vpop.f32.mrb[0].mxu0
        %1041 = vdwg.mxu0
        %v1042 = vadd.f32 %v920, %v1037
        %v1043 = vld [vmem:[%s274] sm:$0xe]
        %v1044 = vld [vmem:[%s274 + $0x4] sm:$0x1]
        %s1045 = scalar_lea.vmem [#allocation5], 448
        %v1046 = vld [vmem:[%s1045] sm:$0xf]
        %v1047 = vld [vmem:[%s1045 + $0x4] sm:$0xf]
        %v1048 = vld [vmem:[%s1045 + $0x8] sm:$0xf]
        %v1049 = vld [vmem:[%s1045 + $0xc] sm:$0xf]
        %v1050 = vld [vmem:[%s1045 + $0x10] sm:$0xf]
        %v1051 = vld [vmem:[%s1045 + $0x14] sm:$0xf]
        %v1052 = vld [vmem:[%s1045 + $0x18] sm:$0xf]
        %v1053 = vld [vmem:[%s1045 + $0x1c] sm:$0xf]
        %v1054 = vld [vmem:[%s1045 + $0x20] sm:$0xf]
        %v1055 = vld [vmem:[%s1045 + $0x24] sm:$0xf]
        %v1056 = vld [vmem:[%s1045 + $0x28] sm:$0xf]
        %v1057 = vld [vmem:[%s1045 + $0x2c] sm:$0xf]
        %v1058 = vld [vmem:[%s1045 + $0x30] sm:$0xf]
        %v1059 = vld [vmem:[%s1045 + $0x34] sm:$0xf]
        %v1060 = vld [vmem:[%s1045 + $0x38] sm:$0xf]
        %v1061 = vld [vmem:[%s1045 + $0x3c] sm:$0xf]
        %v1064 = vunpack.c.l.b16 %v1043
        %v1065 = vunpack.c.l.b16 %v1044
        %v1066 = vpack.c.b16 %v1065, %v1064
        %v1068 = vshrl.u32 %v1066, 16
        %v1070 = vrot.slane %v1068, 1
        %v1071 = vshll.u32 %v1066, 16
        %v1073 = vrot.slane %v1071, 2
        %v1074 = vor.u32 %v1070, %v1073
        %v1092 = vunpack.c.l.b16 %v1046
        %v1093 = vunpack.c.l.b16 %v1047
        %v1094 = vunpack.c.l.b16 %v1048
        %v1095 = vunpack.c.l.b16 %v1049
        %v1096 = vunpack.c.l.b16 %v1050
        %v1097 = vunpack.c.l.b16 %v1051
        %v1098 = vunpack.c.l.b16 %v1052
        %v1099 = vunpack.c.l.b16 %v1053
        %v1100 = vunpack.c.l.b16 %v1054
        %v1101 = vunpack.c.l.b16 %v1055
        %v1102 = vunpack.c.l.b16 %v1056
        %v1103 = vunpack.c.l.b16 %v1057
        %v1104 = vunpack.c.l.b16 %v1058
        %v1105 = vunpack.c.l.b16 %v1059
        %v1106 = vunpack.c.l.b16 %v1060
        %v1107 = vunpack.c.l.b16 %v1061
        %v1108 = vpack.c.b16 %v1093, %v1092
        %v1109 = vpack.c.b16 %v1095, %v1094
        %v1110 = vpack.c.b16 %v1097, %v1096
        %v1111 = vpack.c.b16 %v1099, %v1098
        %v1112 = vpack.c.b16 %v1101, %v1100
        %v1113 = vpack.c.b16 %v1103, %v1102
        %v1114 = vpack.c.b16 %v1105, %v1104
        %v1115 = vpack.c.b16 %v1107, %v1106
        %1124 = vmatprep.subr.bf16.mxu0 0
        %1125 = vmatpush1.bf16.msra.mxu0 %v1108
        %1126 = vmatprep.subr.bf16.mxu0 0
        %1127 = vmatpush1.bf16.msra.mxu0 %v1109
        %1128 = vmatprep.subr.bf16.mxu0 0
        %1129 = vmatpush1.bf16.msra.mxu0 %v1110
        %1130 = vmatprep.subr.bf16.mxu0 0
        %1131 = vmatpush1.bf16.msra.mxu0 %v1111
        %1132 = vmatprep.subr.bf16.mxu0 0
        %1133 = vmatpush1.bf16.msra.mxu0 %v1112
        %1134 = vmatprep.subr.bf16.mxu0 0
        %1135 = vmatpush1.bf16.msra.mxu0 %v1113
        %1136 = vmatprep.subr.bf16.mxu0 0
        %1137 = vmatpush1.bf16.msra.mxu0 %v1114
        %1138 = vmatprep.subr.bf16.mxu0 0
        %1139 = vmatpush1.bf16.msra.mxu0 %v1115
        %1140 = vmatprep.subr.bf16.mxu0 0
        %1141 = vmatpush1.bf16.msra.mxu0 0
        %1142 = vmatprep.subr.bf16.mxu0 0
        %1143 = vmatpush1.bf16.msra.mxu0 0
        %1144 = vmatprep.subr.bf16.mxu0 0
        %1145 = vmatpush1.bf16.msra.mxu0 0
        %1146 = vmatprep.subr.bf16.mxu0 0
        %1147 = vmatpush1.bf16.msra.mxu0 0
        %1148 = vmatprep.subr.bf16.mxu0 0
        %1149 = vmatpush1.bf16.msra.mxu0 0
        %1150 = vmatprep.subr.bf16.mxu0 0
        %1151 = vmatpush1.bf16.msra.mxu0 0
        %1152 = vmatprep.subr.bf16.mxu0 0
        %1153 = vmatpush1.bf16.msra.mxu0 0
        %1154 = vmatprep.subr.bf16.mxu0 0
        %1155 = vmatpush1.bf16.msra.mxu0 0
        %1156 = vmatprep.mubr.bf16.mxu0 0
        %1157 = vmatmul.mubr.bf16.gmra.mrb[0].mxu0 %v1074
        %v1158 = vpop.f32.mrb[0].mxu0
        %v1159 = vadd.f32 0.0, %v1158
        %v1160 = vpop.f32.mrb[0].mxu0
        %v1161 = vpop.f32.mrb[0].mxu0
        %v1162 = vpop.f32.mrb[0].mxu0
        %1163 = vdwg.mxu0
        %v1164 = vadd.f32 %v1042, %v1159
        %v1165 = vld [vmem:[%s219] sm:$0xc]
        %s1166 = scalar_lea.vmem [#allocation5], 512
        %v1167 = vld [vmem:[%s1166] sm:$0xf]
        %v1168 = vld [vmem:[%s1166 + $0x4] sm:$0xf]
        %v1169 = vld [vmem:[%s1166 + $0x8] sm:$0xf]
        %v1170 = vld [vmem:[%s1166 + $0xc] sm:$0xf]
        %v1171 = vld [vmem:[%s1166 + $0x10] sm:$0xf]
        %v1172 = vld [vmem:[%s1166 + $0x14] sm:$0xf]
        %v1173 = vld [vmem:[%s1166 + $0x18] sm:$0xf]
        %v1174 = vld [vmem:[%s1166 + $0x1c] sm:$0xf]
        %v1175 = vld [vmem:[%s1166 + $0x20] sm:$0xf]
        %v1176 = vld [vmem:[%s1166 + $0x24] sm:$0xf]
        %v1177 = vld [vmem:[%s1166 + $0x28] sm:$0xf]
        %v1178 = vld [vmem:[%s1166 + $0x2c] sm:$0xf]
        %v1179 = vld [vmem:[%s1166 + $0x30] sm:$0xf]
        %v1180 = vld [vmem:[%s1166 + $0x34] sm:$0xf]
        %v1181 = vld [vmem:[%s1166 + $0x38] sm:$0xf]
        %v1182 = vld [vmem:[%s1166 + $0x3c] sm:$0xf]
        %v1184 = vunpack.c.l.b16 %v1165
        %v1185 = vpack.c.b16 %v943, %v1184
        %v1186 = vrot.slane %v1185, 2
        %v1204 = vunpack.c.l.b16 %v1167
        %v1205 = vunpack.c.l.b16 %v1168
        %v1206 = vunpack.c.l.b16 %v1169
        %v1207 = vunpack.c.l.b16 %v1170
        %v1208 = vunpack.c.l.b16 %v1171
        %v1209 = vunpack.c.l.b16 %v1172
        %v1210 = vunpack.c.l.b16 %v1173
        %v1211 = vunpack.c.l.b16 %v1174
        %v1212 = vunpack.c.l.b16 %v1175
        %v1213 = vunpack.c.l.b16 %v1176
        %v1214 = vunpack.c.l.b16 %v1177
        %v1215 = vunpack.c.l.b16 %v1178
        %v1216 = vunpack.c.l.b16 %v1179
        %v1217 = vunpack.c.l.b16 %v1180
        %v1218 = vunpack.c.l.b16 %v1181
        %v1219 = vunpack.c.l.b16 %v1182
        %v1220 = vpack.c.b16 %v1205, %v1204
        %v1221 = vpack.c.b16 %v1207, %v1206
        %v1222 = vpack.c.b16 %v1209, %v1208
        %v1223 = vpack.c.b16 %v1211, %v1210
        %v1224 = vpack.c.b16 %v1213, %v1212
        %v1225 = vpack.c.b16 %v1215, %v1214
        %v1226 = vpack.c.b16 %v1217, %v1216
        %v1227 = vpack.c.b16 %v1219, %v1218
        %1236 = vmatprep.subr.bf16.mxu0 0
        %1237 = vmatpush1.bf16.msra.mxu0 %v1220
        %1238 = vmatprep.subr.bf16.mxu0 0
        %1239 = vmatpush1.bf16.msra.mxu0 %v1221
        %1240 = vmatprep.subr.bf16.mxu0 0
        %1241 = vmatpush1.bf16.msra.mxu0 %v1222
        %1242 = vmatprep.subr.bf16.mxu0 0
        %1243 = vmatpush1.bf16.msra.mxu0 %v1223
        %1244 = vmatprep.subr.bf16.mxu0 0
        %1245 = vmatpush1.bf16.msra.mxu0 %v1224
        %1246 = vmatprep.subr.bf16.mxu0 0
        %1247 = vmatpush1.bf16.msra.mxu0 %v1225
        %1248 = vmatprep.subr.bf16.mxu0 0
        %1249 = vmatpush1.bf16.msra.mxu0 %v1226
        %1250 = vmatprep.subr.bf16.mxu0 0
        %1251 = vmatpush1.bf16.msra.mxu0 %v1227
        %1252 = vmatprep.subr.bf16.mxu0 0
        %1253 = vmatpush1.bf16.msra.mxu0 0
        %1254 = vmatprep.subr.bf16.mxu0 0
        %1255 = vmatpush1.bf16.msra.mxu0 0
        %1256 = vmatprep.subr.bf16.mxu0 0
        %1257 = vmatpush1.bf16.msra.mxu0 0
        %1258 = vmatprep.subr.bf16.mxu0 0
        %1259 = vmatpush1.bf16.msra.mxu0 0
        %1260 = vmatprep.subr.bf16.mxu0 0
        %1261 = vmatpush1.bf16.msra.mxu0 0
        %1262 = vmatprep.subr.bf16.mxu0 0
        %1263 = vmatpush1.bf16.msra.mxu0 0
        %1264 = vmatprep.subr.bf16.mxu0 0
        %1265 = vmatpush1.bf16.msra.mxu0 0
        %1266 = vmatprep.subr.bf16.mxu0 0
        %1267 = vmatpush1.bf16.msra.mxu0 0
        %1268 = vmatprep.mubr.bf16.mxu0 0
        %1269 = vmatmul.mubr.bf16.gmra.mrb[0].mxu0 %v1186
        %v1270 = vpop.f32.mrb[0].mxu0
        %v1271 = vadd.f32 0.0, %v1270
        %v1272 = vpop.f32.mrb[0].mxu0
        %v1273 = vpop.f32.mrb[0].mxu0
        %v1274 = vpop.f32.mrb[0].mxu0
        %1275 = vdwg.mxu0
        %v1276 = vadd.f32 %v1164, %v1271
        %v1277 = vld [vmem:[#allocation7] sm:$0x1]
        %v1279 = vlaneseq
        %v1280 = vshrl.u32 %v1279, 7
        %v1281 = vsub.s32 0, %v1280
        %v1282 = vrot.slane %v1277, %v1281
        %v1284 = vmul.f32 %v1276, %v1282
        %v1285 = vld [vmem:[#allocation8] sm:$0x1]
        %v1287 = vlaneseq
        %v1288 = vshrl.u32 %v1287, 7
        %v1289 = vsub.s32 0, %v1288
        %v1290 = vrot.slane %v1285, %v1289
        %v1292 = vadd.f32 %v1284, %v1290
        %v1293 = vmax.f32 %v1292, 0.0
        %v1294 = vpack.c.bf16 %v1293, %v1293
        %1295 = vst [vmem:[%s255] sm:$0x7] %v1294
        %s1296 = sand.u32 %s120, 1
        %s1297 = scalar_lea.sflag [#allocation4], %s1296
        %s1298 = sand.u32 %s120, 1
        %s1299 = smul.addr %s1298, 4
        %s1300 = scalar_lea.vmem [#allocation10], %s1299
        // Predicated region
        $region53: #{resnext_forward.23} parent=35 // pred_check
          %p1301 = pneg %p130
        $region54: #{resnext_forward.23} parent=35 // pred_check_branch
          %1303 = sbr.rel (%p1301) target = $region56
        $region55: #{resnext_forward.23} parent=35 // pred_region
          %s1305 = ssub.s32 64, 64
          %1306 = vsyncadd %s1297, %s1305
          %s1307 = smul.addr %s23, 64
          %s1308 = scalar_lea.hbm %s4, %s1307
          %s1310 = sshll.u32 %s1300, 4
          %s1311 = int_to_ptr.vmem [resolvable:$true] %s1310
          %1313 = dma.vmem_to_hbm [thread:$0]  %s1311, 64, %s1308, %s1297
        $region56: #{resnext_forward.23} parent=35 // pred_fallthru
          _
      $region36: #{resnext_forward.23} parent=5 // pred_fallthru
        _
      %p1314 = scmp.le.s32.totalorder 2, %s18
      // Predicated region
      $region57: #{resnext_forward.23} parent=5 // pred_check
        %p1315 = pneg %p1314
      $region58: #{resnext_forward.23} parent=5 // pred_check_branch
        %1317 = sbr.rel (%p1315) target = $region60
      $region59: #{resnext_forward.23} parent=5 // pred_region
        %s1318 = ssub.s32 %s18, 2
        // Predicated region
        $region61: #{resnext_forward.23} parent=59 // pred_check
          %p1319 = pneg %p136
        $region62: #{resnext_forward.23} parent=59 // pred_check_branch
          %1321 = sbr.rel (%p1319) target = $region64
        $region63: #{resnext_forward.23} parent=59 // pred_region
          %s1322 = sand.u32 %s121, 1
          %s1323 = scalar_lea.sflag [#allocation4], %s1322
          %s1324 = sand.u32 %s121, 1
          %s1325 = smul.addr %s1324, 4
          %s1326 = scalar_lea.vmem [#allocation10], %s1325
          %1327 = dma.done %s1323, 64
        $region64: #{resnext_forward.23} parent=59 // pred_fallthru
          _
      $region60: #{resnext_forward.23} parent=5 // pred_fallthru
        _
    $region6: #{resnext_forward.23} parent=1 // loop_footer
      %s22 = sadd.s32 1, %s18
    $region7: #{resnext_forward.23} parent=1 // loop_footer_branch
      %17 = sbr.rel target = $region3
    $region8: #{resnext_forward.23} parent=1 // loop_exit
      _
    %1328 = vsyncpa [#allocation3], 1
    %s1329 = scalar_lea.sflag [#allocation3], 1
    %1330 = vsyncpa %s1329, 1
    %1331 = vsyncpa [#allocation6], 1
    %1332 = vsyncpa [#allocation9], 1
    %1333 = vsyncpa [#allocation4], 1
    %s1334 = scalar_lea.sflag [#allocation4], 1
    %1335 = vsyncpa %s1334, 1

// kernel: resnext_forward.25
$region0: #{resnext_forward.25}
  #allocation0 [shape = 'u32[]', space=smem, size = 0x4, offset = 0x4, fixed_abs, tag = 'smem constant byte address 0x4 - core index']
  #allocation1 [shape = 'u32[144,128]{1,0:T(1,128)}', space=vmem, size = 0x12000, scoped, tag = 'internal scratch']
  #allocation2 [shape = 'f32[2,128]{1,0:T(2,128)}', space=vmem, size = 0x400, scoped, tag = 'scratch operand']
  %s0 = inlined_call_operand.hbm [shape: bf16[2,4,128], index: 0, kind: input, shape index: {}]
  %s1 = inlined_call_operand.hbm [shape: bf16[128,128], index: 1, kind: input, shape index: {}]
  %s2 = inlined_call_operand.hbm [shape: f32[1,128], index: 2, kind: input, shape index: {}]
  %s3 = inlined_call_operand.hbm [shape: f32[2,128], index: 3, kind: output, shape index: {}]
  %s4 = sld [smem:[#allocation0]]
  $region42: #{resnext_forward.25} parent=0
    _
  %s6 = ssub.s32 1, %s4
  %s7 = scalar_select 0, %s6, %s4
  $region1: #{resnext_forward.25} parent=0
    #allocation3 [shape = 'u8[2048]{0}', space=vmem, size = 0x800, scoped, tag = 'input window, operand 0, single buffered']
    #allocation4 [shape = 's32[1]{0}', space=sflag, size = 0x4, scoped, tag = 'scoped memory for resnext_forward.25']
    #allocation5 [shape = 's32[1]{0}', space=sflag, size = 0x4, scoped, tag = 'scoped memory for resnext_forward.25']
    #allocation6 [shape = 'u8[32768]{0}', space=vmem, size = 0x8000, scoped, tag = 'input window, operand 1, single buffered']
    #allocation7 [shape = 's32[1]{0}', space=sflag, size = 0x4, scoped, tag = 'scoped memory for resnext_forward.25']
    #allocation8 [shape = 'u8[512]{0}', space=vmem, size = 0x400, scoped, tag = 'input window, operand 2, single buffered']
    #allocation9 [shape = 'u8[1024]{0}', space=vmem, size = 0x400, scoped, tag = 'output window, operand 0, single buffered']
    %8 = vsyncpa [#allocation4], 0
    %9 = vsyncpa [#allocation7], 0
    %10 = vsyncpa [#allocation5], 0
    // Predicated region
    $region2: #{resnext_forward.25} parent=1 // pred_check
      _
    $region3: #{resnext_forward.25} parent=1 // pred_check_branch
      %12 = sbr.rel (0) target = $region5
    $region4: #{resnext_forward.25} parent=1 // pred_region
      %s14 = ssub.s32 64, 64
      %15 = vsyncadd [#allocation4], %s14
      %s16 = sshll.u32 [#allocation3], 4
      %s17 = int_to_ptr.vmem [resolvable:$true] %s16
      %22 = dma.hbm_to_vmem [thread:$0]  %s0, 64, %s17, [#allocation4], 32, 32, 2
    $region5: #{resnext_forward.25} parent=1 // pred_fallthru
      _
    // Predicated region
    $region6: #{resnext_forward.25} parent=1 // pred_check
      _
    $region7: #{resnext_forward.25} parent=1 // pred_check_branch
      %24 = sbr.rel (0) target = $region9
    $region8: #{resnext_forward.25} parent=1 // pred_region
      %s26 = ssub.s32 1024, 1024
      %27 = vsyncadd [#allocation7], %s26
      %s28 = sshll.u32 [#allocation6], 4
      %s29 = int_to_ptr.vmem [resolvable:$true] %s28
      %34 = dma.hbm_to_vmem [thread:$0]  %s1, 1024, %s29, [#allocation7], 64, 64, 4
    $region9: #{resnext_forward.25} parent=1 // pred_fallthru
      _
    // Predicated region
    $region10: #{resnext_forward.25} parent=1 // pred_check
      _
    $region11: #{resnext_forward.25} parent=1 // pred_check_branch
      %36 = sbr.rel (0) target = $region13
    $region12: #{resnext_forward.25} parent=1 // pred_region
      %s38 = ssub.s32 16, 16
      %39 = vsyncadd [#allocation7], %s38
      %s41 = sshll.u32 [#allocation8], 4
      %s42 = int_to_ptr.vmem [resolvable:$true] %s41
      %44 = dma.hbm_to_vmem [thread:$0]  %s2, 16, %s42, [#allocation7]
    $region13: #{resnext_forward.25} parent=1 // pred_fallthru
      _
    // Predicated region
    $region14: #{resnext_forward.25} parent=1 // pred_check
      _
    $region15: #{resnext_forward.25} parent=1 // pred_check_branch
      %46 = sbr.rel (0) target = $region17
    $region16: #{resnext_forward.25} parent=1 // pred_region
      %47 = dma.done [#allocation4], 64
    $region17: #{resnext_forward.25} parent=1 // pred_fallthru
      _
    // Predicated region
    $region18: #{resnext_forward.25} parent=1 // pred_check
      _
    $region19: #{resnext_forward.25} parent=1 // pred_check_branch
      %49 = sbr.rel (0) target = $region21
    $region20: #{resnext_forward.25} parent=1 // pred_region
      %50 = dma.done [#allocation7], 1024
    $region21: #{resnext_forward.25} parent=1 // pred_fallthru
      _
    // Predicated region
    $region22: #{resnext_forward.25} parent=1 // pred_check
      _
    $region23: #{resnext_forward.25} parent=1 // pred_check_branch
      %52 = sbr.rel (0) target = $region25
    $region24: #{resnext_forward.25} parent=1 // pred_region
      %53 = dma.done [#allocation7], 16
    $region25: #{resnext_forward.25} parent=1 // pred_fallthru
      _
    %p55 = scmp.eq.s32.totalorder 0, 0
    // Predicated region
    $region26: #{resnext_forward.25} parent=1 // pred_check
      %p56 = pneg %p55
    $region27: #{resnext_forward.25} parent=1 // pred_check_branch
      %58 = sbr.rel (%p56) target = $region29
    $region28: #{resnext_forward.25} parent=1 // pred_region
      %59 = vst [vmem:[#allocation2] sm:$0x3] 0.0
    $region29: #{resnext_forward.25} parent=1 // pred_fallthru
      _
    %v60 = vld [vmem:[#allocation2] sm:$0x3]
    %v61 = vld [vmem:[#allocation3] sm:$0x3]
    %v62 = vld [vmem:[#allocation3 + $0x2] sm:$0x3]
    %v63 = vunpack.c.l.bf16 %v61
    %v64 = vunpack.c.l.bf16 %v62
    %vm65 = vcmask 1043456
    %v66 = vsel %vm65, %v63, 0.0
    %v67 = vrot.slane %v66, 4
    %v68 = vadd.f32 %v66, %v67
    %v69 = vrot.slane %v68, 2
    %v70 = vadd.f32 %v68, %v69
    %v71 = vrot.slane %v70, 1
    %v72 = vadd.f32 %v70, %v71
    %v73 = vsel %vm65, %v64, 0.0
    %v74 = vrot.slane %v73, 4
    %v75 = vadd.f32 %v73, %v74
    %v76 = vrot.slane %v75, 2
    %v77 = vadd.f32 %v75, %v76
    %v78 = vrot.slane %v77, 1
    %v79 = vadd.f32 %v77, %v78
    %vm82 = vcmask 1041409
    %v83 = vsel %vm82, %v79, %v72
    %v85 = vadd.f32 %v60, %v83
    %86 = vst [vmem:[#allocation2] sm:$0x3] %v85
    // Predicated region
    $region30: #{resnext_forward.25} parent=1 // pred_check
      %p87 = pneg %p55
    $region31: #{resnext_forward.25} parent=1 // pred_check_branch
      %89 = sbr.rel (%p87) target = $region33
    $region32: #{resnext_forward.25} parent=1 // pred_region
      %v90 = vld [vmem:[#allocation2] sm:$0x3]
      %v91 = vmul.f32 %v90, 0.25
      %v92 = vpack.c.bf16 %v91, %v91
      %v93 = vld [vmem:[#allocation6] sm:$0xf]
      %v94 = vld [vmem:[#allocation6 + $0x4] sm:$0xf]
      %v95 = vld [vmem:[#allocation6 + $0x8] sm:$0xf]
      %v96 = vld [vmem:[#allocation6 + $0xc] sm:$0xf]
      %v97 = vld [vmem:[#allocation6 + $0x10] sm:$0xf]
      %v98 = vld [vmem:[#allocation6 + $0x14] sm:$0xf]
      %v99 = vld [vmem:[#allocation6 + $0x18] sm:$0xf]
      %v100 = vld [vmem:[#allocation6 + $0x1c] sm:$0xf]
      %v101 = vld [vmem:[#allocation6 + $0x20] sm:$0xf]
      %v102 = vld [vmem:[#allocation6 + $0x24] sm:$0xf]
      %v103 = vld [vmem:[#allocation6 + $0x28] sm:$0xf]
      %v104 = vld [vmem:[#allocation6 + $0x2c] sm:$0xf]
      %v105 = vld [vmem:[#allocation6 + $0x30] sm:$0xf]
      %v106 = vld [vmem:[#allocation6 + $0x34] sm:$0xf]
      %v107 = vld [vmem:[#allocation6 + $0x38] sm:$0xf]
      %v108 = vld [vmem:[#allocation6 + $0x3c] sm:$0xf]
      %v109 = vld [vmem:[#allocation8] sm:$0x1]
      %v111 = vlaneseq
      %v112 = vshrl.u32 %v111, 7
      %v113 = vsub.s32 0, %v112
      %v114 = vrot.slane %v109, %v113
      %v132 = vunpack.c.l.b16 %v93
      %v133 = vunpack.c.l.b16 %v94
      %v134 = vunpack.c.l.b16 %v95
      %v135 = vunpack.c.l.b16 %v96
      %v136 = vunpack.c.l.b16 %v97
      %v137 = vunpack.c.l.b16 %v98
      %v138 = vunpack.c.l.b16 %v99
      %v139 = vunpack.c.l.b16 %v100
      %v140 = vunpack.c.l.b16 %v101
      %v141 = vunpack.c.l.b16 %v102
      %v142 = vunpack.c.l.b16 %v103
      %v143 = vunpack.c.l.b16 %v104
      %v144 = vunpack.c.l.b16 %v105
      %v145 = vunpack.c.l.b16 %v106
      %v146 = vunpack.c.l.b16 %v107
      %v147 = vunpack.c.l.b16 %v108
      %v148 = vpack.c.b16 %v133, %v132
      %v149 = vpack.c.b16 %v135, %v134
      %v150 = vpack.c.b16 %v137, %v136
      %v151 = vpack.c.b16 %v139, %v138
      %v152 = vpack.c.b16 %v141, %v140
      %v153 = vpack.c.b16 %v143, %v142
      %v154 = vpack.c.b16 %v145, %v144
      %v155 = vpack.c.b16 %v147, %v146
      %164 = vmatprep.subr.bf16.mxu0 0
      %165 = vmatpush1.bf16.msra.mxu0 %v148
      %166 = vmatprep.subr.bf16.mxu0 0
      %167 = vmatpush1.bf16.msra.mxu0 %v149
      %168 = vmatprep.subr.bf16.mxu0 0
      %169 = vmatpush1.bf16.msra.mxu0 %v150
      %170 = vmatprep.subr.bf16.mxu0 0
      %171 = vmatpush1.bf16.msra.mxu0 %v151
      %172 = vmatprep.subr.bf16.mxu0 0
      %173 = vmatpush1.bf16.msra.mxu0 %v152
      %174 = vmatprep.subr.bf16.mxu0 0
      %175 = vmatpush1.bf16.msra.mxu0 %v153
      %176 = vmatprep.subr.bf16.mxu0 0
      %177 = vmatpush1.bf16.msra.mxu0 %v154
      %178 = vmatprep.subr.bf16.mxu0 0
      %179 = vmatpush1.bf16.msra.mxu0 %v155
      %180 = vmatprep.subr.bf16.mxu0 0
      %181 = vmatpush1.bf16.msra.mxu0 0
      %182 = vmatprep.subr.bf16.mxu0 0
      %183 = vmatpush1.bf16.msra.mxu0 0
      %184 = vmatprep.subr.bf16.mxu0 0
      %185 = vmatpush1.bf16.msra.mxu0 0
      %186 = vmatprep.subr.bf16.mxu0 0
      %187 = vmatpush1.bf16.msra.mxu0 0
      %188 = vmatprep.subr.bf16.mxu0 0
      %189 = vmatpush1.bf16.msra.mxu0 0
      %190 = vmatprep.subr.bf16.mxu0 0
      %191 = vmatpush1.bf16.msra.mxu0 0
      %192 = vmatprep.subr.bf16.mxu0 0
      %193 = vmatpush1.bf16.msra.mxu0 0
      %194 = vmatprep.subr.bf16.mxu0 0
      %195 = vmatpush1.bf16.msra.mxu0 0
      %196 = vmatprep.mubr.bf16.mxu0 0
      %197 = vmatmul.mubr.bf16.gmra.mrb[0].mxu0 %v92
      %v198 = vpop.f32.mrb[0].mxu0
      %v199 = vadd.f32 %v114, %v198
      %v200 = vpop.f32.mrb[0].mxu0
      %v201 = vpop.f32.mrb[0].mxu0
      %v202 = vpop.f32.mrb[0].mxu0
      %203 = vdwg.mxu0
      %204 = vst [vmem:[#allocation9] sm:$0x3] %v199
    $region33: #{resnext_forward.25} parent=1 // pred_fallthru
      _
    // Predicated region
    $region34: #{resnext_forward.25} parent=1 // pred_check
      _
    $region35: #{resnext_forward.25} parent=1 // pred_check_branch
      %206 = sbr.rel (0) target = $region37
    $region36: #{resnext_forward.25} parent=1 // pred_region
      %s208 = ssub.s32 32, 32
      %209 = vsyncadd [#allocation5], %s208
      %s211 = sshll.u32 [#allocation9], 4
      %s212 = int_to_ptr.vmem [resolvable:$true] %s211
      %214 = dma.vmem_to_hbm [thread:$0]  %s212, 32, %s3, [#allocation5]
    $region37: #{resnext_forward.25} parent=1 // pred_fallthru
      _
    // Predicated region
    $region38: #{resnext_forward.25} parent=1 // pred_check
      _
    $region39: #{resnext_forward.25} parent=1 // pred_check_branch
      %216 = sbr.rel (0) target = $region41
    $region40: #{resnext_forward.25} parent=1 // pred_region
      %217 = dma.done [#allocation5], 32
    $region41: #{resnext_forward.25} parent=1 // pred_fallthru
      _
    %218 = vsyncpa [#allocation4], 1
    %219 = vsyncpa [#allocation7], 1
    %220 = vsyncpa [#allocation5], 1

</llo_original>
